<compile_context>
chip_gen: v7x
topology: tpu7x:2x2x1
jax: 0.10.0
libtpu: 0.0.40
codegen_flags: <defaults>
</compile_context>

<pallas_src>
import jax
import jax.numpy as jnp
import numpy as np
from jax import lax
from jax.experimental import pallas as pl
from jax.experimental.pallas import tpu as pltpu

KS = 5                      # conv kernel size
PAD = 2
H0 = W0 = 28                # input spatial
C1 = 16                     # conv1 out channels
C2 = 32                     # conv2 out channels
HP1 = H0 + 2 * PAD          # 32   padded rows/cols for conv1
WP1 = W0 + 2 * PAD          # 32
HO1 = H0 // 2               # 14   spatial after pool1
HP2 = HO1 + 2 * PAD         # 18   padded rows/cols for conv2
WP2 = HO1 + 2 * PAD         # 18
HO2 = HO1 // 2              # 7    spatial after pool2
L1 = W0 * C1                # 448  conv1 out lanes   (w*16 + co)
LP2 = WP2 * C1              # 288  conv2 in  lanes   (wp*16 + ci)
L2 = HO1 * C2               # 448  conv2 out lanes   (w*32 + co)
LQ1 = HO1 * C1              # 224  pooled conv1 lanes (wo*16 + co)
LQ2 = HO2 * C2              # 224  pooled conv2 lanes (wo*32 + co)
FEAT = HO2 * HO2 * C2       # 1568
NOUT = 10


def cnn_kernel(x_ref, t1_ref, b1_ref, t2_ref, b2_ref, wf_ref, bf_ref,
               o_ref, xp1_ref, xp2_ref):
    nb = x_ref.shape[0]                 # images in this block
    r1 = nb * HP1                       # conv1 matmul rows
    r2 = nb * HP2                       # conv2 matmul rows

    # Zero the padded scratches (pad borders + tail rows).  With the compact
    # layouts this is ~0.35 MiB (~90 vreg stores) per step, and doing it every
    # step keeps the kernel correct when the parallel grid is core-sharded.
    xp1_ref[...] = jnp.zeros_like(xp1_ref)
    xp2_ref[...] = jnp.zeros_like(xp2_ref)

    # ---- conv1 -------------------------------------------------------------
    # Scatter the (nb, 28, 28) input into the scratch interior
    # (rows = b*32 + hp, lanes = wp).  C == 1 is squeezed so W is the lane axis.
    for b in range(nb):
        xp1_ref[pl.ds(b * HP1 + PAD, H0), pl.ds(PAD, W0)] = x_ref[b]

    # 5 row-tap matmuls against host-built Toeplitz weights:
    #   y1[b*32+h, w*16+co] = sum_kh sum_wp xp1[b*32+h+kh, wp] * T1[kh][wp, w*16+co]
    y1 = None
    for kh in range(KS):
        lhs = xp1_ref[pl.ds(kh, r1), :].astype(jnp.bfloat16)
        d = jnp.dot(lhs, t1_ref[kh], preferred_element_type=jnp.float32)
        y1 = d if y1 is None else y1 + d
    y1 = jnp.maximum(y1 + b1_ref[...], 0.0)                      # (r1, 448) f32

    # 2x2 max pool: even/odd lane groups (w pairs), then even/odd rows (h pairs).
    y1 = y1.reshape(r1, HO1, 2 * C1)
    y1 = jnp.maximum(y1[:, :, :C1], y1[:, :, C1:]).reshape(r1, LQ1)
    y1 = y1.reshape(nb * (HP1 // 2), 2, LQ1)
    p1 = jnp.maximum(y1[:, 0, :], y1[:, 1, :])                   # (nb*16, 224)

    # ---- conv2 -------------------------------------------------------------
    # Scatter pooled conv1 activations (rows b*16+ho, ho<14 valid) into the
    # conv2 padded scratch interior (rows b*18+2+ho, lanes (wo+2)*16+ci).
    for b in range(nb):
        xp2_ref[pl.ds(b * HP2 + PAD, HO1), pl.ds(PAD * C1, LQ1)] = \
            p1[b * (HP1 // 2): b * (HP1 // 2) + HO1, :]

    y2 = None
    for kh in range(KS):
        lhs = xp2_ref[pl.ds(kh, r2), :].astype(jnp.bfloat16)
        d = jnp.dot(lhs, t2_ref[kh], preferred_element_type=jnp.float32)
        y2 = d if y2 is None else y2 + d
    y2 = jnp.maximum(y2 + b2_ref[...], 0.0)                      # (r2, 448) f32

    y2 = y2.reshape(r2, HO2, 2 * C2)
    y2 = jnp.maximum(y2[:, :, :C2], y2[:, :, C2:]).reshape(r2, LQ2)
    y2 = y2.reshape(nb * (HP2 // 2), 2, LQ2)
    p2 = jnp.maximum(y2[:, 0, :], y2[:, 1, :])                   # (nb*9, 224)

    # ---- linear ------------------------------------------------------------
    # Flatten valid rows (ho < 7) into (nb, 1568) in order ho*224 + wo*32 + co;
    # the Linear weight rows were permuted to this order on the host.
    feat = p2.reshape(nb, HP2 // 2, LQ2)[:, :HO2, :].reshape(nb, FEAT)
    logits = jnp.dot(feat.astype(jnp.bfloat16), wf_ref[...],
                     preferred_element_type=jnp.float32) + bf_ref[...]
    o_ref[...] = logits[None, :, :]


def _block_batch(B):
    if B <= 1:
        return 1
    return min(8, max(1, B // 2))       # >=2 grid steps so v7x uses both TCs


@jax.jit
def cnn_forward(x_nchw, kparams):
    B = x_nchw.shape[0]
    x = x_nchw.reshape(B, H0, W0)       # squeeze C == 1 (free reshape)
    nb = _block_batch(B)
    g = pl.cdiv(B, nb)
    bp = g * nb
    if bp != B:                          # ragged tail batch -> zero-pad
        x = jnp.pad(x, ((0, bp - B), (0, 0), (0, 0)))

    rows1 = nb * HP1 + 8                                   # room for kh<=4 offset reads
    rows2 = ((nb * HP2 + KS - 1 + 7) // 8) * 8

    out = pl.pallas_call(
        cnn_kernel,
        out_shape=jax.ShapeDtypeStruct((g, nb, NOUT), jnp.float32),
        grid_spec=pltpu.PrefetchScalarGridSpec(
            num_scalar_prefetch=0,
            grid=(g,),
            in_specs=[
                pl.BlockSpec((nb, H0, W0), lambda i: (i, 0, 0)),
                pl.BlockSpec((KS, WP1, L1), lambda i: (0, 0, 0)),
                pl.BlockSpec((1, L1), lambda i: (0, 0)),
                pl.BlockSpec((KS, LP2, L2), lambda i: (0, 0, 0)),
                pl.BlockSpec((1, L2), lambda i: (0, 0)),
                pl.BlockSpec((FEAT, NOUT), lambda i: (0, 0)),
                pl.BlockSpec((1, NOUT), lambda i: (0, 0)),
            ],
            out_specs=pl.BlockSpec((1, nb, NOUT), lambda i: (i, 0, 0)),
            scratch_shapes=[
                pltpu.VMEM((rows1, WP1), jnp.float32),     # padded conv1 input
                pltpu.VMEM((rows2, LP2), jnp.float32),     # padded conv2 input
            ],
        ),
        compiler_params=pltpu.CompilerParams(
            dimension_semantics=("parallel",)),
    )(x, kparams["t1"], kparams["b1t"], kparams["t2"], kparams["b2t"],
      kparams["wf"], kparams["bf"])
    return out.reshape(bp, NOUT)[:B]


def prepare_params(params):
    """One-time, host-side conversion of torch-layout weights to kernel layout.

    T1[kh] (32, 448)  : Toeplitz-over-w form of conv1 tap row kh,
                        T1[kh][wp, w*16+co] = w1[kh, wp-w, 0, co] for 0<=wp-w<5.
    T2[kh] (288, 448) : same for conv2 with lanes wp*16+ci -> w*32+co.
    Keeping this out of the jitted forward removes all per-call weight
    reshape/transpose/pad HBM traffic.
    """
    w1 = np.asarray(params["w1"], np.float32)      # (5,5,1,16)  HWIO
    w2 = np.asarray(params["w2"], np.float32)      # (5,5,16,32) HWIO
    b1 = np.asarray(params["b1"], np.float32)
    b2 = np.asarray(params["b2"], np.float32)
    wf = np.asarray(params["wf"], np.float32)      # (1568, 10), torch NCHW-flatten rows
    bf = np.asarray(params["bf"], np.float32)

    t1 = np.zeros((KS, WP1, L1), np.float32)
    for kh in range(KS):
        for kw in range(KS):
            for w in range(W0):
                t1[kh, w + kw, w * C1:(w + 1) * C1] = w1[kh, kw, 0, :]

    t2 = np.zeros((KS, LP2, L2), np.float32)
    for kh in range(KS):
        for kw in range(KS):
            for w in range(HO1):
                wp = w + kw
                t2[kh, wp * C1:(wp + 1) * C1, w * C2:(w + 1) * C2] = w2[kh, kw]

    # Linear rows: torch order c*49 + h*7 + w  ->  kernel order h*224 + w*32 + c.
    wf_k = wf.reshape(C2, HO2, HO2, NOUT).transpose(1, 2, 0, 3).reshape(FEAT, NOUT)

    return dict(
        t1=jnp.asarray(t1, jnp.bfloat16),
        t2=jnp.asarray(t2, jnp.bfloat16),
        b1t=jnp.asarray(np.tile(b1, W0)[None, :], jnp.float32),    # (1, 448)
        b2t=jnp.asarray(np.tile(b2, HO1)[None, :], jnp.float32),   # (1, 448)
        wf=jnp.asarray(wf_k, jnp.bfloat16),                        # (1568, 10)
        bf=jnp.asarray(bf[None, :], jnp.float32),                  # (1, 10)
    )


def init_params(key):
    """Deterministic init (uniform +-1/sqrt(fan_in), like torch's default)."""
    k1, k2, k3, k4, k5, k6 = jax.random.split(key, 6)

    def u(k, shape, fan_in):
        bound = 1.0 / (float(fan_in) ** 0.5)
        return jax.random.uniform(k, shape, jnp.float32, -bound, bound)

    return dict(
        w1=u(k1, (KS, KS, 1, C1), 1 * KS * KS),      # HWIO
        b1=u(k2, (C1,), 1 * KS * KS),
        w2=u(k3, (KS, KS, C1, C2), C1 * KS * KS),    # HWIO
        b2=u(k4, (C2,), C1 * KS * KS),
        wf=u(k5, (FEAT, NOUT), FEAT),                # (in, out), NCHW-flatten rows
        bf=u(k6, (NOUT,), FEAT),
    )


def ref_forward(x_nchw, params):
    """Pure-JAX reference (XLA conv / reduce_window) for correctness check."""
    def block(x, w_hwio, b):
        w_oihw = jnp.transpose(w_hwio, (3, 2, 0, 1))
        y = lax.conv_general_dilated(
            x, w_oihw, (1, 1), ((PAD, PAD), (PAD, PAD)),
            dimension_numbers=("NCHW", "OIHW", "NCHW"))
        y = jnp.maximum(y + b[None, :, None, None], 0.0)
        return lax.reduce_window(y, -jnp.inf, lax.max,
                                 (1, 1, 2, 2), (1, 1, 2, 2), "VALID")

    y = block(x_nchw, params["w1"], params["b1"])
    y = block(y, params["w2"], params["b2"])
    y = y.reshape(y.shape[0], -1)          # NCHW flatten, like torch x.view(B,-1)
    return y @ params["wf"] + params["bf"]


if __name__ == "__main__":
    key = jax.random.PRNGKey(0)
    kx, kp = jax.random.split(key)
    x = jax.random.normal(kx, (2, 1, 28, 28), jnp.float32)   # batch=2, MNIST-size
    params = init_params(kp)
    kparams = prepare_params(params)       # one-time weight prep, outside jit

    out = jax.block_until_ready(cnn_forward(x, kparams))
    assert out.shape == (2, NOUT), out.shape

    ref = ref_forward(x, params)
    assert jnp.allclose(out, ref, atol=2e-2, rtol=2e-2), (out, ref)
    print("KERNEL_OK")
</pallas_src>

<mosaic_0001>
module attributes {stable_mosaic.version = 11 : i64} {
  func.func @cnn_kernel(%arg0: i32, %arg1: memref<1x28x28xf32, #tpu.memory_space<vmem>>, %arg2: memref<5x32x448xbf16, #tpu.memory_space<vmem>>, %arg3: memref<1x448xf32, #tpu.memory_space<vmem>>, %arg4: memref<5x288x448xbf16, #tpu.memory_space<vmem>>, %arg5: memref<1x448xf32, #tpu.memory_space<vmem>>, %arg6: memref<1568x10xbf16, #tpu.memory_space<vmem>>, %arg7: memref<1x10xf32, #tpu.memory_space<vmem>>, %arg8: memref<1x1x10xf32, #tpu.memory_space<vmem>>, %arg9: memref<40x32xf32, #tpu.memory_space<vmem>>, %arg10: memref<24x288xf32, #tpu.memory_space<vmem>>) attributes {dimension_semantics = [#tpu.dimension_semantics<parallel>], iteration_bounds = array<i64: 2>, scalar_prefetch = 0 : i64, scratch_operands = 2 : i64, tpu.core_type = #tpu.core_type<tc>, window_params = [{transform_indices = @transform_0, window_bounds = array<i64: 1, 28, 28>}, {pipeline_mode = #tpu.pipeline_mode<synchronous>, transform_indices = @transform_1, window_bounds = array<i64: 5, 32, 448>}, {pipeline_mode = #tpu.pipeline_mode<synchronous>, transform_indices = @transform_2, window_bounds = array<i64: 1, 448>}, {pipeline_mode = #tpu.pipeline_mode<synchronous>, transform_indices = @transform_3, window_bounds = array<i64: 5, 288, 448>}, {pipeline_mode = #tpu.pipeline_mode<synchronous>, transform_indices = @transform_4, window_bounds = array<i64: 1, 448>}, {pipeline_mode = #tpu.pipeline_mode<synchronous>, transform_indices = @transform_5, window_bounds = array<i64: 1568, 10>}, {pipeline_mode = #tpu.pipeline_mode<synchronous>, transform_indices = @transform_6, window_bounds = array<i64: 1, 10>}, {transform_indices = @transform_7, window_bounds = array<i64: 1, 1, 10>}]} {
    %cst = arith.constant 0.000000e+00 : f32
    %0 = vector.broadcast %cst : f32 to vector<40x32xf32>
    %c0 = arith.constant 0 : index
    %c0_0 = arith.constant 0 : index
    %1 = vector.load %arg9[%c0, %c0_0] : memref<40x32xf32, #tpu.memory_space<vmem>>, vector<40x32xf32>
    tpu.vector_store %arg9[%c0, %c0_0], %0 {strides = array<i32>} : memref<40x32xf32, #tpu.memory_space<vmem>>, vector<40x32xf32>,
    %cst_1 = arith.constant 0.000000e+00 : f32
    %2 = vector.broadcast %cst_1 : f32 to vector<24x288xf32>
    %c0_2 = arith.constant 0 : index
    %c0_3 = arith.constant 0 : index
    %3 = vector.load %arg10[%c0_2, %c0_3] : memref<24x288xf32, #tpu.memory_space<vmem>>, vector<24x288xf32>
    tpu.vector_store %arg10[%c0_2, %c0_3], %2 {strides = array<i32>} : memref<24x288xf32, #tpu.memory_space<vmem>>, vector<24x288xf32>,
    %c0_4 = arith.constant 0 : index
    %c0_5 = arith.constant 0 : index
    %c0_6 = arith.constant 0 : index
    %4 = vector.load %arg1[%c0_4, %c0_5, %c0_6] : memref<1x28x28xf32, #tpu.memory_space<vmem>>, vector<1x28x28xf32>
    %5 = vector.shape_cast %4 : vector<1x28x28xf32> to vector<28x28xf32>
    %c2 = arith.constant 2 : index
    %c2_7 = arith.constant 2 : index
    %6 = vector.load %arg9[%c2, %c2_7] : memref<40x32xf32, #tpu.memory_space<vmem>>, vector<28x28xf32>
    tpu.vector_store %arg9[%c2, %c2_7], %5 {strides = array<i32>} : memref<40x32xf32, #tpu.memory_space<vmem>>, vector<28x28xf32>,
    %c0_8 = arith.constant 0 : index
    %c0_9 = arith.constant 0 : index
    %7 = vector.load %arg9[%c0_8, %c0_9] : memref<40x32xf32, #tpu.memory_space<vmem>>, vector<32x32xf32>
    %8 = arith.truncf %7 : vector<32x32xf32> to vector<32x32xbf16>
    %c0_10 = arith.constant 0 : index
    %c0_11 = arith.constant 0 : index
    %c0_12 = arith.constant 0 : index
    %9 = vector.load %arg2[%c0_10, %c0_11, %c0_12] : memref<5x32x448xbf16, #tpu.memory_space<vmem>>, vector<1x32x448xbf16>
    %10 = vector.shape_cast %9 : vector<1x32x448xbf16> to vector<32x448xbf16>
    %cst_13 = arith.constant dense<0.000000e+00> : vector<32x448xf32>
    %11 = tpu.matmul %8, %10, %cst_13 {dimension_numbers = #tpu.dot_dimension_numbers<[1], [0], [0], [1], [0, 0, 1, 1], [], []>} : vector<32x32xbf16>, vector<32x448xbf16>, vector<32x448xf32> -> vector<32x448xf32>
    %c1 = arith.constant 1 : index
    %c0_14 = arith.constant 0 : index
    %12 = vector.load %arg9[%c1, %c0_14] : memref<40x32xf32, #tpu.memory_space<vmem>>, vector<32x32xf32>
    %13 = arith.truncf %12 : vector<32x32xf32> to vector<32x32xbf16>
    %c1_15 = arith.constant 1 : index
    %c0_16 = arith.constant 0 : index
    %c0_17 = arith.constant 0 : index
    %14 = vector.load %arg2[%c1_15, %c0_16, %c0_17] : memref<5x32x448xbf16, #tpu.memory_space<vmem>>, vector<1x32x448xbf16>
    %15 = vector.shape_cast %14 : vector<1x32x448xbf16> to vector<32x448xbf16>
    %cst_18 = arith.constant dense<0.000000e+00> : vector<32x448xf32>
    %16 = tpu.matmul %13, %15, %cst_18 {dimension_numbers = #tpu.dot_dimension_numbers<[1], [0], [0], [1], [0, 0, 1, 1], [], []>} : vector<32x32xbf16>, vector<32x448xbf16>, vector<32x448xf32> -> vector<32x448xf32>
    %17 = arith.addf %11, %16 : vector<32x448xf32>
    %c2_19 = arith.constant 2 : index
    %c0_20 = arith.constant 0 : index
    %18 = vector.load %arg9[%c2_19, %c0_20] : memref<40x32xf32, #tpu.memory_space<vmem>>, vector<32x32xf32>
    %19 = arith.truncf %18 : vector<32x32xf32> to vector<32x32xbf16>
    %c2_21 = arith.constant 2 : index
    %c0_22 = arith.constant 0 : index
    %c0_23 = arith.constant 0 : index
    %20 = vector.load %arg2[%c2_21, %c0_22, %c0_23] : memref<5x32x448xbf16, #tpu.memory_space<vmem>>, vector<1x32x448xbf16>
    %21 = vector.shape_cast %20 : vector<1x32x448xbf16> to vector<32x448xbf16>
    %cst_24 = arith.constant dense<0.000000e+00> : vector<32x448xf32>
    %22 = tpu.matmul %19, %21, %cst_24 {dimension_numbers = #tpu.dot_dimension_numbers<[1], [0], [0], [1], [0, 0, 1, 1], [], []>} : vector<32x32xbf16>, vector<32x448xbf16>, vector<32x448xf32> -> vector<32x448xf32>
    %23 = arith.addf %17, %22 : vector<32x448xf32>
    %c3 = arith.constant 3 : index
    %c0_25 = arith.constant 0 : index
    %24 = vector.load %arg9[%c3, %c0_25] : memref<40x32xf32, #tpu.memory_space<vmem>>, vector<32x32xf32>
    %25 = arith.truncf %24 : vector<32x32xf32> to vector<32x32xbf16>
    %c3_26 = arith.constant 3 : index
    %c0_27 = arith.constant 0 : index
    %c0_28 = arith.constant 0 : index
    %26 = vector.load %arg2[%c3_26, %c0_27, %c0_28] : memref<5x32x448xbf16, #tpu.memory_space<vmem>>, vector<1x32x448xbf16>
    %27 = vector.shape_cast %26 : vector<1x32x448xbf16> to vector<32x448xbf16>
    %cst_29 = arith.constant dense<0.000000e+00> : vector<32x448xf32>
    %28 = tpu.matmul %25, %27, %cst_29 {dimension_numbers = #tpu.dot_dimension_numbers<[1], [0], [0], [1], [0, 0, 1, 1], [], []>} : vector<32x32xbf16>, vector<32x448xbf16>, vector<32x448xf32> -> vector<32x448xf32>
    %29 = arith.addf %23, %28 : vector<32x448xf32>
    %c4 = arith.constant 4 : index
    %c0_30 = arith.constant 0 : index
    %30 = vector.load %arg9[%c4, %c0_30] : memref<40x32xf32, #tpu.memory_space<vmem>>, vector<32x32xf32>
    %31 = arith.truncf %30 : vector<32x32xf32> to vector<32x32xbf16>
    %c4_31 = arith.constant 4 : index
    %c0_32 = arith.constant 0 : index
    %c0_33 = arith.constant 0 : index
    %32 = vector.load %arg2[%c4_31, %c0_32, %c0_33] : memref<5x32x448xbf16, #tpu.memory_space<vmem>>, vector<1x32x448xbf16>
    %33 = vector.shape_cast %32 : vector<1x32x448xbf16> to vector<32x448xbf16>
    %cst_34 = arith.constant dense<0.000000e+00> : vector<32x448xf32>
    %34 = tpu.matmul %31, %33, %cst_34 {dimension_numbers = #tpu.dot_dimension_numbers<[1], [0], [0], [1], [0, 0, 1, 1], [], []>} : vector<32x32xbf16>, vector<32x448xbf16>, vector<32x448xf32> -> vector<32x448xf32>
    %35 = arith.addf %29, %34 : vector<32x448xf32>
    %c0_35 = arith.constant 0 : index
    %c0_36 = arith.constant 0 : index
    %36 = vector.load %arg3[%c0_35, %c0_36] : memref<1x448xf32, #tpu.memory_space<vmem>>, vector<1x448xf32>
    %37 = vector.broadcast %36 : vector<1x448xf32> to vector<32x448xf32>
    %38 = arith.addf %35, %37 : vector<32x448xf32>
    %cst_37 = arith.constant 0.000000e+00 : f32
    %39 = vector.broadcast %cst_37 : f32 to vector<32x448xf32>
    %40 = arith.maximumf %38, %39 : vector<32x448xf32>
    %41 = vector.shape_cast %40 : vector<32x448xf32> to vector<32x14x32xf32>
    %42 = vector.extract_strided_slice %41 {offsets = [0, 0, 0], sizes = [32, 14, 16], strides = [1, 1, 1]} : vector<32x14x32xf32> to vector<32x14x16xf32>
    %43 = vector.extract_strided_slice %41 {offsets = [0, 0, 16], sizes = [32, 14, 16], strides = [1, 1, 1]} : vector<32x14x32xf32> to vector<32x14x16xf32>
    %44 = arith.maximumf %42, %43 : vector<32x14x16xf32>
    %45 = vector.shape_cast %44 : vector<32x14x16xf32> to vector<32x224xf32>
    %46 = vector.shape_cast %45 : vector<32x224xf32> to vector<16x2x224xf32>
    %47 = vector.extract_strided_slice %46 {offsets = [0, 0, 0], sizes = [16, 1, 224], strides = [1, 1, 1]} : vector<16x2x224xf32> to vector<16x1x224xf32>
    %48 = vector.shape_cast %47 : vector<16x1x224xf32> to vector<16x224xf32>
    %49 = vector.extract_strided_slice %46 {offsets = [0, 1, 0], sizes = [16, 1, 224], strides = [1, 1, 1]} : vector<16x2x224xf32> to vector<16x1x224xf32>
    %50 = vector.shape_cast %49 : vector<16x1x224xf32> to vector<16x224xf32>
    %51 = arith.maximumf %48, %50 : vector<16x224xf32>
    %52 = vector.extract_strided_slice %51 {offsets = [0, 0], sizes = [14, 224], strides = [1, 1]} : vector<16x224xf32> to vector<14x224xf32>
    %c2_38 = arith.constant 2 : index
    %c32 = arith.constant 32 : index
    %53 = vector.load %arg10[%c2_38, %c32] : memref<24x288xf32, #tpu.memory_space<vmem>>, vector<14x224xf32>
    tpu.vector_store %arg10[%c2_38, %c32], %52 {strides = array<i32>} : memref<24x288xf32, #tpu.memory_space<vmem>>, vector<14x224xf32>,
    %c0_39 = arith.constant 0 : index
    %c0_40 = arith.constant 0 : index
    %54 = vector.load %arg10[%c0_39, %c0_40] : memref<24x288xf32, #tpu.memory_space<vmem>>, vector<18x288xf32>
    %55 = arith.truncf %54 : vector<18x288xf32> to vector<18x288xbf16>
    %c0_41 = arith.constant 0 : index
    %c0_42 = arith.constant 0 : index
    %c0_43 = arith.constant 0 : index
    %56 = vector.load %arg4[%c0_41, %c0_42, %c0_43] : memref<5x288x448xbf16, #tpu.memory_space<vmem>>, vector<1x288x448xbf16>
    %57 = vector.shape_cast %56 : vector<1x288x448xbf16> to vector<288x448xbf16>
    %cst_44 = arith.constant dense<0.000000e+00> : vector<18x448xf32>
    %58 = tpu.matmul %55, %57, %cst_44 {dimension_numbers = #tpu.dot_dimension_numbers<[1], [0], [0], [1], [0, 0, 1, 1], [], []>} : vector<18x288xbf16>, vector<288x448xbf16>, vector<18x448xf32> -> vector<18x448xf32>
    %c1_45 = arith.constant 1 : index
    %c0_46 = arith.constant 0 : index
    %59 = vector.load %arg10[%c1_45, %c0_46] : memref<24x288xf32, #tpu.memory_space<vmem>>, vector<18x288xf32>
    %60 = arith.truncf %59 : vector<18x288xf32> to vector<18x288xbf16>
    %c1_47 = arith.constant 1 : index
    %c0_48 = arith.constant 0 : index
    %c0_49 = arith.constant 0 : index
    %61 = vector.load %arg4[%c1_47, %c0_48, %c0_49] : memref<5x288x448xbf16, #tpu.memory_space<vmem>>, vector<1x288x448xbf16>
    %62 = vector.shape_cast %61 : vector<1x288x448xbf16> to vector<288x448xbf16>
    %cst_50 = arith.constant dense<0.000000e+00> : vector<18x448xf32>
    %63 = tpu.matmul %60, %62, %cst_50 {dimension_numbers = #tpu.dot_dimension_numbers<[1], [0], [0], [1], [0, 0, 1, 1], [], []>} : vector<18x288xbf16>, vector<288x448xbf16>, vector<18x448xf32> -> vector<18x448xf32>
    %64 = arith.addf %58, %63 : vector<18x448xf32>
    %c2_51 = arith.constant 2 : index
    %c0_52 = arith.constant 0 : index
    %65 = vector.load %arg10[%c2_51, %c0_52] : memref<24x288xf32, #tpu.memory_space<vmem>>, vector<18x288xf32>
    %66 = arith.truncf %65 : vector<18x288xf32> to vector<18x288xbf16>
    %c2_53 = arith.constant 2 : index
    %c0_54 = arith.constant 0 : index
    %c0_55 = arith.constant 0 : index
    %67 = vector.load %arg4[%c2_53, %c0_54, %c0_55] : memref<5x288x448xbf16, #tpu.memory_space<vmem>>, vector<1x288x448xbf16>
    %68 = vector.shape_cast %67 : vector<1x288x448xbf16> to vector<288x448xbf16>
    %cst_56 = arith.constant dense<0.000000e+00> : vector<18x448xf32>
    %69 = tpu.matmul %66, %68, %cst_56 {dimension_numbers = #tpu.dot_dimension_numbers<[1], [0], [0], [1], [0, 0, 1, 1], [], []>} : vector<18x288xbf16>, vector<288x448xbf16>, vector<18x448xf32> -> vector<18x448xf32>
    %70 = arith.addf %64, %69 : vector<18x448xf32>
    %c3_57 = arith.constant 3 : index
    %c0_58 = arith.constant 0 : index
    %71 = vector.load %arg10[%c3_57, %c0_58] : memref<24x288xf32, #tpu.memory_space<vmem>>, vector<18x288xf32>
    %72 = arith.truncf %71 : vector<18x288xf32> to vector<18x288xbf16>
    %c3_59 = arith.constant 3 : index
    %c0_60 = arith.constant 0 : index
    %c0_61 = arith.constant 0 : index
    %73 = vector.load %arg4[%c3_59, %c0_60, %c0_61] : memref<5x288x448xbf16, #tpu.memory_space<vmem>>, vector<1x288x448xbf16>
    %74 = vector.shape_cast %73 : vector<1x288x448xbf16> to vector<288x448xbf16>
    %cst_62 = arith.constant dense<0.000000e+00> : vector<18x448xf32>
    %75 = tpu.matmul %72, %74, %cst_62 {dimension_numbers = #tpu.dot_dimension_numbers<[1], [0], [0], [1], [0, 0, 1, 1], [], []>} : vector<18x288xbf16>, vector<288x448xbf16>, vector<18x448xf32> -> vector<18x448xf32>
    %76 = arith.addf %70, %75 : vector<18x448xf32>
    %c4_63 = arith.constant 4 : index
    %c0_64 = arith.constant 0 : index
    %77 = vector.load %arg10[%c4_63, %c0_64] : memref<24x288xf32, #tpu.memory_space<vmem>>, vector<18x288xf32>
    %78 = arith.truncf %77 : vector<18x288xf32> to vector<18x288xbf16>
    %c4_65 = arith.constant 4 : index
    %c0_66 = arith.constant 0 : index
    %c0_67 = arith.constant 0 : index
    %79 = vector.load %arg4[%c4_65, %c0_66, %c0_67] : memref<5x288x448xbf16, #tpu.memory_space<vmem>>, vector<1x288x448xbf16>
    %80 = vector.shape_cast %79 : vector<1x288x448xbf16> to vector<288x448xbf16>
    %cst_68 = arith.constant dense<0.000000e+00> : vector<18x448xf32>
    %81 = tpu.matmul %78, %80, %cst_68 {dimension_numbers = #tpu.dot_dimension_numbers<[1], [0], [0], [1], [0, 0, 1, 1], [], []>} : vector<18x288xbf16>, vector<288x448xbf16>, vector<18x448xf32> -> vector<18x448xf32>
    %82 = arith.addf %76, %81 : vector<18x448xf32>
    %c0_69 = arith.constant 0 : index
    %c0_70 = arith.constant 0 : index
    %83 = vector.load %arg5[%c0_69, %c0_70] : memref<1x448xf32, #tpu.memory_space<vmem>>, vector<1x448xf32>
    %84 = vector.broadcast %83 : vector<1x448xf32> to vector<18x448xf32>
    %85 = arith.addf %82, %84 : vector<18x448xf32>
    %cst_71 = arith.constant 0.000000e+00 : f32
    %86 = vector.broadcast %cst_71 : f32 to vector<18x448xf32>
    %87 = arith.maximumf %85, %86 : vector<18x448xf32>
    %88 = vector.shape_cast %87 : vector<18x448xf32> to vector<18x7x64xf32>
    %89 = vector.extract_strided_slice %88 {offsets = [0, 0, 0], sizes = [18, 7, 32], strides = [1, 1, 1]} : vector<18x7x64xf32> to vector<18x7x32xf32>
    %90 = vector.extract_strided_slice %88 {offsets = [0, 0, 32], sizes = [18, 7, 32], strides = [1, 1, 1]} : vector<18x7x64xf32> to vector<18x7x32xf32>
    %91 = arith.maximumf %89, %90 : vector<18x7x32xf32>
    %92 = vector.shape_cast %91 : vector<18x7x32xf32> to vector<18x224xf32>
    %93 = vector.shape_cast %92 : vector<18x224xf32> to vector<9x2x224xf32>
    %94 = vector.extract_strided_slice %93 {offsets = [0, 0, 0], sizes = [9, 1, 224], strides = [1, 1, 1]} : vector<9x2x224xf32> to vector<9x1x224xf32>
    %95 = vector.shape_cast %94 : vector<9x1x224xf32> to vector<9x224xf32>
    %96 = vector.extract_strided_slice %93 {offsets = [0, 1, 0], sizes = [9, 1, 224], strides = [1, 1, 1]} : vector<9x2x224xf32> to vector<9x1x224xf32>
    %97 = vector.shape_cast %96 : vector<9x1x224xf32> to vector<9x224xf32>
    %98 = arith.maximumf %95, %97 : vector<9x224xf32>
    %99 = vector.shape_cast %98 : vector<9x224xf32> to vector<1x9x224xf32>
    %100 = vector.extract_strided_slice %99 {offsets = [0, 0, 0], sizes = [1, 7, 224], strides = [1, 1, 1]} : vector<1x9x224xf32> to vector<1x7x224xf32>
    %101 = vector.shape_cast %100 : vector<1x7x224xf32> to vector<1x1568xf32>
    %102 = arith.truncf %101 : vector<1x1568xf32> to vector<1x1568xbf16>
    %c0_72 = arith.constant 0 : index
    %c0_73 = arith.constant 0 : index
    %103 = vector.load %arg6[%c0_72, %c0_73] : memref<1568x10xbf16, #tpu.memory_space<vmem>>, vector<1568x10xbf16>
    %cst_74 = arith.constant dense<0.000000e+00> : vector<1x10xf32>
    %104 = tpu.matmul %102, %103, %cst_74 {dimension_numbers = #tpu.dot_dimension_numbers<[1], [0], [0], [1], [0, 0, 1, 1], [], []>} : vector<1x1568xbf16>, vector<1568x10xbf16>, vector<1x10xf32> -> vector<1x10xf32>
    %c0_75 = arith.constant 0 : index
    %c0_76 = arith.constant 0 : index
    %105 = vector.load %arg7[%c0_75, %c0_76] : memref<1x10xf32, #tpu.memory_space<vmem>>, vector<1x10xf32>
    %106 = arith.addf %104, %105 : vector<1x10xf32>
    %107 = vector.shape_cast %106 : vector<1x10xf32> to vector<1x1x10xf32>
    %c0_77 = arith.constant 0 : index
    %c0_78 = arith.constant 0 : index
    %c0_79 = arith.constant 0 : index
    %108 = vector.load %arg8[%c0_77, %c0_78, %c0_79] : memref<1x1x10xf32, #tpu.memory_space<vmem>>, vector<1x1x10xf32>
    tpu.vector_store %arg8[%c0_77, %c0_78, %c0_79], %107 {strides = array<i32>} : memref<1x1x10xf32, #tpu.memory_space<vmem>>, vector<1x1x10xf32>,
    return
  }
  func.func @transform_0(%arg0: i32) -> (i32, i32, i32) {
    %c0_i32 = arith.constant 0 : i32
    %c0_i32_0 = arith.constant 0 : i32
    %c0_i32_1 = arith.constant 0 : i32
    return %arg0, %c0_i32, %c0_i32_0 : i32, i32, i32
  }
  func.func @transform_1(%arg0: i32) -> (i32, i32, i32) {
    %c0_i32 = arith.constant 0 : i32
    %c0_i32_0 = arith.constant 0 : i32
    %c0_i32_1 = arith.constant 0 : i32
    %c0_i32_2 = arith.constant 0 : i32
    return %c0_i32, %c0_i32_0, %c0_i32_1 : i32, i32, i32
  }
  func.func @transform_2(%arg0: i32) -> (i32, i32) {
    %c0_i32 = arith.constant 0 : i32
    %c0_i32_0 = arith.constant 0 : i32
    %c0_i32_1 = arith.constant 0 : i32
    return %c0_i32, %c0_i32_0 : i32, i32
  }
  func.func @transform_3(%arg0: i32) -> (i32, i32, i32) {
    %c0_i32 = arith.constant 0 : i32
    %c0_i32_0 = arith.constant 0 : i32
    %c0_i32_1 = arith.constant 0 : i32
    %c0_i32_2 = arith.constant 0 : i32
    return %c0_i32, %c0_i32_0, %c0_i32_1 : i32, i32, i32
  }
  func.func @transform_4(%arg0: i32) -> (i32, i32) {
    %c0_i32 = arith.constant 0 : i32
    %c0_i32_0 = arith.constant 0 : i32
    %c0_i32_1 = arith.constant 0 : i32
    return %c0_i32, %c0_i32_0 : i32, i32
  }
  func.func @transform_5(%arg0: i32) -> (i32, i32) {
    %c0_i32 = arith.constant 0 : i32
    %c0_i32_0 = arith.constant 0 : i32
    %c0_i32_1 = arith.constant 0 : i32
    return %c0_i32, %c0_i32_0 : i32, i32
  }
  func.func @transform_6(%arg0: i32) -> (i32, i32) {
    %c0_i32 = arith.constant 0 : i32
    %c0_i32_0 = arith.constant 0 : i32
    %c0_i32_1 = arith.constant 0 : i32
    return %c0_i32, %c0_i32_0 : i32, i32
  }
  func.func @transform_7(%arg0: i32) -> (i32, i32, i32) {
    %c0_i32 = arith.constant 0 : i32
    %c0_i32_0 = arith.constant 0 : i32
    %c0_i32_1 = arith.constant 0 : i32
    return %arg0, %c0_i32, %c0_i32_0 : i32, i32, i32
  }
}

</mosaic_0001>

<llo_original>
// kernel: cnn_forward.1
$region0: #{cnn_forward.1}
  #allocation0 [shape = 'u32[]', space=smem, size = 0x4, offset = 0x4, fixed_abs, tag = 'smem constant byte address 0x4 - core index']
  #allocation1 [shape = 'u32[144,128]{1,0:T(1,128)}', space=vmem, size = 0x12000, scoped, tag = 'internal scratch']
  #allocation2 [shape = 'f32[40,32]{1,0:T(8,128)}', space=vmem, size = 0x5000, scoped, tag = 'scratch operand']
  #allocation3 [shape = 'f32[24,288]{1,0:T(8,128)}', space=vmem, size = 0x9000, scoped, tag = 'scratch operand']
  %s0 = inlined_call_operand.vmem [shape: f32[2,28,28], index: 0, kind: input, shape index: {}]
  %s1 = inlined_call_operand.hbm [shape: bf16[5,32,448], index: 1, kind: input, shape index: {}]
  %s2 = inlined_call_operand.hbm [shape: f32[1,448], index: 2, kind: input, shape index: {}]
  %s3 = inlined_call_operand.hbm [shape: bf16[5,288,448], index: 3, kind: input, shape index: {}]
  %s4 = inlined_call_operand.hbm [shape: f32[1,448], index: 4, kind: input, shape index: {}]
  %s5 = inlined_call_operand.vmem [shape: bf16[1568,10], index: 5, kind: input, shape index: {}]
  %s6 = inlined_call_operand.hbm [shape: f32[1,10], index: 6, kind: input, shape index: {}]
  %s7 = inlined_call_operand.hbm [shape: f32[2,1,10], index: 7, kind: output, shape index: {}]
  %s8 = sld [smem:[#allocation0]]
  $region81: #{cnn_forward.1} parent=0
    _
  %s10 = ssub.s32 1, %s8
  %s11 = scalar_select 0, %s10, %s8
  $region1: #{cnn_forward.1} parent=0
    #allocation4 [shape = 'u8[163840]{0}', space=vmem, size = 0x28000, scoped, tag = 'input window, operand 1, single buffered']
    #allocation5 [shape = 's32[2]{0}', space=sflag, size = 0x8, scoped, tag = 'scoped memory for cnn_forward.1']
    #allocation6 [shape = 's32[2]{0}', space=sflag, size = 0x8, scoped, tag = 'scoped memory for cnn_forward.1']
    #allocation7 [shape = 'u8[2048]{0}', space=vmem, size = 0x800, scoped, tag = 'input window, operand 2, single buffered']
    #allocation8 [shape = 's32[1]{0}', space=sflag, size = 0x4, scoped, tag = 'scoped memory for cnn_forward.1']
    #allocation9 [shape = 'u8[1474560]{0}', space=vmem, size = 0x168000, scoped, tag = 'input window, operand 3, single buffered']
    #allocation10 [shape = 'u8[2048]{0}', space=vmem, size = 0x800, scoped, tag = 'input window, operand 4, single buffered']
    #allocation11 [shape = 's32[1]{0}', space=sflag, size = 0x4, scoped, tag = 'scoped memory for cnn_forward.1']
    #allocation12 [shape = 'u8[512]{0}', space=vmem, size = 0x400, scoped, tag = 'input window, operand 6, single buffered']
    #allocation13 [shape = 'u8[1024]{0}', space=vmem, size = 0x400, scoped, tag = 'output window, operand 0']
    %12 = vsyncpa [#allocation5], 0
    %13 = vsyncpa [#allocation8], 0
    %14 = vsyncpa [#allocation11], 0
    %15 = vsyncpa [#allocation6], 0
    %s16 = scalar_lea.sflag [#allocation6], 1
    %17 = vsyncpa %s16, 0
    loop: start=0, step=1, limit=4
    $region2: #{cnn_forward.1} parent=1 // loop_pre_header
      _
    $region3: #{cnn_forward.1} parent=1 // loop_header
      %s19 = sphi 0, %s23
      %p20 = scmp.ge.s32.totalorder %s19, 4
      %s29 = sphi 0, %s31
      %s32 = sphi 0, %s29
      %s33 = sphi 0, %s32
      %s49 = sphi 0, %s33
      %s53 = sphi 0, %s53
      %s55 = sphi 0, %s53
      %s56 = sphi 0, %s55
      %s70 = sphi 0, %s56
      %s74 = sphi 0, %s74
      %s76 = sphi 0, %s74
      %s77 = sphi 0, %s76
      %s91 = sphi 0, %s77
      %s95 = sphi 0, %s95
      %s97 = sphi 0, %s95
      %s98 = sphi 0, %s97
      %s112 = sphi 0, %s98
      %s116 = sphi 0, %s116
      %s118 = sphi 0, %s116
      %s119 = sphi 0, %s118
      %s133 = sphi 0, %s119
      %s137 = sphi 0, %s137
      %s139 = sphi 0, %s137
      %s140 = sphi 0, %s139
      %s154 = sphi 0, %s140
      %s158 = sphi 0, %s158
      %s160 = sphi 0, %s158
      %s161 = sphi 0, %s160
      %s175 = sphi 0, %s161
      %s181 = sphi 0, %s183
      %s184 = sphi 0, %s181
      %s185 = sphi 0, %s184
      %s201 = sphi 0, %s185
    $region4: #{cnn_forward.1} parent=1 // loop_header_branch
      %22 = sbr.rel (%p20) target = $region8
    $region5: #{cnn_forward.1} parent=1 // loop_body
      %s24 = ssub.s32 %s19, 1
      %s25 = ssub.s32 %s19, 2
      %s26 = sadd.s32 %s19, 1
      %s27 = ssub.s32 %s19, %s26
      %p28 = scmp.eq.s32.totalorder %s27, 0
      %s30 = sadd.s32 %s29, 1
      %s31 = scalar_select %p28, %s29, %s30
      %p34 = pneg %p28
      %p35 = scmp.eq.s32.totalorder %s19, 1
      %p36 = por %p34, %p35
      %p37 = scmp.ne.s32.totalorder %s29, %s32
      %p38 = scmp.eq.s32.totalorder %s19, 0
      %p39 = por %p37, %p38
      %p40 = scmp.ne.s32.totalorder %s29, %s32
      %p41 = scmp.eq.s32.totalorder %s24, 1
      %p42 = por %p40, %p41
      %p43 = scmp.ne.s32.totalorder %s32, %s33
      %p44 = scmp.eq.s32.totalorder %s24, 0
      %p45 = por %p43, %p44
      %p46 = scmp.ne.s32.totalorder %s32, %s33
      %p47 = scmp.eq.s32.totalorder %s25, 1
      %p48 = por %p46, %p47
      %p50 = scmp.ne.s32.totalorder %s33, %s49
      %p51 = scmp.eq.s32.totalorder %s25, 0
      %p52 = por %p50, %p51
      %s54 = sadd.s32 %s53, 1
      %p57 = scmp.eq.s32.totalorder %s19, 1
      %p58 = scmp.ne.s32.totalorder %s53, %s55
      %p59 = scmp.eq.s32.totalorder %s19, 0
      %p60 = por %p58, %p59
      %p61 = scmp.ne.s32.totalorder %s53, %s55
      %p62 = scmp.eq.s32.totalorder %s24, 1
      %p63 = por %p61, %p62
      %p64 = scmp.ne.s32.totalorder %s55, %s56
      %p65 = scmp.eq.s32.totalorder %s24, 0
      %p66 = por %p64, %p65
      %p67 = scmp.ne.s32.totalorder %s55, %s56
      %p68 = scmp.eq.s32.totalorder %s25, 1
      %p69 = por %p67, %p68
      %p71 = scmp.ne.s32.totalorder %s56, %s70
      %p72 = scmp.eq.s32.totalorder %s25, 0
      %p73 = por %p71, %p72
      %s75 = sadd.s32 %s74, 1
      %p78 = scmp.eq.s32.totalorder %s19, 1
      %p79 = scmp.ne.s32.totalorder %s74, %s76
      %p80 = scmp.eq.s32.totalorder %s19, 0
      %p81 = por %p79, %p80
      %p82 = scmp.ne.s32.totalorder %s74, %s76
      %p83 = scmp.eq.s32.totalorder %s24, 1
      %p84 = por %p82, %p83
      %p85 = scmp.ne.s32.totalorder %s76, %s77
      %p86 = scmp.eq.s32.totalorder %s24, 0
      %p87 = por %p85, %p86
      %p88 = scmp.ne.s32.totalorder %s76, %s77
      %p89 = scmp.eq.s32.totalorder %s25, 1
      %p90 = por %p88, %p89
      %p92 = scmp.ne.s32.totalorder %s77, %s91
      %p93 = scmp.eq.s32.totalorder %s25, 0
      %p94 = por %p92, %p93
      %s96 = sadd.s32 %s95, 1
      %p99 = scmp.eq.s32.totalorder %s19, 1
      %p100 = scmp.ne.s32.totalorder %s95, %s97
      %p101 = scmp.eq.s32.totalorder %s19, 0
      %p102 = por %p100, %p101
      %p103 = scmp.ne.s32.totalorder %s95, %s97
      %p104 = scmp.eq.s32.totalorder %s24, 1
      %p105 = por %p103, %p104
      %p106 = scmp.ne.s32.totalorder %s97, %s98
      %p107 = scmp.eq.s32.totalorder %s24, 0
      %p108 = por %p106, %p107
      %p109 = scmp.ne.s32.totalorder %s97, %s98
      %p110 = scmp.eq.s32.totalorder %s25, 1
      %p111 = por %p109, %p110
      %p113 = scmp.ne.s32.totalorder %s98, %s112
      %p114 = scmp.eq.s32.totalorder %s25, 0
      %p115 = por %p113, %p114
      %s117 = sadd.s32 %s116, 1
      %p120 = scmp.eq.s32.totalorder %s19, 1
      %p121 = scmp.ne.s32.totalorder %s116, %s118
      %p122 = scmp.eq.s32.totalorder %s19, 0
      %p123 = por %p121, %p122
      %p124 = scmp.ne.s32.totalorder %s116, %s118
      %p125 = scmp.eq.s32.totalorder %s24, 1
      %p126 = por %p124, %p125
      %p127 = scmp.ne.s32.totalorder %s118, %s119
      %p128 = scmp.eq.s32.totalorder %s24, 0
      %p129 = por %p127, %p128
      %p130 = scmp.ne.s32.totalorder %s118, %s119
      %p131 = scmp.eq.s32.totalorder %s25, 1
      %p132 = por %p130, %p131
      %p134 = scmp.ne.s32.totalorder %s119, %s133
      %p135 = scmp.eq.s32.totalorder %s25, 0
      %p136 = por %p134, %p135
      %s138 = sadd.s32 %s137, 1
      %p141 = scmp.eq.s32.totalorder %s19, 1
      %p142 = scmp.ne.s32.totalorder %s137, %s139
      %p143 = scmp.eq.s32.totalorder %s19, 0
      %p144 = por %p142, %p143
      %p145 = scmp.ne.s32.totalorder %s137, %s139
      %p146 = scmp.eq.s32.totalorder %s24, 1
      %p147 = por %p145, %p146
      %p148 = scmp.ne.s32.totalorder %s139, %s140
      %p149 = scmp.eq.s32.totalorder %s24, 0
      %p150 = por %p148, %p149
      %p151 = scmp.ne.s32.totalorder %s139, %s140
      %p152 = scmp.eq.s32.totalorder %s25, 1
      %p153 = por %p151, %p152
      %p155 = scmp.ne.s32.totalorder %s140, %s154
      %p156 = scmp.eq.s32.totalorder %s25, 0
      %p157 = por %p155, %p156
      %s159 = sadd.s32 %s158, 1
      %p162 = scmp.eq.s32.totalorder %s19, 1
      %p163 = scmp.ne.s32.totalorder %s158, %s160
      %p164 = scmp.eq.s32.totalorder %s19, 0
      %p165 = por %p163, %p164
      %p166 = scmp.ne.s32.totalorder %s158, %s160
      %p167 = scmp.eq.s32.totalorder %s24, 1
      %p168 = por %p166, %p167
      %p169 = scmp.ne.s32.totalorder %s160, %s161
      %p170 = scmp.eq.s32.totalorder %s24, 0
      %p171 = por %p169, %p170
      %p172 = scmp.ne.s32.totalorder %s160, %s161
      %p173 = scmp.eq.s32.totalorder %s25, 1
      %p174 = por %p172, %p173
      %p176 = scmp.ne.s32.totalorder %s161, %s175
      %p177 = scmp.eq.s32.totalorder %s25, 0
      %p178 = por %p176, %p177
      %s179 = ssub.s32 %s19, %s26
      %p180 = scmp.eq.s32.totalorder %s179, 0
      %s182 = sadd.s32 %s181, 1
      %s183 = scalar_select %p180, %s181, %s182
      %p186 = pneg %p180
      %p187 = scmp.eq.s32.totalorder %s19, 1
      %p188 = por %p186, %p187
      %p189 = scmp.ne.s32.totalorder %s181, %s184
      %p190 = scmp.eq.s32.totalorder %s19, 0
      %p191 = por %p189, %p190
      %p192 = scmp.ne.s32.totalorder %s181, %s184
      %p193 = scmp.eq.s32.totalorder %s24, 1
      %p194 = por %p192, %p193
      %p195 = scmp.ne.s32.totalorder %s184, %s185
      %p196 = scmp.eq.s32.totalorder %s24, 0
      %p197 = por %p195, %p196
      %p198 = scmp.ne.s32.totalorder %s184, %s185
      %p199 = scmp.eq.s32.totalorder %s25, 1
      %p200 = por %p198, %p199
      %p202 = scmp.ne.s32.totalorder %s185, %s201
      %p203 = scmp.eq.s32.totalorder %s25, 0
      %p204 = por %p202, %p203
      %p205 = scmp.le.s32.totalorder 1, %s19
      %p206 = scmp.lt.s32.totalorder %s19, 3
      %p207 = pnand %p205, %p206
      %p208 = pneg %p207
      // Predicated region
      $region9: #{cnn_forward.1} parent=5 // pred_check
        _
      $region10: #{cnn_forward.1} parent=5 // pred_check_branch
        %210 = sbr.rel (%p207) target = $region12
      $region11: #{cnn_forward.1} parent=5 // pred_region
        %s211 = ssub.s32 %s19, 1
        // Predicated region
        $region13: #{cnn_forward.1} parent=11 // pred_check
          %p212 = pneg %p66
        $region14: #{cnn_forward.1} parent=11 // pred_check_branch
          %214 = sbr.rel (%p212) target = $region16
        $region15: #{cnn_forward.1} parent=11 // pred_region
          %s216 = ssub.s32 5120, 5120
          %217 = vsyncadd [#allocation5], %s216
          %s218 = sshll.u32 [#allocation4], 4
          %s219 = int_to_ptr.vmem [resolvable:$true] %s218
          %224 = dma.hbm_to_vmem [thread:$0]  %s1, 5120, %s219, [#allocation5], 256, 256, 16
        $region16: #{cnn_forward.1} parent=11 // pred_fallthru
          _
        // Predicated region
        $region17: #{cnn_forward.1} parent=11 // pred_check
          %p225 = pneg %p87
        $region18: #{cnn_forward.1} parent=11 // pred_check_branch
          %227 = sbr.rel (%p225) target = $region20
        $region19: #{cnn_forward.1} parent=11 // pred_region
          %s229 = ssub.s32 64, 64
          %230 = vsyncadd [#allocation8], %s229
          %s232 = sshll.u32 [#allocation7], 4
          %s233 = int_to_ptr.vmem [resolvable:$true] %s232
          %235 = dma.hbm_to_vmem [thread:$0]  %s2, 64, %s233, [#allocation8]
        $region20: #{cnn_forward.1} parent=11 // pred_fallthru
          _
        // Predicated region
        $region21: #{cnn_forward.1} parent=11 // pred_check
          %p236 = pneg %p108
        $region22: #{cnn_forward.1} parent=11 // pred_check_branch
          %238 = sbr.rel (%p236) target = $region24
        $region23: #{cnn_forward.1} parent=11 // pred_region
          %s240 = ssub.s32 46080, 46080
          %241 = vsyncadd [#allocation8], %s240
          %s242 = sshll.u32 [#allocation9], 4
          %s243 = int_to_ptr.vmem [resolvable:$true] %s242
          %248 = dma.hbm_to_vmem [thread:$0]  %s3, 46080, %s243, [#allocation8], 256, 256, 16
        $region24: #{cnn_forward.1} parent=11 // pred_fallthru
          _
        // Predicated region
        $region25: #{cnn_forward.1} parent=11 // pred_check
          %p249 = pneg %p129
        $region26: #{cnn_forward.1} parent=11 // pred_check_branch
          %251 = sbr.rel (%p249) target = $region28
        $region27: #{cnn_forward.1} parent=11 // pred_region
          %s253 = ssub.s32 64, 64
          %254 = vsyncadd [#allocation11], %s253
          %s256 = sshll.u32 [#allocation10], 4
          %s257 = int_to_ptr.vmem [resolvable:$true] %s256
          %259 = dma.hbm_to_vmem [thread:$0]  %s4, 64, %s257, [#allocation11]
        $region28: #{cnn_forward.1} parent=11 // pred_fallthru
          _
        // Predicated region
        $region29: #{cnn_forward.1} parent=11 // pred_check
          %p260 = pneg %p150
        $region30: #{cnn_forward.1} parent=11 // pred_check_branch
          %262 = sbr.rel (%p260) target = $region32
        $region31: #{cnn_forward.1} parent=11 // pred_region
          _
        $region32: #{cnn_forward.1} parent=11 // pred_fallthru
          _
        // Predicated region
        $region33: #{cnn_forward.1} parent=11 // pred_check
          %p263 = pneg %p171
        $region34: #{cnn_forward.1} parent=11 // pred_check_branch
          %265 = sbr.rel (%p263) target = $region36
        $region35: #{cnn_forward.1} parent=11 // pred_region
          %s267 = ssub.s32 16, 16
          %268 = vsyncadd [#allocation11], %s267
          %s270 = sshll.u32 [#allocation12], 4
          %s271 = int_to_ptr.vmem [resolvable:$true] %s270
          %273 = dma.hbm_to_vmem [thread:$0]  %s6, 16, %s271, [#allocation11]
        $region36: #{cnn_forward.1} parent=11 // pred_fallthru
          _
      $region12: #{cnn_forward.1} parent=5 // pred_fallthru
        _
      %p274 = scmp.lt.s32.totalorder %s19, 2
      // Predicated region
      $region37: #{cnn_forward.1} parent=5 // pred_check
        %p275 = pneg %p274
      $region38: #{cnn_forward.1} parent=5 // pred_check_branch
        %277 = sbr.rel (%p275) target = $region40
      $region39: #{cnn_forward.1} parent=5 // pred_region
        // Predicated region
        $region41: #{cnn_forward.1} parent=39 // pred_check
          %p278 = pneg %p39
        $region42: #{cnn_forward.1} parent=39 // pred_check_branch
          %280 = sbr.rel (%p278) target = $region44
        $region43: #{cnn_forward.1} parent=39 // pred_region
          %p281 = scmp.lt.s32.totalorder %s19, 1
          %s282 = scalar_select %p281, %s19, 1
          %s283 = smul.addr %s282, 4
          %s284 = smul.addr %s283, 8
          %s285 = scalar_lea.vmem %s0, %s284
        $region44: #{cnn_forward.1} parent=39 // pred_fallthru
          _
      $region40: #{cnn_forward.1} parent=5 // pred_fallthru
        _
      %p286 = scmp.le.s32.totalorder 1, %s19
      %p287 = scmp.lt.s32.totalorder %s19, 3
      %p288 = pnand %p286, %p287
      %p289 = pneg %p288
      // Predicated region
      $region45: #{cnn_forward.1} parent=5 // pred_check
        _
      $region46: #{cnn_forward.1} parent=5 // pred_check_branch
        %291 = sbr.rel (%p288) target = $region48
      $region47: #{cnn_forward.1} parent=5 // pred_region
        %s292 = ssub.s32 %s19, 1
        // Predicated region
        $region49: #{cnn_forward.1} parent=47 // pred_check
          %p293 = pneg %p66
        $region50: #{cnn_forward.1} parent=47 // pred_check_branch
          %295 = sbr.rel (%p293) target = $region52
        $region51: #{cnn_forward.1} parent=47 // pred_region
          %296 = dma.done [#allocation5], 5120
        $region52: #{cnn_forward.1} parent=47 // pred_fallthru
          _
        // Predicated region
        $region53: #{cnn_forward.1} parent=47 // pred_check
          %p297 = pneg %p87
        $region54: #{cnn_forward.1} parent=47 // pred_check_branch
          %299 = sbr.rel (%p297) target = $region56
        $region55: #{cnn_forward.1} parent=47 // pred_region
          %300 = dma.done [#allocation8], 64
        $region56: #{cnn_forward.1} parent=47 // pred_fallthru
          _
        // Predicated region
        $region57: #{cnn_forward.1} parent=47 // pred_check
          %p301 = pneg %p108
        $region58: #{cnn_forward.1} parent=47 // pred_check_branch
          %303 = sbr.rel (%p301) target = $region60
        $region59: #{cnn_forward.1} parent=47 // pred_region
          %304 = dma.done [#allocation8], 46080
        $region60: #{cnn_forward.1} parent=47 // pred_fallthru
          _
        // Predicated region
        $region61: #{cnn_forward.1} parent=47 // pred_check
          %p305 = pneg %p129
        $region62: #{cnn_forward.1} parent=47 // pred_check_branch
          %307 = sbr.rel (%p305) target = $region64
        $region63: #{cnn_forward.1} parent=47 // pred_region
          %308 = dma.done [#allocation11], 64
        $region64: #{cnn_forward.1} parent=47 // pred_fallthru
          _
        // Predicated region
        $region65: #{cnn_forward.1} parent=47 // pred_check
          %p309 = pneg %p171
        $region66: #{cnn_forward.1} parent=47 // pred_check_branch
          %311 = sbr.rel (%p309) target = $region68
        $region67: #{cnn_forward.1} parent=47 // pred_region
          %312 = dma.done [#allocation11], 16
        $region68: #{cnn_forward.1} parent=47 // pred_fallthru
          _
        %p313 = scmp.lt.s32.totalorder %s24, 1
        %s314 = scalar_select %p313, %s24, 1
        %s315 = smul.addr %s314, 4
        %s316 = smul.addr %s315, 8
        %s317 = scalar_lea.vmem %s0, %s316
        %p318 = pneg %p45
        %p319 = pneg %p42
        %p320 = pneg %p66
        %p321 = pneg %p63
        %p322 = pneg %p87
        %p323 = pneg %p84
        %p324 = pneg %p108
        %p325 = pneg %p105
        %p326 = pneg %p129
        %p327 = pneg %p126
        %p328 = pneg %p150
        %p329 = pneg %p147
        %p330 = pneg %p171
        %p331 = pneg %p168
        %p332 = pneg %p197
        %p333 = pneg %p194
        %s334 = sand.u32 %s184, 1
        %s335 = scalar_lea.sflag [#allocation6], %s334
        %s336 = sand.u32 %s184, 1
        %s337 = scalar_lea.vmem [#allocation13], %s336
        %p338 = scmp.lt.s32.totalorder %s24, 1
        %s339 = scalar_select %p338, %s24, 1
        %s340 = smul.addr %s339, 4
        %s341 = smul.addr %s340, 8
        %s342 = scalar_lea.vmem %s0, %s341
        %vm344 = vcmask 261120
        %345 = vst.msk [vmem:[#allocation2] sm:$0xff] %vm344, 0.0
        %346 = vst.msk [vmem:[#allocation2 + $0x8] sm:$0xff] %vm344, 0.0
        %347 = vst.msk [vmem:[#allocation2 + $0x10] sm:$0xff] %vm344, 0.0
        %348 = vst.msk [vmem:[#allocation2 + $0x18] sm:$0xff] %vm344, 0.0
        %349 = vst.msk [vmem:[#allocation2 + $0x20] sm:$0xff] %vm344, 0.0
        %350 = vst [vmem:[#allocation3] sm:$0xff] 0.0
        %351 = vst [vmem:[#allocation3 + $0x8] sm:$0xff] 0.0
        %352 = vst.msk [vmem:[#allocation3 + $0x10] sm:$0xff] %vm344, 0.0
        %353 = vst [vmem:[#allocation3 + $0x18] sm:$0xff] 0.0
        %354 = vst [vmem:[#allocation3 + $0x20] sm:$0xff] 0.0
        %355 = vst.msk [vmem:[#allocation3 + $0x28] sm:$0xff] %vm344, 0.0
        %356 = vst [vmem:[#allocation3 + $0x30] sm:$0xff] 0.0
        %357 = vst [vmem:[#allocation3 + $0x38] sm:$0xff] 0.0
        %358 = vst.msk [vmem:[#allocation3 + $0x40] sm:$0xff] %vm344, 0.0
        %v359 = vld [vmem:[%s342] sm:$0xff]
        %v360 = vld [vmem:[%s342 + $0x8] sm:$0xff]
        %v361 = vld [vmem:[%s342 + $0x10] sm:$0xff]
        %v362 = vld [vmem:[%s342 + $0x18] sm:$0xf]
        %367 = vrot.lane.b32.xlu0 %v359, 2
        %v368 = vpop.permute.xlu0 %367
        %369 = vrot.lane.b32.xlu0 %v360, 2
        %v370 = vpop.permute.xlu0 %369
        %371 = vrot.lane.b32.xlu0 %v361, 2
        %v372 = vpop.permute.xlu0 %371
        %373 = vrot.lane.b32.xlu0 %v362, 2
        %v374 = vpop.permute.xlu0 %373
        %vm379 = vcmask 244752
        %380 = vst.msk [vmem:[#allocation2 + $0x2] sm:$0xff] %vm379, %v368
        %381 = vst.msk [vmem:[#allocation2 + $0xa] sm:$0xff] %vm379, %v370
        %382 = vst.msk [vmem:[#allocation2 + $0x12] sm:$0xff] %vm379, %v372
        %vm383 = vcmask 240656
        %384 = vst.msk [vmem:[#allocation2 + $0x1a] sm:$0xf] %vm383, %v374
        %v385 = vld [vmem:[#allocation2] sm:$0xff]
        %v386 = vld [vmem:[#allocation2 + $0x8] sm:$0xff]
        %v387 = vld [vmem:[#allocation2 + $0x10] sm:$0xff]
        %v388 = vld [vmem:[#allocation2 + $0x18] sm:$0xff]
        %v389 = vpack.c.bf16 %v386, %v385
        %v390 = vpack.c.bf16 %v388, %v387
        %v391 = vld [vmem:[#allocation4] sm:$0xff]
        %v392 = vld [vmem:[#allocation4 + $0x8] sm:$0xff]
        %v393 = vld [vmem:[#allocation4 + $0x10] sm:$0xff]
        %v394 = vld [vmem:[#allocation4 + $0x18] sm:$0xff]
        %v395 = vld [vmem:[#allocation4 + $0x20] sm:$0xff]
        %v396 = vld [vmem:[#allocation4 + $0x28] sm:$0xff]
        %v397 = vld [vmem:[#allocation4 + $0x30] sm:$0xff]
        %v398 = vld [vmem:[#allocation4 + $0x38] sm:$0xff]
        %v399 = vld [vmem:[#allocation2 + $0x1] sm:$0xff]
        %v400 = vld [vmem:[#allocation2 + $0x9] sm:$0xff]
        %v401 = vld [vmem:[#allocation2 + $0x11] sm:$0xff]
        %v402 = vld [vmem:[#allocation2 + $0x19] sm:$0xff]
        %v403 = vpack.c.bf16 %v400, %v399
        %v404 = vpack.c.bf16 %v402, %v401
        %s405 = scalar_lea.vmem [#allocation4], 64
        %v406 = vld [vmem:[%s405] sm:$0xff]
        %v407 = vld [vmem:[%s405 + $0x8] sm:$0xff]
        %v408 = vld [vmem:[%s405 + $0x10] sm:$0xff]
        %v409 = vld [vmem:[%s405 + $0x18] sm:$0xff]
        %v410 = vld [vmem:[%s405 + $0x20] sm:$0xff]
        %v411 = vld [vmem:[%s405 + $0x28] sm:$0xff]
        %v412 = vld [vmem:[%s405 + $0x30] sm:$0xff]
        %v413 = vld [vmem:[%s405 + $0x38] sm:$0xff]
        %v422 = vunpack.c.l.b16 %v406
        %v423 = vunpack.c.h.b16 %v406
        %v424 = vunpack.c.l.b16 %v407
        %v425 = vunpack.c.h.b16 %v407
        %v426 = vunpack.c.l.b16 %v408
        %v427 = vunpack.c.h.b16 %v408
        %v428 = vunpack.c.l.b16 %v409
        %v429 = vunpack.c.h.b16 %v409
        %v430 = vunpack.c.l.b16 %v410
        %v431 = vunpack.c.h.b16 %v410
        %v432 = vunpack.c.l.b16 %v411
        %v433 = vunpack.c.h.b16 %v411
        %v434 = vunpack.c.l.b16 %v412
        %v435 = vunpack.c.h.b16 %v412
        %v436 = vunpack.c.l.b16 %v413
        %v437 = vunpack.c.h.b16 %v413
        %v438 = vpack.c.b16 %v426, %v422
        %v439 = vpack.c.b16 %v427, %v423
        %v440 = vpack.c.b16 %v428, %v424
        %v441 = vpack.c.b16 %v429, %v425
        %v442 = vpack.c.b16 %v434, %v430
        %v443 = vpack.c.b16 %v435, %v431
        %v444 = vpack.c.b16 %v436, %v432
        %v445 = vpack.c.b16 %v437, %v433
        %v455 = vsel %vm344, %v403, 0
        %v458 = vsel %vm344, %v404, 0
        %460 = vmatprep.subr.bf16.mxu0 %v439
        %461 = vmatpush1.bf16.msra.mxu0 %v438
        %462 = vmatprep.subr.bf16.mxu0 %v443
        %463 = vmatpush1.bf16.msra.mxu0 %v442
        %464 = vmatprep.subr.bf16.mxu0 0
        %465 = vmatpush1.bf16.msra.mxu0 0
        %466 = vmatprep.subr.bf16.mxu0 0
        %467 = vmatpush1.bf16.msra.mxu0 0
        %468 = vmatprep.subr.bf16.mxu0 0
        %469 = vmatpush1.bf16.msra.mxu0 0
        %470 = vmatprep.subr.bf16.mxu0 0
        %471 = vmatpush1.bf16.msra.mxu0 0
        %472 = vmatprep.subr.bf16.mxu0 0
        %473 = vmatpush1.bf16.msra.mxu0 0
        %474 = vmatprep.subr.bf16.mxu0 0
        %475 = vmatpush1.bf16.msra.mxu0 0
        %476 = vmatprep.subr.bf16.mxu0 0
        %477 = vmatpush1.bf16.msra.mxu0 0
        %478 = vmatprep.subr.bf16.mxu0 0
        %479 = vmatpush1.bf16.msra.mxu0 0
        %480 = vmatprep.subr.bf16.mxu0 0
        %481 = vmatpush1.bf16.msra.mxu0 0
        %482 = vmatprep.subr.bf16.mxu0 0
        %483 = vmatpush1.bf16.msra.mxu0 0
        %484 = vmatprep.subr.bf16.mxu0 0
        %485 = vmatpush1.bf16.msra.mxu0 0
        %486 = vmatprep.subr.bf16.mxu0 0
        %487 = vmatpush1.bf16.msra.mxu0 0
        %488 = vmatprep.subr.bf16.mxu0 0
        %489 = vmatpush1.bf16.msra.mxu0 0
        %490 = vmatprep.subr.bf16.mxu0 0
        %491 = vmatpush1.bf16.msra.mxu0 0
        %492 = vmatprep.mubr.bf16.mxu0 0
        %493 = vmatmul.mubr.bf16.gmra.mrb[0].mxu0 %v455
        %v494 = vpop.f32.mrb[0].mxu0
        %v495 = vadd.f32 0.0, %v494
        %v496 = vpop.f32.mrb[0].mxu0
        %v497 = vadd.f32 0.0, %v496
        %v498 = vpop.f32.mrb[0].mxu0
        %v499 = vadd.f32 0.0, %v498
        %v500 = vpop.f32.mrb[0].mxu0
        %v501 = vadd.f32 0.0, %v500
        %502 = vmatprep.mubr.bf16.mxu0 0
        %503 = vmatmul.mubr.bf16.gmra.mrb[0].mxu0 %v458
        %v504 = vpop.f32.mrb[0].mxu0
        %v505 = vadd.f32 0.0, %v504
        %v506 = vpop.f32.mrb[0].mxu0
        %v507 = vadd.f32 0.0, %v506
        %v508 = vpop.f32.mrb[0].mxu0
        %v509 = vadd.f32 0.0, %v508
        %v510 = vpop.f32.mrb[0].mxu0
        %v511 = vadd.f32 0.0, %v510
        %512 = vdwg.mxu0
        %513 = vmatprep.subr.bf16.mxu0 %v441
        %514 = vmatpush1.bf16.msra.mxu0 %v440
        %515 = vmatprep.subr.bf16.mxu0 %v445
        %516 = vmatpush1.bf16.msra.mxu0 %v444
        %517 = vmatprep.subr.bf16.mxu0 0
        %518 = vmatpush1.bf16.msra.mxu0 0
        %519 = vmatprep.subr.bf16.mxu0 0
        %520 = vmatpush1.bf16.msra.mxu0 0
        %521 = vmatprep.subr.bf16.mxu0 0
        %522 = vmatpush1.bf16.msra.mxu0 0
        %523 = vmatprep.subr.bf16.mxu0 0
        %524 = vmatpush1.bf16.msra.mxu0 0
        %525 = vmatprep.subr.bf16.mxu0 0
        %526 = vmatpush1.bf16.msra.mxu0 0
        %527 = vmatprep.subr.bf16.mxu0 0
        %528 = vmatpush1.bf16.msra.mxu0 0
        %529 = vmatprep.subr.bf16.mxu0 0
        %530 = vmatpush1.bf16.msra.mxu0 0
        %531 = vmatprep.subr.bf16.mxu0 0
        %532 = vmatpush1.bf16.msra.mxu0 0
        %533 = vmatprep.subr.bf16.mxu0 0
        %534 = vmatpush1.bf16.msra.mxu0 0
        %535 = vmatprep.subr.bf16.mxu0 0
        %536 = vmatpush1.bf16.msra.mxu0 0
        %537 = vmatprep.subr.bf16.mxu0 0
        %538 = vmatpush1.bf16.msra.mxu0 0
        %539 = vmatprep.subr.bf16.mxu0 0
        %540 = vmatpush1.bf16.msra.mxu0 0
        %541 = vmatprep.subr.bf16.mxu0 0
        %542 = vmatpush1.bf16.msra.mxu0 0
        %543 = vmatprep.subr.bf16.mxu0 0
        %544 = vmatpush1.bf16.msra.mxu0 0
        %545 = vmatprep.mubr.bf16.mxu0 0
        %546 = vmatmul.mubr.bf16.gmra.mrb[0].mxu0 %v455
        %v547 = vpop.f32.mrb[0].mxu0
        %v548 = vadd.f32 0.0, %v547
        %v549 = vpop.f32.mrb[0].mxu0
        %v550 = vadd.f32 0.0, %v549
        %v551 = vpop.f32.mrb[0].mxu0
        %v552 = vadd.f32 0.0, %v551
        %v553 = vpop.f32.mrb[0].mxu0
        %v554 = vadd.f32 0.0, %v553
        %555 = vmatprep.mubr.bf16.mxu0 0
        %556 = vmatmul.mubr.bf16.gmra.mrb[0].mxu0 %v458
        %v557 = vpop.f32.mrb[0].mxu0
        %v558 = vadd.f32 0.0, %v557
        %v559 = vpop.f32.mrb[0].mxu0
        %v560 = vadd.f32 0.0, %v559
        %v561 = vpop.f32.mrb[0].mxu0
        %v562 = vadd.f32 0.0, %v561
        %v563 = vpop.f32.mrb[0].mxu0
        %v564 = vadd.f32 0.0, %v563
        %565 = vdwg.mxu0
        %v574 = vunpack.c.l.b16 %v391
        %v575 = vunpack.c.h.b16 %v391
        %v576 = vunpack.c.l.b16 %v392
        %v577 = vunpack.c.h.b16 %v392
        %v578 = vunpack.c.l.b16 %v393
        %v579 = vunpack.c.h.b16 %v393
        %v580 = vunpack.c.l.b16 %v394
        %v581 = vunpack.c.h.b16 %v394
        %v582 = vunpack.c.l.b16 %v395
        %v583 = vunpack.c.h.b16 %v395
        %v584 = vunpack.c.l.b16 %v396
        %v585 = vunpack.c.h.b16 %v396
        %v586 = vunpack.c.l.b16 %v397
        %v587 = vunpack.c.h.b16 %v397
        %v588 = vunpack.c.l.b16 %v398
        %v589 = vunpack.c.h.b16 %v398
        %v590 = vpack.c.b16 %v578, %v574
        %v591 = vpack.c.b16 %v579, %v575
        %v592 = vpack.c.b16 %v580, %v576
        %v593 = vpack.c.b16 %v581, %v577
        %v594 = vpack.c.b16 %v586, %v582
        %v595 = vpack.c.b16 %v587, %v583
        %v596 = vpack.c.b16 %v588, %v584
        %v597 = vpack.c.b16 %v589, %v585
        %v607 = vsel %vm344, %v389, 0
        %v610 = vsel %vm344, %v390, 0
        %612 = vmatprep.subr.bf16.mxu0 %v591
        %613 = vmatpush1.bf16.msra.mxu0 %v590
        %614 = vmatprep.subr.bf16.mxu0 %v595
        %615 = vmatpush1.bf16.msra.mxu0 %v594
        %616 = vmatprep.subr.bf16.mxu0 0
        %617 = vmatpush1.bf16.msra.mxu0 0
        %618 = vmatprep.subr.bf16.mxu0 0
        %619 = vmatpush1.bf16.msra.mxu0 0
        %620 = vmatprep.subr.bf16.mxu0 0
        %621 = vmatpush1.bf16.msra.mxu0 0
        %622 = vmatprep.subr.bf16.mxu0 0
        %623 = vmatpush1.bf16.msra.mxu0 0
        %624 = vmatprep.subr.bf16.mxu0 0
        %625 = vmatpush1.bf16.msra.mxu0 0
        %626 = vmatprep.subr.bf16.mxu0 0
        %627 = vmatpush1.bf16.msra.mxu0 0
        %628 = vmatprep.subr.bf16.mxu0 0
        %629 = vmatpush1.bf16.msra.mxu0 0
        %630 = vmatprep.subr.bf16.mxu0 0
        %631 = vmatpush1.bf16.msra.mxu0 0
        %632 = vmatprep.subr.bf16.mxu0 0
        %633 = vmatpush1.bf16.msra.mxu0 0
        %634 = vmatprep.subr.bf16.mxu0 0
        %635 = vmatpush1.bf16.msra.mxu0 0
        %636 = vmatprep.subr.bf16.mxu0 0
        %637 = vmatpush1.bf16.msra.mxu0 0
        %638 = vmatprep.subr.bf16.mxu0 0
        %639 = vmatpush1.bf16.msra.mxu0 0
        %640 = vmatprep.subr.bf16.mxu0 0
        %641 = vmatpush1.bf16.msra.mxu0 0
        %642 = vmatprep.subr.bf16.mxu0 0
        %643 = vmatpush1.bf16.msra.mxu0 0
        %644 = vmatprep.mubr.bf16.mxu0 0
        %645 = vmatmul.mubr.bf16.gmra.mrb[0].mxu0 %v607
        %v646 = vpop.f32.mrb[0].mxu0
        %v647 = vadd.f32 %v495, %v646
        %v648 = vpop.f32.mrb[0].mxu0
        %v649 = vadd.f32 %v497, %v648
        %v650 = vpop.f32.mrb[0].mxu0
        %v651 = vadd.f32 %v499, %v650
        %v652 = vpop.f32.mrb[0].mxu0
        %v653 = vadd.f32 %v501, %v652
        %654 = vmatprep.mubr.bf16.mxu0 0
        %655 = vmatmul.mubr.bf16.gmra.mrb[0].mxu0 %v610
        %v656 = vpop.f32.mrb[0].mxu0
        %v657 = vadd.f32 %v505, %v656
        %v658 = vpop.f32.mrb[0].mxu0
        %v659 = vadd.f32 %v507, %v658
        %v660 = vpop.f32.mrb[0].mxu0
        %v661 = vadd.f32 %v509, %v660
        %v662 = vpop.f32.mrb[0].mxu0
        %v663 = vadd.f32 %v511, %v662
        %664 = vdwg.mxu0
        %665 = vmatprep.subr.bf16.mxu0 %v593
        %666 = vmatpush1.bf16.msra.mxu0 %v592
        %667 = vmatprep.subr.bf16.mxu0 %v597
        %668 = vmatpush1.bf16.msra.mxu0 %v596
        %669 = vmatprep.subr.bf16.mxu0 0
        %670 = vmatpush1.bf16.msra.mxu0 0
        %671 = vmatprep.subr.bf16.mxu0 0
        %672 = vmatpush1.bf16.msra.mxu0 0
        %673 = vmatprep.subr.bf16.mxu0 0
        %674 = vmatpush1.bf16.msra.mxu0 0
        %675 = vmatprep.subr.bf16.mxu0 0
        %676 = vmatpush1.bf16.msra.mxu0 0
        %677 = vmatprep.subr.bf16.mxu0 0
        %678 = vmatpush1.bf16.msra.mxu0 0
        %679 = vmatprep.subr.bf16.mxu0 0
        %680 = vmatpush1.bf16.msra.mxu0 0
        %681 = vmatprep.subr.bf16.mxu0 0
        %682 = vmatpush1.bf16.msra.mxu0 0
        %683 = vmatprep.subr.bf16.mxu0 0
        %684 = vmatpush1.bf16.msra.mxu0 0
        %685 = vmatprep.subr.bf16.mxu0 0
        %686 = vmatpush1.bf16.msra.mxu0 0
        %687 = vmatprep.subr.bf16.mxu0 0
        %688 = vmatpush1.bf16.msra.mxu0 0
        %689 = vmatprep.subr.bf16.mxu0 0
        %690 = vmatpush1.bf16.msra.mxu0 0
        %691 = vmatprep.subr.bf16.mxu0 0
        %692 = vmatpush1.bf16.msra.mxu0 0
        %693 = vmatprep.subr.bf16.mxu0 0
        %694 = vmatpush1.bf16.msra.mxu0 0
        %695 = vmatprep.subr.bf16.mxu0 0
        %696 = vmatpush1.bf16.msra.mxu0 0
        %697 = vmatprep.mubr.bf16.mxu0 0
        %698 = vmatmul.mubr.bf16.gmra.mrb[0].mxu0 %v607
        %v699 = vpop.f32.mrb[0].mxu0
        %v700 = vadd.f32 %v548, %v699
        %v701 = vpop.f32.mrb[0].mxu0
        %v702 = vadd.f32 %v550, %v701
        %v703 = vpop.f32.mrb[0].mxu0
        %v704 = vadd.f32 %v552, %v703
        %v705 = vpop.f32.mrb[0].mxu0
        %v706 = vadd.f32 %v554, %v705
        %707 = vmatprep.mubr.bf16.mxu0 0
        %708 = vmatmul.mubr.bf16.gmra.mrb[0].mxu0 %v610
        %v709 = vpop.f32.mrb[0].mxu0
        %v710 = vadd.f32 %v558, %v709
        %v711 = vpop.f32.mrb[0].mxu0
        %v712 = vadd.f32 %v560, %v711
        %v713 = vpop.f32.mrb[0].mxu0
        %v714 = vadd.f32 %v562, %v713
        %v715 = vpop.f32.mrb[0].mxu0
        %v716 = vadd.f32 %v564, %v715
        %717 = vdwg.mxu0
        %v718 = vld [vmem:[#allocation2 + $0x2] sm:$0xff]
        %v719 = vld [vmem:[#allocation2 + $0xa] sm:$0xff]
        %v720 = vld [vmem:[#allocation2 + $0x12] sm:$0xff]
        %v721 = vld [vmem:[#allocation2 + $0x1a] sm:$0xff]
        %v722 = vpack.c.bf16 %v719, %v718
        %v723 = vpack.c.bf16 %v721, %v720
        %s724 = scalar_lea.vmem [#allocation4], 128
        %v725 = vld [vmem:[%s724] sm:$0xff]
        %v726 = vld [vmem:[%s724 + $0x8] sm:$0xff]
        %v727 = vld [vmem:[%s724 + $0x10] sm:$0xff]
        %v728 = vld [vmem:[%s724 + $0x18] sm:$0xff]
        %v729 = vld [vmem:[%s724 + $0x20] sm:$0xff]
        %v730 = vld [vmem:[%s724 + $0x28] sm:$0xff]
        %v731 = vld [vmem:[%s724 + $0x30] sm:$0xff]
        %v732 = vld [vmem:[%s724 + $0x38] sm:$0xff]
        %v741 = vunpack.c.l.b16 %v725
        %v742 = vunpack.c.h.b16 %v725
        %v743 = vunpack.c.l.b16 %v726
        %v744 = vunpack.c.h.b16 %v726
        %v745 = vunpack.c.l.b16 %v727
        %v746 = vunpack.c.h.b16 %v727
        %v747 = vunpack.c.l.b16 %v728
        %v748 = vunpack.c.h.b16 %v728
        %v749 = vunpack.c.l.b16 %v729
        %v750 = vunpack.c.h.b16 %v729
        %v751 = vunpack.c.l.b16 %v730
        %v752 = vunpack.c.h.b16 %v730
        %v753 = vunpack.c.l.b16 %v731
        %v754 = vunpack.c.h.b16 %v731
        %v755 = vunpack.c.l.b16 %v732
        %v756 = vunpack.c.h.b16 %v732
        %v757 = vpack.c.b16 %v745, %v741
        %v758 = vpack.c.b16 %v746, %v742
        %v759 = vpack.c.b16 %v747, %v743
        %v760 = vpack.c.b16 %v748, %v744
        %v761 = vpack.c.b16 %v753, %v749
        %v762 = vpack.c.b16 %v754, %v750
        %v763 = vpack.c.b16 %v755, %v751
        %v764 = vpack.c.b16 %v756, %v752
        %v774 = vsel %vm344, %v722, 0
        %v777 = vsel %vm344, %v723, 0
        %779 = vmatprep.subr.bf16.mxu0 %v758
        %780 = vmatpush1.bf16.msra.mxu0 %v757
        %781 = vmatprep.subr.bf16.mxu0 %v762
        %782 = vmatpush1.bf16.msra.mxu0 %v761
        %783 = vmatprep.subr.bf16.mxu0 0
        %784 = vmatpush1.bf16.msra.mxu0 0
        %785 = vmatprep.subr.bf16.mxu0 0
        %786 = vmatpush1.bf16.msra.mxu0 0
        %787 = vmatprep.subr.bf16.mxu0 0
        %788 = vmatpush1.bf16.msra.mxu0 0
        %789 = vmatprep.subr.bf16.mxu0 0
        %790 = vmatpush1.bf16.msra.mxu0 0
        %791 = vmatprep.subr.bf16.mxu0 0
        %792 = vmatpush1.bf16.msra.mxu0 0
        %793 = vmatprep.subr.bf16.mxu0 0
        %794 = vmatpush1.bf16.msra.mxu0 0
        %795 = vmatprep.subr.bf16.mxu0 0
        %796 = vmatpush1.bf16.msra.mxu0 0
        %797 = vmatprep.subr.bf16.mxu0 0
        %798 = vmatpush1.bf16.msra.mxu0 0
        %799 = vmatprep.subr.bf16.mxu0 0
        %800 = vmatpush1.bf16.msra.mxu0 0
        %801 = vmatprep.subr.bf16.mxu0 0
        %802 = vmatpush1.bf16.msra.mxu0 0
        %803 = vmatprep.subr.bf16.mxu0 0
        %804 = vmatpush1.bf16.msra.mxu0 0
        %805 = vmatprep.subr.bf16.mxu0 0
        %806 = vmatpush1.bf16.msra.mxu0 0
        %807 = vmatprep.subr.bf16.mxu0 0
        %808 = vmatpush1.bf16.msra.mxu0 0
        %809 = vmatprep.subr.bf16.mxu0 0
        %810 = vmatpush1.bf16.msra.mxu0 0
        %811 = vmatprep.mubr.bf16.mxu0 0
        %812 = vmatmul.mubr.bf16.gmra.mrb[0].mxu0 %v774
        %v813 = vpop.f32.mrb[0].mxu0
        %v814 = vadd.f32 0.0, %v813
        %v815 = vpop.f32.mrb[0].mxu0
        %v816 = vadd.f32 0.0, %v815
        %v817 = vpop.f32.mrb[0].mxu0
        %v818 = vadd.f32 0.0, %v817
        %v819 = vpop.f32.mrb[0].mxu0
        %v820 = vadd.f32 0.0, %v819
        %821 = vmatprep.mubr.bf16.mxu0 0
        %822 = vmatmul.mubr.bf16.gmra.mrb[0].mxu0 %v777
        %v823 = vpop.f32.mrb[0].mxu0
        %v824 = vadd.f32 0.0, %v823
        %v825 = vpop.f32.mrb[0].mxu0
        %v826 = vadd.f32 0.0, %v825
        %v827 = vpop.f32.mrb[0].mxu0
        %v828 = vadd.f32 0.0, %v827
        %v829 = vpop.f32.mrb[0].mxu0
        %v830 = vadd.f32 0.0, %v829
        %831 = vdwg.mxu0
        %832 = vmatprep.subr.bf16.mxu0 %v760
        %833 = vmatpush1.bf16.msra.mxu0 %v759
        %834 = vmatprep.subr.bf16.mxu0 %v764
        %835 = vmatpush1.bf16.msra.mxu0 %v763
        %836 = vmatprep.subr.bf16.mxu0 0
        %837 = vmatpush1.bf16.msra.mxu0 0
        %838 = vmatprep.subr.bf16.mxu0 0
        %839 = vmatpush1.bf16.msra.mxu0 0
        %840 = vmatprep.subr.bf16.mxu0 0
        %841 = vmatpush1.bf16.msra.mxu0 0
        %842 = vmatprep.subr.bf16.mxu0 0
        %843 = vmatpush1.bf16.msra.mxu0 0
        %844 = vmatprep.subr.bf16.mxu0 0
        %845 = vmatpush1.bf16.msra.mxu0 0
        %846 = vmatprep.subr.bf16.mxu0 0
        %847 = vmatpush1.bf16.msra.mxu0 0
        %848 = vmatprep.subr.bf16.mxu0 0
        %849 = vmatpush1.bf16.msra.mxu0 0
        %850 = vmatprep.subr.bf16.mxu0 0
        %851 = vmatpush1.bf16.msra.mxu0 0
        %852 = vmatprep.subr.bf16.mxu0 0
        %853 = vmatpush1.bf16.msra.mxu0 0
        %854 = vmatprep.subr.bf16.mxu0 0
        %855 = vmatpush1.bf16.msra.mxu0 0
        %856 = vmatprep.subr.bf16.mxu0 0
        %857 = vmatpush1.bf16.msra.mxu0 0
        %858 = vmatprep.subr.bf16.mxu0 0
        %859 = vmatpush1.bf16.msra.mxu0 0
        %860 = vmatprep.subr.bf16.mxu0 0
        %861 = vmatpush1.bf16.msra.mxu0 0
        %862 = vmatprep.subr.bf16.mxu0 0
        %863 = vmatpush1.bf16.msra.mxu0 0
        %864 = vmatprep.mubr.bf16.mxu0 0
        %865 = vmatmul.mubr.bf16.gmra.mrb[0].mxu0 %v774
        %v866 = vpop.f32.mrb[0].mxu0
        %v867 = vadd.f32 0.0, %v866
        %v868 = vpop.f32.mrb[0].mxu0
        %v869 = vadd.f32 0.0, %v868
        %v870 = vpop.f32.mrb[0].mxu0
        %v871 = vadd.f32 0.0, %v870
        %v872 = vpop.f32.mrb[0].mxu0
        %v873 = vadd.f32 0.0, %v872
        %874 = vmatprep.mubr.bf16.mxu0 0
        %875 = vmatmul.mubr.bf16.gmra.mrb[0].mxu0 %v777
        %v876 = vpop.f32.mrb[0].mxu0
        %v877 = vadd.f32 0.0, %v876
        %v878 = vpop.f32.mrb[0].mxu0
        %v879 = vadd.f32 0.0, %v878
        %v880 = vpop.f32.mrb[0].mxu0
        %v881 = vadd.f32 0.0, %v880
        %v882 = vpop.f32.mrb[0].mxu0
        %v883 = vadd.f32 0.0, %v882
        %884 = vdwg.mxu0
        %v885 = vadd.f32 %v647, %v814
        %v886 = vadd.f32 %v649, %v816
        %v887 = vadd.f32 %v700, %v867
        %v888 = vadd.f32 %v702, %v869
        %v889 = vadd.f32 %v651, %v818
        %v890 = vadd.f32 %v653, %v820
        %v891 = vadd.f32 %v704, %v871
        %v892 = vadd.f32 %v706, %v873
        %v893 = vadd.f32 %v657, %v824
        %v894 = vadd.f32 %v659, %v826
        %v895 = vadd.f32 %v710, %v877
        %v896 = vadd.f32 %v712, %v879
        %v897 = vadd.f32 %v661, %v828
        %v898 = vadd.f32 %v663, %v830
        %v899 = vadd.f32 %v714, %v881
        %v900 = vadd.f32 %v716, %v883
        %v901 = vld [vmem:[#allocation2 + $0x3] sm:$0xff]
        %v902 = vld [vmem:[#allocation2 + $0xb] sm:$0xff]
        %v903 = vld [vmem:[#allocation2 + $0x13] sm:$0xff]
        %v904 = vld [vmem:[#allocation2 + $0x1b] sm:$0xff]
        %v905 = vpack.c.bf16 %v902, %v901
        %v906 = vpack.c.bf16 %v904, %v903
        %s907 = scalar_lea.vmem [#allocation4], 192
        %v908 = vld [vmem:[%s907] sm:$0xff]
        %v909 = vld [vmem:[%s907 + $0x8] sm:$0xff]
        %v910 = vld [vmem:[%s907 + $0x10] sm:$0xff]
        %v911 = vld [vmem:[%s907 + $0x18] sm:$0xff]
        %v912 = vld [vmem:[%s907 + $0x20] sm:$0xff]
        %v913 = vld [vmem:[%s907 + $0x28] sm:$0xff]
        %v914 = vld [vmem:[%s907 + $0x30] sm:$0xff]
        %v915 = vld [vmem:[%s907 + $0x38] sm:$0xff]
        %v924 = vunpack.c.l.b16 %v908
        %v925 = vunpack.c.h.b16 %v908
        %v926 = vunpack.c.l.b16 %v909
        %v927 = vunpack.c.h.b16 %v909
        %v928 = vunpack.c.l.b16 %v910
        %v929 = vunpack.c.h.b16 %v910
        %v930 = vunpack.c.l.b16 %v911
        %v931 = vunpack.c.h.b16 %v911
        %v932 = vunpack.c.l.b16 %v912
        %v933 = vunpack.c.h.b16 %v912
        %v934 = vunpack.c.l.b16 %v913
        %v935 = vunpack.c.h.b16 %v913
        %v936 = vunpack.c.l.b16 %v914
        %v937 = vunpack.c.h.b16 %v914
        %v938 = vunpack.c.l.b16 %v915
        %v939 = vunpack.c.h.b16 %v915
        %v940 = vpack.c.b16 %v928, %v924
        %v941 = vpack.c.b16 %v929, %v925
        %v942 = vpack.c.b16 %v930, %v926
        %v943 = vpack.c.b16 %v931, %v927
        %v944 = vpack.c.b16 %v936, %v932
        %v945 = vpack.c.b16 %v937, %v933
        %v946 = vpack.c.b16 %v938, %v934
        %v947 = vpack.c.b16 %v939, %v935
        %v957 = vsel %vm344, %v905, 0
        %v960 = vsel %vm344, %v906, 0
        %962 = vmatprep.subr.bf16.mxu0 %v941
        %963 = vmatpush1.bf16.msra.mxu0 %v940
        %964 = vmatprep.subr.bf16.mxu0 %v945
        %965 = vmatpush1.bf16.msra.mxu0 %v944
        %966 = vmatprep.subr.bf16.mxu0 0
        %967 = vmatpush1.bf16.msra.mxu0 0
        %968 = vmatprep.subr.bf16.mxu0 0
        %969 = vmatpush1.bf16.msra.mxu0 0
        %970 = vmatprep.subr.bf16.mxu0 0
        %971 = vmatpush1.bf16.msra.mxu0 0
        %972 = vmatprep.subr.bf16.mxu0 0
        %973 = vmatpush1.bf16.msra.mxu0 0
        %974 = vmatprep.subr.bf16.mxu0 0
        %975 = vmatpush1.bf16.msra.mxu0 0
        %976 = vmatprep.subr.bf16.mxu0 0
        %977 = vmatpush1.bf16.msra.mxu0 0
        %978 = vmatprep.subr.bf16.mxu0 0
        %979 = vmatpush1.bf16.msra.mxu0 0
        %980 = vmatprep.subr.bf16.mxu0 0
        %981 = vmatpush1.bf16.msra.mxu0 0
        %982 = vmatprep.subr.bf16.mxu0 0
        %983 = vmatpush1.bf16.msra.mxu0 0
        %984 = vmatprep.subr.bf16.mxu0 0
        %985 = vmatpush1.bf16.msra.mxu0 0
        %986 = vmatprep.subr.bf16.mxu0 0
        %987 = vmatpush1.bf16.msra.mxu0 0
        %988 = vmatprep.subr.bf16.mxu0 0
        %989 = vmatpush1.bf16.msra.mxu0 0
        %990 = vmatprep.subr.bf16.mxu0 0
        %991 = vmatpush1.bf16.msra.mxu0 0
        %992 = vmatprep.subr.bf16.mxu0 0
        %993 = vmatpush1.bf16.msra.mxu0 0
        %994 = vmatprep.mubr.bf16.mxu0 0
        %995 = vmatmul.mubr.bf16.gmra.mrb[0].mxu0 %v957
        %v996 = vpop.f32.mrb[0].mxu0
        %v997 = vadd.f32 0.0, %v996
        %v998 = vpop.f32.mrb[0].mxu0
        %v999 = vadd.f32 0.0, %v998
        %v1000 = vpop.f32.mrb[0].mxu0
        %v1001 = vadd.f32 0.0, %v1000
        %v1002 = vpop.f32.mrb[0].mxu0
        %v1003 = vadd.f32 0.0, %v1002
        %1004 = vmatprep.mubr.bf16.mxu0 0
        %1005 = vmatmul.mubr.bf16.gmra.mrb[0].mxu0 %v960
        %v1006 = vpop.f32.mrb[0].mxu0
        %v1007 = vadd.f32 0.0, %v1006
        %v1008 = vpop.f32.mrb[0].mxu0
        %v1009 = vadd.f32 0.0, %v1008
        %v1010 = vpop.f32.mrb[0].mxu0
        %v1011 = vadd.f32 0.0, %v1010
        %v1012 = vpop.f32.mrb[0].mxu0
        %v1013 = vadd.f32 0.0, %v1012
        %1014 = vdwg.mxu0
        %1015 = vmatprep.subr.bf16.mxu0 %v943
        %1016 = vmatpush1.bf16.msra.mxu0 %v942
        %1017 = vmatprep.subr.bf16.mxu0 %v947
        %1018 = vmatpush1.bf16.msra.mxu0 %v946
        %1019 = vmatprep.subr.bf16.mxu0 0
        %1020 = vmatpush1.bf16.msra.mxu0 0
        %1021 = vmatprep.subr.bf16.mxu0 0
        %1022 = vmatpush1.bf16.msra.mxu0 0
        %1023 = vmatprep.subr.bf16.mxu0 0
        %1024 = vmatpush1.bf16.msra.mxu0 0
        %1025 = vmatprep.subr.bf16.mxu0 0
        %1026 = vmatpush1.bf16.msra.mxu0 0
        %1027 = vmatprep.subr.bf16.mxu0 0
        %1028 = vmatpush1.bf16.msra.mxu0 0
        %1029 = vmatprep.subr.bf16.mxu0 0
        %1030 = vmatpush1.bf16.msra.mxu0 0
        %1031 = vmatprep.subr.bf16.mxu0 0
        %1032 = vmatpush1.bf16.msra.mxu0 0
        %1033 = vmatprep.subr.bf16.mxu0 0
        %1034 = vmatpush1.bf16.msra.mxu0 0
        %1035 = vmatprep.subr.bf16.mxu0 0
        %1036 = vmatpush1.bf16.msra.mxu0 0
        %1037 = vmatprep.subr.bf16.mxu0 0
        %1038 = vmatpush1.bf16.msra.mxu0 0
        %1039 = vmatprep.subr.bf16.mxu0 0
        %1040 = vmatpush1.bf16.msra.mxu0 0
        %1041 = vmatprep.subr.bf16.mxu0 0
        %1042 = vmatpush1.bf16.msra.mxu0 0
        %1043 = vmatprep.subr.bf16.mxu0 0
        %1044 = vmatpush1.bf16.msra.mxu0 0
        %1045 = vmatprep.subr.bf16.mxu0 0
        %1046 = vmatpush1.bf16.msra.mxu0 0
        %1047 = vmatprep.mubr.bf16.mxu0 0
        %1048 = vmatmul.mubr.bf16.gmra.mrb[0].mxu0 %v957
        %v1049 = vpop.f32.mrb[0].mxu0
        %v1050 = vadd.f32 0.0, %v1049
        %v1051 = vpop.f32.mrb[0].mxu0
        %v1052 = vadd.f32 0.0, %v1051
        %v1053 = vpop.f32.mrb[0].mxu0
        %v1054 = vadd.f32 0.0, %v1053
        %v1055 = vpop.f32.mrb[0].mxu0
        %v1056 = vadd.f32 0.0, %v1055
        %1057 = vmatprep.mubr.bf16.mxu0 0
        %1058 = vmatmul.mubr.bf16.gmra.mrb[0].mxu0 %v960
        %v1059 = vpop.f32.mrb[0].mxu0
        %v1060 = vadd.f32 0.0, %v1059
        %v1061 = vpop.f32.mrb[0].mxu0
        %v1062 = vadd.f32 0.0, %v1061
        %v1063 = vpop.f32.mrb[0].mxu0
        %v1064 = vadd.f32 0.0, %v1063
        %v1065 = vpop.f32.mrb[0].mxu0
        %v1066 = vadd.f32 0.0, %v1065
        %1067 = vdwg.mxu0
        %v1068 = vadd.f32 %v885, %v997
        %v1069 = vadd.f32 %v886, %v999
        %v1070 = vadd.f32 %v887, %v1050
        %v1071 = vadd.f32 %v888, %v1052
        %v1072 = vadd.f32 %v889, %v1001
        %v1073 = vadd.f32 %v890, %v1003
        %v1074 = vadd.f32 %v891, %v1054
        %v1075 = vadd.f32 %v892, %v1056
        %v1076 = vadd.f32 %v893, %v1007
        %v1077 = vadd.f32 %v894, %v1009
        %v1078 = vadd.f32 %v895, %v1060
        %v1079 = vadd.f32 %v896, %v1062
        %v1080 = vadd.f32 %v897, %v1011
        %v1081 = vadd.f32 %v898, %v1013
        %v1082 = vadd.f32 %v899, %v1064
        %v1083 = vadd.f32 %v900, %v1066
        %v1084 = vld [vmem:[#allocation2 + $0x4] sm:$0xff]
        %v1085 = vld [vmem:[#allocation2 + $0xc] sm:$0xff]
        %v1086 = vld [vmem:[#allocation2 + $0x14] sm:$0xff]
        %v1087 = vld [vmem:[#allocation2 + $0x1c] sm:$0xff]
        %v1088 = vpack.c.bf16 %v1085, %v1084
        %v1089 = vpack.c.bf16 %v1087, %v1086
        %s1090 = scalar_lea.vmem [#allocation4], 256
        %v1091 = vld [vmem:[%s1090] sm:$0xff]
        %v1092 = vld [vmem:[%s1090 + $0x8] sm:$0xff]
        %v1093 = vld [vmem:[%s1090 + $0x10] sm:$0xff]
        %v1094 = vld [vmem:[%s1090 + $0x18] sm:$0xff]
        %v1095 = vld [vmem:[%s1090 + $0x20] sm:$0xff]
        %v1096 = vld [vmem:[%s1090 + $0x28] sm:$0xff]
        %v1097 = vld [vmem:[%s1090 + $0x30] sm:$0xff]
        %v1098 = vld [vmem:[%s1090 + $0x38] sm:$0xff]
        %v1107 = vunpack.c.l.b16 %v1091
        %v1108 = vunpack.c.h.b16 %v1091
        %v1109 = vunpack.c.l.b16 %v1092
        %v1110 = vunpack.c.h.b16 %v1092
        %v1111 = vunpack.c.l.b16 %v1093
        %v1112 = vunpack.c.h.b16 %v1093
        %v1113 = vunpack.c.l.b16 %v1094
        %v1114 = vunpack.c.h.b16 %v1094
        %v1115 = vunpack.c.l.b16 %v1095
        %v1116 = vunpack.c.h.b16 %v1095
        %v1117 = vunpack.c.l.b16 %v1096
        %v1118 = vunpack.c.h.b16 %v1096
        %v1119 = vunpack.c.l.b16 %v1097
        %v1120 = vunpack.c.h.b16 %v1097
        %v1121 = vunpack.c.l.b16 %v1098
        %v1122 = vunpack.c.h.b16 %v1098
        %v1123 = vpack.c.b16 %v1111, %v1107
        %v1124 = vpack.c.b16 %v1112, %v1108
        %v1125 = vpack.c.b16 %v1113, %v1109
        %v1126 = vpack.c.b16 %v1114, %v1110
        %v1127 = vpack.c.b16 %v1119, %v1115
        %v1128 = vpack.c.b16 %v1120, %v1116
        %v1129 = vpack.c.b16 %v1121, %v1117
        %v1130 = vpack.c.b16 %v1122, %v1118
        %v1140 = vsel %vm344, %v1088, 0
        %v1143 = vsel %vm344, %v1089, 0
        %1145 = vmatprep.subr.bf16.mxu0 %v1124
        %1146 = vmatpush1.bf16.msra.mxu0 %v1123
        %1147 = vmatprep.subr.bf16.mxu0 %v1128
        %1148 = vmatpush1.bf16.msra.mxu0 %v1127
        %1149 = vmatprep.subr.bf16.mxu0 0
        %1150 = vmatpush1.bf16.msra.mxu0 0
        %1151 = vmatprep.subr.bf16.mxu0 0
        %1152 = vmatpush1.bf16.msra.mxu0 0
        %1153 = vmatprep.subr.bf16.mxu0 0
        %1154 = vmatpush1.bf16.msra.mxu0 0
        %1155 = vmatprep.subr.bf16.mxu0 0
        %1156 = vmatpush1.bf16.msra.mxu0 0
        %1157 = vmatprep.subr.bf16.mxu0 0
        %1158 = vmatpush1.bf16.msra.mxu0 0
        %1159 = vmatprep.subr.bf16.mxu0 0
        %1160 = vmatpush1.bf16.msra.mxu0 0
        %1161 = vmatprep.subr.bf16.mxu0 0
        %1162 = vmatpush1.bf16.msra.mxu0 0
        %1163 = vmatprep.subr.bf16.mxu0 0
        %1164 = vmatpush1.bf16.msra.mxu0 0
        %1165 = vmatprep.subr.bf16.mxu0 0
        %1166 = vmatpush1.bf16.msra.mxu0 0
        %1167 = vmatprep.subr.bf16.mxu0 0
        %1168 = vmatpush1.bf16.msra.mxu0 0
        %1169 = vmatprep.subr.bf16.mxu0 0
        %1170 = vmatpush1.bf16.msra.mxu0 0
        %1171 = vmatprep.subr.bf16.mxu0 0
        %1172 = vmatpush1.bf16.msra.mxu0 0
        %1173 = vmatprep.subr.bf16.mxu0 0
        %1174 = vmatpush1.bf16.msra.mxu0 0
        %1175 = vmatprep.subr.bf16.mxu0 0
        %1176 = vmatpush1.bf16.msra.mxu0 0
        %1177 = vmatprep.mubr.bf16.mxu0 0
        %1178 = vmatmul.mubr.bf16.gmra.mrb[0].mxu0 %v1140
        %v1179 = vpop.f32.mrb[0].mxu0
        %v1180 = vadd.f32 0.0, %v1179
        %v1181 = vpop.f32.mrb[0].mxu0
        %v1182 = vadd.f32 0.0, %v1181
        %v1183 = vpop.f32.mrb[0].mxu0
        %v1184 = vadd.f32 0.0, %v1183
        %v1185 = vpop.f32.mrb[0].mxu0
        %v1186 = vadd.f32 0.0, %v1185
        %1187 = vmatprep.mubr.bf16.mxu0 0
        %1188 = vmatmul.mubr.bf16.gmra.mrb[0].mxu0 %v1143
        %v1189 = vpop.f32.mrb[0].mxu0
        %v1190 = vadd.f32 0.0, %v1189
        %v1191 = vpop.f32.mrb[0].mxu0
        %v1192 = vadd.f32 0.0, %v1191
        %v1193 = vpop.f32.mrb[0].mxu0
        %v1194 = vadd.f32 0.0, %v1193
        %v1195 = vpop.f32.mrb[0].mxu0
        %v1196 = vadd.f32 0.0, %v1195
        %1197 = vdwg.mxu0
        %1198 = vmatprep.subr.bf16.mxu0 %v1126
        %1199 = vmatpush1.bf16.msra.mxu0 %v1125
        %1200 = vmatprep.subr.bf16.mxu0 %v1130
        %1201 = vmatpush1.bf16.msra.mxu0 %v1129
        %1202 = vmatprep.subr.bf16.mxu0 0
        %1203 = vmatpush1.bf16.msra.mxu0 0
        %1204 = vmatprep.subr.bf16.mxu0 0
        %1205 = vmatpush1.bf16.msra.mxu0 0
        %1206 = vmatprep.subr.bf16.mxu0 0
        %1207 = vmatpush1.bf16.msra.mxu0 0
        %1208 = vmatprep.subr.bf16.mxu0 0
        %1209 = vmatpush1.bf16.msra.mxu0 0
        %1210 = vmatprep.subr.bf16.mxu0 0
        %1211 = vmatpush1.bf16.msra.mxu0 0
        %1212 = vmatprep.subr.bf16.mxu0 0
        %1213 = vmatpush1.bf16.msra.mxu0 0
        %1214 = vmatprep.subr.bf16.mxu0 0
        %1215 = vmatpush1.bf16.msra.mxu0 0
        %1216 = vmatprep.subr.bf16.mxu0 0
        %1217 = vmatpush1.bf16.msra.mxu0 0
        %1218 = vmatprep.subr.bf16.mxu0 0
        %1219 = vmatpush1.bf16.msra.mxu0 0
        %1220 = vmatprep.subr.bf16.mxu0 0
        %1221 = vmatpush1.bf16.msra.mxu0 0
        %1222 = vmatprep.subr.bf16.mxu0 0
        %1223 = vmatpush1.bf16.msra.mxu0 0
        %1224 = vmatprep.subr.bf16.mxu0 0
        %1225 = vmatpush1.bf16.msra.mxu0 0
        %1226 = vmatprep.subr.bf16.mxu0 0
        %1227 = vmatpush1.bf16.msra.mxu0 0
        %1228 = vmatprep.subr.bf16.mxu0 0
        %1229 = vmatpush1.bf16.msra.mxu0 0
        %1230 = vmatprep.mubr.bf16.mxu0 0
        %1231 = vmatmul.mubr.bf16.gmra.mrb[0].mxu0 %v1140
        %v1232 = vpop.f32.mrb[0].mxu0
        %v1233 = vadd.f32 0.0, %v1232
        %v1234 = vpop.f32.mrb[0].mxu0
        %v1235 = vadd.f32 0.0, %v1234
        %v1236 = vpop.f32.mrb[0].mxu0
        %v1237 = vadd.f32 0.0, %v1236
        %v1238 = vpop.f32.mrb[0].mxu0
        %v1239 = vadd.f32 0.0, %v1238
        %1240 = vmatprep.mubr.bf16.mxu0 0
        %1241 = vmatmul.mubr.bf16.gmra.mrb[0].mxu0 %v1143
        %v1242 = vpop.f32.mrb[0].mxu0
        %v1243 = vadd.f32 0.0, %v1242
        %v1244 = vpop.f32.mrb[0].mxu0
        %v1245 = vadd.f32 0.0, %v1244
        %v1246 = vpop.f32.mrb[0].mxu0
        %v1247 = vadd.f32 0.0, %v1246
        %v1248 = vpop.f32.mrb[0].mxu0
        %v1249 = vadd.f32 0.0, %v1248
        %1250 = vdwg.mxu0
        %v1251 = vadd.f32 %v1068, %v1180
        %v1252 = vadd.f32 %v1069, %v1182
        %v1253 = vadd.f32 %v1070, %v1233
        %v1254 = vadd.f32 %v1071, %v1235
        %v1255 = vadd.f32 %v1072, %v1184
        %v1256 = vadd.f32 %v1073, %v1186
        %v1257 = vadd.f32 %v1074, %v1237
        %v1258 = vadd.f32 %v1075, %v1239
        %v1259 = vadd.f32 %v1076, %v1190
        %v1260 = vadd.f32 %v1077, %v1192
        %v1261 = vadd.f32 %v1078, %v1243
        %v1262 = vadd.f32 %v1079, %v1245
        %v1263 = vadd.f32 %v1080, %v1194
        %v1264 = vadd.f32 %v1081, %v1196
        %v1265 = vadd.f32 %v1082, %v1247
        %v1266 = vadd.f32 %v1083, %v1249
        %v1267 = vld [vmem:[#allocation7] sm:$0xf]
        %v1269 = vlaneseq
        %v1270 = vshrl.u32 %v1269, 7
        %v1271 = vsub.s32 0, %v1270
        %v1272 = vrot.slane %v1267, %v1271
        %v1273 = vlaneseq
        %v1274 = vshrl.u32 %v1273, 7
        %v1275 = vsub.s32 1, %v1274
        %v1276 = vrot.slane %v1267, %v1275
        %v1277 = vlaneseq
        %v1278 = vshrl.u32 %v1277, 7
        %v1279 = vsub.s32 2, %v1278
        %v1280 = vrot.slane %v1267, %v1279
        %v1281 = vlaneseq
        %v1282 = vshrl.u32 %v1281, 7
        %v1283 = vsub.s32 3, %v1282
        %v1284 = vrot.slane %v1267, %v1283
        %v1289 = vadd.f32 %v1251, %v1272
        %v1290 = vadd.f32 %v1252, %v1276
        %v1291 = vadd.f32 %v1253, %v1280
        %v1292 = vadd.f32 %v1254, %v1284
        %v1293 = vadd.f32 %v1255, %v1272
        %v1294 = vadd.f32 %v1256, %v1276
        %v1295 = vadd.f32 %v1257, %v1280
        %v1296 = vadd.f32 %v1258, %v1284
        %v1297 = vadd.f32 %v1259, %v1272
        %v1298 = vadd.f32 %v1260, %v1276
        %v1299 = vadd.f32 %v1261, %v1280
        %v1300 = vadd.f32 %v1262, %v1284
        %v1301 = vadd.f32 %v1263, %v1272
        %v1302 = vadd.f32 %v1264, %v1276
        %v1303 = vadd.f32 %v1265, %v1280
        %v1304 = vadd.f32 %v1266, %v1284
        %v1305 = vmax.f32 %v1289, 0.0
        %v1306 = vmax.f32 %v1290, 0.0
        %v1307 = vmax.f32 %v1291, 0.0
        %v1308 = vmax.f32 %v1292, 0.0
        %v1309 = vmax.f32 %v1293, 0.0
        %v1310 = vmax.f32 %v1294, 0.0
        %v1311 = vmax.f32 %v1295, 0.0
        %v1312 = vmax.f32 %v1296, 0.0
        %v1313 = vmax.f32 %v1297, 0.0
        %v1314 = vmax.f32 %v1298, 0.0
        %v1315 = vmax.f32 %v1299, 0.0
        %v1316 = vmax.f32 %v1300, 0.0
        %v1317 = vmax.f32 %v1301, 0.0
        %v1318 = vmax.f32 %v1302, 0.0
        %v1319 = vmax.f32 %v1303, 0.0
        %v1320 = vmax.f32 %v1304, 0.0
        %1325 = vrot.lane.b32.xlu0 %v1305, 96
        %v1326 = vpop.permute.xlu0 %1325
        %1327 = vrot.lane.b32.xlu0 %v1309, 96
        %v1328 = vpop.permute.xlu0 %1327
        %1329 = vrot.lane.b32.xlu0 %v1313, 96
        %v1330 = vpop.permute.xlu0 %1329
        %1331 = vrot.lane.b32.xlu0 %v1317, 96
        %v1332 = vpop.permute.xlu0 %1331
        %1337 = vrot.lane.b32.xlu0 %v1305, 64
        %v1338 = vpop.permute.xlu0 %1337
        %1339 = vrot.lane.b32.xlu0 %v1309, 64
        %v1340 = vpop.permute.xlu0 %1339
        %1341 = vrot.lane.b32.xlu0 %v1313, 64
        %v1342 = vpop.permute.xlu0 %1341
        %1343 = vrot.lane.b32.xlu0 %v1317, 64
        %v1344 = vpop.permute.xlu0 %1343
        %1349 = vrot.lane.b32.xlu0 %v1305, 32
        %v1350 = vpop.permute.xlu0 %1349
        %1351 = vrot.lane.b32.xlu0 %v1309, 32
        %v1352 = vpop.permute.xlu0 %1351
        %1353 = vrot.lane.b32.xlu0 %v1313, 32
        %v1354 = vpop.permute.xlu0 %1353
        %1355 = vrot.lane.b32.xlu0 %v1317, 32
        %v1356 = vpop.permute.xlu0 %1355
        %1365 = vrot.lane.b32.xlu0 %v1306, 96
        %v1366 = vpop.permute.xlu0 %1365
        %1367 = vrot.lane.b32.xlu0 %v1310, 96
        %v1368 = vpop.permute.xlu0 %1367
        %1369 = vrot.lane.b32.xlu0 %v1314, 96
        %v1370 = vpop.permute.xlu0 %1369
        %1371 = vrot.lane.b32.xlu0 %v1318, 96
        %v1372 = vpop.permute.xlu0 %1371
        %1377 = vrot.lane.b32.xlu0 %v1306, 64
        %v1378 = vpop.permute.xlu0 %1377
        %1379 = vrot.lane.b32.xlu0 %v1310, 64
        %v1380 = vpop.permute.xlu0 %1379
        %1381 = vrot.lane.b32.xlu0 %v1314, 64
        %v1382 = vpop.permute.xlu0 %1381
        %1383 = vrot.lane.b32.xlu0 %v1318, 64
        %v1384 = vpop.permute.xlu0 %1383
        %1389 = vrot.lane.b32.xlu0 %v1306, 32
        %v1390 = vpop.permute.xlu0 %1389
        %1391 = vrot.lane.b32.xlu0 %v1310, 32
        %v1392 = vpop.permute.xlu0 %1391
        %1393 = vrot.lane.b32.xlu0 %v1314, 32
        %v1394 = vpop.permute.xlu0 %1393
        %1395 = vrot.lane.b32.xlu0 %v1318, 32
        %v1396 = vpop.permute.xlu0 %1395
        %1405 = vrot.lane.b32.xlu0 %v1307, 96
        %v1406 = vpop.permute.xlu0 %1405
        %1407 = vrot.lane.b32.xlu0 %v1311, 96
        %v1408 = vpop.permute.xlu0 %1407
        %1409 = vrot.lane.b32.xlu0 %v1315, 96
        %v1410 = vpop.permute.xlu0 %1409
        %1411 = vrot.lane.b32.xlu0 %v1319, 96
        %v1412 = vpop.permute.xlu0 %1411
        %1417 = vrot.lane.b32.xlu0 %v1307, 64
        %v1418 = vpop.permute.xlu0 %1417
        %1419 = vrot.lane.b32.xlu0 %v1311, 64
        %v1420 = vpop.permute.xlu0 %1419
        %1421 = vrot.lane.b32.xlu0 %v1315, 64
        %v1422 = vpop.permute.xlu0 %1421
        %1423 = vrot.lane.b32.xlu0 %v1319, 64
        %v1424 = vpop.permute.xlu0 %1423
        %1429 = vrot.lane.b32.xlu0 %v1307, 32
        %v1430 = vpop.permute.xlu0 %1429
        %1431 = vrot.lane.b32.xlu0 %v1311, 32
        %v1432 = vpop.permute.xlu0 %1431
        %1433 = vrot.lane.b32.xlu0 %v1315, 32
        %v1434 = vpop.permute.xlu0 %1433
        %1435 = vrot.lane.b32.xlu0 %v1319, 32
        %v1436 = vpop.permute.xlu0 %1435
        %1445 = vrot.lane.b32.xlu0 %v1308, 96
        %v1446 = vpop.permute.xlu0 %1445
        %1447 = vrot.lane.b32.xlu0 %v1312, 96
        %v1448 = vpop.permute.xlu0 %1447
        %1449 = vrot.lane.b32.xlu0 %v1316, 96
        %v1450 = vpop.permute.xlu0 %1449
        %1451 = vrot.lane.b32.xlu0 %v1320, 96
        %v1452 = vpop.permute.xlu0 %1451
        %v1457 = vcombine.low %v1305, %v1338
        %v1458 = vcombine.high %v1305, %v1338
        %v1460 = vunpack.c.l.s4 1983009808
        %v1461 = vunpack.c.0.s8 %v1460
        %v1462 = vlaneseq
        %v1463 = vshrl.u32 %v1462, 7
        %v1464 = vsub.s32 %v1461, %v1463
        %v1465 = vrot.slane %v1457, %v1464
        %v1467 = vunpack.c.l.s4 1983009808
        %v1468 = vunpack.c.0.s8 %v1467
        %v1469 = vlaneseq
        %v1470 = vshrl.u32 %v1469, 7
        %v1471 = vsub.s32 %v1468, %v1470
        %v1472 = vrot.slane %v1458, %v1471
        %v1473 = vcombine.low %v1326, %v1350
        %v1474 = vcombine.high %v1326, %v1350
        %v1476 = vunpack.c.l.s4 1983009808
        %v1477 = vunpack.c.0.s8 %v1476
        %v1478 = vlaneseq
        %v1479 = vshrl.u32 %v1478, 7
        %v1480 = vsub.s32 %v1477, %v1479
        %v1481 = vrot.slane %v1473, %v1480
        %v1483 = vunpack.c.l.s4 1983009808
        %v1484 = vunpack.c.0.s8 %v1483
        %v1485 = vlaneseq
        %v1486 = vshrl.u32 %v1485, 7
        %v1487 = vsub.s32 %v1484, %v1486
        %v1488 = vrot.slane %v1474, %v1487
        %v1489 = vcombine.low %v1306, %v1378
        %v1490 = vcombine.high %v1306, %v1378
        %v1492 = vunpack.c.l.s4 1983009808
        %v1493 = vunpack.c.0.s8 %v1492
        %v1494 = vlaneseq
        %v1495 = vshrl.u32 %v1494, 7
        %v1496 = vsub.s32 %v1493, %v1495
        %v1497 = vrot.slane %v1489, %v1496
        %v1499 = vunpack.c.l.s4 1983009808
        %v1500 = vunpack.c.0.s8 %v1499
        %v1501 = vlaneseq
        %v1502 = vshrl.u32 %v1501, 7
        %v1503 = vsub.s32 %v1500, %v1502
        %v1504 = vrot.slane %v1490, %v1503
        %v1505 = vcombine.low %v1366, %v1390
        %v1506 = vcombine.high %v1366, %v1390
        %v1508 = vunpack.c.l.s4 1983009808
        %v1509 = vunpack.c.0.s8 %v1508
        %v1510 = vlaneseq
        %v1511 = vshrl.u32 %v1510, 7
        %v1512 = vsub.s32 %v1509, %v1511
        %v1513 = vrot.slane %v1505, %v1512
        %v1515 = vunpack.c.l.s4 1983009808
        %v1516 = vunpack.c.0.s8 %v1515
        %v1517 = vlaneseq
        %v1518 = vshrl.u32 %v1517, 7
        %v1519 = vsub.s32 %v1516, %v1518
        %v1520 = vrot.slane %v1506, %v1519
        %v1521 = vcombine.low %v1465, %v1481
        %v1522 = vcombine.high %v1465, %v1481
        %v1524 = vunpack.c.l.s4 1934713408
        %v1525 = vunpack.c.0.s8 %v1524
        %v1526 = vlaneseq
        %v1527 = vshrl.u32 %v1526, 7
        %v1528 = vsub.s32 %v1525, %v1527
        %v1529 = vrot.slane %v1521, %v1528
        %v1531 = vunpack.c.l.s4 1934713408
        %v1532 = vunpack.c.0.s8 %v1531
        %v1533 = vlaneseq
        %v1534 = vshrl.u32 %v1533, 7
        %v1535 = vsub.s32 %v1532, %v1534
        %v1536 = vrot.slane %v1522, %v1535
        %v1537 = vcombine.low %v1472, %v1488
        %v1538 = vcombine.high %v1472, %v1488
        %v1540 = vunpack.c.l.s4 1934713408
        %v1541 = vunpack.c.0.s8 %v1540
        %v1542 = vlaneseq
        %v1543 = vshrl.u32 %v1542, 7
        %v1544 = vsub.s32 %v1541, %v1543
        %v1545 = vrot.slane %v1537, %v1544
        %v1547 = vunpack.c.l.s4 1934713408
        %v1548 = vunpack.c.0.s8 %v1547
        %v1549 = vlaneseq
        %v1550 = vshrl.u32 %v1549, 7
        %v1551 = vsub.s32 %v1548, %v1550
        %v1552 = vrot.slane %v1538, %v1551
        %v1553 = vcombine.low %v1497, %v1513
        %v1554 = vcombine.high %v1497, %v1513
        %v1556 = vunpack.c.l.s4 1934713408
        %v1557 = vunpack.c.0.s8 %v1556
        %v1558 = vlaneseq
        %v1559 = vshrl.u32 %v1558, 7
        %v1560 = vsub.s32 %v1557, %v1559
        %v1561 = vrot.slane %v1553, %v1560
        %v1563 = vunpack.c.l.s4 1934713408
        %v1564 = vunpack.c.0.s8 %v1563
        %v1565 = vlaneseq
        %v1566 = vshrl.u32 %v1565, 7
        %v1567 = vsub.s32 %v1564, %v1566
        %v1568 = vrot.slane %v1554, %v1567
        %v1569 = vcombine.low %v1504, %v1520
        %v1570 = vcombine.high %v1504, %v1520
        %v1572 = vunpack.c.l.s4 1934713408
        %v1573 = vunpack.c.0.s8 %v1572
        %v1574 = vlaneseq
        %v1575 = vshrl.u32 %v1574, 7
        %v1576 = vsub.s32 %v1573, %v1575
        %v1577 = vrot.slane %v1569, %v1576
        %v1579 = vunpack.c.l.s4 1934713408
        %v1580 = vunpack.c.0.s8 %v1579
        %v1581 = vlaneseq
        %v1582 = vshrl.u32 %v1581, 7
        %v1583 = vsub.s32 %v1580, %v1582
        %v1584 = vrot.slane %v1570, %v1583
        %v1585 = vcombine.low %v1529, %v1561
        %v1586 = vcombine.high %v1529, %v1561
        %v1587 = vcombine.low %v1536, %v1568
        %v1588 = vcombine.high %v1536, %v1568
        %v1589 = vcombine.low %v1545, %v1577
        %v1590 = vcombine.high %v1545, %v1577
        %v1591 = vcombine.low %v1552, %v1584
        %v1592 = vcombine.high %v1552, %v1584
        %v1593 = vcombine.low %v1307, %v1418
        %v1594 = vcombine.high %v1307, %v1418
        %v1596 = vunpack.c.l.s4 1983009808
        %v1597 = vunpack.c.0.s8 %v1596
        %v1598 = vlaneseq
        %v1599 = vshrl.u32 %v1598, 7
        %v1600 = vsub.s32 %v1597, %v1599
        %v1601 = vrot.slane %v1593, %v1600
        %v1603 = vunpack.c.l.s4 1983009808
        %v1604 = vunpack.c.0.s8 %v1603
        %v1605 = vlaneseq
        %v1606 = vshrl.u32 %v1605, 7
        %v1607 = vsub.s32 %v1604, %v1606
        %v1608 = vrot.slane %v1594, %v1607
        %v1609 = vcombine.low %v1406, %v1430
        %v1610 = vcombine.high %v1406, %v1430
        %v1612 = vunpack.c.l.s4 1983009808
        %v1613 = vunpack.c.0.s8 %v1612
        %v1614 = vlaneseq
        %v1615 = vshrl.u32 %v1614, 7
        %v1616 = vsub.s32 %v1613, %v1615
        %v1617 = vrot.slane %v1609, %v1616
        %v1619 = vunpack.c.l.s4 1983009808
        %v1620 = vunpack.c.0.s8 %v1619
        %v1621 = vlaneseq
        %v1622 = vshrl.u32 %v1621, 7
        %v1623 = vsub.s32 %v1620, %v1622
        %v1624 = vrot.slane %v1610, %v1623
        %v1625 = vcombine.high %v1308, 0.0
        %v1627 = vunpack.c.l.s4 1983009808
        %v1628 = vunpack.c.0.s8 %v1627
        %v1629 = vlaneseq
        %v1630 = vshrl.u32 %v1629, 7
        %v1631 = vsub.s32 %v1628, %v1630
        %v1632 = vrot.slane %v1308, %v1631
        %v1634 = vunpack.c.l.s4 1983009808
        %v1635 = vunpack.c.0.s8 %v1634
        %v1636 = vlaneseq
        %v1637 = vshrl.u32 %v1636, 7
        %v1638 = vsub.s32 %v1635, %v1637
        %v1639 = vrot.slane %v1625, %v1638
        %v1640 = vcombine.high %v1446, 0.0
        %v1642 = vunpack.c.l.s4 1983009808
        %v1643 = vunpack.c.0.s8 %v1642
        %v1644 = vlaneseq
        %v1645 = vshrl.u32 %v1644, 7
        %v1646 = vsub.s32 %v1643, %v1645
        %v1647 = vrot.slane %v1446, %v1646
        %v1649 = vunpack.c.l.s4 1983009808
        %v1650 = vunpack.c.0.s8 %v1649
        %v1651 = vlaneseq
        %v1652 = vshrl.u32 %v1651, 7
        %v1653 = vsub.s32 %v1650, %v1652
        %v1654 = vrot.slane %v1640, %v1653
        %v1655 = vcombine.low %v1601, %v1617
        %v1656 = vcombine.high %v1601, %v1617
        %v1658 = vunpack.c.l.s4 1934713408
        %v1659 = vunpack.c.0.s8 %v1658
        %v1660 = vlaneseq
        %v1661 = vshrl.u32 %v1660, 7
        %v1662 = vsub.s32 %v1659, %v1661
        %v1663 = vrot.slane %v1655, %v1662
        %v1665 = vunpack.c.l.s4 1934713408
        %v1666 = vunpack.c.0.s8 %v1665
        %v1667 = vlaneseq
        %v1668 = vshrl.u32 %v1667, 7
        %v1669 = vsub.s32 %v1666, %v1668
        %v1670 = vrot.slane %v1656, %v1669
        %v1671 = vcombine.low %v1608, %v1624
        %v1672 = vcombine.high %v1608, %v1624
        %v1674 = vunpack.c.l.s4 1934713408
        %v1675 = vunpack.c.0.s8 %v1674
        %v1676 = vlaneseq
        %v1677 = vshrl.u32 %v1676, 7
        %v1678 = vsub.s32 %v1675, %v1677
        %v1679 = vrot.slane %v1671, %v1678
        %v1681 = vunpack.c.l.s4 1934713408
        %v1682 = vunpack.c.0.s8 %v1681
        %v1683 = vlaneseq
        %v1684 = vshrl.u32 %v1683, 7
        %v1685 = vsub.s32 %v1682, %v1684
        %v1686 = vrot.slane %v1672, %v1685
        %v1687 = vcombine.low %v1632, %v1647
        %v1688 = vcombine.high %v1632, %v1647
        %v1690 = vunpack.c.l.s4 1934713408
        %v1691 = vunpack.c.0.s8 %v1690
        %v1692 = vlaneseq
        %v1693 = vshrl.u32 %v1692, 7
        %v1694 = vsub.s32 %v1691, %v1693
        %v1695 = vrot.slane %v1687, %v1694
        %v1697 = vunpack.c.l.s4 1934713408
        %v1698 = vunpack.c.0.s8 %v1697
        %v1699 = vlaneseq
        %v1700 = vshrl.u32 %v1699, 7
        %v1701 = vsub.s32 %v1698, %v1700
        %v1702 = vrot.slane %v1688, %v1701
        %v1703 = vcombine.low %v1639, %v1654
        %v1704 = vcombine.high %v1639, %v1654
        %v1706 = vunpack.c.l.s4 1934713408
        %v1707 = vunpack.c.0.s8 %v1706
        %v1708 = vlaneseq
        %v1709 = vshrl.u32 %v1708, 7
        %v1710 = vsub.s32 %v1707, %v1709
        %v1711 = vrot.slane %v1703, %v1710
        %v1713 = vunpack.c.l.s4 1934713408
        %v1714 = vunpack.c.0.s8 %v1713
        %v1715 = vlaneseq
        %v1716 = vshrl.u32 %v1715, 7
        %v1717 = vsub.s32 %v1714, %v1716
        %v1718 = vrot.slane %v1704, %v1717
        %v1719 = vcombine.low %v1663, %v1695
        %v1720 = vcombine.high %v1663, %v1695
        %v1721 = vcombine.low %v1670, %v1702
        %v1722 = vcombine.high %v1670, %v1702
        %v1723 = vcombine.low %v1679, %v1711
        %v1724 = vcombine.high %v1679, %v1711
        %v1725 = vcombine.low %v1686, %v1718
        %v1726 = vcombine.high %v1686, %v1718
        %v1727 = vcombine.low %v1309, %v1340
        %v1728 = vcombine.high %v1309, %v1340
        %v1730 = vunpack.c.l.s4 1983009808
        %v1731 = vunpack.c.0.s8 %v1730
        %v1732 = vlaneseq
        %v1733 = vshrl.u32 %v1732, 7
        %v1734 = vsub.s32 %v1731, %v1733
        %v1735 = vrot.slane %v1727, %v1734
        %v1737 = vunpack.c.l.s4 1983009808
        %v1738 = vunpack.c.0.s8 %v1737
        %v1739 = vlaneseq
        %v1740 = vshrl.u32 %v1739, 7
        %v1741 = vsub.s32 %v1738, %v1740
        %v1742 = vrot.slane %v1728, %v1741
        %v1743 = vcombine.low %v1328, %v1352
        %v1744 = vcombine.high %v1328, %v1352
        %v1746 = vunpack.c.l.s4 1983009808
        %v1747 = vunpack.c.0.s8 %v1746
        %v1748 = vlaneseq
        %v1749 = vshrl.u32 %v1748, 7
        %v1750 = vsub.s32 %v1747, %v1749
        %v1751 = vrot.slane %v1743, %v1750
        %v1753 = vunpack.c.l.s4 1983009808
        %v1754 = vunpack.c.0.s8 %v1753
        %v1755 = vlaneseq
        %v1756 = vshrl.u32 %v1755, 7
        %v1757 = vsub.s32 %v1754, %v1756
        %v1758 = vrot.slane %v1744, %v1757
        %v1759 = vcombine.low %v1310, %v1380
        %v1760 = vcombine.high %v1310, %v1380
        %v1762 = vunpack.c.l.s4 1983009808
        %v1763 = vunpack.c.0.s8 %v1762
        %v1764 = vlaneseq
        %v1765 = vshrl.u32 %v1764, 7
        %v1766 = vsub.s32 %v1763, %v1765
        %v1767 = vrot.slane %v1759, %v1766
        %v1769 = vunpack.c.l.s4 1983009808
        %v1770 = vunpack.c.0.s8 %v1769
        %v1771 = vlaneseq
        %v1772 = vshrl.u32 %v1771, 7
        %v1773 = vsub.s32 %v1770, %v1772
        %v1774 = vrot.slane %v1760, %v1773
        %v1775 = vcombine.low %v1368, %v1392
        %v1776 = vcombine.high %v1368, %v1392
        %v1778 = vunpack.c.l.s4 1983009808
        %v1779 = vunpack.c.0.s8 %v1778
        %v1780 = vlaneseq
        %v1781 = vshrl.u32 %v1780, 7
        %v1782 = vsub.s32 %v1779, %v1781
        %v1783 = vrot.slane %v1775, %v1782
        %v1785 = vunpack.c.l.s4 1983009808
        %v1786 = vunpack.c.0.s8 %v1785
        %v1787 = vlaneseq
        %v1788 = vshrl.u32 %v1787, 7
        %v1789 = vsub.s32 %v1786, %v1788
        %v1790 = vrot.slane %v1776, %v1789
        %v1791 = vcombine.low %v1735, %v1751
        %v1792 = vcombine.high %v1735, %v1751
        %v1794 = vunpack.c.l.s4 1934713408
        %v1795 = vunpack.c.0.s8 %v1794
        %v1796 = vlaneseq
        %v1797 = vshrl.u32 %v1796, 7
        %v1798 = vsub.s32 %v1795, %v1797
        %v1799 = vrot.slane %v1791, %v1798
        %v1801 = vunpack.c.l.s4 1934713408
        %v1802 = vunpack.c.0.s8 %v1801
        %v1803 = vlaneseq
        %v1804 = vshrl.u32 %v1803, 7
        %v1805 = vsub.s32 %v1802, %v1804
        %v1806 = vrot.slane %v1792, %v1805
        %v1807 = vcombine.low %v1742, %v1758
        %v1808 = vcombine.high %v1742, %v1758
        %v1810 = vunpack.c.l.s4 1934713408
        %v1811 = vunpack.c.0.s8 %v1810
        %v1812 = vlaneseq
        %v1813 = vshrl.u32 %v1812, 7
        %v1814 = vsub.s32 %v1811, %v1813
        %v1815 = vrot.slane %v1807, %v1814
        %v1817 = vunpack.c.l.s4 1934713408
        %v1818 = vunpack.c.0.s8 %v1817
        %v1819 = vlaneseq
        %v1820 = vshrl.u32 %v1819, 7
        %v1821 = vsub.s32 %v1818, %v1820
        %v1822 = vrot.slane %v1808, %v1821
        %v1823 = vcombine.low %v1767, %v1783
        %v1824 = vcombine.high %v1767, %v1783
        %v1826 = vunpack.c.l.s4 1934713408
        %v1827 = vunpack.c.0.s8 %v1826
        %v1828 = vlaneseq
        %v1829 = vshrl.u32 %v1828, 7
        %v1830 = vsub.s32 %v1827, %v1829
        %v1831 = vrot.slane %v1823, %v1830
        %v1833 = vunpack.c.l.s4 1934713408
        %v1834 = vunpack.c.0.s8 %v1833
        %v1835 = vlaneseq
        %v1836 = vshrl.u32 %v1835, 7
        %v1837 = vsub.s32 %v1834, %v1836
        %v1838 = vrot.slane %v1824, %v1837
        %v1839 = vcombine.low %v1774, %v1790
        %v1840 = vcombine.high %v1774, %v1790
        %v1842 = vunpack.c.l.s4 1934713408
        %v1843 = vunpack.c.0.s8 %v1842
        %v1844 = vlaneseq
        %v1845 = vshrl.u32 %v1844, 7
        %v1846 = vsub.s32 %v1843, %v1845
        %v1847 = vrot.slane %v1839, %v1846
        %v1849 = vunpack.c.l.s4 1934713408
        %v1850 = vunpack.c.0.s8 %v1849
        %v1851 = vlaneseq
        %v1852 = vshrl.u32 %v1851, 7
        %v1853 = vsub.s32 %v1850, %v1852
        %v1854 = vrot.slane %v1840, %v1853
        %v1855 = vcombine.low %v1799, %v1831
        %v1856 = vcombine.high %v1799, %v1831
        %v1857 = vcombine.low %v1806, %v1838
        %v1858 = vcombine.high %v1806, %v1838
        %v1859 = vcombine.low %v1815, %v1847
        %v1860 = vcombine.high %v1815, %v1847
        %v1861 = vcombine.low %v1822, %v1854
        %v1862 = vcombine.high %v1822, %v1854
        %v1863 = vcombine.low %v1311, %v1420
        %v1864 = vcombine.high %v1311, %v1420
        %v1866 = vunpack.c.l.s4 1983009808
        %v1867 = vunpack.c.0.s8 %v1866
        %v1868 = vlaneseq
        %v1869 = vshrl.u32 %v1868, 7
        %v1870 = vsub.s32 %v1867, %v1869
        %v1871 = vrot.slane %v1863, %v1870
        %v1873 = vunpack.c.l.s4 1983009808
        %v1874 = vunpack.c.0.s8 %v1873
        %v1875 = vlaneseq
        %v1876 = vshrl.u32 %v1875, 7
        %v1877 = vsub.s32 %v1874, %v1876
        %v1878 = vrot.slane %v1864, %v1877
        %v1879 = vcombine.low %v1408, %v1432
        %v1880 = vcombine.high %v1408, %v1432
        %v1882 = vunpack.c.l.s4 1983009808
        %v1883 = vunpack.c.0.s8 %v1882
        %v1884 = vlaneseq
        %v1885 = vshrl.u32 %v1884, 7
        %v1886 = vsub.s32 %v1883, %v1885
        %v1887 = vrot.slane %v1879, %v1886
        %v1889 = vunpack.c.l.s4 1983009808
        %v1890 = vunpack.c.0.s8 %v1889
        %v1891 = vlaneseq
        %v1892 = vshrl.u32 %v1891, 7
        %v1893 = vsub.s32 %v1890, %v1892
        %v1894 = vrot.slane %v1880, %v1893
        %v1895 = vcombine.high %v1312, 0.0
        %v1897 = vunpack.c.l.s4 1983009808
        %v1898 = vunpack.c.0.s8 %v1897
        %v1899 = vlaneseq
        %v1900 = vshrl.u32 %v1899, 7
        %v1901 = vsub.s32 %v1898, %v1900
        %v1902 = vrot.slane %v1312, %v1901
        %v1904 = vunpack.c.l.s4 1983009808
        %v1905 = vunpack.c.0.s8 %v1904
        %v1906 = vlaneseq
        %v1907 = vshrl.u32 %v1906, 7
        %v1908 = vsub.s32 %v1905, %v1907
        %v1909 = vrot.slane %v1895, %v1908
        %v1910 = vcombine.high %v1448, 0.0
        %v1912 = vunpack.c.l.s4 1983009808
        %v1913 = vunpack.c.0.s8 %v1912
        %v1914 = vlaneseq
        %v1915 = vshrl.u32 %v1914, 7
        %v1916 = vsub.s32 %v1913, %v1915
        %v1917 = vrot.slane %v1448, %v1916
        %v1919 = vunpack.c.l.s4 1983009808
        %v1920 = vunpack.c.0.s8 %v1919
        %v1921 = vlaneseq
        %v1922 = vshrl.u32 %v1921, 7
        %v1923 = vsub.s32 %v1920, %v1922
        %v1924 = vrot.slane %v1910, %v1923
        %v1925 = vcombine.low %v1871, %v1887
        %v1926 = vcombine.high %v1871, %v1887
        %v1928 = vunpack.c.l.s4 1934713408
        %v1929 = vunpack.c.0.s8 %v1928
        %v1930 = vlaneseq
        %v1931 = vshrl.u32 %v1930, 7
        %v1932 = vsub.s32 %v1929, %v1931
        %v1933 = vrot.slane %v1925, %v1932
        %v1935 = vunpack.c.l.s4 1934713408
        %v1936 = vunpack.c.0.s8 %v1935
        %v1937 = vlaneseq
        %v1938 = vshrl.u32 %v1937, 7
        %v1939 = vsub.s32 %v1936, %v1938
        %v1940 = vrot.slane %v1926, %v1939
        %v1941 = vcombine.low %v1878, %v1894
        %v1942 = vcombine.high %v1878, %v1894
        %v1944 = vunpack.c.l.s4 1934713408
        %v1945 = vunpack.c.0.s8 %v1944
        %v1946 = vlaneseq
        %v1947 = vshrl.u32 %v1946, 7
        %v1948 = vsub.s32 %v1945, %v1947
        %v1949 = vrot.slane %v1941, %v1948
        %v1951 = vunpack.c.l.s4 1934713408
        %v1952 = vunpack.c.0.s8 %v1951
        %v1953 = vlaneseq
        %v1954 = vshrl.u32 %v1953, 7
        %v1955 = vsub.s32 %v1952, %v1954
        %v1956 = vrot.slane %v1942, %v1955
        %v1957 = vcombine.low %v1902, %v1917
        %v1958 = vcombine.high %v1902, %v1917
        %v1960 = vunpack.c.l.s4 1934713408
        %v1961 = vunpack.c.0.s8 %v1960
        %v1962 = vlaneseq
        %v1963 = vshrl.u32 %v1962, 7
        %v1964 = vsub.s32 %v1961, %v1963
        %v1965 = vrot.slane %v1957, %v1964
        %v1967 = vunpack.c.l.s4 1934713408
        %v1968 = vunpack.c.0.s8 %v1967
        %v1969 = vlaneseq
        %v1970 = vshrl.u32 %v1969, 7
        %v1971 = vsub.s32 %v1968, %v1970
        %v1972 = vrot.slane %v1958, %v1971
        %v1973 = vcombine.low %v1909, %v1924
        %v1974 = vcombine.high %v1909, %v1924
        %v1976 = vunpack.c.l.s4 1934713408
        %v1977 = vunpack.c.0.s8 %v1976
        %v1978 = vlaneseq
        %v1979 = vshrl.u32 %v1978, 7
        %v1980 = vsub.s32 %v1977, %v1979
        %v1981 = vrot.slane %v1973, %v1980
        %v1983 = vunpack.c.l.s4 1934713408
        %v1984 = vunpack.c.0.s8 %v1983
        %v1985 = vlaneseq
        %v1986 = vshrl.u32 %v1985, 7
        %v1987 = vsub.s32 %v1984, %v1986
        %v1988 = vrot.slane %v1974, %v1987
        %v1989 = vcombine.low %v1933, %v1965
        %v1990 = vcombine.high %v1933, %v1965
        %v1991 = vcombine.low %v1940, %v1972
        %v1992 = vcombine.high %v1940, %v1972
        %v1993 = vcombine.low %v1949, %v1981
        %v1994 = vcombine.high %v1949, %v1981
        %v1995 = vcombine.low %v1956, %v1988
        %v1996 = vcombine.high %v1956, %v1988
        %v1997 = vcombine.low %v1313, %v1342
        %v1998 = vcombine.high %v1313, %v1342
        %v2000 = vunpack.c.l.s4 1983009808
        %v2001 = vunpack.c.0.s8 %v2000
        %v2002 = vlaneseq
        %v2003 = vshrl.u32 %v2002, 7
        %v2004 = vsub.s32 %v2001, %v2003
        %v2005 = vrot.slane %v1997, %v2004
        %v2007 = vunpack.c.l.s4 1983009808
        %v2008 = vunpack.c.0.s8 %v2007
        %v2009 = vlaneseq
        %v2010 = vshrl.u32 %v2009, 7
        %v2011 = vsub.s32 %v2008, %v2010
        %v2012 = vrot.slane %v1998, %v2011
        %v2013 = vcombine.low %v1330, %v1354
        %v2014 = vcombine.high %v1330, %v1354
        %v2016 = vunpack.c.l.s4 1983009808
        %v2017 = vunpack.c.0.s8 %v2016
        %v2018 = vlaneseq
        %v2019 = vshrl.u32 %v2018, 7
        %v2020 = vsub.s32 %v2017, %v2019
        %v2021 = vrot.slane %v2013, %v2020
        %v2023 = vunpack.c.l.s4 1983009808
        %v2024 = vunpack.c.0.s8 %v2023
        %v2025 = vlaneseq
        %v2026 = vshrl.u32 %v2025, 7
        %v2027 = vsub.s32 %v2024, %v2026
        %v2028 = vrot.slane %v2014, %v2027
        %v2029 = vcombine.low %v1314, %v1382
        %v2030 = vcombine.high %v1314, %v1382
        %v2032 = vunpack.c.l.s4 1983009808
        %v2033 = vunpack.c.0.s8 %v2032
        %v2034 = vlaneseq
        %v2035 = vshrl.u32 %v2034, 7
        %v2036 = vsub.s32 %v2033, %v2035
        %v2037 = vrot.slane %v2029, %v2036
        %v2039 = vunpack.c.l.s4 1983009808
        %v2040 = vunpack.c.0.s8 %v2039
        %v2041 = vlaneseq
        %v2042 = vshrl.u32 %v2041, 7
        %v2043 = vsub.s32 %v2040, %v2042
        %v2044 = vrot.slane %v2030, %v2043
        %v2045 = vcombine.low %v1370, %v1394
        %v2046 = vcombine.high %v1370, %v1394
        %v2048 = vunpack.c.l.s4 1983009808
        %v2049 = vunpack.c.0.s8 %v2048
        %v2050 = vlaneseq
        %v2051 = vshrl.u32 %v2050, 7
        %v2052 = vsub.s32 %v2049, %v2051
        %v2053 = vrot.slane %v2045, %v2052
        %v2055 = vunpack.c.l.s4 1983009808
        %v2056 = vunpack.c.0.s8 %v2055
        %v2057 = vlaneseq
        %v2058 = vshrl.u32 %v2057, 7
        %v2059 = vsub.s32 %v2056, %v2058
        %v2060 = vrot.slane %v2046, %v2059
        %v2061 = vcombine.low %v2005, %v2021
        %v2062 = vcombine.high %v2005, %v2021
        %v2064 = vunpack.c.l.s4 1934713408
        %v2065 = vunpack.c.0.s8 %v2064
        %v2066 = vlaneseq
        %v2067 = vshrl.u32 %v2066, 7
        %v2068 = vsub.s32 %v2065, %v2067
        %v2069 = vrot.slane %v2061, %v2068
        %v2071 = vunpack.c.l.s4 1934713408
        %v2072 = vunpack.c.0.s8 %v2071
        %v2073 = vlaneseq
        %v2074 = vshrl.u32 %v2073, 7
        %v2075 = vsub.s32 %v2072, %v2074
        %v2076 = vrot.slane %v2062, %v2075
        %v2077 = vcombine.low %v2012, %v2028
        %v2078 = vcombine.high %v2012, %v2028
        %v2080 = vunpack.c.l.s4 1934713408
        %v2081 = vunpack.c.0.s8 %v2080
        %v2082 = vlaneseq
        %v2083 = vshrl.u32 %v2082, 7
        %v2084 = vsub.s32 %v2081, %v2083
        %v2085 = vrot.slane %v2077, %v2084
        %v2087 = vunpack.c.l.s4 1934713408
        %v2088 = vunpack.c.0.s8 %v2087
        %v2089 = vlaneseq
        %v2090 = vshrl.u32 %v2089, 7
        %v2091 = vsub.s32 %v2088, %v2090
        %v2092 = vrot.slane %v2078, %v2091
        %v2093 = vcombine.low %v2037, %v2053
        %v2094 = vcombine.high %v2037, %v2053
        %v2096 = vunpack.c.l.s4 1934713408
        %v2097 = vunpack.c.0.s8 %v2096
        %v2098 = vlaneseq
        %v2099 = vshrl.u32 %v2098, 7
        %v2100 = vsub.s32 %v2097, %v2099
        %v2101 = vrot.slane %v2093, %v2100
        %v2103 = vunpack.c.l.s4 1934713408
        %v2104 = vunpack.c.0.s8 %v2103
        %v2105 = vlaneseq
        %v2106 = vshrl.u32 %v2105, 7
        %v2107 = vsub.s32 %v2104, %v2106
        %v2108 = vrot.slane %v2094, %v2107
        %v2109 = vcombine.low %v2044, %v2060
        %v2110 = vcombine.high %v2044, %v2060
        %v2112 = vunpack.c.l.s4 1934713408
        %v2113 = vunpack.c.0.s8 %v2112
        %v2114 = vlaneseq
        %v2115 = vshrl.u32 %v2114, 7
        %v2116 = vsub.s32 %v2113, %v2115
        %v2117 = vrot.slane %v2109, %v2116
        %v2119 = vunpack.c.l.s4 1934713408
        %v2120 = vunpack.c.0.s8 %v2119
        %v2121 = vlaneseq
        %v2122 = vshrl.u32 %v2121, 7
        %v2123 = vsub.s32 %v2120, %v2122
        %v2124 = vrot.slane %v2110, %v2123
        %v2125 = vcombine.low %v2069, %v2101
        %v2126 = vcombine.high %v2069, %v2101
        %v2127 = vcombine.low %v2076, %v2108
        %v2128 = vcombine.high %v2076, %v2108
        %v2129 = vcombine.low %v2085, %v2117
        %v2130 = vcombine.high %v2085, %v2117
        %v2131 = vcombine.low %v2092, %v2124
        %v2132 = vcombine.high %v2092, %v2124
        %v2133 = vcombine.low %v1315, %v1422
        %v2134 = vcombine.high %v1315, %v1422
        %v2136 = vunpack.c.l.s4 1983009808
        %v2137 = vunpack.c.0.s8 %v2136
        %v2138 = vlaneseq
        %v2139 = vshrl.u32 %v2138, 7
        %v2140 = vsub.s32 %v2137, %v2139
        %v2141 = vrot.slane %v2133, %v2140
        %v2143 = vunpack.c.l.s4 1983009808
        %v2144 = vunpack.c.0.s8 %v2143
        %v2145 = vlaneseq
        %v2146 = vshrl.u32 %v2145, 7
        %v2147 = vsub.s32 %v2144, %v2146
        %v2148 = vrot.slane %v2134, %v2147
        %v2149 = vcombine.low %v1410, %v1434
        %v2150 = vcombine.high %v1410, %v1434
        %v2152 = vunpack.c.l.s4 1983009808
        %v2153 = vunpack.c.0.s8 %v2152
        %v2154 = vlaneseq
        %v2155 = vshrl.u32 %v2154, 7
        %v2156 = vsub.s32 %v2153, %v2155
        %v2157 = vrot.slane %v2149, %v2156
        %v2159 = vunpack.c.l.s4 1983009808
        %v2160 = vunpack.c.0.s8 %v2159
        %v2161 = vlaneseq
        %v2162 = vshrl.u32 %v2161, 7
        %v2163 = vsub.s32 %v2160, %v2162
        %v2164 = vrot.slane %v2150, %v2163
        %v2165 = vcombine.high %v1316, 0.0
        %v2167 = vunpack.c.l.s4 1983009808
        %v2168 = vunpack.c.0.s8 %v2167
        %v2169 = vlaneseq
        %v2170 = vshrl.u32 %v2169, 7
        %v2171 = vsub.s32 %v2168, %v2170
        %v2172 = vrot.slane %v1316, %v2171
        %v2174 = vunpack.c.l.s4 1983009808
        %v2175 = vunpack.c.0.s8 %v2174
        %v2176 = vlaneseq
        %v2177 = vshrl.u32 %v2176, 7
        %v2178 = vsub.s32 %v2175, %v2177
        %v2179 = vrot.slane %v2165, %v2178
        %v2180 = vcombine.high %v1450, 0.0
        %v2182 = vunpack.c.l.s4 1983009808
        %v2183 = vunpack.c.0.s8 %v2182
        %v2184 = vlaneseq
        %v2185 = vshrl.u32 %v2184, 7
        %v2186 = vsub.s32 %v2183, %v2185
        %v2187 = vrot.slane %v1450, %v2186
        %v2189 = vunpack.c.l.s4 1983009808
        %v2190 = vunpack.c.0.s8 %v2189
        %v2191 = vlaneseq
        %v2192 = vshrl.u32 %v2191, 7
        %v2193 = vsub.s32 %v2190, %v2192
        %v2194 = vrot.slane %v2180, %v2193
        %v2195 = vcombine.low %v2141, %v2157
        %v2196 = vcombine.high %v2141, %v2157
        %v2198 = vunpack.c.l.s4 1934713408
        %v2199 = vunpack.c.0.s8 %v2198
        %v2200 = vlaneseq
        %v2201 = vshrl.u32 %v2200, 7
        %v2202 = vsub.s32 %v2199, %v2201
        %v2203 = vrot.slane %v2195, %v2202
        %v2205 = vunpack.c.l.s4 1934713408
        %v2206 = vunpack.c.0.s8 %v2205
        %v2207 = vlaneseq
        %v2208 = vshrl.u32 %v2207, 7
        %v2209 = vsub.s32 %v2206, %v2208
        %v2210 = vrot.slane %v2196, %v2209
        %v2211 = vcombine.low %v2148, %v2164
        %v2212 = vcombine.high %v2148, %v2164
        %v2214 = vunpack.c.l.s4 1934713408
        %v2215 = vunpack.c.0.s8 %v2214
        %v2216 = vlaneseq
        %v2217 = vshrl.u32 %v2216, 7
        %v2218 = vsub.s32 %v2215, %v2217
        %v2219 = vrot.slane %v2211, %v2218
        %v2221 = vunpack.c.l.s4 1934713408
        %v2222 = vunpack.c.0.s8 %v2221
        %v2223 = vlaneseq
        %v2224 = vshrl.u32 %v2223, 7
        %v2225 = vsub.s32 %v2222, %v2224
        %v2226 = vrot.slane %v2212, %v2225
        %v2227 = vcombine.low %v2172, %v2187
        %v2228 = vcombine.high %v2172, %v2187
        %v2230 = vunpack.c.l.s4 1934713408
        %v2231 = vunpack.c.0.s8 %v2230
        %v2232 = vlaneseq
        %v2233 = vshrl.u32 %v2232, 7
        %v2234 = vsub.s32 %v2231, %v2233
        %v2235 = vrot.slane %v2227, %v2234
        %v2237 = vunpack.c.l.s4 1934713408
        %v2238 = vunpack.c.0.s8 %v2237
        %v2239 = vlaneseq
        %v2240 = vshrl.u32 %v2239, 7
        %v2241 = vsub.s32 %v2238, %v2240
        %v2242 = vrot.slane %v2228, %v2241
        %v2243 = vcombine.low %v2179, %v2194
        %v2244 = vcombine.high %v2179, %v2194
        %v2246 = vunpack.c.l.s4 1934713408
        %v2247 = vunpack.c.0.s8 %v2246
        %v2248 = vlaneseq
        %v2249 = vshrl.u32 %v2248, 7
        %v2250 = vsub.s32 %v2247, %v2249
        %v2251 = vrot.slane %v2243, %v2250
        %v2253 = vunpack.c.l.s4 1934713408
        %v2254 = vunpack.c.0.s8 %v2253
        %v2255 = vlaneseq
        %v2256 = vshrl.u32 %v2255, 7
        %v2257 = vsub.s32 %v2254, %v2256
        %v2258 = vrot.slane %v2244, %v2257
        %v2259 = vcombine.low %v2203, %v2235
        %v2260 = vcombine.high %v2203, %v2235
        %v2261 = vcombine.low %v2210, %v2242
        %v2262 = vcombine.high %v2210, %v2242
        %v2263 = vcombine.low %v2219, %v2251
        %v2264 = vcombine.high %v2219, %v2251
        %v2265 = vcombine.low %v2226, %v2258
        %v2266 = vcombine.high %v2226, %v2258
        %v2267 = vcombine.low %v1317, %v1344
        %v2269 = vunpack.c.l.s4 1983009808
        %v2270 = vunpack.c.0.s8 %v2269
        %v2271 = vlaneseq
        %v2272 = vshrl.u32 %v2271, 7
        %v2273 = vsub.s32 %v2270, %v2272
        %v2274 = vrot.slane %v2267, %v2273
        %v2275 = vcombine.low %v1332, %v1356
        %v2277 = vunpack.c.l.s4 1983009808
        %v2278 = vunpack.c.0.s8 %v2277
        %v2279 = vlaneseq
        %v2280 = vshrl.u32 %v2279, 7
        %v2281 = vsub.s32 %v2278, %v2280
        %v2282 = vrot.slane %v2275, %v2281
        %v2283 = vcombine.low %v1318, %v1384
        %v2285 = vunpack.c.l.s4 1983009808
        %v2286 = vunpack.c.0.s8 %v2285
        %v2287 = vlaneseq
        %v2288 = vshrl.u32 %v2287, 7
        %v2289 = vsub.s32 %v2286, %v2288
        %v2290 = vrot.slane %v2283, %v2289
        %v2291 = vcombine.low %v1372, %v1396
        %v2293 = vunpack.c.l.s4 1983009808
        %v2294 = vunpack.c.0.s8 %v2293
        %v2295 = vlaneseq
        %v2296 = vshrl.u32 %v2295, 7
        %v2297 = vsub.s32 %v2294, %v2296
        %v2298 = vrot.slane %v2291, %v2297
        %v2299 = vcombine.low %v2274, %v2282
        %v2300 = vcombine.high %v2274, %v2282
        %v2302 = vunpack.c.l.s4 1934713408
        %v2303 = vunpack.c.0.s8 %v2302
        %v2304 = vlaneseq
        %v2305 = vshrl.u32 %v2304, 7
        %v2306 = vsub.s32 %v2303, %v2305
        %v2307 = vrot.slane %v2299, %v2306
        %v2309 = vunpack.c.l.s4 1934713408
        %v2310 = vunpack.c.0.s8 %v2309
        %v2311 = vlaneseq
        %v2312 = vshrl.u32 %v2311, 7
        %v2313 = vsub.s32 %v2310, %v2312
        %v2314 = vrot.slane %v2300, %v2313
        %v2315 = vcombine.low %v2290, %v2298
        %v2316 = vcombine.high %v2290, %v2298
        %v2318 = vunpack.c.l.s4 1934713408
        %v2319 = vunpack.c.0.s8 %v2318
        %v2320 = vlaneseq
        %v2321 = vshrl.u32 %v2320, 7
        %v2322 = vsub.s32 %v2319, %v2321
        %v2323 = vrot.slane %v2315, %v2322
        %v2325 = vunpack.c.l.s4 1934713408
        %v2326 = vunpack.c.0.s8 %v2325
        %v2327 = vlaneseq
        %v2328 = vshrl.u32 %v2327, 7
        %v2329 = vsub.s32 %v2326, %v2328
        %v2330 = vrot.slane %v2316, %v2329
        %v2331 = vcombine.low %v2307, %v2323
        %v2332 = vcombine.high %v2307, %v2323
        %v2333 = vcombine.low %v2314, %v2330
        %v2334 = vcombine.high %v2314, %v2330
        %v2335 = vcombine.low %v1319, %v1424
        %v2337 = vunpack.c.l.s4 1983009808
        %v2338 = vunpack.c.0.s8 %v2337
        %v2339 = vlaneseq
        %v2340 = vshrl.u32 %v2339, 7
        %v2341 = vsub.s32 %v2338, %v2340
        %v2342 = vrot.slane %v2335, %v2341
        %v2343 = vcombine.low %v1412, %v1436
        %v2345 = vunpack.c.l.s4 1983009808
        %v2346 = vunpack.c.0.s8 %v2345
        %v2347 = vlaneseq
        %v2348 = vshrl.u32 %v2347, 7
        %v2349 = vsub.s32 %v2346, %v2348
        %v2350 = vrot.slane %v2343, %v2349
        %v2352 = vunpack.c.l.s4 1983009808
        %v2353 = vunpack.c.0.s8 %v2352
        %v2354 = vlaneseq
        %v2355 = vshrl.u32 %v2354, 7
        %v2356 = vsub.s32 %v2353, %v2355
        %v2357 = vrot.slane %v1320, %v2356
        %v2359 = vunpack.c.l.s4 1983009808
        %v2360 = vunpack.c.0.s8 %v2359
        %v2361 = vlaneseq
        %v2362 = vshrl.u32 %v2361, 7
        %v2363 = vsub.s32 %v2360, %v2362
        %v2364 = vrot.slane %v1452, %v2363
        %v2365 = vcombine.low %v2342, %v2350
        %v2366 = vcombine.high %v2342, %v2350
        %v2368 = vunpack.c.l.s4 1934713408
        %v2369 = vunpack.c.0.s8 %v2368
        %v2370 = vlaneseq
        %v2371 = vshrl.u32 %v2370, 7
        %v2372 = vsub.s32 %v2369, %v2371
        %v2373 = vrot.slane %v2365, %v2372
        %v2375 = vunpack.c.l.s4 1934713408
        %v2376 = vunpack.c.0.s8 %v2375
        %v2377 = vlaneseq
        %v2378 = vshrl.u32 %v2377, 7
        %v2379 = vsub.s32 %v2376, %v2378
        %v2380 = vrot.slane %v2366, %v2379
        %v2381 = vcombine.low %v2357, %v2364
        %v2382 = vcombine.high %v2357, %v2364
        %v2384 = vunpack.c.l.s4 1934713408
        %v2385 = vunpack.c.0.s8 %v2384
        %v2386 = vlaneseq
        %v2387 = vshrl.u32 %v2386, 7
        %v2388 = vsub.s32 %v2385, %v2387
        %v2389 = vrot.slane %v2381, %v2388
        %v2391 = vunpack.c.l.s4 1934713408
        %v2392 = vunpack.c.0.s8 %v2391
        %v2393 = vlaneseq
        %v2394 = vshrl.u32 %v2393, 7
        %v2395 = vsub.s32 %v2392, %v2394
        %v2396 = vrot.slane %v2382, %v2395
        %v2397 = vcombine.low %v2373, %v2389
        %v2398 = vcombine.high %v2373, %v2389
        %v2399 = vcombine.low %v2380, %v2396
        %v2400 = vcombine.high %v2380, %v2396
        %2457 = vrot.lane.b32.xlu0 %v1585, 112
        %v2458 = vpop.permute.xlu0 %2457
        %2459 = vrot.lane.b32.xlu0 %v1719, 112
        %v2460 = vpop.permute.xlu0 %2459
        %2461 = vrot.lane.b32.xlu0 %v1586, 112
        %v2462 = vpop.permute.xlu0 %2461
        %2463 = vrot.lane.b32.xlu0 %v1720, 112
        %v2464 = vpop.permute.xlu0 %2463
        %2465 = vrot.lane.b32.xlu0 %v1587, 112
        %v2466 = vpop.permute.xlu0 %2465
        %2467 = vrot.lane.b32.xlu0 %v1721, 112
        %v2468 = vpop.permute.xlu0 %2467
        %2469 = vrot.lane.b32.xlu0 %v1588, 112
        %v2470 = vpop.permute.xlu0 %2469
        %2471 = vrot.lane.b32.xlu0 %v1722, 112
        %v2472 = vpop.permute.xlu0 %2471
        %2473 = vrot.lane.b32.xlu0 %v1589, 112
        %v2474 = vpop.permute.xlu0 %2473
        %2475 = vrot.lane.b32.xlu0 %v1723, 112
        %v2476 = vpop.permute.xlu0 %2475
        %2477 = vrot.lane.b32.xlu0 %v1590, 112
        %v2478 = vpop.permute.xlu0 %2477
        %2479 = vrot.lane.b32.xlu0 %v1724, 112
        %v2480 = vpop.permute.xlu0 %2479
        %2481 = vrot.lane.b32.xlu0 %v1591, 112
        %v2482 = vpop.permute.xlu0 %2481
        %2483 = vrot.lane.b32.xlu0 %v1725, 112
        %v2484 = vpop.permute.xlu0 %2483
        %2485 = vrot.lane.b32.xlu0 %v1592, 112
        %v2486 = vpop.permute.xlu0 %2485
        %2487 = vrot.lane.b32.xlu0 %v1726, 112
        %v2488 = vpop.permute.xlu0 %2487
        %2489 = vrot.lane.b32.xlu0 %v1855, 112
        %v2490 = vpop.permute.xlu0 %2489
        %2491 = vrot.lane.b32.xlu0 %v1989, 112
        %v2492 = vpop.permute.xlu0 %2491
        %2493 = vrot.lane.b32.xlu0 %v1856, 112
        %v2494 = vpop.permute.xlu0 %2493
        %2495 = vrot.lane.b32.xlu0 %v1990, 112
        %v2496 = vpop.permute.xlu0 %2495
        %2497 = vrot.lane.b32.xlu0 %v1857, 112
        %v2498 = vpop.permute.xlu0 %2497
        %2499 = vrot.lane.b32.xlu0 %v1991, 112
        %v2500 = vpop.permute.xlu0 %2499
        %2501 = vrot.lane.b32.xlu0 %v1858, 112
        %v2502 = vpop.permute.xlu0 %2501
        %2503 = vrot.lane.b32.xlu0 %v1992, 112
        %v2504 = vpop.permute.xlu0 %2503
        %2505 = vrot.lane.b32.xlu0 %v1859, 112
        %v2506 = vpop.permute.xlu0 %2505
        %2507 = vrot.lane.b32.xlu0 %v1993, 112
        %v2508 = vpop.permute.xlu0 %2507
        %2509 = vrot.lane.b32.xlu0 %v1860, 112
        %v2510 = vpop.permute.xlu0 %2509
        %2511 = vrot.lane.b32.xlu0 %v1994, 112
        %v2512 = vpop.permute.xlu0 %2511
        %2513 = vrot.lane.b32.xlu0 %v1861, 112
        %v2514 = vpop.permute.xlu0 %2513
        %2515 = vrot.lane.b32.xlu0 %v1995, 112
        %v2516 = vpop.permute.xlu0 %2515
        %2517 = vrot.lane.b32.xlu0 %v1862, 112
        %v2518 = vpop.permute.xlu0 %2517
        %2519 = vrot.lane.b32.xlu0 %v1996, 112
        %v2520 = vpop.permute.xlu0 %2519
        %2521 = vrot.lane.b32.xlu0 %v2125, 112
        %v2522 = vpop.permute.xlu0 %2521
        %2523 = vrot.lane.b32.xlu0 %v2259, 112
        %v2524 = vpop.permute.xlu0 %2523
        %2525 = vrot.lane.b32.xlu0 %v2126, 112
        %v2526 = vpop.permute.xlu0 %2525
        %2527 = vrot.lane.b32.xlu0 %v2260, 112
        %v2528 = vpop.permute.xlu0 %2527
        %2529 = vrot.lane.b32.xlu0 %v2127, 112
        %v2530 = vpop.permute.xlu0 %2529
        %2531 = vrot.lane.b32.xlu0 %v2261, 112
        %v2532 = vpop.permute.xlu0 %2531
        %2533 = vrot.lane.b32.xlu0 %v2128, 112
        %v2534 = vpop.permute.xlu0 %2533
        %2535 = vrot.lane.b32.xlu0 %v2262, 112
        %v2536 = vpop.permute.xlu0 %2535
        %2537 = vrot.lane.b32.xlu0 %v2129, 112
        %v2538 = vpop.permute.xlu0 %2537
        %2539 = vrot.lane.b32.xlu0 %v2263, 112
        %v2540 = vpop.permute.xlu0 %2539
        %2541 = vrot.lane.b32.xlu0 %v2130, 112
        %v2542 = vpop.permute.xlu0 %2541
        %2543 = vrot.lane.b32.xlu0 %v2264, 112
        %v2544 = vpop.permute.xlu0 %2543
        %2545 = vrot.lane.b32.xlu0 %v2131, 112
        %v2546 = vpop.permute.xlu0 %2545
        %2547 = vrot.lane.b32.xlu0 %v2265, 112
        %v2548 = vpop.permute.xlu0 %2547
        %2549 = vrot.lane.b32.xlu0 %v2132, 112
        %v2550 = vpop.permute.xlu0 %2549
        %2551 = vrot.lane.b32.xlu0 %v2266, 112
        %v2552 = vpop.permute.xlu0 %2551
        %2553 = vrot.lane.b32.xlu0 %v2331, 112
        %v2554 = vpop.permute.xlu0 %2553
        %2555 = vrot.lane.b32.xlu0 %v2397, 112
        %v2556 = vpop.permute.xlu0 %2555
        %2557 = vrot.lane.b32.xlu0 %v2332, 112
        %v2558 = vpop.permute.xlu0 %2557
        %2559 = vrot.lane.b32.xlu0 %v2398, 112
        %v2560 = vpop.permute.xlu0 %2559
        %2561 = vrot.lane.b32.xlu0 %v2333, 112
        %v2562 = vpop.permute.xlu0 %2561
        %2563 = vrot.lane.b32.xlu0 %v2399, 112
        %v2564 = vpop.permute.xlu0 %2563
        %2565 = vrot.lane.b32.xlu0 %v2334, 112
        %v2566 = vpop.permute.xlu0 %2565
        %2567 = vrot.lane.b32.xlu0 %v2400, 112
        %v2568 = vpop.permute.xlu0 %2567
        %v2625 = vmax.f32 %v1585, %v2458
        %v2626 = vmax.f32 %v1719, %v2460
        %v2627 = vmax.f32 %v1586, %v2462
        %v2628 = vmax.f32 %v1720, %v2464
        %v2629 = vmax.f32 %v1587, %v2466
        %v2630 = vmax.f32 %v1721, %v2468
        %v2631 = vmax.f32 %v1588, %v2470
        %v2632 = vmax.f32 %v1722, %v2472
        %v2633 = vmax.f32 %v1589, %v2474
        %v2634 = vmax.f32 %v1723, %v2476
        %v2635 = vmax.f32 %v1590, %v2478
        %v2636 = vmax.f32 %v1724, %v2480
        %v2637 = vmax.f32 %v1591, %v2482
        %v2638 = vmax.f32 %v1725, %v2484
        %v2639 = vmax.f32 %v1592, %v2486
        %v2640 = vmax.f32 %v1726, %v2488
        %v2641 = vmax.f32 %v1855, %v2490
        %v2642 = vmax.f32 %v1989, %v2492
        %v2643 = vmax.f32 %v1856, %v2494
        %v2644 = vmax.f32 %v1990, %v2496
        %v2645 = vmax.f32 %v1857, %v2498
        %v2646 = vmax.f32 %v1991, %v2500
        %v2647 = vmax.f32 %v1858, %v2502
        %v2648 = vmax.f32 %v1992, %v2504
        %v2649 = vmax.f32 %v1859, %v2506
        %v2650 = vmax.f32 %v1993, %v2508
        %v2651 = vmax.f32 %v1860, %v2510
        %v2652 = vmax.f32 %v1994, %v2512
        %v2653 = vmax.f32 %v1861, %v2514
        %v2654 = vmax.f32 %v1995, %v2516
        %v2655 = vmax.f32 %v1862, %v2518
        %v2656 = vmax.f32 %v1996, %v2520
        %v2657 = vmax.f32 %v2125, %v2522
        %v2658 = vmax.f32 %v2259, %v2524
        %v2659 = vmax.f32 %v2126, %v2526
        %v2660 = vmax.f32 %v2260, %v2528
        %v2661 = vmax.f32 %v2127, %v2530
        %v2662 = vmax.f32 %v2261, %v2532
        %v2663 = vmax.f32 %v2128, %v2534
        %v2664 = vmax.f32 %v2262, %v2536
        %v2665 = vmax.f32 %v2129, %v2538
        %v2666 = vmax.f32 %v2263, %v2540
        %v2667 = vmax.f32 %v2130, %v2542
        %v2668 = vmax.f32 %v2264, %v2544
        %v2669 = vmax.f32 %v2131, %v2546
        %v2670 = vmax.f32 %v2265, %v2548
        %v2671 = vmax.f32 %v2132, %v2550
        %v2672 = vmax.f32 %v2266, %v2552
        %v2673 = vmax.f32 %v2331, %v2554
        %v2674 = vmax.f32 %v2397, %v2556
        %v2675 = vmax.f32 %v2332, %v2558
        %v2676 = vmax.f32 %v2398, %v2560
        %v2677 = vmax.f32 %v2333, %v2562
        %v2678 = vmax.f32 %v2399, %v2564
        %v2679 = vmax.f32 %v2334, %v2566
        %v2680 = vmax.f32 %v2400, %v2568
        %v2681 = vcombine.high %v2625, 0.0
        %v2683 = vunpack.c.l.s4 1983009808
        %v2684 = vunpack.c.0.s8 %v2683
        %v2685 = vlaneseq
        %v2686 = vshrl.u32 %v2685, 7
        %v2687 = vsub.s32 %v2684, %v2686
        %v2688 = vrot.slane %v2625, %v2687
        %v2690 = vunpack.c.l.s4 1983009808
        %v2691 = vunpack.c.0.s8 %v2690
        %v2692 = vlaneseq
        %v2693 = vshrl.u32 %v2692, 7
        %v2694 = vsub.s32 %v2691, %v2693
        %v2695 = vrot.slane %v2681, %v2694
        %v2696 = vcombine.high %v2627, 0.0
        %v2698 = vunpack.c.l.s4 1983009808
        %v2699 = vunpack.c.0.s8 %v2698
        %v2700 = vlaneseq
        %v2701 = vshrl.u32 %v2700, 7
        %v2702 = vsub.s32 %v2699, %v2701
        %v2703 = vrot.slane %v2627, %v2702
        %v2705 = vunpack.c.l.s4 1983009808
        %v2706 = vunpack.c.0.s8 %v2705
        %v2707 = vlaneseq
        %v2708 = vshrl.u32 %v2707, 7
        %v2709 = vsub.s32 %v2706, %v2708
        %v2710 = vrot.slane %v2696, %v2709
        %v2711 = vcombine.low %v2688, %v2703
        %v2712 = vcombine.high %v2688, %v2703
        %v2714 = vunpack.c.l.s4 1934713408
        %v2715 = vunpack.c.0.s8 %v2714
        %v2716 = vlaneseq
        %v2717 = vshrl.u32 %v2716, 7
        %v2718 = vsub.s32 %v2715, %v2717
        %v2719 = vrot.slane %v2711, %v2718
        %v2721 = vunpack.c.l.s4 1934713408
        %v2722 = vunpack.c.0.s8 %v2721
        %v2723 = vlaneseq
        %v2724 = vshrl.u32 %v2723, 7
        %v2725 = vsub.s32 %v2722, %v2724
        %v2726 = vrot.slane %v2712, %v2725
        %v2727 = vcombine.low %v2695, %v2710
        %v2728 = vcombine.high %v2695, %v2710
        %v2730 = vunpack.c.l.s4 1934713408
        %v2731 = vunpack.c.0.s8 %v2730
        %v2732 = vlaneseq
        %v2733 = vshrl.u32 %v2732, 7
        %v2734 = vsub.s32 %v2731, %v2733
        %v2735 = vrot.slane %v2727, %v2734
        %v2737 = vunpack.c.l.s4 1934713408
        %v2738 = vunpack.c.0.s8 %v2737
        %v2739 = vlaneseq
        %v2740 = vshrl.u32 %v2739, 7
        %v2741 = vsub.s32 %v2738, %v2740
        %v2742 = vrot.slane %v2728, %v2741
        %v2743 = vcombine.high %v2719, 0.0
        %v2744 = vcombine.high %v2726, 0.0
        %v2745 = vcombine.high %v2735, 0.0
        %v2746 = vcombine.high %v2742, 0.0
        %v2748 = vunpack.c.l.s4 1983009808
        %v2749 = vunpack.c.0.s8 %v2748
        %v2750 = vlaneseq
        %v2751 = vshrl.u32 %v2750, 7
        %v2752 = vsub.s32 %v2749, %v2751
        %v2753 = vrot.slane %v2626, %v2752
        %v2754 = vcombine.high %v2626, 0.0
        %v2756 = vunpack.c.l.s4 1983009808
        %v2757 = vunpack.c.0.s8 %v2756
        %v2758 = vlaneseq
        %v2759 = vshrl.u32 %v2758, 7
        %v2760 = vsub.s32 %v2757, %v2759
        %v2761 = vrot.slane %v2628, %v2760
        %v2762 = vcombine.high %v2628, 0.0
        %v2763 = vcombine.low %v2753, %v2761
        %v2764 = vcombine.high %v2753, %v2761
        %v2766 = vunpack.c.l.s4 1934713408
        %v2767 = vunpack.c.0.s8 %v2766
        %v2768 = vlaneseq
        %v2769 = vshrl.u32 %v2768, 7
        %v2770 = vsub.s32 %v2767, %v2769
        %v2771 = vrot.slane %v2763, %v2770
        %v2773 = vunpack.c.l.s4 1934713408
        %v2774 = vunpack.c.0.s8 %v2773
        %v2775 = vlaneseq
        %v2776 = vshrl.u32 %v2775, 7
        %v2777 = vsub.s32 %v2774, %v2776
        %v2778 = vrot.slane %v2764, %v2777
        %v2779 = vcombine.low %v2754, %v2762
        %v2781 = vunpack.c.l.s4 1934713408
        %v2782 = vunpack.c.0.s8 %v2781
        %v2783 = vlaneseq
        %v2784 = vshrl.u32 %v2783, 7
        %v2785 = vsub.s32 %v2782, %v2784
        %v2786 = vrot.slane %v2779, %v2785
        %v2787 = vcombine.high %v2771, 0.0
        %v2788 = vcombine.high %v2778, 0.0
        %v2789 = vcombine.high %v2786, 0.0
        %v2790 = vcombine.high %v2629, 0.0
        %v2792 = vunpack.c.l.s4 1983009808
        %v2793 = vunpack.c.0.s8 %v2792
        %v2794 = vlaneseq
        %v2795 = vshrl.u32 %v2794, 7
        %v2796 = vsub.s32 %v2793, %v2795
        %v2797 = vrot.slane %v2629, %v2796
        %v2799 = vunpack.c.l.s4 1983009808
        %v2800 = vunpack.c.0.s8 %v2799
        %v2801 = vlaneseq
        %v2802 = vshrl.u32 %v2801, 7
        %v2803 = vsub.s32 %v2800, %v2802
        %v2804 = vrot.slane %v2790, %v2803
        %v2805 = vcombine.high %v2631, 0.0
        %v2807 = vunpack.c.l.s4 1983009808
        %v2808 = vunpack.c.0.s8 %v2807
        %v2809 = vlaneseq
        %v2810 = vshrl.u32 %v2809, 7
        %v2811 = vsub.s32 %v2808, %v2810
        %v2812 = vrot.slane %v2631, %v2811
        %v2814 = vunpack.c.l.s4 1983009808
        %v2815 = vunpack.c.0.s8 %v2814
        %v2816 = vlaneseq
        %v2817 = vshrl.u32 %v2816, 7
        %v2818 = vsub.s32 %v2815, %v2817
        %v2819 = vrot.slane %v2805, %v2818
        %v2820 = vcombine.low %v2797, %v2812
        %v2821 = vcombine.high %v2797, %v2812
        %v2823 = vunpack.c.l.s4 1934713408
        %v2824 = vunpack.c.0.s8 %v2823
        %v2825 = vlaneseq
        %v2826 = vshrl.u32 %v2825, 7
        %v2827 = vsub.s32 %v2824, %v2826
        %v2828 = vrot.slane %v2820, %v2827
        %v2830 = vunpack.c.l.s4 1934713408
        %v2831 = vunpack.c.0.s8 %v2830
        %v2832 = vlaneseq
        %v2833 = vshrl.u32 %v2832, 7
        %v2834 = vsub.s32 %v2831, %v2833
        %v2835 = vrot.slane %v2821, %v2834
        %v2836 = vcombine.low %v2804, %v2819
        %v2837 = vcombine.high %v2804, %v2819
        %v2839 = vunpack.c.l.s4 1934713408
        %v2840 = vunpack.c.0.s8 %v2839
        %v2841 = vlaneseq
        %v2842 = vshrl.u32 %v2841, 7
        %v2843 = vsub.s32 %v2840, %v2842
        %v2844 = vrot.slane %v2836, %v2843
        %v2846 = vunpack.c.l.s4 1934713408
        %v2847 = vunpack.c.0.s8 %v2846
        %v2848 = vlaneseq
        %v2849 = vshrl.u32 %v2848, 7
        %v2850 = vsub.s32 %v2847, %v2849
        %v2851 = vrot.slane %v2837, %v2850
        %v2852 = vcombine.high %v2828, 0.0
        %v2853 = vcombine.high %v2835, 0.0
        %v2854 = vcombine.high %v2844, 0.0
        %v2855 = vcombine.high %v2851, 0.0
        %v2857 = vunpack.c.l.s4 1983009808
        %v2858 = vunpack.c.0.s8 %v2857
        %v2859 = vlaneseq
        %v2860 = vshrl.u32 %v2859, 7
        %v2861 = vsub.s32 %v2858, %v2860
        %v2862 = vrot.slane %v2630, %v2861
        %v2863 = vcombine.high %v2630, 0.0
        %v2865 = vunpack.c.l.s4 1983009808
        %v2866 = vunpack.c.0.s8 %v2865
        %v2867 = vlaneseq
        %v2868 = vshrl.u32 %v2867, 7
        %v2869 = vsub.s32 %v2866, %v2868
        %v2870 = vrot.slane %v2632, %v2869
        %v2871 = vcombine.high %v2632, 0.0
        %v2872 = vcombine.low %v2862, %v2870
        %v2873 = vcombine.high %v2862, %v2870
        %v2875 = vunpack.c.l.s4 1934713408
        %v2876 = vunpack.c.0.s8 %v2875
        %v2877 = vlaneseq
        %v2878 = vshrl.u32 %v2877, 7
        %v2879 = vsub.s32 %v2876, %v2878
        %v2880 = vrot.slane %v2872, %v2879
        %v2882 = vunpack.c.l.s4 1934713408
        %v2883 = vunpack.c.0.s8 %v2882
        %v2884 = vlaneseq
        %v2885 = vshrl.u32 %v2884, 7
        %v2886 = vsub.s32 %v2883, %v2885
        %v2887 = vrot.slane %v2873, %v2886
        %v2888 = vcombine.low %v2863, %v2871
        %v2890 = vunpack.c.l.s4 1934713408
        %v2891 = vunpack.c.0.s8 %v2890
        %v2892 = vlaneseq
        %v2893 = vshrl.u32 %v2892, 7
        %v2894 = vsub.s32 %v2891, %v2893
        %v2895 = vrot.slane %v2888, %v2894
        %v2896 = vcombine.high %v2880, 0.0
        %v2897 = vcombine.high %v2887, 0.0
        %v2898 = vcombine.high %v2895, 0.0
        %v2899 = vcombine.high %v2633, 0.0
        %v2901 = vunpack.c.l.s4 1983009808
        %v2902 = vunpack.c.0.s8 %v2901
        %v2903 = vlaneseq
        %v2904 = vshrl.u32 %v2903, 7
        %v2905 = vsub.s32 %v2902, %v2904
        %v2906 = vrot.slane %v2633, %v2905
        %v2908 = vunpack.c.l.s4 1983009808
        %v2909 = vunpack.c.0.s8 %v2908
        %v2910 = vlaneseq
        %v2911 = vshrl.u32 %v2910, 7
        %v2912 = vsub.s32 %v2909, %v2911
        %v2913 = vrot.slane %v2899, %v2912
        %v2914 = vcombine.high %v2635, 0.0
        %v2916 = vunpack.c.l.s4 1983009808
        %v2917 = vunpack.c.0.s8 %v2916
        %v2918 = vlaneseq
        %v2919 = vshrl.u32 %v2918, 7
        %v2920 = vsub.s32 %v2917, %v2919
        %v2921 = vrot.slane %v2635, %v2920
        %v2923 = vunpack.c.l.s4 1983009808
        %v2924 = vunpack.c.0.s8 %v2923
        %v2925 = vlaneseq
        %v2926 = vshrl.u32 %v2925, 7
        %v2927 = vsub.s32 %v2924, %v2926
        %v2928 = vrot.slane %v2914, %v2927
        %v2929 = vcombine.low %v2906, %v2921
        %v2930 = vcombine.high %v2906, %v2921
        %v2932 = vunpack.c.l.s4 1934713408
        %v2933 = vunpack.c.0.s8 %v2932
        %v2934 = vlaneseq
        %v2935 = vshrl.u32 %v2934, 7
        %v2936 = vsub.s32 %v2933, %v2935
        %v2937 = vrot.slane %v2929, %v2936
        %v2939 = vunpack.c.l.s4 1934713408
        %v2940 = vunpack.c.0.s8 %v2939
        %v2941 = vlaneseq
        %v2942 = vshrl.u32 %v2941, 7
        %v2943 = vsub.s32 %v2940, %v2942
        %v2944 = vrot.slane %v2930, %v2943
        %v2945 = vcombine.low %v2913, %v2928
        %v2946 = vcombine.high %v2913, %v2928
        %v2948 = vunpack.c.l.s4 1934713408
        %v2949 = vunpack.c.0.s8 %v2948
        %v2950 = vlaneseq
        %v2951 = vshrl.u32 %v2950, 7
        %v2952 = vsub.s32 %v2949, %v2951
        %v2953 = vrot.slane %v2945, %v2952
        %v2955 = vunpack.c.l.s4 1934713408
        %v2956 = vunpack.c.0.s8 %v2955
        %v2957 = vlaneseq
        %v2958 = vshrl.u32 %v2957, 7
        %v2959 = vsub.s32 %v2956, %v2958
        %v2960 = vrot.slane %v2946, %v2959
        %v2961 = vcombine.high %v2937, 0.0
        %v2962 = vcombine.high %v2944, 0.0
        %v2963 = vcombine.high %v2953, 0.0
        %v2964 = vcombine.high %v2960, 0.0
        %v2966 = vunpack.c.l.s4 1983009808
        %v2967 = vunpack.c.0.s8 %v2966
        %v2968 = vlaneseq
        %v2969 = vshrl.u32 %v2968, 7
        %v2970 = vsub.s32 %v2967, %v2969
        %v2971 = vrot.slane %v2634, %v2970
        %v2972 = vcombine.high %v2634, 0.0
        %v2974 = vunpack.c.l.s4 1983009808
        %v2975 = vunpack.c.0.s8 %v2974
        %v2976 = vlaneseq
        %v2977 = vshrl.u32 %v2976, 7
        %v2978 = vsub.s32 %v2975, %v2977
        %v2979 = vrot.slane %v2636, %v2978
        %v2980 = vcombine.high %v2636, 0.0
        %v2981 = vcombine.low %v2971, %v2979
        %v2982 = vcombine.high %v2971, %v2979
        %v2984 = vunpack.c.l.s4 1934713408
        %v2985 = vunpack.c.0.s8 %v2984
        %v2986 = vlaneseq
        %v2987 = vshrl.u32 %v2986, 7
        %v2988 = vsub.s32 %v2985, %v2987
        %v2989 = vrot.slane %v2981, %v2988
        %v2991 = vunpack.c.l.s4 1934713408
        %v2992 = vunpack.c.0.s8 %v2991
        %v2993 = vlaneseq
        %v2994 = vshrl.u32 %v2993, 7
        %v2995 = vsub.s32 %v2992, %v2994
        %v2996 = vrot.slane %v2982, %v2995
        %v2997 = vcombine.low %v2972, %v2980
        %v2999 = vunpack.c.l.s4 1934713408
        %v3000 = vunpack.c.0.s8 %v2999
        %v3001 = vlaneseq
        %v3002 = vshrl.u32 %v3001, 7
        %v3003 = vsub.s32 %v3000, %v3002
        %v3004 = vrot.slane %v2997, %v3003
        %v3005 = vcombine.high %v2989, 0.0
        %v3006 = vcombine.high %v2996, 0.0
        %v3007 = vcombine.high %v3004, 0.0
        %v3008 = vcombine.high %v2637, 0.0
        %v3010 = vunpack.c.l.s4 1983009808
        %v3011 = vunpack.c.0.s8 %v3010
        %v3012 = vlaneseq
        %v3013 = vshrl.u32 %v3012, 7
        %v3014 = vsub.s32 %v3011, %v3013
        %v3015 = vrot.slane %v2637, %v3014
        %v3017 = vunpack.c.l.s4 1983009808
        %v3018 = vunpack.c.0.s8 %v3017
        %v3019 = vlaneseq
        %v3020 = vshrl.u32 %v3019, 7
        %v3021 = vsub.s32 %v3018, %v3020
        %v3022 = vrot.slane %v3008, %v3021
        %v3023 = vcombine.high %v2639, 0.0
        %v3025 = vunpack.c.l.s4 1983009808
        %v3026 = vunpack.c.0.s8 %v3025
        %v3027 = vlaneseq
        %v3028 = vshrl.u32 %v3027, 7
        %v3029 = vsub.s32 %v3026, %v3028
        %v3030 = vrot.slane %v2639, %v3029
        %v3032 = vunpack.c.l.s4 1983009808
        %v3033 = vunpack.c.0.s8 %v3032
        %v3034 = vlaneseq
        %v3035 = vshrl.u32 %v3034, 7
        %v3036 = vsub.s32 %v3033, %v3035
        %v3037 = vrot.slane %v3023, %v3036
        %v3038 = vcombine.low %v3015, %v3030
        %v3039 = vcombine.high %v3015, %v3030
        %v3041 = vunpack.c.l.s4 1934713408
        %v3042 = vunpack.c.0.s8 %v3041
        %v3043 = vlaneseq
        %v3044 = vshrl.u32 %v3043, 7
        %v3045 = vsub.s32 %v3042, %v3044
        %v3046 = vrot.slane %v3038, %v3045
        %v3048 = vunpack.c.l.s4 1934713408
        %v3049 = vunpack.c.0.s8 %v3048
        %v3050 = vlaneseq
        %v3051 = vshrl.u32 %v3050, 7
        %v3052 = vsub.s32 %v3049, %v3051
        %v3053 = vrot.slane %v3039, %v3052
        %v3054 = vcombine.low %v3022, %v3037
        %v3055 = vcombine.high %v3022, %v3037
        %v3057 = vunpack.c.l.s4 1934713408
        %v3058 = vunpack.c.0.s8 %v3057
        %v3059 = vlaneseq
        %v3060 = vshrl.u32 %v3059, 7
        %v3061 = vsub.s32 %v3058, %v3060
        %v3062 = vrot.slane %v3054, %v3061
        %v3064 = vunpack.c.l.s4 1934713408
        %v3065 = vunpack.c.0.s8 %v3064
        %v3066 = vlaneseq
        %v3067 = vshrl.u32 %v3066, 7
        %v3068 = vsub.s32 %v3065, %v3067
        %v3069 = vrot.slane %v3055, %v3068
        %v3070 = vcombine.high %v3046, 0.0
        %v3071 = vcombine.high %v3053, 0.0
        %v3072 = vcombine.high %v3062, 0.0
        %v3073 = vcombine.high %v3069, 0.0
        %v3075 = vunpack.c.l.s4 1983009808
        %v3076 = vunpack.c.0.s8 %v3075
        %v3077 = vlaneseq
        %v3078 = vshrl.u32 %v3077, 7
        %v3079 = vsub.s32 %v3076, %v3078
        %v3080 = vrot.slane %v2638, %v3079
        %v3081 = vcombine.high %v2638, 0.0
        %v3083 = vunpack.c.l.s4 1983009808
        %v3084 = vunpack.c.0.s8 %v3083
        %v3085 = vlaneseq
        %v3086 = vshrl.u32 %v3085, 7
        %v3087 = vsub.s32 %v3084, %v3086
        %v3088 = vrot.slane %v2640, %v3087
        %v3089 = vcombine.high %v2640, 0.0
        %v3090 = vcombine.low %v3080, %v3088
        %v3091 = vcombine.high %v3080, %v3088
        %v3093 = vunpack.c.l.s4 1934713408
        %v3094 = vunpack.c.0.s8 %v3093
        %v3095 = vlaneseq
        %v3096 = vshrl.u32 %v3095, 7
        %v3097 = vsub.s32 %v3094, %v3096
        %v3098 = vrot.slane %v3090, %v3097
        %v3100 = vunpack.c.l.s4 1934713408
        %v3101 = vunpack.c.0.s8 %v3100
        %v3102 = vlaneseq
        %v3103 = vshrl.u32 %v3102, 7
        %v3104 = vsub.s32 %v3101, %v3103
        %v3105 = vrot.slane %v3091, %v3104
        %v3106 = vcombine.low %v3081, %v3089
        %v3108 = vunpack.c.l.s4 1934713408
        %v3109 = vunpack.c.0.s8 %v3108
        %v3110 = vlaneseq
        %v3111 = vshrl.u32 %v3110, 7
        %v3112 = vsub.s32 %v3109, %v3111
        %v3113 = vrot.slane %v3106, %v3112
        %v3114 = vcombine.high %v3098, 0.0
        %v3115 = vcombine.high %v3105, 0.0
        %v3116 = vcombine.high %v3113, 0.0
        %v3117 = vcombine.high %v2641, 0.0
        %v3119 = vunpack.c.l.s4 1983009808
        %v3120 = vunpack.c.0.s8 %v3119
        %v3121 = vlaneseq
        %v3122 = vshrl.u32 %v3121, 7
        %v3123 = vsub.s32 %v3120, %v3122
        %v3124 = vrot.slane %v2641, %v3123
        %v3126 = vunpack.c.l.s4 1983009808
        %v3127 = vunpack.c.0.s8 %v3126
        %v3128 = vlaneseq
        %v3129 = vshrl.u32 %v3128, 7
        %v3130 = vsub.s32 %v3127, %v3129
        %v3131 = vrot.slane %v3117, %v3130
        %v3132 = vcombine.high %v2643, 0.0
        %v3134 = vunpack.c.l.s4 1983009808
        %v3135 = vunpack.c.0.s8 %v3134
        %v3136 = vlaneseq
        %v3137 = vshrl.u32 %v3136, 7
        %v3138 = vsub.s32 %v3135, %v3137
        %v3139 = vrot.slane %v2643, %v3138
        %v3141 = vunpack.c.l.s4 1983009808
        %v3142 = vunpack.c.0.s8 %v3141
        %v3143 = vlaneseq
        %v3144 = vshrl.u32 %v3143, 7
        %v3145 = vsub.s32 %v3142, %v3144
        %v3146 = vrot.slane %v3132, %v3145
        %v3147 = vcombine.low %v3124, %v3139
        %v3148 = vcombine.high %v3124, %v3139
        %v3150 = vunpack.c.l.s4 1934713408
        %v3151 = vunpack.c.0.s8 %v3150
        %v3152 = vlaneseq
        %v3153 = vshrl.u32 %v3152, 7
        %v3154 = vsub.s32 %v3151, %v3153
        %v3155 = vrot.slane %v3147, %v3154
        %v3157 = vunpack.c.l.s4 1934713408
        %v3158 = vunpack.c.0.s8 %v3157
        %v3159 = vlaneseq
        %v3160 = vshrl.u32 %v3159, 7
        %v3161 = vsub.s32 %v3158, %v3160
        %v3162 = vrot.slane %v3148, %v3161
        %v3163 = vcombine.low %v3131, %v3146
        %v3164 = vcombine.high %v3131, %v3146
        %v3166 = vunpack.c.l.s4 1934713408
        %v3167 = vunpack.c.0.s8 %v3166
        %v3168 = vlaneseq
        %v3169 = vshrl.u32 %v3168, 7
        %v3170 = vsub.s32 %v3167, %v3169
        %v3171 = vrot.slane %v3163, %v3170
        %v3173 = vunpack.c.l.s4 1934713408
        %v3174 = vunpack.c.0.s8 %v3173
        %v3175 = vlaneseq
        %v3176 = vshrl.u32 %v3175, 7
        %v3177 = vsub.s32 %v3174, %v3176
        %v3178 = vrot.slane %v3164, %v3177
        %v3179 = vcombine.high %v3155, 0.0
        %v3180 = vcombine.high %v3162, 0.0
        %v3181 = vcombine.high %v3171, 0.0
        %v3182 = vcombine.high %v3178, 0.0
        %v3184 = vunpack.c.l.s4 1983009808
        %v3185 = vunpack.c.0.s8 %v3184
        %v3186 = vlaneseq
        %v3187 = vshrl.u32 %v3186, 7
        %v3188 = vsub.s32 %v3185, %v3187
        %v3189 = vrot.slane %v2642, %v3188
        %v3190 = vcombine.high %v2642, 0.0
        %v3192 = vunpack.c.l.s4 1983009808
        %v3193 = vunpack.c.0.s8 %v3192
        %v3194 = vlaneseq
        %v3195 = vshrl.u32 %v3194, 7
        %v3196 = vsub.s32 %v3193, %v3195
        %v3197 = vrot.slane %v2644, %v3196
        %v3198 = vcombine.high %v2644, 0.0
        %v3199 = vcombine.low %v3189, %v3197
        %v3200 = vcombine.high %v3189, %v3197
        %v3202 = vunpack.c.l.s4 1934713408
        %v3203 = vunpack.c.0.s8 %v3202
        %v3204 = vlaneseq
        %v3205 = vshrl.u32 %v3204, 7
        %v3206 = vsub.s32 %v3203, %v3205
        %v3207 = vrot.slane %v3199, %v3206
        %v3209 = vunpack.c.l.s4 1934713408
        %v3210 = vunpack.c.0.s8 %v3209
        %v3211 = vlaneseq
        %v3212 = vshrl.u32 %v3211, 7
        %v3213 = vsub.s32 %v3210, %v3212
        %v3214 = vrot.slane %v3200, %v3213
        %v3215 = vcombine.low %v3190, %v3198
        %v3217 = vunpack.c.l.s4 1934713408
        %v3218 = vunpack.c.0.s8 %v3217
        %v3219 = vlaneseq
        %v3220 = vshrl.u32 %v3219, 7
        %v3221 = vsub.s32 %v3218, %v3220
        %v3222 = vrot.slane %v3215, %v3221
        %v3223 = vcombine.high %v3207, 0.0
        %v3224 = vcombine.high %v3214, 0.0
        %v3225 = vcombine.high %v3222, 0.0
        %v3226 = vcombine.high %v2645, 0.0
        %v3228 = vunpack.c.l.s4 1983009808
        %v3229 = vunpack.c.0.s8 %v3228
        %v3230 = vlaneseq
        %v3231 = vshrl.u32 %v3230, 7
        %v3232 = vsub.s32 %v3229, %v3231
        %v3233 = vrot.slane %v2645, %v3232
        %v3235 = vunpack.c.l.s4 1983009808
        %v3236 = vunpack.c.0.s8 %v3235
        %v3237 = vlaneseq
        %v3238 = vshrl.u32 %v3237, 7
        %v3239 = vsub.s32 %v3236, %v3238
        %v3240 = vrot.slane %v3226, %v3239
        %v3241 = vcombine.high %v2647, 0.0
        %v3243 = vunpack.c.l.s4 1983009808
        %v3244 = vunpack.c.0.s8 %v3243
        %v3245 = vlaneseq
        %v3246 = vshrl.u32 %v3245, 7
        %v3247 = vsub.s32 %v3244, %v3246
        %v3248 = vrot.slane %v2647, %v3247
        %v3250 = vunpack.c.l.s4 1983009808
        %v3251 = vunpack.c.0.s8 %v3250
        %v3252 = vlaneseq
        %v3253 = vshrl.u32 %v3252, 7
        %v3254 = vsub.s32 %v3251, %v3253
        %v3255 = vrot.slane %v3241, %v3254
        %v3256 = vcombine.low %v3233, %v3248
        %v3257 = vcombine.high %v3233, %v3248
        %v3259 = vunpack.c.l.s4 1934713408
        %v3260 = vunpack.c.0.s8 %v3259
        %v3261 = vlaneseq
        %v3262 = vshrl.u32 %v3261, 7
        %v3263 = vsub.s32 %v3260, %v3262
        %v3264 = vrot.slane %v3256, %v3263
        %v3266 = vunpack.c.l.s4 1934713408
        %v3267 = vunpack.c.0.s8 %v3266
        %v3268 = vlaneseq
        %v3269 = vshrl.u32 %v3268, 7
        %v3270 = vsub.s32 %v3267, %v3269
        %v3271 = vrot.slane %v3257, %v3270
        %v3272 = vcombine.low %v3240, %v3255
        %v3273 = vcombine.high %v3240, %v3255
        %v3275 = vunpack.c.l.s4 1934713408
        %v3276 = vunpack.c.0.s8 %v3275
        %v3277 = vlaneseq
        %v3278 = vshrl.u32 %v3277, 7
        %v3279 = vsub.s32 %v3276, %v3278
        %v3280 = vrot.slane %v3272, %v3279
        %v3282 = vunpack.c.l.s4 1934713408
        %v3283 = vunpack.c.0.s8 %v3282
        %v3284 = vlaneseq
        %v3285 = vshrl.u32 %v3284, 7
        %v3286 = vsub.s32 %v3283, %v3285
        %v3287 = vrot.slane %v3273, %v3286
        %v3288 = vcombine.high %v3264, 0.0
        %v3289 = vcombine.high %v3271, 0.0
        %v3290 = vcombine.high %v3280, 0.0
        %v3291 = vcombine.high %v3287, 0.0
        %v3293 = vunpack.c.l.s4 1983009808
        %v3294 = vunpack.c.0.s8 %v3293
        %v3295 = vlaneseq
        %v3296 = vshrl.u32 %v3295, 7
        %v3297 = vsub.s32 %v3294, %v3296
        %v3298 = vrot.slane %v2646, %v3297
        %v3299 = vcombine.high %v2646, 0.0
        %v3301 = vunpack.c.l.s4 1983009808
        %v3302 = vunpack.c.0.s8 %v3301
        %v3303 = vlaneseq
        %v3304 = vshrl.u32 %v3303, 7
        %v3305 = vsub.s32 %v3302, %v3304
        %v3306 = vrot.slane %v2648, %v3305
        %v3307 = vcombine.high %v2648, 0.0
        %v3308 = vcombine.low %v3298, %v3306
        %v3309 = vcombine.high %v3298, %v3306
        %v3311 = vunpack.c.l.s4 1934713408
        %v3312 = vunpack.c.0.s8 %v3311
        %v3313 = vlaneseq
        %v3314 = vshrl.u32 %v3313, 7
        %v3315 = vsub.s32 %v3312, %v3314
        %v3316 = vrot.slane %v3308, %v3315
        %v3318 = vunpack.c.l.s4 1934713408
        %v3319 = vunpack.c.0.s8 %v3318
        %v3320 = vlaneseq
        %v3321 = vshrl.u32 %v3320, 7
        %v3322 = vsub.s32 %v3319, %v3321
        %v3323 = vrot.slane %v3309, %v3322
        %v3324 = vcombine.low %v3299, %v3307
        %v3326 = vunpack.c.l.s4 1934713408
        %v3327 = vunpack.c.0.s8 %v3326
        %v3328 = vlaneseq
        %v3329 = vshrl.u32 %v3328, 7
        %v3330 = vsub.s32 %v3327, %v3329
        %v3331 = vrot.slane %v3324, %v3330
        %v3332 = vcombine.high %v3316, 0.0
        %v3333 = vcombine.high %v3323, 0.0
        %v3334 = vcombine.high %v3331, 0.0
        %v3335 = vcombine.high %v2649, 0.0
        %v3337 = vunpack.c.l.s4 1983009808
        %v3338 = vunpack.c.0.s8 %v3337
        %v3339 = vlaneseq
        %v3340 = vshrl.u32 %v3339, 7
        %v3341 = vsub.s32 %v3338, %v3340
        %v3342 = vrot.slane %v2649, %v3341
        %v3344 = vunpack.c.l.s4 1983009808
        %v3345 = vunpack.c.0.s8 %v3344
        %v3346 = vlaneseq
        %v3347 = vshrl.u32 %v3346, 7
        %v3348 = vsub.s32 %v3345, %v3347
        %v3349 = vrot.slane %v3335, %v3348
        %v3350 = vcombine.high %v2651, 0.0
        %v3352 = vunpack.c.l.s4 1983009808
        %v3353 = vunpack.c.0.s8 %v3352
        %v3354 = vlaneseq
        %v3355 = vshrl.u32 %v3354, 7
        %v3356 = vsub.s32 %v3353, %v3355
        %v3357 = vrot.slane %v2651, %v3356
        %v3359 = vunpack.c.l.s4 1983009808
        %v3360 = vunpack.c.0.s8 %v3359
        %v3361 = vlaneseq
        %v3362 = vshrl.u32 %v3361, 7
        %v3363 = vsub.s32 %v3360, %v3362
        %v3364 = vrot.slane %v3350, %v3363
        %v3365 = vcombine.low %v3342, %v3357
        %v3366 = vcombine.high %v3342, %v3357
        %v3368 = vunpack.c.l.s4 1934713408
        %v3369 = vunpack.c.0.s8 %v3368
        %v3370 = vlaneseq
        %v3371 = vshrl.u32 %v3370, 7
        %v3372 = vsub.s32 %v3369, %v3371
        %v3373 = vrot.slane %v3365, %v3372
        %v3375 = vunpack.c.l.s4 1934713408
        %v3376 = vunpack.c.0.s8 %v3375
        %v3377 = vlaneseq
        %v3378 = vshrl.u32 %v3377, 7
        %v3379 = vsub.s32 %v3376, %v3378
        %v3380 = vrot.slane %v3366, %v3379
        %v3381 = vcombine.low %v3349, %v3364
        %v3382 = vcombine.high %v3349, %v3364
        %v3384 = vunpack.c.l.s4 1934713408
        %v3385 = vunpack.c.0.s8 %v3384
        %v3386 = vlaneseq
        %v3387 = vshrl.u32 %v3386, 7
        %v3388 = vsub.s32 %v3385, %v3387
        %v3389 = vrot.slane %v3381, %v3388
        %v3391 = vunpack.c.l.s4 1934713408
        %v3392 = vunpack.c.0.s8 %v3391
        %v3393 = vlaneseq
        %v3394 = vshrl.u32 %v3393, 7
        %v3395 = vsub.s32 %v3392, %v3394
        %v3396 = vrot.slane %v3382, %v3395
        %v3397 = vcombine.high %v3373, 0.0
        %v3398 = vcombine.high %v3380, 0.0
        %v3399 = vcombine.high %v3389, 0.0
        %v3400 = vcombine.high %v3396, 0.0
        %v3402 = vunpack.c.l.s4 1983009808
        %v3403 = vunpack.c.0.s8 %v3402
        %v3404 = vlaneseq
        %v3405 = vshrl.u32 %v3404, 7
        %v3406 = vsub.s32 %v3403, %v3405
        %v3407 = vrot.slane %v2650, %v3406
        %v3408 = vcombine.high %v2650, 0.0
        %v3410 = vunpack.c.l.s4 1983009808
        %v3411 = vunpack.c.0.s8 %v3410
        %v3412 = vlaneseq
        %v3413 = vshrl.u32 %v3412, 7
        %v3414 = vsub.s32 %v3411, %v3413
        %v3415 = vrot.slane %v2652, %v3414
        %v3416 = vcombine.high %v2652, 0.0
        %v3417 = vcombine.low %v3407, %v3415
        %v3418 = vcombine.high %v3407, %v3415
        %v3420 = vunpack.c.l.s4 1934713408
        %v3421 = vunpack.c.0.s8 %v3420
        %v3422 = vlaneseq
        %v3423 = vshrl.u32 %v3422, 7
        %v3424 = vsub.s32 %v3421, %v3423
        %v3425 = vrot.slane %v3417, %v3424
        %v3427 = vunpack.c.l.s4 1934713408
        %v3428 = vunpack.c.0.s8 %v3427
        %v3429 = vlaneseq
        %v3430 = vshrl.u32 %v3429, 7
        %v3431 = vsub.s32 %v3428, %v3430
        %v3432 = vrot.slane %v3418, %v3431
        %v3433 = vcombine.low %v3408, %v3416
        %v3435 = vunpack.c.l.s4 1934713408
        %v3436 = vunpack.c.0.s8 %v3435
        %v3437 = vlaneseq
        %v3438 = vshrl.u32 %v3437, 7
        %v3439 = vsub.s32 %v3436, %v3438
        %v3440 = vrot.slane %v3433, %v3439
        %v3441 = vcombine.high %v3425, 0.0
        %v3442 = vcombine.high %v3432, 0.0
        %v3443 = vcombine.high %v3440, 0.0
        %v3444 = vcombine.high %v2653, 0.0
        %v3446 = vunpack.c.l.s4 1983009808
        %v3447 = vunpack.c.0.s8 %v3446
        %v3448 = vlaneseq
        %v3449 = vshrl.u32 %v3448, 7
        %v3450 = vsub.s32 %v3447, %v3449
        %v3451 = vrot.slane %v2653, %v3450
        %v3453 = vunpack.c.l.s4 1983009808
        %v3454 = vunpack.c.0.s8 %v3453
        %v3455 = vlaneseq
        %v3456 = vshrl.u32 %v3455, 7
        %v3457 = vsub.s32 %v3454, %v3456
        %v3458 = vrot.slane %v3444, %v3457
        %v3459 = vcombine.high %v2655, 0.0
        %v3461 = vunpack.c.l.s4 1983009808
        %v3462 = vunpack.c.0.s8 %v3461
        %v3463 = vlaneseq
        %v3464 = vshrl.u32 %v3463, 7
        %v3465 = vsub.s32 %v3462, %v3464
        %v3466 = vrot.slane %v2655, %v3465
        %v3468 = vunpack.c.l.s4 1983009808
        %v3469 = vunpack.c.0.s8 %v3468
        %v3470 = vlaneseq
        %v3471 = vshrl.u32 %v3470, 7
        %v3472 = vsub.s32 %v3469, %v3471
        %v3473 = vrot.slane %v3459, %v3472
        %v3474 = vcombine.low %v3451, %v3466
        %v3475 = vcombine.high %v3451, %v3466
        %v3477 = vunpack.c.l.s4 1934713408
        %v3478 = vunpack.c.0.s8 %v3477
        %v3479 = vlaneseq
        %v3480 = vshrl.u32 %v3479, 7
        %v3481 = vsub.s32 %v3478, %v3480
        %v3482 = vrot.slane %v3474, %v3481
        %v3484 = vunpack.c.l.s4 1934713408
        %v3485 = vunpack.c.0.s8 %v3484
        %v3486 = vlaneseq
        %v3487 = vshrl.u32 %v3486, 7
        %v3488 = vsub.s32 %v3485, %v3487
        %v3489 = vrot.slane %v3475, %v3488
        %v3490 = vcombine.low %v3458, %v3473
        %v3491 = vcombine.high %v3458, %v3473
        %v3493 = vunpack.c.l.s4 1934713408
        %v3494 = vunpack.c.0.s8 %v3493
        %v3495 = vlaneseq
        %v3496 = vshrl.u32 %v3495, 7
        %v3497 = vsub.s32 %v3494, %v3496
        %v3498 = vrot.slane %v3490, %v3497
        %v3500 = vunpack.c.l.s4 1934713408
        %v3501 = vunpack.c.0.s8 %v3500
        %v3502 = vlaneseq
        %v3503 = vshrl.u32 %v3502, 7
        %v3504 = vsub.s32 %v3501, %v3503
        %v3505 = vrot.slane %v3491, %v3504
        %v3506 = vcombine.high %v3482, 0.0
        %v3507 = vcombine.high %v3489, 0.0
        %v3508 = vcombine.high %v3498, 0.0
        %v3509 = vcombine.high %v3505, 0.0
        %v3511 = vunpack.c.l.s4 1983009808
        %v3512 = vunpack.c.0.s8 %v3511
        %v3513 = vlaneseq
        %v3514 = vshrl.u32 %v3513, 7
        %v3515 = vsub.s32 %v3512, %v3514
        %v3516 = vrot.slane %v2654, %v3515
        %v3517 = vcombine.high %v2654, 0.0
        %v3519 = vunpack.c.l.s4 1983009808
        %v3520 = vunpack.c.0.s8 %v3519
        %v3521 = vlaneseq
        %v3522 = vshrl.u32 %v3521, 7
        %v3523 = vsub.s32 %v3520, %v3522
        %v3524 = vrot.slane %v2656, %v3523
        %v3525 = vcombine.high %v2656, 0.0
        %v3526 = vcombine.low %v3516, %v3524
        %v3527 = vcombine.high %v3516, %v3524
        %v3529 = vunpack.c.l.s4 1934713408
        %v3530 = vunpack.c.0.s8 %v3529
        %v3531 = vlaneseq
        %v3532 = vshrl.u32 %v3531, 7
        %v3533 = vsub.s32 %v3530, %v3532
        %v3534 = vrot.slane %v3526, %v3533
        %v3536 = vunpack.c.l.s4 1934713408
        %v3537 = vunpack.c.0.s8 %v3536
        %v3538 = vlaneseq
        %v3539 = vshrl.u32 %v3538, 7
        %v3540 = vsub.s32 %v3537, %v3539
        %v3541 = vrot.slane %v3527, %v3540
        %v3542 = vcombine.low %v3517, %v3525
        %v3544 = vunpack.c.l.s4 1934713408
        %v3545 = vunpack.c.0.s8 %v3544
        %v3546 = vlaneseq
        %v3547 = vshrl.u32 %v3546, 7
        %v3548 = vsub.s32 %v3545, %v3547
        %v3549 = vrot.slane %v3542, %v3548
        %v3550 = vcombine.high %v3534, 0.0
        %v3551 = vcombine.high %v3541, 0.0
        %v3552 = vcombine.high %v3549, 0.0
        %v3553 = vcombine.high %v2657, 0.0
        %v3555 = vunpack.c.l.s4 1983009808
        %v3556 = vunpack.c.0.s8 %v3555
        %v3557 = vlaneseq
        %v3558 = vshrl.u32 %v3557, 7
        %v3559 = vsub.s32 %v3556, %v3558
        %v3560 = vrot.slane %v2657, %v3559
        %v3562 = vunpack.c.l.s4 1983009808
        %v3563 = vunpack.c.0.s8 %v3562
        %v3564 = vlaneseq
        %v3565 = vshrl.u32 %v3564, 7
        %v3566 = vsub.s32 %v3563, %v3565
        %v3567 = vrot.slane %v3553, %v3566
        %v3568 = vcombine.high %v2659, 0.0
        %v3570 = vunpack.c.l.s4 1983009808
        %v3571 = vunpack.c.0.s8 %v3570
        %v3572 = vlaneseq
        %v3573 = vshrl.u32 %v3572, 7
        %v3574 = vsub.s32 %v3571, %v3573
        %v3575 = vrot.slane %v2659, %v3574
        %v3577 = vunpack.c.l.s4 1983009808
        %v3578 = vunpack.c.0.s8 %v3577
        %v3579 = vlaneseq
        %v3580 = vshrl.u32 %v3579, 7
        %v3581 = vsub.s32 %v3578, %v3580
        %v3582 = vrot.slane %v3568, %v3581
        %v3583 = vcombine.low %v3560, %v3575
        %v3584 = vcombine.high %v3560, %v3575
        %v3586 = vunpack.c.l.s4 1934713408
        %v3587 = vunpack.c.0.s8 %v3586
        %v3588 = vlaneseq
        %v3589 = vshrl.u32 %v3588, 7
        %v3590 = vsub.s32 %v3587, %v3589
        %v3591 = vrot.slane %v3583, %v3590
        %v3593 = vunpack.c.l.s4 1934713408
        %v3594 = vunpack.c.0.s8 %v3593
        %v3595 = vlaneseq
        %v3596 = vshrl.u32 %v3595, 7
        %v3597 = vsub.s32 %v3594, %v3596
        %v3598 = vrot.slane %v3584, %v3597
        %v3599 = vcombine.low %v3567, %v3582
        %v3600 = vcombine.high %v3567, %v3582
        %v3602 = vunpack.c.l.s4 1934713408
        %v3603 = vunpack.c.0.s8 %v3602
        %v3604 = vlaneseq
        %v3605 = vshrl.u32 %v3604, 7
        %v3606 = vsub.s32 %v3603, %v3605
        %v3607 = vrot.slane %v3599, %v3606
        %v3609 = vunpack.c.l.s4 1934713408
        %v3610 = vunpack.c.0.s8 %v3609
        %v3611 = vlaneseq
        %v3612 = vshrl.u32 %v3611, 7
        %v3613 = vsub.s32 %v3610, %v3612
        %v3614 = vrot.slane %v3600, %v3613
        %v3615 = vcombine.high %v3591, 0.0
        %v3616 = vcombine.high %v3598, 0.0
        %v3617 = vcombine.high %v3607, 0.0
        %v3618 = vcombine.high %v3614, 0.0
        %v3620 = vunpack.c.l.s4 1983009808
        %v3621 = vunpack.c.0.s8 %v3620
        %v3622 = vlaneseq
        %v3623 = vshrl.u32 %v3622, 7
        %v3624 = vsub.s32 %v3621, %v3623
        %v3625 = vrot.slane %v2658, %v3624
        %v3626 = vcombine.high %v2658, 0.0
        %v3628 = vunpack.c.l.s4 1983009808
        %v3629 = vunpack.c.0.s8 %v3628
        %v3630 = vlaneseq
        %v3631 = vshrl.u32 %v3630, 7
        %v3632 = vsub.s32 %v3629, %v3631
        %v3633 = vrot.slane %v2660, %v3632
        %v3634 = vcombine.high %v2660, 0.0
        %v3635 = vcombine.low %v3625, %v3633
        %v3636 = vcombine.high %v3625, %v3633
        %v3638 = vunpack.c.l.s4 1934713408
        %v3639 = vunpack.c.0.s8 %v3638
        %v3640 = vlaneseq
        %v3641 = vshrl.u32 %v3640, 7
        %v3642 = vsub.s32 %v3639, %v3641
        %v3643 = vrot.slane %v3635, %v3642
        %v3645 = vunpack.c.l.s4 1934713408
        %v3646 = vunpack.c.0.s8 %v3645
        %v3647 = vlaneseq
        %v3648 = vshrl.u32 %v3647, 7
        %v3649 = vsub.s32 %v3646, %v3648
        %v3650 = vrot.slane %v3636, %v3649
        %v3651 = vcombine.low %v3626, %v3634
        %v3653 = vunpack.c.l.s4 1934713408
        %v3654 = vunpack.c.0.s8 %v3653
        %v3655 = vlaneseq
        %v3656 = vshrl.u32 %v3655, 7
        %v3657 = vsub.s32 %v3654, %v3656
        %v3658 = vrot.slane %v3651, %v3657
        %v3659 = vcombine.high %v3643, 0.0
        %v3660 = vcombine.high %v3650, 0.0
        %v3661 = vcombine.high %v3658, 0.0
        %v3662 = vcombine.high %v2661, 0.0
        %v3664 = vunpack.c.l.s4 1983009808
        %v3665 = vunpack.c.0.s8 %v3664
        %v3666 = vlaneseq
        %v3667 = vshrl.u32 %v3666, 7
        %v3668 = vsub.s32 %v3665, %v3667
        %v3669 = vrot.slane %v2661, %v3668
        %v3671 = vunpack.c.l.s4 1983009808
        %v3672 = vunpack.c.0.s8 %v3671
        %v3673 = vlaneseq
        %v3674 = vshrl.u32 %v3673, 7
        %v3675 = vsub.s32 %v3672, %v3674
        %v3676 = vrot.slane %v3662, %v3675
        %v3677 = vcombine.high %v2663, 0.0
        %v3679 = vunpack.c.l.s4 1983009808
        %v3680 = vunpack.c.0.s8 %v3679
        %v3681 = vlaneseq
        %v3682 = vshrl.u32 %v3681, 7
        %v3683 = vsub.s32 %v3680, %v3682
        %v3684 = vrot.slane %v2663, %v3683
        %v3686 = vunpack.c.l.s4 1983009808
        %v3687 = vunpack.c.0.s8 %v3686
        %v3688 = vlaneseq
        %v3689 = vshrl.u32 %v3688, 7
        %v3690 = vsub.s32 %v3687, %v3689
        %v3691 = vrot.slane %v3677, %v3690
        %v3692 = vcombine.low %v3669, %v3684
        %v3693 = vcombine.high %v3669, %v3684
        %v3695 = vunpack.c.l.s4 1934713408
        %v3696 = vunpack.c.0.s8 %v3695
        %v3697 = vlaneseq
        %v3698 = vshrl.u32 %v3697, 7
        %v3699 = vsub.s32 %v3696, %v3698
        %v3700 = vrot.slane %v3692, %v3699
        %v3702 = vunpack.c.l.s4 1934713408
        %v3703 = vunpack.c.0.s8 %v3702
        %v3704 = vlaneseq
        %v3705 = vshrl.u32 %v3704, 7
        %v3706 = vsub.s32 %v3703, %v3705
        %v3707 = vrot.slane %v3693, %v3706
        %v3708 = vcombine.low %v3676, %v3691
        %v3709 = vcombine.high %v3676, %v3691
        %v3711 = vunpack.c.l.s4 1934713408
        %v3712 = vunpack.c.0.s8 %v3711
        %v3713 = vlaneseq
        %v3714 = vshrl.u32 %v3713, 7
        %v3715 = vsub.s32 %v3712, %v3714
        %v3716 = vrot.slane %v3708, %v3715
        %v3718 = vunpack.c.l.s4 1934713408
        %v3719 = vunpack.c.0.s8 %v3718
        %v3720 = vlaneseq
        %v3721 = vshrl.u32 %v3720, 7
        %v3722 = vsub.s32 %v3719, %v3721
        %v3723 = vrot.slane %v3709, %v3722
        %v3724 = vcombine.high %v3700, 0.0
        %v3725 = vcombine.high %v3707, 0.0
        %v3726 = vcombine.high %v3716, 0.0
        %v3727 = vcombine.high %v3723, 0.0
        %v3729 = vunpack.c.l.s4 1983009808
        %v3730 = vunpack.c.0.s8 %v3729
        %v3731 = vlaneseq
        %v3732 = vshrl.u32 %v3731, 7
        %v3733 = vsub.s32 %v3730, %v3732
        %v3734 = vrot.slane %v2662, %v3733
        %v3735 = vcombine.high %v2662, 0.0
        %v3737 = vunpack.c.l.s4 1983009808
        %v3738 = vunpack.c.0.s8 %v3737
        %v3739 = vlaneseq
        %v3740 = vshrl.u32 %v3739, 7
        %v3741 = vsub.s32 %v3738, %v3740
        %v3742 = vrot.slane %v2664, %v3741
        %v3743 = vcombine.high %v2664, 0.0
        %v3744 = vcombine.low %v3734, %v3742
        %v3745 = vcombine.high %v3734, %v3742
        %v3747 = vunpack.c.l.s4 1934713408
        %v3748 = vunpack.c.0.s8 %v3747
        %v3749 = vlaneseq
        %v3750 = vshrl.u32 %v3749, 7
        %v3751 = vsub.s32 %v3748, %v3750
        %v3752 = vrot.slane %v3744, %v3751
        %v3754 = vunpack.c.l.s4 1934713408
        %v3755 = vunpack.c.0.s8 %v3754
        %v3756 = vlaneseq
        %v3757 = vshrl.u32 %v3756, 7
        %v3758 = vsub.s32 %v3755, %v3757
        %v3759 = vrot.slane %v3745, %v3758
        %v3760 = vcombine.low %v3735, %v3743
        %v3762 = vunpack.c.l.s4 1934713408
        %v3763 = vunpack.c.0.s8 %v3762
        %v3764 = vlaneseq
        %v3765 = vshrl.u32 %v3764, 7
        %v3766 = vsub.s32 %v3763, %v3765
        %v3767 = vrot.slane %v3760, %v3766
        %v3768 = vcombine.high %v3752, 0.0
        %v3769 = vcombine.high %v3759, 0.0
        %v3770 = vcombine.high %v3767, 0.0
        %v3771 = vcombine.high %v2665, 0.0
        %v3773 = vunpack.c.l.s4 1983009808
        %v3774 = vunpack.c.0.s8 %v3773
        %v3775 = vlaneseq
        %v3776 = vshrl.u32 %v3775, 7
        %v3777 = vsub.s32 %v3774, %v3776
        %v3778 = vrot.slane %v2665, %v3777
        %v3780 = vunpack.c.l.s4 1983009808
        %v3781 = vunpack.c.0.s8 %v3780
        %v3782 = vlaneseq
        %v3783 = vshrl.u32 %v3782, 7
        %v3784 = vsub.s32 %v3781, %v3783
        %v3785 = vrot.slane %v3771, %v3784
        %v3786 = vcombine.high %v2667, 0.0
        %v3788 = vunpack.c.l.s4 1983009808
        %v3789 = vunpack.c.0.s8 %v3788
        %v3790 = vlaneseq
        %v3791 = vshrl.u32 %v3790, 7
        %v3792 = vsub.s32 %v3789, %v3791
        %v3793 = vrot.slane %v2667, %v3792
        %v3795 = vunpack.c.l.s4 1983009808
        %v3796 = vunpack.c.0.s8 %v3795
        %v3797 = vlaneseq
        %v3798 = vshrl.u32 %v3797, 7
        %v3799 = vsub.s32 %v3796, %v3798
        %v3800 = vrot.slane %v3786, %v3799
        %v3801 = vcombine.low %v3778, %v3793
        %v3802 = vcombine.high %v3778, %v3793
        %v3804 = vunpack.c.l.s4 1934713408
        %v3805 = vunpack.c.0.s8 %v3804
        %v3806 = vlaneseq
        %v3807 = vshrl.u32 %v3806, 7
        %v3808 = vsub.s32 %v3805, %v3807
        %v3809 = vrot.slane %v3801, %v3808
        %v3811 = vunpack.c.l.s4 1934713408
        %v3812 = vunpack.c.0.s8 %v3811
        %v3813 = vlaneseq
        %v3814 = vshrl.u32 %v3813, 7
        %v3815 = vsub.s32 %v3812, %v3814
        %v3816 = vrot.slane %v3802, %v3815
        %v3817 = vcombine.low %v3785, %v3800
        %v3818 = vcombine.high %v3785, %v3800
        %v3820 = vunpack.c.l.s4 1934713408
        %v3821 = vunpack.c.0.s8 %v3820
        %v3822 = vlaneseq
        %v3823 = vshrl.u32 %v3822, 7
        %v3824 = vsub.s32 %v3821, %v3823
        %v3825 = vrot.slane %v3817, %v3824
        %v3827 = vunpack.c.l.s4 1934713408
        %v3828 = vunpack.c.0.s8 %v3827
        %v3829 = vlaneseq
        %v3830 = vshrl.u32 %v3829, 7
        %v3831 = vsub.s32 %v3828, %v3830
        %v3832 = vrot.slane %v3818, %v3831
        %v3833 = vcombine.high %v3809, 0.0
        %v3834 = vcombine.high %v3816, 0.0
        %v3835 = vcombine.high %v3825, 0.0
        %v3836 = vcombine.high %v3832, 0.0
        %v3838 = vunpack.c.l.s4 1983009808
        %v3839 = vunpack.c.0.s8 %v3838
        %v3840 = vlaneseq
        %v3841 = vshrl.u32 %v3840, 7
        %v3842 = vsub.s32 %v3839, %v3841
        %v3843 = vrot.slane %v2666, %v3842
        %v3844 = vcombine.high %v2666, 0.0
        %v3846 = vunpack.c.l.s4 1983009808
        %v3847 = vunpack.c.0.s8 %v3846
        %v3848 = vlaneseq
        %v3849 = vshrl.u32 %v3848, 7
        %v3850 = vsub.s32 %v3847, %v3849
        %v3851 = vrot.slane %v2668, %v3850
        %v3852 = vcombine.high %v2668, 0.0
        %v3853 = vcombine.low %v3843, %v3851
        %v3854 = vcombine.high %v3843, %v3851
        %v3856 = vunpack.c.l.s4 1934713408
        %v3857 = vunpack.c.0.s8 %v3856
        %v3858 = vlaneseq
        %v3859 = vshrl.u32 %v3858, 7
        %v3860 = vsub.s32 %v3857, %v3859
        %v3861 = vrot.slane %v3853, %v3860
        %v3863 = vunpack.c.l.s4 1934713408
        %v3864 = vunpack.c.0.s8 %v3863
        %v3865 = vlaneseq
        %v3866 = vshrl.u32 %v3865, 7
        %v3867 = vsub.s32 %v3864, %v3866
        %v3868 = vrot.slane %v3854, %v3867
        %v3869 = vcombine.low %v3844, %v3852
        %v3871 = vunpack.c.l.s4 1934713408
        %v3872 = vunpack.c.0.s8 %v3871
        %v3873 = vlaneseq
        %v3874 = vshrl.u32 %v3873, 7
        %v3875 = vsub.s32 %v3872, %v3874
        %v3876 = vrot.slane %v3869, %v3875
        %v3877 = vcombine.high %v3861, 0.0
        %v3878 = vcombine.high %v3868, 0.0
        %v3879 = vcombine.high %v3876, 0.0
        %v3880 = vcombine.high %v2669, 0.0
        %v3882 = vunpack.c.l.s4 1983009808
        %v3883 = vunpack.c.0.s8 %v3882
        %v3884 = vlaneseq
        %v3885 = vshrl.u32 %v3884, 7
        %v3886 = vsub.s32 %v3883, %v3885
        %v3887 = vrot.slane %v2669, %v3886
        %v3889 = vunpack.c.l.s4 1983009808
        %v3890 = vunpack.c.0.s8 %v3889
        %v3891 = vlaneseq
        %v3892 = vshrl.u32 %v3891, 7
        %v3893 = vsub.s32 %v3890, %v3892
        %v3894 = vrot.slane %v3880, %v3893
        %v3895 = vcombine.high %v2671, 0.0
        %v3897 = vunpack.c.l.s4 1983009808
        %v3898 = vunpack.c.0.s8 %v3897
        %v3899 = vlaneseq
        %v3900 = vshrl.u32 %v3899, 7
        %v3901 = vsub.s32 %v3898, %v3900
        %v3902 = vrot.slane %v2671, %v3901
        %v3904 = vunpack.c.l.s4 1983009808
        %v3905 = vunpack.c.0.s8 %v3904
        %v3906 = vlaneseq
        %v3907 = vshrl.u32 %v3906, 7
        %v3908 = vsub.s32 %v3905, %v3907
        %v3909 = vrot.slane %v3895, %v3908
        %v3910 = vcombine.low %v3887, %v3902
        %v3911 = vcombine.high %v3887, %v3902
        %v3913 = vunpack.c.l.s4 1934713408
        %v3914 = vunpack.c.0.s8 %v3913
        %v3915 = vlaneseq
        %v3916 = vshrl.u32 %v3915, 7
        %v3917 = vsub.s32 %v3914, %v3916
        %v3918 = vrot.slane %v3910, %v3917
        %v3920 = vunpack.c.l.s4 1934713408
        %v3921 = vunpack.c.0.s8 %v3920
        %v3922 = vlaneseq
        %v3923 = vshrl.u32 %v3922, 7
        %v3924 = vsub.s32 %v3921, %v3923
        %v3925 = vrot.slane %v3911, %v3924
        %v3926 = vcombine.low %v3894, %v3909
        %v3927 = vcombine.high %v3894, %v3909
        %v3929 = vunpack.c.l.s4 1934713408
        %v3930 = vunpack.c.0.s8 %v3929
        %v3931 = vlaneseq
        %v3932 = vshrl.u32 %v3931, 7
        %v3933 = vsub.s32 %v3930, %v3932
        %v3934 = vrot.slane %v3926, %v3933
        %v3936 = vunpack.c.l.s4 1934713408
        %v3937 = vunpack.c.0.s8 %v3936
        %v3938 = vlaneseq
        %v3939 = vshrl.u32 %v3938, 7
        %v3940 = vsub.s32 %v3937, %v3939
        %v3941 = vrot.slane %v3927, %v3940
        %v3942 = vcombine.high %v3918, 0.0
        %v3943 = vcombine.high %v3925, 0.0
        %v3944 = vcombine.high %v3934, 0.0
        %v3945 = vcombine.high %v3941, 0.0
        %v3947 = vunpack.c.l.s4 1983009808
        %v3948 = vunpack.c.0.s8 %v3947
        %v3949 = vlaneseq
        %v3950 = vshrl.u32 %v3949, 7
        %v3951 = vsub.s32 %v3948, %v3950
        %v3952 = vrot.slane %v2670, %v3951
        %v3953 = vcombine.high %v2670, 0.0
        %v3955 = vunpack.c.l.s4 1983009808
        %v3956 = vunpack.c.0.s8 %v3955
        %v3957 = vlaneseq
        %v3958 = vshrl.u32 %v3957, 7
        %v3959 = vsub.s32 %v3956, %v3958
        %v3960 = vrot.slane %v2672, %v3959
        %v3961 = vcombine.high %v2672, 0.0
        %v3962 = vcombine.low %v3952, %v3960
        %v3963 = vcombine.high %v3952, %v3960
        %v3965 = vunpack.c.l.s4 1934713408
        %v3966 = vunpack.c.0.s8 %v3965
        %v3967 = vlaneseq
        %v3968 = vshrl.u32 %v3967, 7
        %v3969 = vsub.s32 %v3966, %v3968
        %v3970 = vrot.slane %v3962, %v3969
        %v3972 = vunpack.c.l.s4 1934713408
        %v3973 = vunpack.c.0.s8 %v3972
        %v3974 = vlaneseq
        %v3975 = vshrl.u32 %v3974, 7
        %v3976 = vsub.s32 %v3973, %v3975
        %v3977 = vrot.slane %v3963, %v3976
        %v3978 = vcombine.low %v3953, %v3961
        %v3980 = vunpack.c.l.s4 1934713408
        %v3981 = vunpack.c.0.s8 %v3980
        %v3982 = vlaneseq
        %v3983 = vshrl.u32 %v3982, 7
        %v3984 = vsub.s32 %v3981, %v3983
        %v3985 = vrot.slane %v3978, %v3984
        %v3986 = vcombine.high %v3970, 0.0
        %v3987 = vcombine.high %v3977, 0.0
        %v3988 = vcombine.high %v3985, 0.0
        %v3989 = vcombine.high %v2673, 0.0
        %v3991 = vunpack.c.l.s4 1983009808
        %v3992 = vunpack.c.0.s8 %v3991
        %v3993 = vlaneseq
        %v3994 = vshrl.u32 %v3993, 7
        %v3995 = vsub.s32 %v3992, %v3994
        %v3996 = vrot.slane %v2673, %v3995
        %v3998 = vunpack.c.l.s4 1983009808
        %v3999 = vunpack.c.0.s8 %v3998
        %v4000 = vlaneseq
        %v4001 = vshrl.u32 %v4000, 7
        %v4002 = vsub.s32 %v3999, %v4001
        %v4003 = vrot.slane %v3989, %v4002
        %v4004 = vcombine.high %v2675, 0.0
        %v4006 = vunpack.c.l.s4 1983009808
        %v4007 = vunpack.c.0.s8 %v4006
        %v4008 = vlaneseq
        %v4009 = vshrl.u32 %v4008, 7
        %v4010 = vsub.s32 %v4007, %v4009
        %v4011 = vrot.slane %v2675, %v4010
        %v4013 = vunpack.c.l.s4 1983009808
        %v4014 = vunpack.c.0.s8 %v4013
        %v4015 = vlaneseq
        %v4016 = vshrl.u32 %v4015, 7
        %v4017 = vsub.s32 %v4014, %v4016
        %v4018 = vrot.slane %v4004, %v4017
        %v4019 = vcombine.low %v3996, %v4011
        %v4020 = vcombine.high %v3996, %v4011
        %v4022 = vunpack.c.l.s4 1934713408
        %v4023 = vunpack.c.0.s8 %v4022
        %v4024 = vlaneseq
        %v4025 = vshrl.u32 %v4024, 7
        %v4026 = vsub.s32 %v4023, %v4025
        %v4027 = vrot.slane %v4019, %v4026
        %v4029 = vunpack.c.l.s4 1934713408
        %v4030 = vunpack.c.0.s8 %v4029
        %v4031 = vlaneseq
        %v4032 = vshrl.u32 %v4031, 7
        %v4033 = vsub.s32 %v4030, %v4032
        %v4034 = vrot.slane %v4020, %v4033
        %v4035 = vcombine.low %v4003, %v4018
        %v4036 = vcombine.high %v4003, %v4018
        %v4038 = vunpack.c.l.s4 1934713408
        %v4039 = vunpack.c.0.s8 %v4038
        %v4040 = vlaneseq
        %v4041 = vshrl.u32 %v4040, 7
        %v4042 = vsub.s32 %v4039, %v4041
        %v4043 = vrot.slane %v4035, %v4042
        %v4045 = vunpack.c.l.s4 1934713408
        %v4046 = vunpack.c.0.s8 %v4045
        %v4047 = vlaneseq
        %v4048 = vshrl.u32 %v4047, 7
        %v4049 = vsub.s32 %v4046, %v4048
        %v4050 = vrot.slane %v4036, %v4049
        %v4051 = vcombine.high %v4027, 0.0
        %v4052 = vcombine.high %v4034, 0.0
        %v4053 = vcombine.high %v4043, 0.0
        %v4054 = vcombine.high %v4050, 0.0
        %v4056 = vunpack.c.l.s4 1983009808
        %v4057 = vunpack.c.0.s8 %v4056
        %v4058 = vlaneseq
        %v4059 = vshrl.u32 %v4058, 7
        %v4060 = vsub.s32 %v4057, %v4059
        %v4061 = vrot.slane %v2674, %v4060
        %v4062 = vcombine.high %v2674, 0.0
        %v4064 = vunpack.c.l.s4 1983009808
        %v4065 = vunpack.c.0.s8 %v4064
        %v4066 = vlaneseq
        %v4067 = vshrl.u32 %v4066, 7
        %v4068 = vsub.s32 %v4065, %v4067
        %v4069 = vrot.slane %v2676, %v4068
        %v4070 = vcombine.high %v2676, 0.0
        %v4071 = vcombine.low %v4061, %v4069
        %v4072 = vcombine.high %v4061, %v4069
        %v4074 = vunpack.c.l.s4 1934713408
        %v4075 = vunpack.c.0.s8 %v4074
        %v4076 = vlaneseq
        %v4077 = vshrl.u32 %v4076, 7
        %v4078 = vsub.s32 %v4075, %v4077
        %v4079 = vrot.slane %v4071, %v4078
        %v4081 = vunpack.c.l.s4 1934713408
        %v4082 = vunpack.c.0.s8 %v4081
        %v4083 = vlaneseq
        %v4084 = vshrl.u32 %v4083, 7
        %v4085 = vsub.s32 %v4082, %v4084
        %v4086 = vrot.slane %v4072, %v4085
        %v4087 = vcombine.low %v4062, %v4070
        %v4089 = vunpack.c.l.s4 1934713408
        %v4090 = vunpack.c.0.s8 %v4089
        %v4091 = vlaneseq
        %v4092 = vshrl.u32 %v4091, 7
        %v4093 = vsub.s32 %v4090, %v4092
        %v4094 = vrot.slane %v4087, %v4093
        %v4095 = vcombine.high %v4079, 0.0
        %v4096 = vcombine.high %v4086, 0.0
        %v4097 = vcombine.high %v4094, 0.0
        %v4098 = vcombine.high %v2677, 0.0
        %v4100 = vunpack.c.l.s4 1983009808
        %v4101 = vunpack.c.0.s8 %v4100
        %v4102 = vlaneseq
        %v4103 = vshrl.u32 %v4102, 7
        %v4104 = vsub.s32 %v4101, %v4103
        %v4105 = vrot.slane %v2677, %v4104
        %v4107 = vunpack.c.l.s4 1983009808
        %v4108 = vunpack.c.0.s8 %v4107
        %v4109 = vlaneseq
        %v4110 = vshrl.u32 %v4109, 7
        %v4111 = vsub.s32 %v4108, %v4110
        %v4112 = vrot.slane %v4098, %v4111
        %v4113 = vcombine.high %v2679, 0.0
        %v4115 = vunpack.c.l.s4 1983009808
        %v4116 = vunpack.c.0.s8 %v4115
        %v4117 = vlaneseq
        %v4118 = vshrl.u32 %v4117, 7
        %v4119 = vsub.s32 %v4116, %v4118
        %v4120 = vrot.slane %v2679, %v4119
        %v4122 = vunpack.c.l.s4 1983009808
        %v4123 = vunpack.c.0.s8 %v4122
        %v4124 = vlaneseq
        %v4125 = vshrl.u32 %v4124, 7
        %v4126 = vsub.s32 %v4123, %v4125
        %v4127 = vrot.slane %v4113, %v4126
        %v4128 = vcombine.low %v4105, %v4120
        %v4129 = vcombine.high %v4105, %v4120
        %v4131 = vunpack.c.l.s4 1934713408
        %v4132 = vunpack.c.0.s8 %v4131
        %v4133 = vlaneseq
        %v4134 = vshrl.u32 %v4133, 7
        %v4135 = vsub.s32 %v4132, %v4134
        %v4136 = vrot.slane %v4128, %v4135
        %v4138 = vunpack.c.l.s4 1934713408
        %v4139 = vunpack.c.0.s8 %v4138
        %v4140 = vlaneseq
        %v4141 = vshrl.u32 %v4140, 7
        %v4142 = vsub.s32 %v4139, %v4141
        %v4143 = vrot.slane %v4129, %v4142
        %v4144 = vcombine.low %v4112, %v4127
        %v4145 = vcombine.high %v4112, %v4127
        %v4147 = vunpack.c.l.s4 1934713408
        %v4148 = vunpack.c.0.s8 %v4147
        %v4149 = vlaneseq
        %v4150 = vshrl.u32 %v4149, 7
        %v4151 = vsub.s32 %v4148, %v4150
        %v4152 = vrot.slane %v4144, %v4151
        %v4154 = vunpack.c.l.s4 1934713408
        %v4155 = vunpack.c.0.s8 %v4154
        %v4156 = vlaneseq
        %v4157 = vshrl.u32 %v4156, 7
        %v4158 = vsub.s32 %v4155, %v4157
        %v4159 = vrot.slane %v4145, %v4158
        %v4160 = vcombine.high %v4136, 0.0
        %v4161 = vcombine.high %v4143, 0.0
        %v4162 = vcombine.high %v4152, 0.0
        %v4163 = vcombine.high %v4159, 0.0
        %v4165 = vunpack.c.l.s4 1983009808
        %v4166 = vunpack.c.0.s8 %v4165
        %v4167 = vlaneseq
        %v4168 = vshrl.u32 %v4167, 7
        %v4169 = vsub.s32 %v4166, %v4168
        %v4170 = vrot.slane %v2678, %v4169
        %v4171 = vcombine.high %v2678, 0.0
        %v4173 = vunpack.c.l.s4 1983009808
        %v4174 = vunpack.c.0.s8 %v4173
        %v4175 = vlaneseq
        %v4176 = vshrl.u32 %v4175, 7
        %v4177 = vsub.s32 %v4174, %v4176
        %v4178 = vrot.slane %v2680, %v4177
        %v4179 = vcombine.high %v2680, 0.0
        %v4180 = vcombine.low %v4170, %v4178
        %v4181 = vcombine.high %v4170, %v4178
        %v4183 = vunpack.c.l.s4 1934713408
        %v4184 = vunpack.c.0.s8 %v4183
        %v4185 = vlaneseq
        %v4186 = vshrl.u32 %v4185, 7
        %v4187 = vsub.s32 %v4184, %v4186
        %v4188 = vrot.slane %v4180, %v4187
        %v4190 = vunpack.c.l.s4 1934713408
        %v4191 = vunpack.c.0.s8 %v4190
        %v4192 = vlaneseq
        %v4193 = vshrl.u32 %v4192, 7
        %v4194 = vsub.s32 %v4191, %v4193
        %v4195 = vrot.slane %v4181, %v4194
        %v4196 = vcombine.low %v4171, %v4179
        %v4198 = vunpack.c.l.s4 1934713408
        %v4199 = vunpack.c.0.s8 %v4198
        %v4200 = vlaneseq
        %v4201 = vshrl.u32 %v4200, 7
        %v4202 = vsub.s32 %v4199, %v4201
        %v4203 = vrot.slane %v4196, %v4202
        %v4204 = vcombine.high %v4188, 0.0
        %v4205 = vcombine.high %v4195, 0.0
        %v4206 = vcombine.high %v4203, 0.0
        %4221 = vrot.lane.b32.xlu0 %v2743, 16
        %v4222 = vpop.permute.xlu0 %4221
        %4223 = vrot.lane.b32.xlu0 %v2852, 16
        %v4224 = vpop.permute.xlu0 %4223
        %4225 = vrot.lane.b32.xlu0 %v2961, 16
        %v4226 = vpop.permute.xlu0 %4225
        %4227 = vrot.lane.b32.xlu0 %v3070, 16
        %v4228 = vpop.permute.xlu0 %4227
        %4229 = vrot.lane.b32.xlu0 %v3179, 16
        %v4230 = vpop.permute.xlu0 %4229
        %4231 = vrot.lane.b32.xlu0 %v3288, 16
        %v4232 = vpop.permute.xlu0 %4231
        %4233 = vrot.lane.b32.xlu0 %v3397, 16
        %v4234 = vpop.permute.xlu0 %4233
        %4235 = vrot.lane.b32.xlu0 %v3506, 16
        %v4236 = vpop.permute.xlu0 %4235
        %4237 = vrot.lane.b32.xlu0 %v3615, 16
        %v4238 = vpop.permute.xlu0 %4237
        %4239 = vrot.lane.b32.xlu0 %v3724, 16
        %v4240 = vpop.permute.xlu0 %4239
        %4241 = vrot.lane.b32.xlu0 %v3833, 16
        %v4242 = vpop.permute.xlu0 %4241
        %4243 = vrot.lane.b32.xlu0 %v3942, 16
        %v4244 = vpop.permute.xlu0 %4243
        %4245 = vrot.lane.b32.xlu0 %v4051, 16
        %v4246 = vpop.permute.xlu0 %4245
        %4247 = vrot.lane.b32.xlu0 %v4160, 16
        %v4248 = vpop.permute.xlu0 %4247
        %4277 = vrot.lane.b32.xlu0 %v2726, 32
        %v4278 = vpop.permute.xlu0 %4277
        %4279 = vrot.lane.b32.xlu0 %v2835, 32
        %v4280 = vpop.permute.xlu0 %4279
        %4281 = vrot.lane.b32.xlu0 %v2944, 32
        %v4282 = vpop.permute.xlu0 %4281
        %4283 = vrot.lane.b32.xlu0 %v3053, 32
        %v4284 = vpop.permute.xlu0 %4283
        %4285 = vrot.lane.b32.xlu0 %v3162, 32
        %v4286 = vpop.permute.xlu0 %4285
        %4287 = vrot.lane.b32.xlu0 %v3271, 32
        %v4288 = vpop.permute.xlu0 %4287
        %4289 = vrot.lane.b32.xlu0 %v3380, 32
        %v4290 = vpop.permute.xlu0 %4289
        %4291 = vrot.lane.b32.xlu0 %v3489, 32
        %v4292 = vpop.permute.xlu0 %4291
        %4293 = vrot.lane.b32.xlu0 %v3598, 32
        %v4294 = vpop.permute.xlu0 %4293
        %4295 = vrot.lane.b32.xlu0 %v3707, 32
        %v4296 = vpop.permute.xlu0 %4295
        %4297 = vrot.lane.b32.xlu0 %v3816, 32
        %v4298 = vpop.permute.xlu0 %4297
        %4299 = vrot.lane.b32.xlu0 %v3925, 32
        %v4300 = vpop.permute.xlu0 %4299
        %4301 = vrot.lane.b32.xlu0 %v4034, 32
        %v4302 = vpop.permute.xlu0 %4301
        %4303 = vrot.lane.b32.xlu0 %v4143, 32
        %v4304 = vpop.permute.xlu0 %4303
        %4333 = vrot.lane.b32.xlu0 %v2744, 48
        %v4334 = vpop.permute.xlu0 %4333
        %4335 = vrot.lane.b32.xlu0 %v2853, 48
        %v4336 = vpop.permute.xlu0 %4335
        %4337 = vrot.lane.b32.xlu0 %v2962, 48
        %v4338 = vpop.permute.xlu0 %4337
        %4339 = vrot.lane.b32.xlu0 %v3071, 48
        %v4340 = vpop.permute.xlu0 %4339
        %4341 = vrot.lane.b32.xlu0 %v3180, 48
        %v4342 = vpop.permute.xlu0 %4341
        %4343 = vrot.lane.b32.xlu0 %v3289, 48
        %v4344 = vpop.permute.xlu0 %4343
        %4345 = vrot.lane.b32.xlu0 %v3398, 48
        %v4346 = vpop.permute.xlu0 %4345
        %4347 = vrot.lane.b32.xlu0 %v3507, 48
        %v4348 = vpop.permute.xlu0 %4347
        %4349 = vrot.lane.b32.xlu0 %v3616, 48
        %v4350 = vpop.permute.xlu0 %4349
        %4351 = vrot.lane.b32.xlu0 %v3725, 48
        %v4352 = vpop.permute.xlu0 %4351
        %4353 = vrot.lane.b32.xlu0 %v3834, 48
        %v4354 = vpop.permute.xlu0 %4353
        %4355 = vrot.lane.b32.xlu0 %v3943, 48
        %v4356 = vpop.permute.xlu0 %4355
        %4357 = vrot.lane.b32.xlu0 %v4052, 48
        %v4358 = vpop.permute.xlu0 %4357
        %4359 = vrot.lane.b32.xlu0 %v4161, 48
        %v4360 = vpop.permute.xlu0 %4359
        %4389 = vrot.lane.b32.xlu0 %v2735, 64
        %v4390 = vpop.permute.xlu0 %4389
        %4391 = vrot.lane.b32.xlu0 %v2844, 64
        %v4392 = vpop.permute.xlu0 %4391
        %4393 = vrot.lane.b32.xlu0 %v2953, 64
        %v4394 = vpop.permute.xlu0 %4393
        %4395 = vrot.lane.b32.xlu0 %v3062, 64
        %v4396 = vpop.permute.xlu0 %4395
        %4397 = vrot.lane.b32.xlu0 %v3171, 64
        %v4398 = vpop.permute.xlu0 %4397
        %4399 = vrot.lane.b32.xlu0 %v3280, 64
        %v4400 = vpop.permute.xlu0 %4399
        %4401 = vrot.lane.b32.xlu0 %v3389, 64
        %v4402 = vpop.permute.xlu0 %4401
        %4403 = vrot.lane.b32.xlu0 %v3498, 64
        %v4404 = vpop.permute.xlu0 %4403
        %4405 = vrot.lane.b32.xlu0 %v3607, 64
        %v4406 = vpop.permute.xlu0 %4405
        %4407 = vrot.lane.b32.xlu0 %v3716, 64
        %v4408 = vpop.permute.xlu0 %4407
        %4409 = vrot.lane.b32.xlu0 %v3825, 64
        %v4410 = vpop.permute.xlu0 %4409
        %4411 = vrot.lane.b32.xlu0 %v3934, 64
        %v4412 = vpop.permute.xlu0 %4411
        %4413 = vrot.lane.b32.xlu0 %v4043, 64
        %v4414 = vpop.permute.xlu0 %4413
        %4415 = vrot.lane.b32.xlu0 %v4152, 64
        %v4416 = vpop.permute.xlu0 %4415
        %4445 = vrot.lane.b32.xlu0 %v2745, 80
        %v4446 = vpop.permute.xlu0 %4445
        %4447 = vrot.lane.b32.xlu0 %v2854, 80
        %v4448 = vpop.permute.xlu0 %4447
        %4449 = vrot.lane.b32.xlu0 %v2963, 80
        %v4450 = vpop.permute.xlu0 %4449
        %4451 = vrot.lane.b32.xlu0 %v3072, 80
        %v4452 = vpop.permute.xlu0 %4451
        %4453 = vrot.lane.b32.xlu0 %v3181, 80
        %v4454 = vpop.permute.xlu0 %4453
        %4455 = vrot.lane.b32.xlu0 %v3290, 80
        %v4456 = vpop.permute.xlu0 %4455
        %4457 = vrot.lane.b32.xlu0 %v3399, 80
        %v4458 = vpop.permute.xlu0 %4457
        %4459 = vrot.lane.b32.xlu0 %v3508, 80
        %v4460 = vpop.permute.xlu0 %4459
        %4461 = vrot.lane.b32.xlu0 %v3617, 80
        %v4462 = vpop.permute.xlu0 %4461
        %4463 = vrot.lane.b32.xlu0 %v3726, 80
        %v4464 = vpop.permute.xlu0 %4463
        %4465 = vrot.lane.b32.xlu0 %v3835, 80
        %v4466 = vpop.permute.xlu0 %4465
        %4467 = vrot.lane.b32.xlu0 %v3944, 80
        %v4468 = vpop.permute.xlu0 %4467
        %4469 = vrot.lane.b32.xlu0 %v4053, 80
        %v4470 = vpop.permute.xlu0 %4469
        %4471 = vrot.lane.b32.xlu0 %v4162, 80
        %v4472 = vpop.permute.xlu0 %4471
        %4501 = vrot.lane.b32.xlu0 %v2742, 96
        %v4502 = vpop.permute.xlu0 %4501
        %4503 = vrot.lane.b32.xlu0 %v2851, 96
        %v4504 = vpop.permute.xlu0 %4503
        %4505 = vrot.lane.b32.xlu0 %v2960, 96
        %v4506 = vpop.permute.xlu0 %4505
        %4507 = vrot.lane.b32.xlu0 %v3069, 96
        %v4508 = vpop.permute.xlu0 %4507
        %4509 = vrot.lane.b32.xlu0 %v3178, 96
        %v4510 = vpop.permute.xlu0 %4509
        %4511 = vrot.lane.b32.xlu0 %v3287, 96
        %v4512 = vpop.permute.xlu0 %4511
        %4513 = vrot.lane.b32.xlu0 %v3396, 96
        %v4514 = vpop.permute.xlu0 %4513
        %4515 = vrot.lane.b32.xlu0 %v3505, 96
        %v4516 = vpop.permute.xlu0 %4515
        %4517 = vrot.lane.b32.xlu0 %v3614, 96
        %v4518 = vpop.permute.xlu0 %4517
        %4519 = vrot.lane.b32.xlu0 %v3723, 96
        %v4520 = vpop.permute.xlu0 %4519
        %4521 = vrot.lane.b32.xlu0 %v3832, 96
        %v4522 = vpop.permute.xlu0 %4521
        %4523 = vrot.lane.b32.xlu0 %v3941, 96
        %v4524 = vpop.permute.xlu0 %4523
        %4525 = vrot.lane.b32.xlu0 %v4050, 96
        %v4526 = vpop.permute.xlu0 %4525
        %4527 = vrot.lane.b32.xlu0 %v4159, 96
        %v4528 = vpop.permute.xlu0 %4527
        %4557 = vrot.lane.b32.xlu0 %v2746, 112
        %v4558 = vpop.permute.xlu0 %4557
        %4559 = vrot.lane.b32.xlu0 %v2855, 112
        %v4560 = vpop.permute.xlu0 %4559
        %4561 = vrot.lane.b32.xlu0 %v2964, 112
        %v4562 = vpop.permute.xlu0 %4561
        %4563 = vrot.lane.b32.xlu0 %v3073, 112
        %v4564 = vpop.permute.xlu0 %4563
        %4565 = vrot.lane.b32.xlu0 %v3182, 112
        %v4566 = vpop.permute.xlu0 %4565
        %4567 = vrot.lane.b32.xlu0 %v3291, 112
        %v4568 = vpop.permute.xlu0 %4567
        %4569 = vrot.lane.b32.xlu0 %v3400, 112
        %v4570 = vpop.permute.xlu0 %4569
        %4571 = vrot.lane.b32.xlu0 %v3509, 112
        %v4572 = vpop.permute.xlu0 %4571
        %4573 = vrot.lane.b32.xlu0 %v3618, 112
        %v4574 = vpop.permute.xlu0 %4573
        %4575 = vrot.lane.b32.xlu0 %v3727, 112
        %v4576 = vpop.permute.xlu0 %4575
        %4577 = vrot.lane.b32.xlu0 %v3836, 112
        %v4578 = vpop.permute.xlu0 %4577
        %4579 = vrot.lane.b32.xlu0 %v3945, 112
        %v4580 = vpop.permute.xlu0 %4579
        %4581 = vrot.lane.b32.xlu0 %v4054, 112
        %v4582 = vpop.permute.xlu0 %4581
        %4583 = vrot.lane.b32.xlu0 %v4163, 112
        %v4584 = vpop.permute.xlu0 %4583
        %4613 = vrot.lane.b32.xlu0 %v2787, 16
        %v4614 = vpop.permute.xlu0 %4613
        %4615 = vrot.lane.b32.xlu0 %v2896, 16
        %v4616 = vpop.permute.xlu0 %4615
        %4617 = vrot.lane.b32.xlu0 %v3005, 16
        %v4618 = vpop.permute.xlu0 %4617
        %4619 = vrot.lane.b32.xlu0 %v3114, 16
        %v4620 = vpop.permute.xlu0 %4619
        %4621 = vrot.lane.b32.xlu0 %v3223, 16
        %v4622 = vpop.permute.xlu0 %4621
        %4623 = vrot.lane.b32.xlu0 %v3332, 16
        %v4624 = vpop.permute.xlu0 %4623
        %4625 = vrot.lane.b32.xlu0 %v3441, 16
        %v4626 = vpop.permute.xlu0 %4625
        %4627 = vrot.lane.b32.xlu0 %v3550, 16
        %v4628 = vpop.permute.xlu0 %4627
        %4629 = vrot.lane.b32.xlu0 %v3659, 16
        %v4630 = vpop.permute.xlu0 %4629
        %4631 = vrot.lane.b32.xlu0 %v3768, 16
        %v4632 = vpop.permute.xlu0 %4631
        %4633 = vrot.lane.b32.xlu0 %v3877, 16
        %v4634 = vpop.permute.xlu0 %4633
        %4635 = vrot.lane.b32.xlu0 %v3986, 16
        %v4636 = vpop.permute.xlu0 %4635
        %4637 = vrot.lane.b32.xlu0 %v4095, 16
        %v4638 = vpop.permute.xlu0 %4637
        %4639 = vrot.lane.b32.xlu0 %v4204, 16
        %v4640 = vpop.permute.xlu0 %4639
        %4669 = vrot.lane.b32.xlu0 %v2778, 32
        %v4670 = vpop.permute.xlu0 %4669
        %4671 = vrot.lane.b32.xlu0 %v2887, 32
        %v4672 = vpop.permute.xlu0 %4671
        %4673 = vrot.lane.b32.xlu0 %v2996, 32
        %v4674 = vpop.permute.xlu0 %4673
        %4675 = vrot.lane.b32.xlu0 %v3105, 32
        %v4676 = vpop.permute.xlu0 %4675
        %4677 = vrot.lane.b32.xlu0 %v3214, 32
        %v4678 = vpop.permute.xlu0 %4677
        %4679 = vrot.lane.b32.xlu0 %v3323, 32
        %v4680 = vpop.permute.xlu0 %4679
        %4681 = vrot.lane.b32.xlu0 %v3432, 32
        %v4682 = vpop.permute.xlu0 %4681
        %4683 = vrot.lane.b32.xlu0 %v3541, 32
        %v4684 = vpop.permute.xlu0 %4683
        %4685 = vrot.lane.b32.xlu0 %v3650, 32
        %v4686 = vpop.permute.xlu0 %4685
        %4687 = vrot.lane.b32.xlu0 %v3759, 32
        %v4688 = vpop.permute.xlu0 %4687
        %4689 = vrot.lane.b32.xlu0 %v3868, 32
        %v4690 = vpop.permute.xlu0 %4689
        %4691 = vrot.lane.b32.xlu0 %v3977, 32
        %v4692 = vpop.permute.xlu0 %4691
        %4693 = vrot.lane.b32.xlu0 %v4086, 32
        %v4694 = vpop.permute.xlu0 %4693
        %4695 = vrot.lane.b32.xlu0 %v4195, 32
        %v4696 = vpop.permute.xlu0 %4695
        %4725 = vrot.lane.b32.xlu0 %v2788, 48
        %v4726 = vpop.permute.xlu0 %4725
        %4727 = vrot.lane.b32.xlu0 %v2897, 48
        %v4728 = vpop.permute.xlu0 %4727
        %4729 = vrot.lane.b32.xlu0 %v3006, 48
        %v4730 = vpop.permute.xlu0 %4729
        %4731 = vrot.lane.b32.xlu0 %v3115, 48
        %v4732 = vpop.permute.xlu0 %4731
        %4733 = vrot.lane.b32.xlu0 %v3224, 48
        %v4734 = vpop.permute.xlu0 %4733
        %4735 = vrot.lane.b32.xlu0 %v3333, 48
        %v4736 = vpop.permute.xlu0 %4735
        %4737 = vrot.lane.b32.xlu0 %v3442, 48
        %v4738 = vpop.permute.xlu0 %4737
        %4739 = vrot.lane.b32.xlu0 %v3551, 48
        %v4740 = vpop.permute.xlu0 %4739
        %4741 = vrot.lane.b32.xlu0 %v3660, 48
        %v4742 = vpop.permute.xlu0 %4741
        %4743 = vrot.lane.b32.xlu0 %v3769, 48
        %v4744 = vpop.permute.xlu0 %4743
        %4745 = vrot.lane.b32.xlu0 %v3878, 48
        %v4746 = vpop.permute.xlu0 %4745
        %4747 = vrot.lane.b32.xlu0 %v3987, 48
        %v4748 = vpop.permute.xlu0 %4747
        %4749 = vrot.lane.b32.xlu0 %v4096, 48
        %v4750 = vpop.permute.xlu0 %4749
        %4751 = vrot.lane.b32.xlu0 %v4205, 48
        %v4752 = vpop.permute.xlu0 %4751
        %4781 = vrot.lane.b32.xlu0 %v2786, 64
        %v4782 = vpop.permute.xlu0 %4781
        %4783 = vrot.lane.b32.xlu0 %v2895, 64
        %v4784 = vpop.permute.xlu0 %4783
        %4785 = vrot.lane.b32.xlu0 %v3004, 64
        %v4786 = vpop.permute.xlu0 %4785
        %4787 = vrot.lane.b32.xlu0 %v3113, 64
        %v4788 = vpop.permute.xlu0 %4787
        %4789 = vrot.lane.b32.xlu0 %v3222, 64
        %v4790 = vpop.permute.xlu0 %4789
        %4791 = vrot.lane.b32.xlu0 %v3331, 64
        %v4792 = vpop.permute.xlu0 %4791
        %4793 = vrot.lane.b32.xlu0 %v3440, 64
        %v4794 = vpop.permute.xlu0 %4793
        %4795 = vrot.lane.b32.xlu0 %v3549, 64
        %v4796 = vpop.permute.xlu0 %4795
        %4797 = vrot.lane.b32.xlu0 %v3658, 64
        %v4798 = vpop.permute.xlu0 %4797
        %4799 = vrot.lane.b32.xlu0 %v3767, 64
        %v4800 = vpop.permute.xlu0 %4799
        %4801 = vrot.lane.b32.xlu0 %v3876, 64
        %v4802 = vpop.permute.xlu0 %4801
        %4803 = vrot.lane.b32.xlu0 %v3985, 64
        %v4804 = vpop.permute.xlu0 %4803
        %4805 = vrot.lane.b32.xlu0 %v4094, 64
        %v4806 = vpop.permute.xlu0 %4805
        %4807 = vrot.lane.b32.xlu0 %v4203, 64
        %v4808 = vpop.permute.xlu0 %4807
        %4837 = vrot.lane.b32.xlu0 %v2789, 80
        %v4838 = vpop.permute.xlu0 %4837
        %4839 = vrot.lane.b32.xlu0 %v2898, 80
        %v4840 = vpop.permute.xlu0 %4839
        %4841 = vrot.lane.b32.xlu0 %v3007, 80
        %v4842 = vpop.permute.xlu0 %4841
        %4843 = vrot.lane.b32.xlu0 %v3116, 80
        %v4844 = vpop.permute.xlu0 %4843
        %4845 = vrot.lane.b32.xlu0 %v3225, 80
        %v4846 = vpop.permute.xlu0 %4845
        %4847 = vrot.lane.b32.xlu0 %v3334, 80
        %v4848 = vpop.permute.xlu0 %4847
        %4849 = vrot.lane.b32.xlu0 %v3443, 80
        %v4850 = vpop.permute.xlu0 %4849
        %4851 = vrot.lane.b32.xlu0 %v3552, 80
        %v4852 = vpop.permute.xlu0 %4851
        %4853 = vrot.lane.b32.xlu0 %v3661, 80
        %v4854 = vpop.permute.xlu0 %4853
        %4855 = vrot.lane.b32.xlu0 %v3770, 80
        %v4856 = vpop.permute.xlu0 %4855
        %4857 = vrot.lane.b32.xlu0 %v3879, 80
        %v4858 = vpop.permute.xlu0 %4857
        %4859 = vrot.lane.b32.xlu0 %v3988, 80
        %v4860 = vpop.permute.xlu0 %4859
        %4861 = vrot.lane.b32.xlu0 %v4097, 80
        %v4862 = vpop.permute.xlu0 %4861
        %4863 = vrot.lane.b32.xlu0 %v4206, 80
        %v4864 = vpop.permute.xlu0 %4863
        %vm4879 = vcmask 130048
        %v4880 = vsel %vm4879, %v2719, %v4222
        %v4881 = vsel %vm4879, %v2828, %v4224
        %v4882 = vsel %vm4879, %v2937, %v4226
        %v4883 = vsel %vm4879, %v3046, %v4228
        %v4884 = vsel %vm4879, %v3155, %v4230
        %v4885 = vsel %vm4879, %v3264, %v4232
        %v4886 = vsel %vm4879, %v3373, %v4234
        %v4887 = vsel %vm4879, %v3482, %v4236
        %v4888 = vsel %vm4879, %v3591, %v4238
        %v4889 = vsel %vm4879, %v3700, %v4240
        %v4890 = vsel %vm4879, %v3809, %v4242
        %v4891 = vsel %vm4879, %v3918, %v4244
        %v4892 = vsel %vm4879, %v4027, %v4246
        %v4893 = vsel %vm4879, %v4136, %v4248
        %v4894 = vsel %vm344, %v4880, %v4278
        %v4895 = vsel %vm344, %v4881, %v4280
        %v4896 = vsel %vm344, %v4882, %v4282
        %v4897 = vsel %vm344, %v4883, %v4284
        %v4898 = vsel %vm344, %v4884, %v4286
        %v4899 = vsel %vm344, %v4885, %v4288
        %v4900 = vsel %vm344, %v4886, %v4290
        %v4901 = vsel %vm344, %v4887, %v4292
        %v4902 = vsel %vm344, %v4888, %v4294
        %v4903 = vsel %vm344, %v4889, %v4296
        %v4904 = vsel %vm344, %v4890, %v4298
        %v4905 = vsel %vm344, %v4891, %v4300
        %v4906 = vsel %vm344, %v4892, %v4302
        %v4907 = vsel %vm344, %v4893, %v4304
        %vm4908 = vcmask 392192
        %v4909 = vsel %vm4908, %v4894, %v4334
        %v4910 = vsel %vm4908, %v4895, %v4336
        %v4911 = vsel %vm4908, %v4896, %v4338
        %v4912 = vsel %vm4908, %v4897, %v4340
        %v4913 = vsel %vm4908, %v4898, %v4342
        %v4914 = vsel %vm4908, %v4899, %v4344
        %v4915 = vsel %vm4908, %v4900, %v4346
        %v4916 = vsel %vm4908, %v4901, %v4348
        %v4917 = vsel %vm4908, %v4902, %v4350
        %v4918 = vsel %vm4908, %v4903, %v4352
        %v4919 = vsel %vm4908, %v4904, %v4354
        %v4920 = vsel %vm4908, %v4905, %v4356
        %v4921 = vsel %vm4908, %v4906, %v4358
        %v4922 = vsel %vm4908, %v4907, %v4360
        %vm4923 = vcmask 523264
        %v4924 = vsel %vm4923, %v4909, %v4390
        %v4925 = vsel %vm4923, %v4910, %v4392
        %v4926 = vsel %vm4923, %v4911, %v4394
        %v4927 = vsel %vm4923, %v4912, %v4396
        %v4928 = vsel %vm4923, %v4913, %v4398
        %v4929 = vsel %vm4923, %v4914, %v4400
        %v4930 = vsel %vm4923, %v4915, %v4402
        %v4931 = vsel %vm4923, %v4916, %v4404
        %v4932 = vsel %vm4923, %v4917, %v4406
        %v4933 = vsel %vm4923, %v4918, %v4408
        %v4934 = vsel %vm4923, %v4919, %v4410
        %v4935 = vsel %vm4923, %v4920, %v4412
        %v4936 = vsel %vm4923, %v4921, %v4414
        %v4937 = vsel %vm4923, %v4922, %v4416
        %vm4938 = vcmask 654336
        %v4939 = vsel %vm4938, %v4924, %v4446
        %v4940 = vsel %vm4938, %v4925, %v4448
        %v4941 = vsel %vm4938, %v4926, %v4450
        %v4942 = vsel %vm4938, %v4927, %v4452
        %v4943 = vsel %vm4938, %v4928, %v4454
        %v4944 = vsel %vm4938, %v4929, %v4456
        %v4945 = vsel %vm4938, %v4930, %v4458
        %v4946 = vsel %vm4938, %v4931, %v4460
        %v4947 = vsel %vm4938, %v4932, %v4462
        %v4948 = vsel %vm4938, %v4933, %v4464
        %v4949 = vsel %vm4938, %v4934, %v4466
        %v4950 = vsel %vm4938, %v4935, %v4468
        %v4951 = vsel %vm4938, %v4936, %v4470
        %v4952 = vsel %vm4938, %v4937, %v4472
        %vm4953 = vcmask 785408
        %v4954 = vsel %vm4953, %v4939, %v4502
        %v4955 = vsel %vm4953, %v4940, %v4504
        %v4956 = vsel %vm4953, %v4941, %v4506
        %v4957 = vsel %vm4953, %v4942, %v4508
        %v4958 = vsel %vm4953, %v4943, %v4510
        %v4959 = vsel %vm4953, %v4944, %v4512
        %v4960 = vsel %vm4953, %v4945, %v4514
        %v4961 = vsel %vm4953, %v4946, %v4516
        %v4962 = vsel %vm4953, %v4947, %v4518
        %v4963 = vsel %vm4953, %v4948, %v4520
        %v4964 = vsel %vm4953, %v4949, %v4522
        %v4965 = vsel %vm4953, %v4950, %v4524
        %v4966 = vsel %vm4953, %v4951, %v4526
        %v4967 = vsel %vm4953, %v4952, %v4528
        %vm4968 = vcmask 916480
        %v4969 = vsel %vm4968, %v4954, %v4558
        %v4970 = vsel %vm4968, %v4955, %v4560
        %v4971 = vsel %vm4968, %v4956, %v4562
        %v4972 = vsel %vm4968, %v4957, %v4564
        %v4973 = vsel %vm4968, %v4958, %v4566
        %v4974 = vsel %vm4968, %v4959, %v4568
        %v4975 = vsel %vm4968, %v4960, %v4570
        %v4976 = vsel %vm4968, %v4961, %v4572
        %v4977 = vsel %vm4968, %v4962, %v4574
        %v4978 = vsel %vm4968, %v4963, %v4576
        %v4979 = vsel %vm4968, %v4964, %v4578
        %v4980 = vsel %vm4968, %v4965, %v4580
        %v4981 = vsel %vm4968, %v4966, %v4582
        %v4982 = vsel %vm4968, %v4967, %v4584
        %v4983 = vsel %vm4879, %v2771, %v4614
        %v4984 = vsel %vm4879, %v2880, %v4616
        %v4985 = vsel %vm4879, %v2989, %v4618
        %v4986 = vsel %vm4879, %v3098, %v4620
        %v4987 = vsel %vm4879, %v3207, %v4622
        %v4988 = vsel %vm4879, %v3316, %v4624
        %v4989 = vsel %vm4879, %v3425, %v4626
        %v4990 = vsel %vm4879, %v3534, %v4628
        %v4991 = vsel %vm4879, %v3643, %v4630
        %v4992 = vsel %vm4879, %v3752, %v4632
        %v4993 = vsel %vm4879, %v3861, %v4634
        %v4994 = vsel %vm4879, %v3970, %v4636
        %v4995 = vsel %vm4879, %v4079, %v4638
        %v4996 = vsel %vm4879, %v4188, %v4640
        %v4997 = vsel %vm344, %v4983, %v4670
        %v4998 = vsel %vm344, %v4984, %v4672
        %v4999 = vsel %vm344, %v4985, %v4674
        %v5000 = vsel %vm344, %v4986, %v4676
        %v5001 = vsel %vm344, %v4987, %v4678
        %v5002 = vsel %vm344, %v4988, %v4680
        %v5003 = vsel %vm344, %v4989, %v4682
        %v5004 = vsel %vm344, %v4990, %v4684
        %v5005 = vsel %vm344, %v4991, %v4686
        %v5006 = vsel %vm344, %v4992, %v4688
        %v5007 = vsel %vm344, %v4993, %v4690
        %v5008 = vsel %vm344, %v4994, %v4692
        %v5009 = vsel %vm344, %v4995, %v4694
        %v5010 = vsel %vm344, %v4996, %v4696
        %v5011 = vsel %vm4908, %v4997, %v4726
        %v5012 = vsel %vm4908, %v4998, %v4728
        %v5013 = vsel %vm4908, %v4999, %v4730
        %v5014 = vsel %vm4908, %v5000, %v4732
        %v5015 = vsel %vm4908, %v5001, %v4734
        %v5016 = vsel %vm4908, %v5002, %v4736
        %v5017 = vsel %vm4908, %v5003, %v4738
        %v5018 = vsel %vm4908, %v5004, %v4740
        %v5019 = vsel %vm4908, %v5005, %v4742
        %v5020 = vsel %vm4908, %v5006, %v4744
        %v5021 = vsel %vm4908, %v5007, %v4746
        %v5022 = vsel %vm4908, %v5008, %v4748
        %v5023 = vsel %vm4908, %v5009, %v4750
        %v5024 = vsel %vm4908, %v5010, %v4752
        %v5025 = vsel %vm4923, %v5011, %v4782
        %v5026 = vsel %vm4923, %v5012, %v4784
        %v5027 = vsel %vm4923, %v5013, %v4786
        %v5028 = vsel %vm4923, %v5014, %v4788
        %v5029 = vsel %vm4923, %v5015, %v4790
        %v5030 = vsel %vm4923, %v5016, %v4792
        %v5031 = vsel %vm4923, %v5017, %v4794
        %v5032 = vsel %vm4923, %v5018, %v4796
        %v5033 = vsel %vm4923, %v5019, %v4798
        %v5034 = vsel %vm4923, %v5020, %v4800
        %v5035 = vsel %vm4923, %v5021, %v4802
        %v5036 = vsel %vm4923, %v5022, %v4804
        %v5037 = vsel %vm4923, %v5023, %v4806
        %v5038 = vsel %vm4923, %v5024, %v4808
        %v5039 = vsel %vm4938, %v5025, %v4838
        %v5040 = vsel %vm4938, %v5026, %v4840
        %v5041 = vsel %vm4938, %v5027, %v4842
        %v5042 = vsel %vm4938, %v5028, %v4844
        %v5043 = vsel %vm4938, %v5029, %v4846
        %v5044 = vsel %vm4938, %v5030, %v4848
        %v5045 = vsel %vm4938, %v5031, %v4850
        %v5046 = vsel %vm4938, %v5032, %v4852
        %v5047 = vsel %vm4938, %v5033, %v4854
        %v5048 = vsel %vm4938, %v5034, %v4856
        %v5049 = vsel %vm4938, %v5035, %v4858
        %v5050 = vsel %vm4938, %v5036, %v4860
        %v5051 = vsel %vm4938, %v5037, %v4862
        %v5052 = vsel %vm4938, %v5038, %v4864
        %v5081 = vrot.slane %v4969, 1
        %v5082 = vrot.slane %v5039, 1
        %v5083 = vrot.slane %v4970, 1
        %v5084 = vrot.slane %v5040, 1
        %v5085 = vrot.slane %v4971, 1
        %v5086 = vrot.slane %v5041, 1
        %v5087 = vrot.slane %v4972, 1
        %v5088 = vrot.slane %v5042, 1
        %v5089 = vrot.slane %v4973, 1
        %v5090 = vrot.slane %v5043, 1
        %v5091 = vrot.slane %v4974, 1
        %v5092 = vrot.slane %v5044, 1
        %v5093 = vrot.slane %v4975, 1
        %v5094 = vrot.slane %v5045, 1
        %v5095 = vrot.slane %v4976, 1
        %v5096 = vrot.slane %v5046, 1
        %v5097 = vrot.slane %v4977, 1
        %v5098 = vrot.slane %v5047, 1
        %v5099 = vrot.slane %v4978, 1
        %v5100 = vrot.slane %v5048, 1
        %v5101 = vrot.slane %v4979, 1
        %v5102 = vrot.slane %v5049, 1
        %v5103 = vrot.slane %v4980, 1
        %v5104 = vrot.slane %v5050, 1
        %v5105 = vrot.slane %v4981, 1
        %v5106 = vrot.slane %v5051, 1
        %v5107 = vrot.slane %v4982, 1
        %v5108 = vrot.slane %v5052, 1
        %v5137 = vmax.f32 %v4969, %v5081
        %v5138 = vmax.f32 %v5039, %v5082
        %v5139 = vmax.f32 %v4970, %v5083
        %v5140 = vmax.f32 %v5040, %v5084
        %v5141 = vmax.f32 %v4971, %v5085
        %v5142 = vmax.f32 %v5041, %v5086
        %v5143 = vmax.f32 %v4972, %v5087
        %v5144 = vmax.f32 %v5042, %v5088
        %v5145 = vmax.f32 %v4973, %v5089
        %v5146 = vmax.f32 %v5043, %v5090
        %v5147 = vmax.f32 %v4974, %v5091
        %v5148 = vmax.f32 %v5044, %v5092
        %v5149 = vmax.f32 %v4975, %v5093
        %v5150 = vmax.f32 %v5045, %v5094
        %v5151 = vmax.f32 %v4976, %v5095
        %v5152 = vmax.f32 %v5046, %v5096
        %v5153 = vmax.f32 %v4977, %v5097
        %v5154 = vmax.f32 %v5047, %v5098
        %v5155 = vmax.f32 %v4978, %v5099
        %v5156 = vmax.f32 %v5048, %v5100
        %v5157 = vmax.f32 %v4979, %v5101
        %v5158 = vmax.f32 %v5049, %v5102
        %v5159 = vmax.f32 %v4980, %v5103
        %v5160 = vmax.f32 %v5050, %v5104
        %v5161 = vmax.f32 %v4981, %v5105
        %v5162 = vmax.f32 %v5051, %v5106
        %v5163 = vmax.f32 %v4982, %v5107
        %v5164 = vmax.f32 %v5052, %v5108
        %v5193 = vrot.slane %v5137, 6
        %v5194 = vrot.slane %v5139, 5
        %vm5195 = vcmask 1043459
        %v5196 = vsel %vm5195, %v5194, %v5193
        %v5197 = vrot.slane %v5141, 4
        %vm5198 = vcmask 1044484
        %v5199 = vsel %vm5198, %v5197, %v5196
        %v5200 = vrot.slane %v5143, 3
        %vm5201 = vcmask 1045509
        %v5202 = vsel %vm5201, %v5200, %v5199
        %v5203 = vrot.slane %v5145, 2
        %vm5204 = vcmask 1046534
        %v5205 = vsel %vm5204, %v5203, %v5202
        %v5206 = vrot.slane %v5147, 1
        %vm5207 = vcmask 1047559
        %v5208 = vsel %vm5207, %v5206, %v5205
        %v5209 = vrot.slane %v5138, 6
        %v5210 = vrot.slane %v5140, 5
        %v5211 = vsel %vm5195, %v5210, %v5209
        %v5212 = vrot.slane %v5142, 4
        %v5213 = vsel %vm5198, %v5212, %v5211
        %v5214 = vrot.slane %v5144, 3
        %v5215 = vsel %vm5201, %v5214, %v5213
        %v5216 = vrot.slane %v5146, 2
        %v5217 = vsel %vm5204, %v5216, %v5215
        %v5218 = vrot.slane %v5148, 1
        %v5219 = vsel %vm5207, %v5218, %v5217
        %v5220 = vrot.slane %v5151, 7
        %vm5221 = vcmask 1041409
        %v5222 = vsel %vm5221, %v5220, %v5149
        %v5223 = vrot.slane %v5153, 6
        %vm5224 = vcmask 1042434
        %v5225 = vsel %vm5224, %v5223, %v5222
        %v5226 = vrot.slane %v5155, 5
        %v5227 = vsel %vm5195, %v5226, %v5225
        %v5228 = vrot.slane %v5157, 4
        %v5229 = vsel %vm5198, %v5228, %v5227
        %v5230 = vrot.slane %v5159, 3
        %v5231 = vsel %vm5201, %v5230, %v5229
        %v5232 = vrot.slane %v5161, 2
        %v5233 = vsel %vm5204, %v5232, %v5231
        %v5234 = vrot.slane %v5163, 1
        %v5235 = vsel %vm5207, %v5234, %v5233
        %v5236 = vrot.slane %v5152, 7
        %v5237 = vsel %vm5221, %v5236, %v5150
        %v5238 = vrot.slane %v5154, 6
        %v5239 = vsel %vm5224, %v5238, %v5237
        %v5240 = vrot.slane %v5156, 5
        %v5241 = vsel %vm5195, %v5240, %v5239
        %v5242 = vrot.slane %v5158, 4
        %v5243 = vsel %vm5198, %v5242, %v5241
        %v5244 = vrot.slane %v5160, 3
        %v5245 = vsel %vm5201, %v5244, %v5243
        %v5246 = vrot.slane %v5162, 2
        %v5247 = vsel %vm5204, %v5246, %v5245
        %v5248 = vrot.slane %v5164, 1
        %v5249 = vsel %vm5207, %v5248, %v5247
        %5250 = vrot.lane.b32.xlu0 %v5208, 32
        %v5251 = vpop.permute.xlu0 %5250
        %5252 = vrot.lane.b32.xlu0 %v5219, 32
        %v5253 = vpop.permute.xlu0 %5252
        %5254 = vrot.lane.b32.xlu0 %v5235, 32
        %v5255 = vpop.permute.xlu0 %5254
        %5256 = vrot.lane.b32.xlu0 %v5249, 32
        %v5257 = vpop.permute.xlu0 %5256
        %v5258 = vsel %vm344, %v5251, %v5253
        %v5259 = vsel %vm344, %v5255, %v5257
        %vm5264 = vcmask 1047810
        %5265 = vst.msk [vmem:[#allocation3] sm:$0xfc] %vm5264, %v5251
        %5266 = vst [vmem:[#allocation3 + $0x8] sm:$0xfc] %v5258
        %vm5267 = vcmask 1047808
        %5268 = vst.msk [vmem:[#allocation3 + $0x18] sm:$0xff] %vm5267, %v5255
        %5269 = vst [vmem:[#allocation3 + $0x20] sm:$0xff] %v5259
        %v5270 = vld [vmem:[#allocation3] sm:$0xff]
        %v5271 = vld [vmem:[#allocation3 + $0x8] sm:$0xff]
        %v5272 = vld [vmem:[#allocation3 + $0x10] sm:$0xff]
        %v5273 = vld [vmem:[#allocation3 + $0x18] sm:$0xff]
        %v5274 = vld [vmem:[#allocation3 + $0x20] sm:$0xff]
        %v5275 = vld [vmem:[#allocation3 + $0x28] sm:$0xff]
        %v5276 = vld [vmem:[#allocation3 + $0x30] sm:$0x3]
        %v5277 = vld [vmem:[#allocation3 + $0x38] sm:$0x3]
        %v5278 = vld [vmem:[#allocation3 + $0x40] sm:$0x3]
        %v5279 = vpack.c.bf16 %v5273, %v5270
        %v5280 = vpack.c.bf16 %v5274, %v5271
        %v5281 = vpack.c.bf16 %v5275, %v5272
        %v5282 = vpack.c.bf16 %v5276, %v5276
        %v5283 = vpack.c.bf16 %v5277, %v5277
        %v5284 = vpack.c.bf16 %v5278, %v5278
        %v5285 = vld [vmem:[#allocation9] sm:$0xff]
        %v5286 = vld [vmem:[#allocation9 + $0x8] sm:$0xff]
        %v5287 = vld [vmem:[#allocation9 + $0x10] sm:$0xff]
        %v5288 = vld [vmem:[#allocation9 + $0x18] sm:$0xff]
        %v5289 = vld [vmem:[#allocation9 + $0x20] sm:$0xff]
        %v5290 = vld [vmem:[#allocation9 + $0x28] sm:$0xff]
        %v5291 = vld [vmem:[#allocation9 + $0x30] sm:$0xff]
        %v5292 = vld [vmem:[#allocation9 + $0x38] sm:$0xff]
        %v5293 = vld [vmem:[#allocation9 + $0x40] sm:$0xff]
        %v5294 = vld [vmem:[#allocation9 + $0x48] sm:$0xff]
        %v5295 = vld [vmem:[#allocation9 + $0x50] sm:$0xff]
        %v5296 = vld [vmem:[#allocation9 + $0x58] sm:$0xff]
        %v5297 = vld [vmem:[#allocation9 + $0x60] sm:$0xff]
        %v5298 = vld [vmem:[#allocation9 + $0x68] sm:$0xff]
        %v5299 = vld [vmem:[#allocation9 + $0x70] sm:$0xff]
        %v5300 = vld [vmem:[#allocation9 + $0x78] sm:$0xff]
        %v5301 = vld [vmem:[#allocation9 + $0x80] sm:$0xff]
        %v5302 = vld [vmem:[#allocation9 + $0x88] sm:$0xff]
        %v5303 = vld [vmem:[#allocation9 + $0x90] sm:$0xff]
        %v5304 = vld [vmem:[#allocation9 + $0x98] sm:$0xff]
        %v5305 = vld [vmem:[#allocation9 + $0xa0] sm:$0xff]
        %v5306 = vld [vmem:[#allocation9 + $0xa8] sm:$0xff]
        %v5307 = vld [vmem:[#allocation9 + $0xb0] sm:$0xff]
        %v5308 = vld [vmem:[#allocation9 + $0xb8] sm:$0xff]
        %v5309 = vld [vmem:[#allocation9 + $0xc0] sm:$0xff]
        %v5310 = vld [vmem:[#allocation9 + $0xc8] sm:$0xff]
        %v5311 = vld [vmem:[#allocation9 + $0xd0] sm:$0xff]
        %v5312 = vld [vmem:[#allocation9 + $0xd8] sm:$0xff]
        %v5313 = vld [vmem:[#allocation9 + $0xe0] sm:$0xff]
        %v5314 = vld [vmem:[#allocation9 + $0xe8] sm:$0xff]
        %v5315 = vld [vmem:[#allocation9 + $0xf0] sm:$0xff]
        %v5316 = vld [vmem:[#allocation9 + $0xf8] sm:$0xff]
        %v5317 = vld [vmem:[#allocation9 + $0x100] sm:$0xff]
        %v5318 = vld [vmem:[#allocation9 + $0x108] sm:$0xff]
        %v5319 = vld [vmem:[#allocation9 + $0x110] sm:$0xff]
        %v5320 = vld [vmem:[#allocation9 + $0x118] sm:$0xff]
        %v5321 = vld [vmem:[#allocation9 + $0x120] sm:$0xff]
        %v5322 = vld [vmem:[#allocation9 + $0x128] sm:$0xff]
        %v5323 = vld [vmem:[#allocation9 + $0x130] sm:$0xff]
        %v5324 = vld [vmem:[#allocation9 + $0x138] sm:$0xff]
        %v5325 = vld [vmem:[#allocation9 + $0x140] sm:$0xff]
        %v5326 = vld [vmem:[#allocation9 + $0x148] sm:$0xff]
        %v5327 = vld [vmem:[#allocation9 + $0x150] sm:$0xff]
        %v5328 = vld [vmem:[#allocation9 + $0x158] sm:$0xff]
        %v5329 = vld [vmem:[#allocation9 + $0x160] sm:$0xff]
        %v5330 = vld [vmem:[#allocation9 + $0x168] sm:$0xff]
        %v5331 = vld [vmem:[#allocation9 + $0x170] sm:$0xff]
        %v5332 = vld [vmem:[#allocation9 + $0x178] sm:$0xff]
        %v5333 = vld [vmem:[#allocation9 + $0x180] sm:$0xff]
        %v5334 = vld [vmem:[#allocation9 + $0x188] sm:$0xff]
        %v5335 = vld [vmem:[#allocation9 + $0x190] sm:$0xff]
        %v5336 = vld [vmem:[#allocation9 + $0x198] sm:$0xff]
        %v5337 = vld [vmem:[#allocation9 + $0x1a0] sm:$0xff]
        %v5338 = vld [vmem:[#allocation9 + $0x1a8] sm:$0xff]
        %v5339 = vld [vmem:[#allocation9 + $0x1b0] sm:$0xff]
        %v5340 = vld [vmem:[#allocation9 + $0x1b8] sm:$0xff]
        %v5341 = vld [vmem:[#allocation9 + $0x1c0] sm:$0xff]
        %v5342 = vld [vmem:[#allocation9 + $0x1c8] sm:$0xff]
        %v5343 = vld [vmem:[#allocation9 + $0x1d0] sm:$0xff]
        %v5344 = vld [vmem:[#allocation9 + $0x1d8] sm:$0xff]
        %v5345 = vld [vmem:[#allocation9 + $0x1e0] sm:$0xff]
        %v5346 = vld [vmem:[#allocation9 + $0x1e8] sm:$0xff]
        %v5347 = vld [vmem:[#allocation9 + $0x1f0] sm:$0xff]
        %v5348 = vld [vmem:[#allocation9 + $0x1f8] sm:$0xff]
        %v5349 = vld [vmem:[#allocation9 + $0x200] sm:$0xff]
        %v5350 = vld [vmem:[#allocation9 + $0x208] sm:$0xff]
        %v5351 = vld [vmem:[#allocation9 + $0x210] sm:$0xff]
        %v5352 = vld [vmem:[#allocation9 + $0x218] sm:$0xff]
        %v5353 = vld [vmem:[#allocation9 + $0x220] sm:$0xff]
        %v5354 = vld [vmem:[#allocation9 + $0x228] sm:$0xff]
        %v5355 = vld [vmem:[#allocation9 + $0x230] sm:$0xff]
        %v5356 = vld [vmem:[#allocation9 + $0x238] sm:$0xff]
        %v5357 = vld [vmem:[#allocation3] sm:$0xfe]
        %v5358 = vld [vmem:[#allocation3 + $0x8] sm:$0xfe]
        %v5359 = vld [vmem:[#allocation3 + $0x10] sm:$0xfe]
        %v5360 = vld [vmem:[#allocation3 + $0x30] sm:$0x7]
        %v5361 = vld [vmem:[#allocation3 + $0x38] sm:$0x7]
        %v5362 = vld [vmem:[#allocation3 + $0x40] sm:$0x7]
        %v5363 = vpack.c.bf16 %v5273, %v5357
        %v5364 = vpack.c.bf16 %v5274, %v5358
        %v5365 = vpack.c.bf16 %v5275, %v5359
        %v5366 = vpack.c.bf16 %v5360, %v5360
        %v5367 = vpack.c.bf16 %v5361, %v5361
        %v5368 = vpack.c.bf16 %v5362, %v5362
        %s5369 = scalar_lea.vmem [#allocation9], 576
        %v5370 = vld [vmem:[%s5369] sm:$0xff]
        %v5371 = vld [vmem:[%s5369 + $0x8] sm:$0xff]
        %v5372 = vld [vmem:[%s5369 + $0x10] sm:$0xff]
        %v5373 = vld [vmem:[%s5369 + $0x18] sm:$0xff]
        %v5374 = vld [vmem:[%s5369 + $0x20] sm:$0xff]
        %v5375 = vld [vmem:[%s5369 + $0x28] sm:$0xff]
        %v5376 = vld [vmem:[%s5369 + $0x30] sm:$0xff]
        %v5377 = vld [vmem:[%s5369 + $0x38] sm:$0xff]
        %v5378 = vld [vmem:[%s5369 + $0x40] sm:$0xff]
        %v5379 = vld [vmem:[%s5369 + $0x48] sm:$0xff]
        %v5380 = vld [vmem:[%s5369 + $0x50] sm:$0xff]
        %v5381 = vld [vmem:[%s5369 + $0x58] sm:$0xff]
        %v5382 = vld [vmem:[%s5369 + $0x60] sm:$0xff]
        %v5383 = vld [vmem:[%s5369 + $0x68] sm:$0xff]
        %v5384 = vld [vmem:[%s5369 + $0x70] sm:$0xff]
        %v5385 = vld [vmem:[%s5369 + $0x78] sm:$0xff]
        %v5386 = vld [vmem:[%s5369 + $0x80] sm:$0xff]
        %v5387 = vld [vmem:[%s5369 + $0x88] sm:$0xff]
        %v5388 = vld [vmem:[%s5369 + $0x90] sm:$0xff]
        %v5389 = vld [vmem:[%s5369 + $0x98] sm:$0xff]
        %v5390 = vld [vmem:[%s5369 + $0xa0] sm:$0xff]
        %v5391 = vld [vmem:[%s5369 + $0xa8] sm:$0xff]
        %v5392 = vld [vmem:[%s5369 + $0xb0] sm:$0xff]
        %v5393 = vld [vmem:[%s5369 + $0xb8] sm:$0xff]
        %v5394 = vld [vmem:[%s5369 + $0xc0] sm:$0xff]
        %v5395 = vld [vmem:[%s5369 + $0xc8] sm:$0xff]
        %v5396 = vld [vmem:[%s5369 + $0xd0] sm:$0xff]
        %v5397 = vld [vmem:[%s5369 + $0xd8] sm:$0xff]
        %v5398 = vld [vmem:[%s5369 + $0xe0] sm:$0xff]
        %v5399 = vld [vmem:[%s5369 + $0xe8] sm:$0xff]
        %v5400 = vld [vmem:[%s5369 + $0xf0] sm:$0xff]
        %v5401 = vld [vmem:[%s5369 + $0xf8] sm:$0xff]
        %v5402 = vld [vmem:[%s5369 + $0x100] sm:$0xff]
        %v5403 = vld [vmem:[%s5369 + $0x108] sm:$0xff]
        %v5404 = vld [vmem:[%s5369 + $0x110] sm:$0xff]
        %v5405 = vld [vmem:[%s5369 + $0x118] sm:$0xff]
        %v5406 = vld [vmem:[%s5369 + $0x120] sm:$0xff]
        %v5407 = vld [vmem:[%s5369 + $0x128] sm:$0xff]
        %v5408 = vld [vmem:[%s5369 + $0x130] sm:$0xff]
        %v5409 = vld [vmem:[%s5369 + $0x138] sm:$0xff]
        %v5410 = vld [vmem:[%s5369 + $0x140] sm:$0xff]
        %v5411 = vld [vmem:[%s5369 + $0x148] sm:$0xff]
        %v5412 = vld [vmem:[%s5369 + $0x150] sm:$0xff]
        %v5413 = vld [vmem:[%s5369 + $0x158] sm:$0xff]
        %v5414 = vld [vmem:[%s5369 + $0x160] sm:$0xff]
        %v5415 = vld [vmem:[%s5369 + $0x168] sm:$0xff]
        %v5416 = vld [vmem:[%s5369 + $0x170] sm:$0xff]
        %v5417 = vld [vmem:[%s5369 + $0x178] sm:$0xff]
        %v5418 = vld [vmem:[%s5369 + $0x180] sm:$0xff]
        %v5419 = vld [vmem:[%s5369 + $0x188] sm:$0xff]
        %v5420 = vld [vmem:[%s5369 + $0x190] sm:$0xff]
        %v5421 = vld [vmem:[%s5369 + $0x198] sm:$0xff]
        %v5422 = vld [vmem:[%s5369 + $0x1a0] sm:$0xff]
        %v5423 = vld [vmem:[%s5369 + $0x1a8] sm:$0xff]
        %v5424 = vld [vmem:[%s5369 + $0x1b0] sm:$0xff]
        %v5425 = vld [vmem:[%s5369 + $0x1b8] sm:$0xff]
        %v5426 = vld [vmem:[%s5369 + $0x1c0] sm:$0xff]
        %v5427 = vld [vmem:[%s5369 + $0x1c8] sm:$0xff]
        %v5428 = vld [vmem:[%s5369 + $0x1d0] sm:$0xff]
        %v5429 = vld [vmem:[%s5369 + $0x1d8] sm:$0xff]
        %v5430 = vld [vmem:[%s5369 + $0x1e0] sm:$0xff]
        %v5431 = vld [vmem:[%s5369 + $0x1e8] sm:$0xff]
        %v5432 = vld [vmem:[%s5369 + $0x1f0] sm:$0xff]
        %v5433 = vld [vmem:[%s5369 + $0x1f8] sm:$0xff]
        %v5434 = vld [vmem:[%s5369 + $0x200] sm:$0xff]
        %v5435 = vld [vmem:[%s5369 + $0x208] sm:$0xff]
        %v5436 = vld [vmem:[%s5369 + $0x210] sm:$0xff]
        %v5437 = vld [vmem:[%s5369 + $0x218] sm:$0xff]
        %v5438 = vld [vmem:[%s5369 + $0x220] sm:$0xff]
        %v5439 = vld [vmem:[%s5369 + $0x228] sm:$0xff]
        %v5440 = vld [vmem:[%s5369 + $0x230] sm:$0xff]
        %v5441 = vld [vmem:[%s5369 + $0x238] sm:$0xff]
        %vm5442 = vsmask.f32 7424
        %v5444 = vshrl.u32 %v5363, 16
        %v5446 = vshll.u32 %v5363, 16
        %v5448 = vrot.slane %v5446, 1
        %v5449 = vor.u32 %v5444, %v5448
        %v5451 = vshll.u32 %v5366, 16
        %v5453 = vrot.slane %v5451, 1
        %v5454 = vsel %vm5442, %v5449, %v5453
        %v5456 = vshrl.u32 %v5364, 16
        %v5458 = vshll.u32 %v5364, 16
        %v5460 = vrot.slane %v5458, 1
        %v5461 = vor.u32 %v5456, %v5460
        %v5463 = vshll.u32 %v5367, 16
        %v5465 = vrot.slane %v5463, 1
        %v5466 = vsel %vm5442, %v5461, %v5465
        %v5468 = vshrl.u32 %v5365, 16
        %v5470 = vshll.u32 %v5365, 16
        %v5472 = vrot.slane %v5470, 1
        %v5473 = vor.u32 %v5468, %v5472
        %v5475 = vshll.u32 %v5368, 16
        %v5477 = vrot.slane %v5475, 1
        %v5478 = vsel %vm5442, %v5473, %v5477
        %v5479 = vshrl.u32 %v5366, 16
        %v5481 = vor.u32 %v5479, %v5453
        %v5482 = vshrl.u32 %v5367, 16
        %v5484 = vor.u32 %v5482, %v5465
        %v5485 = vshrl.u32 %v5368, 16
        %v5487 = vor.u32 %v5485, %v5477
        %v5564 = vunpack.c.l.b16 %v5370
        %v5565 = vunpack.c.h.b16 %v5370
        %v5566 = vunpack.c.l.b16 %v5371
        %v5567 = vunpack.c.h.b16 %v5371
        %v5568 = vunpack.c.l.b16 %v5372
        %v5569 = vunpack.c.h.b16 %v5372
        %v5570 = vunpack.c.l.b16 %v5373
        %v5571 = vunpack.c.h.b16 %v5373
        %v5572 = vunpack.c.l.b16 %v5374
        %v5573 = vunpack.c.h.b16 %v5374
        %v5574 = vunpack.c.l.b16 %v5375
        %v5575 = vunpack.c.h.b16 %v5375
        %v5576 = vunpack.c.l.b16 %v5376
        %v5577 = vunpack.c.h.b16 %v5376
        %v5578 = vunpack.c.l.b16 %v5377
        %v5579 = vunpack.c.h.b16 %v5377
        %v5580 = vunpack.c.l.b16 %v5378
        %v5581 = vunpack.c.h.b16 %v5378
        %v5582 = vunpack.c.l.b16 %v5379
        %v5583 = vunpack.c.h.b16 %v5379
        %v5584 = vunpack.c.l.b16 %v5380
        %v5585 = vunpack.c.h.b16 %v5380
        %v5586 = vunpack.c.l.b16 %v5381
        %v5587 = vunpack.c.h.b16 %v5381
        %v5588 = vunpack.c.l.b16 %v5382
        %v5589 = vunpack.c.h.b16 %v5382
        %v5590 = vunpack.c.l.b16 %v5383
        %v5591 = vunpack.c.h.b16 %v5383
        %v5592 = vunpack.c.l.b16 %v5384
        %v5593 = vunpack.c.h.b16 %v5384
        %v5594 = vunpack.c.l.b16 %v5385
        %v5595 = vunpack.c.h.b16 %v5385
        %v5596 = vunpack.c.l.b16 %v5386
        %v5597 = vunpack.c.h.b16 %v5386
        %v5598 = vunpack.c.l.b16 %v5387
        %v5599 = vunpack.c.h.b16 %v5387
        %v5600 = vunpack.c.l.b16 %v5388
        %v5601 = vunpack.c.h.b16 %v5388
        %v5602 = vunpack.c.l.b16 %v5389
        %v5603 = vunpack.c.h.b16 %v5389
        %v5604 = vunpack.c.l.b16 %v5390
        %v5605 = vunpack.c.h.b16 %v5390
        %v5606 = vunpack.c.l.b16 %v5391
        %v5607 = vunpack.c.h.b16 %v5391
        %v5608 = vunpack.c.l.b16 %v5392
        %v5609 = vunpack.c.h.b16 %v5392
        %v5610 = vunpack.c.l.b16 %v5393
        %v5611 = vunpack.c.h.b16 %v5393
        %v5612 = vunpack.c.l.b16 %v5394
        %v5613 = vunpack.c.h.b16 %v5394
        %v5614 = vunpack.c.l.b16 %v5395
        %v5615 = vunpack.c.h.b16 %v5395
        %v5616 = vunpack.c.l.b16 %v5396
        %v5617 = vunpack.c.h.b16 %v5396
        %v5618 = vunpack.c.l.b16 %v5397
        %v5619 = vunpack.c.h.b16 %v5397
        %v5620 = vunpack.c.l.b16 %v5398
        %v5621 = vunpack.c.h.b16 %v5398
        %v5622 = vunpack.c.l.b16 %v5399
        %v5623 = vunpack.c.h.b16 %v5399
        %v5624 = vunpack.c.l.b16 %v5400
        %v5625 = vunpack.c.h.b16 %v5400
        %v5626 = vunpack.c.l.b16 %v5401
        %v5627 = vunpack.c.h.b16 %v5401
        %v5628 = vunpack.c.l.b16 %v5402
        %v5629 = vunpack.c.h.b16 %v5402
        %v5630 = vunpack.c.l.b16 %v5403
        %v5631 = vunpack.c.h.b16 %v5403
        %v5632 = vunpack.c.l.b16 %v5404
        %v5633 = vunpack.c.h.b16 %v5404
        %v5634 = vunpack.c.l.b16 %v5405
        %v5635 = vunpack.c.h.b16 %v5405
        %v5636 = vunpack.c.l.b16 %v5406
        %v5637 = vunpack.c.h.b16 %v5406
        %v5638 = vunpack.c.l.b16 %v5407
        %v5639 = vunpack.c.h.b16 %v5407
        %v5640 = vunpack.c.l.b16 %v5408
        %v5641 = vunpack.c.h.b16 %v5408
        %v5642 = vunpack.c.l.b16 %v5409
        %v5643 = vunpack.c.h.b16 %v5409
        %v5644 = vunpack.c.l.b16 %v5410
        %v5645 = vunpack.c.h.b16 %v5410
        %v5646 = vunpack.c.l.b16 %v5411
        %v5647 = vunpack.c.h.b16 %v5411
        %v5648 = vunpack.c.l.b16 %v5412
        %v5649 = vunpack.c.h.b16 %v5412
        %v5650 = vunpack.c.l.b16 %v5413
        %v5651 = vunpack.c.h.b16 %v5413
        %v5652 = vunpack.c.l.b16 %v5414
        %v5653 = vunpack.c.h.b16 %v5414
        %v5654 = vunpack.c.l.b16 %v5415
        %v5655 = vunpack.c.h.b16 %v5415
        %v5656 = vunpack.c.l.b16 %v5416
        %v5657 = vunpack.c.h.b16 %v5416
        %v5658 = vunpack.c.l.b16 %v5417
        %v5659 = vunpack.c.h.b16 %v5417
        %v5660 = vunpack.c.l.b16 %v5418
        %v5661 = vunpack.c.h.b16 %v5418
        %v5662 = vunpack.c.l.b16 %v5419
        %v5663 = vunpack.c.h.b16 %v5419
        %v5664 = vunpack.c.l.b16 %v5420
        %v5665 = vunpack.c.h.b16 %v5420
        %v5666 = vunpack.c.l.b16 %v5421
        %v5667 = vunpack.c.h.b16 %v5421
        %v5668 = vunpack.c.l.b16 %v5422
        %v5669 = vunpack.c.h.b16 %v5422
        %v5670 = vunpack.c.l.b16 %v5423
        %v5671 = vunpack.c.h.b16 %v5423
        %v5672 = vunpack.c.l.b16 %v5424
        %v5673 = vunpack.c.h.b16 %v5424
        %v5674 = vunpack.c.l.b16 %v5425
        %v5675 = vunpack.c.h.b16 %v5425
        %v5676 = vunpack.c.l.b16 %v5426
        %v5677 = vunpack.c.h.b16 %v5426
        %v5678 = vunpack.c.l.b16 %v5427
        %v5679 = vunpack.c.h.b16 %v5427
        %v5680 = vunpack.c.l.b16 %v5428
        %v5681 = vunpack.c.h.b16 %v5428
        %v5682 = vunpack.c.l.b16 %v5429
        %v5683 = vunpack.c.h.b16 %v5429
        %v5684 = vunpack.c.l.b16 %v5430
        %v5685 = vunpack.c.h.b16 %v5430
        %v5686 = vunpack.c.l.b16 %v5431
        %v5687 = vunpack.c.h.b16 %v5431
        %v5688 = vunpack.c.l.b16 %v5432
        %v5689 = vunpack.c.h.b16 %v5432
        %v5690 = vunpack.c.l.b16 %v5433
        %v5691 = vunpack.c.h.b16 %v5433
        %v5692 = vunpack.c.l.b16 %v5434
        %v5693 = vunpack.c.h.b16 %v5434
        %v5694 = vunpack.c.l.b16 %v5435
        %v5695 = vunpack.c.h.b16 %v5435
        %v5696 = vunpack.c.l.b16 %v5436
        %v5697 = vunpack.c.h.b16 %v5436
        %v5698 = vunpack.c.l.b16 %v5437
        %v5699 = vunpack.c.h.b16 %v5437
        %v5700 = vunpack.c.l.b16 %v5438
        %v5701 = vunpack.c.h.b16 %v5438
        %v5702 = vunpack.c.l.b16 %v5439
        %v5703 = vunpack.c.h.b16 %v5439
        %v5704 = vunpack.c.l.b16 %v5440
        %v5705 = vunpack.c.h.b16 %v5440
        %v5706 = vunpack.c.l.b16 %v5441
        %v5707 = vunpack.c.h.b16 %v5441
        %v5708 = vpack.c.b16 %v5568, %v5564
        %v5709 = vpack.c.b16 %v5569, %v5565
        %v5710 = vpack.c.b16 %v5570, %v5566
        %v5711 = vpack.c.b16 %v5571, %v5567
        %v5712 = vpack.c.b16 %v5576, %v5572
        %v5713 = vpack.c.b16 %v5577, %v5573
        %v5714 = vpack.c.b16 %v5578, %v5574
        %v5715 = vpack.c.b16 %v5579, %v5575
        %v5716 = vpack.c.b16 %v5584, %v5580
        %v5717 = vpack.c.b16 %v5585, %v5581
        %v5718 = vpack.c.b16 %v5586, %v5582
        %v5719 = vpack.c.b16 %v5587, %v5583
        %v5720 = vpack.c.b16 %v5592, %v5588
        %v5721 = vpack.c.b16 %v5593, %v5589
        %v5722 = vpack.c.b16 %v5594, %v5590
        %v5723 = vpack.c.b16 %v5595, %v5591
        %v5724 = vpack.c.b16 %v5600, %v5596
        %v5725 = vpack.c.b16 %v5601, %v5597
        %v5726 = vpack.c.b16 %v5602, %v5598
        %v5727 = vpack.c.b16 %v5603, %v5599
        %v5728 = vpack.c.b16 %v5608, %v5604
        %v5729 = vpack.c.b16 %v5609, %v5605
        %v5730 = vpack.c.b16 %v5610, %v5606
        %v5731 = vpack.c.b16 %v5611, %v5607
        %v5732 = vpack.c.b16 %v5616, %v5612
        %v5733 = vpack.c.b16 %v5617, %v5613
        %v5734 = vpack.c.b16 %v5618, %v5614
        %v5735 = vpack.c.b16 %v5619, %v5615
        %v5736 = vpack.c.b16 %v5624, %v5620
        %v5737 = vpack.c.b16 %v5625, %v5621
        %v5738 = vpack.c.b16 %v5626, %v5622
        %v5739 = vpack.c.b16 %v5627, %v5623
        %v5740 = vpack.c.b16 %v5632, %v5628
        %v5741 = vpack.c.b16 %v5633, %v5629
        %v5742 = vpack.c.b16 %v5634, %v5630
        %v5743 = vpack.c.b16 %v5635, %v5631
        %v5744 = vpack.c.b16 %v5640, %v5636
        %v5745 = vpack.c.b16 %v5641, %v5637
        %v5746 = vpack.c.b16 %v5642, %v5638
        %v5747 = vpack.c.b16 %v5643, %v5639
        %v5748 = vpack.c.b16 %v5648, %v5644
        %v5749 = vpack.c.b16 %v5649, %v5645
        %v5750 = vpack.c.b16 %v5650, %v5646
        %v5751 = vpack.c.b16 %v5651, %v5647
        %v5752 = vpack.c.b16 %v5656, %v5652
        %v5753 = vpack.c.b16 %v5657, %v5653
        %v5754 = vpack.c.b16 %v5658, %v5654
        %v5755 = vpack.c.b16 %v5659, %v5655
        %v5756 = vpack.c.b16 %v5664, %v5660
        %v5757 = vpack.c.b16 %v5665, %v5661
        %v5758 = vpack.c.b16 %v5666, %v5662
        %v5759 = vpack.c.b16 %v5667, %v5663
        %v5760 = vpack.c.b16 %v5672, %v5668
        %v5761 = vpack.c.b16 %v5673, %v5669
        %v5762 = vpack.c.b16 %v5674, %v5670
        %v5763 = vpack.c.b16 %v5675, %v5671
        %v5764 = vpack.c.b16 %v5680, %v5676
        %v5765 = vpack.c.b16 %v5681, %v5677
        %v5766 = vpack.c.b16 %v5682, %v5678
        %v5767 = vpack.c.b16 %v5683, %v5679
        %v5768 = vpack.c.b16 %v5688, %v5684
        %v5769 = vpack.c.b16 %v5689, %v5685
        %v5770 = vpack.c.b16 %v5690, %v5686
        %v5771 = vpack.c.b16 %v5691, %v5687
        %v5772 = vpack.c.b16 %v5696, %v5692
        %v5773 = vpack.c.b16 %v5697, %v5693
        %v5774 = vpack.c.b16 %v5698, %v5694
        %v5775 = vpack.c.b16 %v5699, %v5695
        %v5776 = vpack.c.b16 %v5704, %v5700
        %v5777 = vpack.c.b16 %v5705, %v5701
        %v5778 = vpack.c.b16 %v5706, %v5702
        %v5779 = vpack.c.b16 %v5707, %v5703
        %v5853 = vsel %vm344, %v5478, 0
        %v5856 = vsel %vm344, %v5487, 0
        %5858 = vmatprep.subr.bf16.mxu0 %v5709
        %5859 = vmatpush1.bf16.msra.mxu0 %v5708
        %5860 = vmatprep.subr.bf16.mxu0 %v5713
        %5861 = vmatpush1.bf16.msra.mxu0 %v5712
        %5862 = vmatprep.subr.bf16.mxu0 %v5717
        %5863 = vmatpush1.bf16.msra.mxu0 %v5716
        %5864 = vmatprep.subr.bf16.mxu0 %v5721
        %5865 = vmatpush1.bf16.msra.mxu0 %v5720
        %5866 = vmatprep.subr.bf16.mxu0 %v5725
        %5867 = vmatpush1.bf16.msra.mxu0 %v5724
        %5868 = vmatprep.subr.bf16.mxu0 %v5729
        %5869 = vmatpush1.bf16.msra.mxu0 %v5728
        %5870 = vmatprep.subr.bf16.mxu0 %v5733
        %5871 = vmatpush1.bf16.msra.mxu0 %v5732
        %5872 = vmatprep.subr.bf16.mxu0 %v5737
        %5873 = vmatpush1.bf16.msra.mxu0 %v5736
        %5874 = vmatprep.subr.bf16.mxu0 %v5741
        %5875 = vmatpush1.bf16.msra.mxu0 %v5740
        %5876 = vmatprep.subr.bf16.mxu0 %v5745
        %5877 = vmatpush1.bf16.msra.mxu0 %v5744
        %5878 = vmatprep.subr.bf16.mxu0 %v5749
        %5879 = vmatpush1.bf16.msra.mxu0 %v5748
        %5880 = vmatprep.subr.bf16.mxu0 %v5753
        %5881 = vmatpush1.bf16.msra.mxu0 %v5752
        %5882 = vmatprep.subr.bf16.mxu0 %v5757
        %5883 = vmatpush1.bf16.msra.mxu0 %v5756
        %5884 = vmatprep.subr.bf16.mxu0 %v5761
        %5885 = vmatpush1.bf16.msra.mxu0 %v5760
        %5886 = vmatprep.subr.bf16.mxu0 %v5765
        %5887 = vmatpush1.bf16.msra.mxu0 %v5764
        %5888 = vmatprep.subr.bf16.mxu0 %v5769
        %5889 = vmatpush1.bf16.msra.mxu0 %v5768
        %5890 = vmatprep.mubr.bf16.mxu0 %v5466
        %5891 = vmatmul.mubr.bf16.gmra.mrb[0].mxu0 %v5454
        %v5892 = vpop.f32.mrb[0].mxu0
        %v5893 = vadd.f32 0.0, %v5892
        %v5894 = vpop.f32.mrb[0].mxu0
        %v5895 = vadd.f32 0.0, %v5894
        %v5896 = vpop.f32.mrb[0].mxu0
        %v5897 = vadd.f32 0.0, %v5896
        %v5898 = vpop.f32.mrb[0].mxu0
        %v5899 = vadd.f32 0.0, %v5898
        %5900 = vmatprep.mubr.bf16.mxu0 %v5484
        %5901 = vmatmul.mubr.bf16.gmra.mrb[0].mxu0 %v5481
        %v5902 = vpop.f32.mrb[0].mxu0
        %v5903 = vpop.f32.mrb[0].mxu0
        %v5904 = vpop.f32.mrb[0].mxu0
        %v5905 = vpop.f32.mrb[0].mxu0
        %5906 = vdwg.mxu0
        %5907 = vmatprep.subr.bf16.mxu0 %v5773
        %5908 = vmatpush1.bf16.msra.mxu0 %v5772
        %5909 = vmatprep.subr.bf16.mxu0 %v5777
        %5910 = vmatpush1.bf16.msra.mxu0 %v5776
        %5911 = vmatprep.subr.bf16.mxu0 0
        %5912 = vmatpush1.bf16.msra.mxu0 0
        %5913 = vmatprep.subr.bf16.mxu0 0
        %5914 = vmatpush1.bf16.msra.mxu0 0
        %5915 = vmatprep.subr.bf16.mxu0 0
        %5916 = vmatpush1.bf16.msra.mxu0 0
        %5917 = vmatprep.subr.bf16.mxu0 0
        %5918 = vmatpush1.bf16.msra.mxu0 0
        %5919 = vmatprep.subr.bf16.mxu0 0
        %5920 = vmatpush1.bf16.msra.mxu0 0
        %5921 = vmatprep.subr.bf16.mxu0 0
        %5922 = vmatpush1.bf16.msra.mxu0 0
        %5923 = vmatprep.subr.bf16.mxu0 0
        %5924 = vmatpush1.bf16.msra.mxu0 0
        %5925 = vmatprep.subr.bf16.mxu0 0
        %5926 = vmatpush1.bf16.msra.mxu0 0
        %5927 = vmatprep.subr.bf16.mxu0 0
        %5928 = vmatpush1.bf16.msra.mxu0 0
        %5929 = vmatprep.subr.bf16.mxu0 0
        %5930 = vmatpush1.bf16.msra.mxu0 0
        %5931 = vmatprep.subr.bf16.mxu0 0
        %5932 = vmatpush1.bf16.msra.mxu0 0
        %5933 = vmatprep.subr.bf16.mxu0 0
        %5934 = vmatpush1.bf16.msra.mxu0 0
        %5935 = vmatprep.subr.bf16.mxu0 0
        %5936 = vmatpush1.bf16.msra.mxu0 0
        %5937 = vmatprep.subr.bf16.mxu0 0
        %5938 = vmatpush1.bf16.msra.mxu0 0
        %5939 = vmatprep.mubr.bf16.mxu0 0
        %5940 = vmatmul.mubr.bf16.gmra.mrb[0].mxu0 %v5853
        %v5941 = vpop.f32.mrb[0].mxu0
        %v5942 = vadd.f32 %v5893, %v5941
        %v5943 = vpop.f32.mrb[0].mxu0
        %v5944 = vadd.f32 %v5895, %v5943
        %v5945 = vpop.f32.mrb[0].mxu0
        %v5946 = vadd.f32 %v5897, %v5945
        %v5947 = vpop.f32.mrb[0].mxu0
        %v5948 = vadd.f32 %v5899, %v5947
        %5949 = vmatprep.mubr.bf16.mxu0 0
        %5950 = vmatmul.mubr.bf16.gmra.mrb[0].mxu0 %v5856
        %v5951 = vpop.f32.mrb[0].mxu0
        %v5952 = vpop.f32.mrb[0].mxu0
        %v5953 = vpop.f32.mrb[0].mxu0
        %v5954 = vpop.f32.mrb[0].mxu0
        %5955 = vdwg.mxu0
        %5956 = vmatprep.subr.bf16.mxu0 %v5711
        %5957 = vmatpush1.bf16.msra.mxu0 %v5710
        %5958 = vmatprep.subr.bf16.mxu0 %v5715
        %5959 = vmatpush1.bf16.msra.mxu0 %v5714
        %5960 = vmatprep.subr.bf16.mxu0 %v5719
        %5961 = vmatpush1.bf16.msra.mxu0 %v5718
        %5962 = vmatprep.subr.bf16.mxu0 %v5723
        %5963 = vmatpush1.bf16.msra.mxu0 %v5722
        %5964 = vmatprep.subr.bf16.mxu0 %v5727
        %5965 = vmatpush1.bf16.msra.mxu0 %v5726
        %5966 = vmatprep.subr.bf16.mxu0 %v5731
        %5967 = vmatpush1.bf16.msra.mxu0 %v5730
        %5968 = vmatprep.subr.bf16.mxu0 %v5735
        %5969 = vmatpush1.bf16.msra.mxu0 %v5734
        %5970 = vmatprep.subr.bf16.mxu0 %v5739
        %5971 = vmatpush1.bf16.msra.mxu0 %v5738
        %5972 = vmatprep.subr.bf16.mxu0 %v5743
        %5973 = vmatpush1.bf16.msra.mxu0 %v5742
        %5974 = vmatprep.subr.bf16.mxu0 %v5747
        %5975 = vmatpush1.bf16.msra.mxu0 %v5746
        %5976 = vmatprep.subr.bf16.mxu0 %v5751
        %5977 = vmatpush1.bf16.msra.mxu0 %v5750
        %5978 = vmatprep.subr.bf16.mxu0 %v5755
        %5979 = vmatpush1.bf16.msra.mxu0 %v5754
        %5980 = vmatprep.subr.bf16.mxu0 %v5759
        %5981 = vmatpush1.bf16.msra.mxu0 %v5758
        %5982 = vmatprep.subr.bf16.mxu0 %v5763
        %5983 = vmatpush1.bf16.msra.mxu0 %v5762
        %5984 = vmatprep.subr.bf16.mxu0 %v5767
        %5985 = vmatpush1.bf16.msra.mxu0 %v5766
        %5986 = vmatprep.subr.bf16.mxu0 %v5771
        %5987 = vmatpush1.bf16.msra.mxu0 %v5770
        %5988 = vmatprep.mubr.bf16.mxu0 %v5466
        %5989 = vmatmul.mubr.bf16.gmra.mrb[0].mxu0 %v5454
        %v5990 = vpop.f32.mrb[0].mxu0
        %v5991 = vadd.f32 0.0, %v5990
        %v5992 = vpop.f32.mrb[0].mxu0
        %v5993 = vadd.f32 0.0, %v5992
        %v5994 = vpop.f32.mrb[0].mxu0
        %v5995 = vadd.f32 0.0, %v5994
        %v5996 = vpop.f32.mrb[0].mxu0
        %v5997 = vadd.f32 0.0, %v5996
        %5998 = vmatprep.mubr.bf16.mxu0 %v5484
        %5999 = vmatmul.mubr.bf16.gmra.mrb[0].mxu0 %v5481
        %v6000 = vpop.f32.mrb[0].mxu0
        %v6001 = vpop.f32.mrb[0].mxu0
        %v6002 = vpop.f32.mrb[0].mxu0
        %v6003 = vpop.f32.mrb[0].mxu0
        %6004 = vdwg.mxu0
        %6005 = vmatprep.subr.bf16.mxu0 %v5775
        %6006 = vmatpush1.bf16.msra.mxu0 %v5774
        %6007 = vmatprep.subr.bf16.mxu0 %v5779
        %6008 = vmatpush1.bf16.msra.mxu0 %v5778
        %6009 = vmatprep.subr.bf16.mxu0 0
        %6010 = vmatpush1.bf16.msra.mxu0 0
        %6011 = vmatprep.subr.bf16.mxu0 0
        %6012 = vmatpush1.bf16.msra.mxu0 0
        %6013 = vmatprep.subr.bf16.mxu0 0
        %6014 = vmatpush1.bf16.msra.mxu0 0
        %6015 = vmatprep.subr.bf16.mxu0 0
        %6016 = vmatpush1.bf16.msra.mxu0 0
        %6017 = vmatprep.subr.bf16.mxu0 0
        %6018 = vmatpush1.bf16.msra.mxu0 0
        %6019 = vmatprep.subr.bf16.mxu0 0
        %6020 = vmatpush1.bf16.msra.mxu0 0
        %6021 = vmatprep.subr.bf16.mxu0 0
        %6022 = vmatpush1.bf16.msra.mxu0 0
        %6023 = vmatprep.subr.bf16.mxu0 0
        %6024 = vmatpush1.bf16.msra.mxu0 0
        %6025 = vmatprep.subr.bf16.mxu0 0
        %6026 = vmatpush1.bf16.msra.mxu0 0
        %6027 = vmatprep.subr.bf16.mxu0 0
        %6028 = vmatpush1.bf16.msra.mxu0 0
        %6029 = vmatprep.subr.bf16.mxu0 0
        %6030 = vmatpush1.bf16.msra.mxu0 0
        %6031 = vmatprep.subr.bf16.mxu0 0
        %6032 = vmatpush1.bf16.msra.mxu0 0
        %6033 = vmatprep.subr.bf16.mxu0 0
        %6034 = vmatpush1.bf16.msra.mxu0 0
        %6035 = vmatprep.subr.bf16.mxu0 0
        %6036 = vmatpush1.bf16.msra.mxu0 0
        %6037 = vmatprep.mubr.bf16.mxu0 0
        %6038 = vmatmul.mubr.bf16.gmra.mrb[0].mxu0 %v5853
        %v6039 = vpop.f32.mrb[0].mxu0
        %v6040 = vadd.f32 %v5991, %v6039
        %v6041 = vpop.f32.mrb[0].mxu0
        %v6042 = vadd.f32 %v5993, %v6041
        %v6043 = vpop.f32.mrb[0].mxu0
        %v6044 = vadd.f32 %v5995, %v6043
        %v6045 = vpop.f32.mrb[0].mxu0
        %v6046 = vadd.f32 %v5997, %v6045
        %6047 = vmatprep.mubr.bf16.mxu0 0
        %6048 = vmatmul.mubr.bf16.gmra.mrb[0].mxu0 %v5856
        %v6049 = vpop.f32.mrb[0].mxu0
        %v6050 = vpop.f32.mrb[0].mxu0
        %v6051 = vpop.f32.mrb[0].mxu0
        %v6052 = vpop.f32.mrb[0].mxu0
        %6053 = vdwg.mxu0
        %v6126 = vunpack.c.l.b16 %v5285
        %v6127 = vunpack.c.h.b16 %v5285
        %v6128 = vunpack.c.l.b16 %v5286
        %v6129 = vunpack.c.h.b16 %v5286
        %v6130 = vunpack.c.l.b16 %v5287
        %v6131 = vunpack.c.h.b16 %v5287
        %v6132 = vunpack.c.l.b16 %v5288
        %v6133 = vunpack.c.h.b16 %v5288
        %v6134 = vunpack.c.l.b16 %v5289
        %v6135 = vunpack.c.h.b16 %v5289
        %v6136 = vunpack.c.l.b16 %v5290
        %v6137 = vunpack.c.h.b16 %v5290
        %v6138 = vunpack.c.l.b16 %v5291
        %v6139 = vunpack.c.h.b16 %v5291
        %v6140 = vunpack.c.l.b16 %v5292
        %v6141 = vunpack.c.h.b16 %v5292
        %v6142 = vunpack.c.l.b16 %v5293
        %v6143 = vunpack.c.h.b16 %v5293
        %v6144 = vunpack.c.l.b16 %v5294
        %v6145 = vunpack.c.h.b16 %v5294
        %v6146 = vunpack.c.l.b16 %v5295
        %v6147 = vunpack.c.h.b16 %v5295
        %v6148 = vunpack.c.l.b16 %v5296
        %v6149 = vunpack.c.h.b16 %v5296
        %v6150 = vunpack.c.l.b16 %v5297
        %v6151 = vunpack.c.h.b16 %v5297
        %v6152 = vunpack.c.l.b16 %v5298
        %v6153 = vunpack.c.h.b16 %v5298
        %v6154 = vunpack.c.l.b16 %v5299
        %v6155 = vunpack.c.h.b16 %v5299
        %v6156 = vunpack.c.l.b16 %v5300
        %v6157 = vunpack.c.h.b16 %v5300
        %v6158 = vunpack.c.l.b16 %v5301
        %v6159 = vunpack.c.h.b16 %v5301
        %v6160 = vunpack.c.l.b16 %v5302
        %v6161 = vunpack.c.h.b16 %v5302
        %v6162 = vunpack.c.l.b16 %v5303
        %v6163 = vunpack.c.h.b16 %v5303
        %v6164 = vunpack.c.l.b16 %v5304
        %v6165 = vunpack.c.h.b16 %v5304
        %v6166 = vunpack.c.l.b16 %v5305
        %v6167 = vunpack.c.h.b16 %v5305
        %v6168 = vunpack.c.l.b16 %v5306
        %v6169 = vunpack.c.h.b16 %v5306
        %v6170 = vunpack.c.l.b16 %v5307
        %v6171 = vunpack.c.h.b16 %v5307
        %v6172 = vunpack.c.l.b16 %v5308
        %v6173 = vunpack.c.h.b16 %v5308
        %v6174 = vunpack.c.l.b16 %v5309
        %v6175 = vunpack.c.h.b16 %v5309
        %v6176 = vunpack.c.l.b16 %v5310
        %v6177 = vunpack.c.h.b16 %v5310
        %v6178 = vunpack.c.l.b16 %v5311
        %v6179 = vunpack.c.h.b16 %v5311
        %v6180 = vunpack.c.l.b16 %v5312
        %v6181 = vunpack.c.h.b16 %v5312
        %v6182 = vunpack.c.l.b16 %v5313
        %v6183 = vunpack.c.h.b16 %v5313
        %v6184 = vunpack.c.l.b16 %v5314
        %v6185 = vunpack.c.h.b16 %v5314
        %v6186 = vunpack.c.l.b16 %v5315
        %v6187 = vunpack.c.h.b16 %v5315
        %v6188 = vunpack.c.l.b16 %v5316
        %v6189 = vunpack.c.h.b16 %v5316
        %v6190 = vunpack.c.l.b16 %v5317
        %v6191 = vunpack.c.h.b16 %v5317
        %v6192 = vunpack.c.l.b16 %v5318
        %v6193 = vunpack.c.h.b16 %v5318
        %v6194 = vunpack.c.l.b16 %v5319
        %v6195 = vunpack.c.h.b16 %v5319
        %v6196 = vunpack.c.l.b16 %v5320
        %v6197 = vunpack.c.h.b16 %v5320
        %v6198 = vunpack.c.l.b16 %v5321
        %v6199 = vunpack.c.h.b16 %v5321
        %v6200 = vunpack.c.l.b16 %v5322
        %v6201 = vunpack.c.h.b16 %v5322
        %v6202 = vunpack.c.l.b16 %v5323
        %v6203 = vunpack.c.h.b16 %v5323
        %v6204 = vunpack.c.l.b16 %v5324
        %v6205 = vunpack.c.h.b16 %v5324
        %v6206 = vunpack.c.l.b16 %v5325
        %v6207 = vunpack.c.h.b16 %v5325
        %v6208 = vunpack.c.l.b16 %v5326
        %v6209 = vunpack.c.h.b16 %v5326
        %v6210 = vunpack.c.l.b16 %v5327
        %v6211 = vunpack.c.h.b16 %v5327
        %v6212 = vunpack.c.l.b16 %v5328
        %v6213 = vunpack.c.h.b16 %v5328
        %v6214 = vunpack.c.l.b16 %v5329
        %v6215 = vunpack.c.h.b16 %v5329
        %v6216 = vunpack.c.l.b16 %v5330
        %v6217 = vunpack.c.h.b16 %v5330
        %v6218 = vunpack.c.l.b16 %v5331
        %v6219 = vunpack.c.h.b16 %v5331
        %v6220 = vunpack.c.l.b16 %v5332
        %v6221 = vunpack.c.h.b16 %v5332
        %v6222 = vunpack.c.l.b16 %v5333
        %v6223 = vunpack.c.h.b16 %v5333
        %v6224 = vunpack.c.l.b16 %v5334
        %v6225 = vunpack.c.h.b16 %v5334
        %v6226 = vunpack.c.l.b16 %v5335
        %v6227 = vunpack.c.h.b16 %v5335
        %v6228 = vunpack.c.l.b16 %v5336
        %v6229 = vunpack.c.h.b16 %v5336
        %v6230 = vunpack.c.l.b16 %v5337
        %v6231 = vunpack.c.h.b16 %v5337
        %v6232 = vunpack.c.l.b16 %v5338
        %v6233 = vunpack.c.h.b16 %v5338
        %v6234 = vunpack.c.l.b16 %v5339
        %v6235 = vunpack.c.h.b16 %v5339
        %v6236 = vunpack.c.l.b16 %v5340
        %v6237 = vunpack.c.h.b16 %v5340
        %v6238 = vunpack.c.l.b16 %v5341
        %v6239 = vunpack.c.h.b16 %v5341
        %v6240 = vunpack.c.l.b16 %v5342
        %v6241 = vunpack.c.h.b16 %v5342
        %v6242 = vunpack.c.l.b16 %v5343
        %v6243 = vunpack.c.h.b16 %v5343
        %v6244 = vunpack.c.l.b16 %v5344
        %v6245 = vunpack.c.h.b16 %v5344
        %v6246 = vunpack.c.l.b16 %v5345
        %v6247 = vunpack.c.h.b16 %v5345
        %v6248 = vunpack.c.l.b16 %v5346
        %v6249 = vunpack.c.h.b16 %v5346
        %v6250 = vunpack.c.l.b16 %v5347
        %v6251 = vunpack.c.h.b16 %v5347
        %v6252 = vunpack.c.l.b16 %v5348
        %v6253 = vunpack.c.h.b16 %v5348
        %v6254 = vunpack.c.l.b16 %v5349
        %v6255 = vunpack.c.h.b16 %v5349
        %v6256 = vunpack.c.l.b16 %v5350
        %v6257 = vunpack.c.h.b16 %v5350
        %v6258 = vunpack.c.l.b16 %v5351
        %v6259 = vunpack.c.h.b16 %v5351
        %v6260 = vunpack.c.l.b16 %v5352
        %v6261 = vunpack.c.h.b16 %v5352
        %v6262 = vunpack.c.l.b16 %v5353
        %v6263 = vunpack.c.h.b16 %v5353
        %v6264 = vunpack.c.l.b16 %v5354
        %v6265 = vunpack.c.h.b16 %v5354
        %v6266 = vunpack.c.l.b16 %v5355
        %v6267 = vunpack.c.h.b16 %v5355
        %v6268 = vunpack.c.l.b16 %v5356
        %v6269 = vunpack.c.h.b16 %v5356
        %v6270 = vpack.c.b16 %v6130, %v6126
        %v6271 = vpack.c.b16 %v6131, %v6127
        %v6272 = vpack.c.b16 %v6132, %v6128
        %v6273 = vpack.c.b16 %v6133, %v6129
        %v6274 = vpack.c.b16 %v6138, %v6134
        %v6275 = vpack.c.b16 %v6139, %v6135
        %v6276 = vpack.c.b16 %v6140, %v6136
        %v6277 = vpack.c.b16 %v6141, %v6137
        %v6278 = vpack.c.b16 %v6146, %v6142
        %v6279 = vpack.c.b16 %v6147, %v6143
        %v6280 = vpack.c.b16 %v6148, %v6144
        %v6281 = vpack.c.b16 %v6149, %v6145
        %v6282 = vpack.c.b16 %v6154, %v6150
        %v6283 = vpack.c.b16 %v6155, %v6151
        %v6284 = vpack.c.b16 %v6156, %v6152
        %v6285 = vpack.c.b16 %v6157, %v6153
        %v6286 = vpack.c.b16 %v6162, %v6158
        %v6287 = vpack.c.b16 %v6163, %v6159
        %v6288 = vpack.c.b16 %v6164, %v6160
        %v6289 = vpack.c.b16 %v6165, %v6161
        %v6290 = vpack.c.b16 %v6170, %v6166
        %v6291 = vpack.c.b16 %v6171, %v6167
        %v6292 = vpack.c.b16 %v6172, %v6168
        %v6293 = vpack.c.b16 %v6173, %v6169
        %v6294 = vpack.c.b16 %v6178, %v6174
        %v6295 = vpack.c.b16 %v6179, %v6175
        %v6296 = vpack.c.b16 %v6180, %v6176
        %v6297 = vpack.c.b16 %v6181, %v6177
        %v6298 = vpack.c.b16 %v6186, %v6182
        %v6299 = vpack.c.b16 %v6187, %v6183
        %v6300 = vpack.c.b16 %v6188, %v6184
        %v6301 = vpack.c.b16 %v6189, %v6185
        %v6302 = vpack.c.b16 %v6194, %v6190
        %v6303 = vpack.c.b16 %v6195, %v6191
        %v6304 = vpack.c.b16 %v6196, %v6192
        %v6305 = vpack.c.b16 %v6197, %v6193
        %v6306 = vpack.c.b16 %v6202, %v6198
        %v6307 = vpack.c.b16 %v6203, %v6199
        %v6308 = vpack.c.b16 %v6204, %v6200
        %v6309 = vpack.c.b16 %v6205, %v6201
        %v6310 = vpack.c.b16 %v6210, %v6206
        %v6311 = vpack.c.b16 %v6211, %v6207
        %v6312 = vpack.c.b16 %v6212, %v6208
        %v6313 = vpack.c.b16 %v6213, %v6209
        %v6314 = vpack.c.b16 %v6218, %v6214
        %v6315 = vpack.c.b16 %v6219, %v6215
        %v6316 = vpack.c.b16 %v6220, %v6216
        %v6317 = vpack.c.b16 %v6221, %v6217
        %v6318 = vpack.c.b16 %v6226, %v6222
        %v6319 = vpack.c.b16 %v6227, %v6223
        %v6320 = vpack.c.b16 %v6228, %v6224
        %v6321 = vpack.c.b16 %v6229, %v6225
        %v6322 = vpack.c.b16 %v6234, %v6230
        %v6323 = vpack.c.b16 %v6235, %v6231
        %v6324 = vpack.c.b16 %v6236, %v6232
        %v6325 = vpack.c.b16 %v6237, %v6233
        %v6326 = vpack.c.b16 %v6242, %v6238
        %v6327 = vpack.c.b16 %v6243, %v6239
        %v6328 = vpack.c.b16 %v6244, %v6240
        %v6329 = vpack.c.b16 %v6245, %v6241
        %v6330 = vpack.c.b16 %v6250, %v6246
        %v6331 = vpack.c.b16 %v6251, %v6247
        %v6332 = vpack.c.b16 %v6252, %v6248
        %v6333 = vpack.c.b16 %v6253, %v6249
        %v6334 = vpack.c.b16 %v6258, %v6254
        %v6335 = vpack.c.b16 %v6259, %v6255
        %v6336 = vpack.c.b16 %v6260, %v6256
        %v6337 = vpack.c.b16 %v6261, %v6257
        %v6338 = vpack.c.b16 %v6266, %v6262
        %v6339 = vpack.c.b16 %v6267, %v6263
        %v6340 = vpack.c.b16 %v6268, %v6264
        %v6341 = vpack.c.b16 %v6269, %v6265
        %v6415 = vsel %vm344, %v5281, 0
        %v6418 = vsel %vm344, %v5284, 0
        %6420 = vmatprep.subr.bf16.mxu0 %v6271
        %6421 = vmatpush1.bf16.msra.mxu0 %v6270
        %6422 = vmatprep.subr.bf16.mxu0 %v6275
        %6423 = vmatpush1.bf16.msra.mxu0 %v6274
        %6424 = vmatprep.subr.bf16.mxu0 %v6279
        %6425 = vmatpush1.bf16.msra.mxu0 %v6278
        %6426 = vmatprep.subr.bf16.mxu0 %v6283
        %6427 = vmatpush1.bf16.msra.mxu0 %v6282
        %6428 = vmatprep.subr.bf16.mxu0 %v6287
        %6429 = vmatpush1.bf16.msra.mxu0 %v6286
        %6430 = vmatprep.subr.bf16.mxu0 %v6291
        %6431 = vmatpush1.bf16.msra.mxu0 %v6290
        %6432 = vmatprep.subr.bf16.mxu0 %v6295
        %6433 = vmatpush1.bf16.msra.mxu0 %v6294
        %6434 = vmatprep.subr.bf16.mxu0 %v6299
        %6435 = vmatpush1.bf16.msra.mxu0 %v6298
        %6436 = vmatprep.subr.bf16.mxu0 %v6303
        %6437 = vmatpush1.bf16.msra.mxu0 %v6302
        %6438 = vmatprep.subr.bf16.mxu0 %v6307
        %6439 = vmatpush1.bf16.msra.mxu0 %v6306
        %6440 = vmatprep.subr.bf16.mxu0 %v6311
        %6441 = vmatpush1.bf16.msra.mxu0 %v6310
        %6442 = vmatprep.subr.bf16.mxu0 %v6315
        %6443 = vmatpush1.bf16.msra.mxu0 %v6314
        %6444 = vmatprep.subr.bf16.mxu0 %v6319
        %6445 = vmatpush1.bf16.msra.mxu0 %v6318
        %6446 = vmatprep.subr.bf16.mxu0 %v6323
        %6447 = vmatpush1.bf16.msra.mxu0 %v6322
        %6448 = vmatprep.subr.bf16.mxu0 %v6327
        %6449 = vmatpush1.bf16.msra.mxu0 %v6326
        %6450 = vmatprep.subr.bf16.mxu0 %v6331
        %6451 = vmatpush1.bf16.msra.mxu0 %v6330
        %6452 = vmatprep.mubr.bf16.mxu0 %v5280
        %6453 = vmatmul.mubr.bf16.gmra.mrb[0].mxu0 %v5279
        %v6454 = vpop.f32.mrb[0].mxu0
        %v6455 = vadd.f32 %v5942, %v6454
        %v6456 = vpop.f32.mrb[0].mxu0
        %v6457 = vadd.f32 %v5944, %v6456
        %v6458 = vpop.f32.mrb[0].mxu0
        %v6459 = vadd.f32 %v5946, %v6458
        %v6460 = vpop.f32.mrb[0].mxu0
        %v6461 = vadd.f32 %v5948, %v6460
        %6462 = vmatprep.mubr.bf16.mxu0 %v5283
        %6463 = vmatmul.mubr.bf16.gmra.mrb[0].mxu0 %v5282
        %v6464 = vpop.f32.mrb[0].mxu0
        %v6465 = vpop.f32.mrb[0].mxu0
        %v6466 = vpop.f32.mrb[0].mxu0
        %v6467 = vpop.f32.mrb[0].mxu0
        %6468 = vdwg.mxu0
        %6469 = vmatprep.subr.bf16.mxu0 %v6335
        %6470 = vmatpush1.bf16.msra.mxu0 %v6334
        %6471 = vmatprep.subr.bf16.mxu0 %v6339
        %6472 = vmatpush1.bf16.msra.mxu0 %v6338
        %6473 = vmatprep.subr.bf16.mxu0 0
        %6474 = vmatpush1.bf16.msra.mxu0 0
        %6475 = vmatprep.subr.bf16.mxu0 0
        %6476 = vmatpush1.bf16.msra.mxu0 0
        %6477 = vmatprep.subr.bf16.mxu0 0
        %6478 = vmatpush1.bf16.msra.mxu0 0
        %6479 = vmatprep.subr.bf16.mxu0 0
        %6480 = vmatpush1.bf16.msra.mxu0 0
        %6481 = vmatprep.subr.bf16.mxu0 0
        %6482 = vmatpush1.bf16.msra.mxu0 0
        %6483 = vmatprep.subr.bf16.mxu0 0
        %6484 = vmatpush1.bf16.msra.mxu0 0
        %6485 = vmatprep.subr.bf16.mxu0 0
        %6486 = vmatpush1.bf16.msra.mxu0 0
        %6487 = vmatprep.subr.bf16.mxu0 0
        %6488 = vmatpush1.bf16.msra.mxu0 0
        %6489 = vmatprep.subr.bf16.mxu0 0
        %6490 = vmatpush1.bf16.msra.mxu0 0
        %6491 = vmatprep.subr.bf16.mxu0 0
        %6492 = vmatpush1.bf16.msra.mxu0 0
        %6493 = vmatprep.subr.bf16.mxu0 0
        %6494 = vmatpush1.bf16.msra.mxu0 0
        %6495 = vmatprep.subr.bf16.mxu0 0
        %6496 = vmatpush1.bf16.msra.mxu0 0
        %6497 = vmatprep.subr.bf16.mxu0 0
        %6498 = vmatpush1.bf16.msra.mxu0 0
        %6499 = vmatprep.subr.bf16.mxu0 0
        %6500 = vmatpush1.bf16.msra.mxu0 0
        %6501 = vmatprep.mubr.bf16.mxu0 0
        %6502 = vmatmul.mubr.bf16.gmra.mrb[0].mxu0 %v6415
        %v6503 = vpop.f32.mrb[0].mxu0
        %v6504 = vadd.f32 %v6455, %v6503
        %v6505 = vpop.f32.mrb[0].mxu0
        %v6506 = vadd.f32 %v6457, %v6505
        %v6507 = vpop.f32.mrb[0].mxu0
        %v6508 = vadd.f32 %v6459, %v6507
        %v6509 = vpop.f32.mrb[0].mxu0
        %v6510 = vadd.f32 %v6461, %v6509
        %6511 = vmatprep.mubr.bf16.mxu0 0
        %6512 = vmatmul.mubr.bf16.gmra.mrb[0].mxu0 %v6418
        %v6513 = vpop.f32.mrb[0].mxu0
        %v6514 = vpop.f32.mrb[0].mxu0
        %v6515 = vpop.f32.mrb[0].mxu0
        %v6516 = vpop.f32.mrb[0].mxu0
        %6517 = vdwg.mxu0
        %6518 = vmatprep.subr.bf16.mxu0 %v6273
        %6519 = vmatpush1.bf16.msra.mxu0 %v6272
        %6520 = vmatprep.subr.bf16.mxu0 %v6277
        %6521 = vmatpush1.bf16.msra.mxu0 %v6276
        %6522 = vmatprep.subr.bf16.mxu0 %v6281
        %6523 = vmatpush1.bf16.msra.mxu0 %v6280
        %6524 = vmatprep.subr.bf16.mxu0 %v6285
        %6525 = vmatpush1.bf16.msra.mxu0 %v6284
        %6526 = vmatprep.subr.bf16.mxu0 %v6289
        %6527 = vmatpush1.bf16.msra.mxu0 %v6288
        %6528 = vmatprep.subr.bf16.mxu0 %v6293
        %6529 = vmatpush1.bf16.msra.mxu0 %v6292
        %6530 = vmatprep.subr.bf16.mxu0 %v6297
        %6531 = vmatpush1.bf16.msra.mxu0 %v6296
        %6532 = vmatprep.subr.bf16.mxu0 %v6301
        %6533 = vmatpush1.bf16.msra.mxu0 %v6300
        %6534 = vmatprep.subr.bf16.mxu0 %v6305
        %6535 = vmatpush1.bf16.msra.mxu0 %v6304
        %6536 = vmatprep.subr.bf16.mxu0 %v6309
        %6537 = vmatpush1.bf16.msra.mxu0 %v6308
        %6538 = vmatprep.subr.bf16.mxu0 %v6313
        %6539 = vmatpush1.bf16.msra.mxu0 %v6312
        %6540 = vmatprep.subr.bf16.mxu0 %v6317
        %6541 = vmatpush1.bf16.msra.mxu0 %v6316
        %6542 = vmatprep.subr.bf16.mxu0 %v6321
        %6543 = vmatpush1.bf16.msra.mxu0 %v6320
        %6544 = vmatprep.subr.bf16.mxu0 %v6325
        %6545 = vmatpush1.bf16.msra.mxu0 %v6324
        %6546 = vmatprep.subr.bf16.mxu0 %v6329
        %6547 = vmatpush1.bf16.msra.mxu0 %v6328
        %6548 = vmatprep.subr.bf16.mxu0 %v6333
        %6549 = vmatpush1.bf16.msra.mxu0 %v6332
        %6550 = vmatprep.mubr.bf16.mxu0 %v5280
        %6551 = vmatmul.mubr.bf16.gmra.mrb[0].mxu0 %v5279
        %v6552 = vpop.f32.mrb[0].mxu0
        %v6553 = vadd.f32 %v6040, %v6552
        %v6554 = vpop.f32.mrb[0].mxu0
        %v6555 = vadd.f32 %v6042, %v6554
        %v6556 = vpop.f32.mrb[0].mxu0
        %v6557 = vadd.f32 %v6044, %v6556
        %v6558 = vpop.f32.mrb[0].mxu0
        %v6559 = vadd.f32 %v6046, %v6558
        %6560 = vmatprep.mubr.bf16.mxu0 %v5283
        %6561 = vmatmul.mubr.bf16.gmra.mrb[0].mxu0 %v5282
        %v6562 = vpop.f32.mrb[0].mxu0
        %v6563 = vpop.f32.mrb[0].mxu0
        %v6564 = vpop.f32.mrb[0].mxu0
        %v6565 = vpop.f32.mrb[0].mxu0
        %6566 = vdwg.mxu0
        %6567 = vmatprep.subr.bf16.mxu0 %v6337
        %6568 = vmatpush1.bf16.msra.mxu0 %v6336
        %6569 = vmatprep.subr.bf16.mxu0 %v6341
        %6570 = vmatpush1.bf16.msra.mxu0 %v6340
        %6571 = vmatprep.subr.bf16.mxu0 0
        %6572 = vmatpush1.bf16.msra.mxu0 0
        %6573 = vmatprep.subr.bf16.mxu0 0
        %6574 = vmatpush1.bf16.msra.mxu0 0
        %6575 = vmatprep.subr.bf16.mxu0 0
        %6576 = vmatpush1.bf16.msra.mxu0 0
        %6577 = vmatprep.subr.bf16.mxu0 0
        %6578 = vmatpush1.bf16.msra.mxu0 0
        %6579 = vmatprep.subr.bf16.mxu0 0
        %6580 = vmatpush1.bf16.msra.mxu0 0
        %6581 = vmatprep.subr.bf16.mxu0 0
        %6582 = vmatpush1.bf16.msra.mxu0 0
        %6583 = vmatprep.subr.bf16.mxu0 0
        %6584 = vmatpush1.bf16.msra.mxu0 0
        %6585 = vmatprep.subr.bf16.mxu0 0
        %6586 = vmatpush1.bf16.msra.mxu0 0
        %6587 = vmatprep.subr.bf16.mxu0 0
        %6588 = vmatpush1.bf16.msra.mxu0 0
        %6589 = vmatprep.subr.bf16.mxu0 0
        %6590 = vmatpush1.bf16.msra.mxu0 0
        %6591 = vmatprep.subr.bf16.mxu0 0
        %6592 = vmatpush1.bf16.msra.mxu0 0
        %6593 = vmatprep.subr.bf16.mxu0 0
        %6594 = vmatpush1.bf16.msra.mxu0 0
        %6595 = vmatprep.subr.bf16.mxu0 0
        %6596 = vmatpush1.bf16.msra.mxu0 0
        %6597 = vmatprep.subr.bf16.mxu0 0
        %6598 = vmatpush1.bf16.msra.mxu0 0
        %6599 = vmatprep.mubr.bf16.mxu0 0
        %6600 = vmatmul.mubr.bf16.gmra.mrb[0].mxu0 %v6415
        %v6601 = vpop.f32.mrb[0].mxu0
        %v6602 = vadd.f32 %v6553, %v6601
        %v6603 = vpop.f32.mrb[0].mxu0
        %v6604 = vadd.f32 %v6555, %v6603
        %v6605 = vpop.f32.mrb[0].mxu0
        %v6606 = vadd.f32 %v6557, %v6605
        %v6607 = vpop.f32.mrb[0].mxu0
        %v6608 = vadd.f32 %v6559, %v6607
        %6609 = vmatprep.mubr.bf16.mxu0 0
        %6610 = vmatmul.mubr.bf16.gmra.mrb[0].mxu0 %v6418
        %v6611 = vpop.f32.mrb[0].mxu0
        %v6612 = vpop.f32.mrb[0].mxu0
        %v6613 = vpop.f32.mrb[0].mxu0
        %v6614 = vpop.f32.mrb[0].mxu0
        %6615 = vdwg.mxu0
        %v6616 = vld [vmem:[#allocation3] sm:$0xfc]
        %v6617 = vld [vmem:[#allocation3 + $0x8] sm:$0xfc]
        %v6618 = vld [vmem:[#allocation3 + $0x10] sm:$0xfc]
        %v6619 = vld [vmem:[#allocation3 + $0x30] sm:$0xf]
        %v6620 = vld [vmem:[#allocation3 + $0x38] sm:$0xf]
        %v6621 = vld [vmem:[#allocation3 + $0x40] sm:$0xf]
        %v6622 = vpack.c.bf16 %v5273, %v6616
        %v6623 = vpack.c.bf16 %v5274, %v6617
        %v6624 = vpack.c.bf16 %v5275, %v6618
        %v6625 = vpack.c.bf16 %v6619, %v6619
        %v6626 = vpack.c.bf16 %v6620, %v6620
        %v6627 = vpack.c.bf16 %v6621, %v6621
        %s6628 = scalar_lea.vmem [#allocation9], 1152
        %v6629 = vld [vmem:[%s6628] sm:$0xff]
        %v6630 = vld [vmem:[%s6628 + $0x8] sm:$0xff]
        %v6631 = vld [vmem:[%s6628 + $0x10] sm:$0xff]
        %v6632 = vld [vmem:[%s6628 + $0x18] sm:$0xff]
        %v6633 = vld [vmem:[%s6628 + $0x20] sm:$0xff]
        %v6634 = vld [vmem:[%s6628 + $0x28] sm:$0xff]
        %v6635 = vld [vmem:[%s6628 + $0x30] sm:$0xff]
        %v6636 = vld [vmem:[%s6628 + $0x38] sm:$0xff]
        %v6637 = vld [vmem:[%s6628 + $0x40] sm:$0xff]
        %v6638 = vld [vmem:[%s6628 + $0x48] sm:$0xff]
        %v6639 = vld [vmem:[%s6628 + $0x50] sm:$0xff]
        %v6640 = vld [vmem:[%s6628 + $0x58] sm:$0xff]
        %v6641 = vld [vmem:[%s6628 + $0x60] sm:$0xff]
        %v6642 = vld [vmem:[%s6628 + $0x68] sm:$0xff]
        %v6643 = vld [vmem:[%s6628 + $0x70] sm:$0xff]
        %v6644 = vld [vmem:[%s6628 + $0x78] sm:$0xff]
        %v6645 = vld [vmem:[%s6628 + $0x80] sm:$0xff]
        %v6646 = vld [vmem:[%s6628 + $0x88] sm:$0xff]
        %v6647 = vld [vmem:[%s6628 + $0x90] sm:$0xff]
        %v6648 = vld [vmem:[%s6628 + $0x98] sm:$0xff]
        %v6649 = vld [vmem:[%s6628 + $0xa0] sm:$0xff]
        %v6650 = vld [vmem:[%s6628 + $0xa8] sm:$0xff]
        %v6651 = vld [vmem:[%s6628 + $0xb0] sm:$0xff]
        %v6652 = vld [vmem:[%s6628 + $0xb8] sm:$0xff]
        %v6653 = vld [vmem:[%s6628 + $0xc0] sm:$0xff]
        %v6654 = vld [vmem:[%s6628 + $0xc8] sm:$0xff]
        %v6655 = vld [vmem:[%s6628 + $0xd0] sm:$0xff]
        %v6656 = vld [vmem:[%s6628 + $0xd8] sm:$0xff]
        %v6657 = vld [vmem:[%s6628 + $0xe0] sm:$0xff]
        %v6658 = vld [vmem:[%s6628 + $0xe8] sm:$0xff]
        %v6659 = vld [vmem:[%s6628 + $0xf0] sm:$0xff]
        %v6660 = vld [vmem:[%s6628 + $0xf8] sm:$0xff]
        %v6661 = vld [vmem:[%s6628 + $0x100] sm:$0xff]
        %v6662 = vld [vmem:[%s6628 + $0x108] sm:$0xff]
        %v6663 = vld [vmem:[%s6628 + $0x110] sm:$0xff]
        %v6664 = vld [vmem:[%s6628 + $0x118] sm:$0xff]
        %v6665 = vld [vmem:[%s6628 + $0x120] sm:$0xff]
        %v6666 = vld [vmem:[%s6628 + $0x128] sm:$0xff]
        %v6667 = vld [vmem:[%s6628 + $0x130] sm:$0xff]
        %v6668 = vld [vmem:[%s6628 + $0x138] sm:$0xff]
        %v6669 = vld [vmem:[%s6628 + $0x140] sm:$0xff]
        %v6670 = vld [vmem:[%s6628 + $0x148] sm:$0xff]
        %v6671 = vld [vmem:[%s6628 + $0x150] sm:$0xff]
        %v6672 = vld [vmem:[%s6628 + $0x158] sm:$0xff]
        %v6673 = vld [vmem:[%s6628 + $0x160] sm:$0xff]
        %v6674 = vld [vmem:[%s6628 + $0x168] sm:$0xff]
        %v6675 = vld [vmem:[%s6628 + $0x170] sm:$0xff]
        %v6676 = vld [vmem:[%s6628 + $0x178] sm:$0xff]
        %v6677 = vld [vmem:[%s6628 + $0x180] sm:$0xff]
        %v6678 = vld [vmem:[%s6628 + $0x188] sm:$0xff]
        %v6679 = vld [vmem:[%s6628 + $0x190] sm:$0xff]
        %v6680 = vld [vmem:[%s6628 + $0x198] sm:$0xff]
        %v6681 = vld [vmem:[%s6628 + $0x1a0] sm:$0xff]
        %v6682 = vld [vmem:[%s6628 + $0x1a8] sm:$0xff]
        %v6683 = vld [vmem:[%s6628 + $0x1b0] sm:$0xff]
        %v6684 = vld [vmem:[%s6628 + $0x1b8] sm:$0xff]
        %v6685 = vld [vmem:[%s6628 + $0x1c0] sm:$0xff]
        %v6686 = vld [vmem:[%s6628 + $0x1c8] sm:$0xff]
        %v6687 = vld [vmem:[%s6628 + $0x1d0] sm:$0xff]
        %v6688 = vld [vmem:[%s6628 + $0x1d8] sm:$0xff]
        %v6689 = vld [vmem:[%s6628 + $0x1e0] sm:$0xff]
        %v6690 = vld [vmem:[%s6628 + $0x1e8] sm:$0xff]
        %v6691 = vld [vmem:[%s6628 + $0x1f0] sm:$0xff]
        %v6692 = vld [vmem:[%s6628 + $0x1f8] sm:$0xff]
        %v6693 = vld [vmem:[%s6628 + $0x200] sm:$0xff]
        %v6694 = vld [vmem:[%s6628 + $0x208] sm:$0xff]
        %v6695 = vld [vmem:[%s6628 + $0x210] sm:$0xff]
        %v6696 = vld [vmem:[%s6628 + $0x218] sm:$0xff]
        %v6697 = vld [vmem:[%s6628 + $0x220] sm:$0xff]
        %v6698 = vld [vmem:[%s6628 + $0x228] sm:$0xff]
        %v6699 = vld [vmem:[%s6628 + $0x230] sm:$0xff]
        %v6700 = vld [vmem:[%s6628 + $0x238] sm:$0xff]
        %vm6707 = vcmask 1046528
        %v6708 = vrot.slane %v6622, 1
        %v6709 = vrot.slane %v6625, 1
        %v6710 = vsel %vm6707, %v6708, %v6709
        %v6711 = vrot.slane %v6623, 1
        %v6712 = vrot.slane %v6626, 1
        %v6713 = vsel %vm6707, %v6711, %v6712
        %v6714 = vrot.slane %v6624, 1
        %v6715 = vrot.slane %v6627, 1
        %v6716 = vsel %vm6707, %v6714, %v6715
        %v6793 = vunpack.c.l.b16 %v6629
        %v6794 = vunpack.c.h.b16 %v6629
        %v6795 = vunpack.c.l.b16 %v6630
        %v6796 = vunpack.c.h.b16 %v6630
        %v6797 = vunpack.c.l.b16 %v6631
        %v6798 = vunpack.c.h.b16 %v6631
        %v6799 = vunpack.c.l.b16 %v6632
        %v6800 = vunpack.c.h.b16 %v6632
        %v6801 = vunpack.c.l.b16 %v6633
        %v6802 = vunpack.c.h.b16 %v6633
        %v6803 = vunpack.c.l.b16 %v6634
        %v6804 = vunpack.c.h.b16 %v6634
        %v6805 = vunpack.c.l.b16 %v6635
        %v6806 = vunpack.c.h.b16 %v6635
        %v6807 = vunpack.c.l.b16 %v6636
        %v6808 = vunpack.c.h.b16 %v6636
        %v6809 = vunpack.c.l.b16 %v6637
        %v6810 = vunpack.c.h.b16 %v6637
        %v6811 = vunpack.c.l.b16 %v6638
        %v6812 = vunpack.c.h.b16 %v6638
        %v6813 = vunpack.c.l.b16 %v6639
        %v6814 = vunpack.c.h.b16 %v6639
        %v6815 = vunpack.c.l.b16 %v6640
        %v6816 = vunpack.c.h.b16 %v6640
        %v6817 = vunpack.c.l.b16 %v6641
        %v6818 = vunpack.c.h.b16 %v6641
        %v6819 = vunpack.c.l.b16 %v6642
        %v6820 = vunpack.c.h.b16 %v6642
        %v6821 = vunpack.c.l.b16 %v6643
        %v6822 = vunpack.c.h.b16 %v6643
        %v6823 = vunpack.c.l.b16 %v6644
        %v6824 = vunpack.c.h.b16 %v6644
        %v6825 = vunpack.c.l.b16 %v6645
        %v6826 = vunpack.c.h.b16 %v6645
        %v6827 = vunpack.c.l.b16 %v6646
        %v6828 = vunpack.c.h.b16 %v6646
        %v6829 = vunpack.c.l.b16 %v6647
        %v6830 = vunpack.c.h.b16 %v6647
        %v6831 = vunpack.c.l.b16 %v6648
        %v6832 = vunpack.c.h.b16 %v6648
        %v6833 = vunpack.c.l.b16 %v6649
        %v6834 = vunpack.c.h.b16 %v6649
        %v6835 = vunpack.c.l.b16 %v6650
        %v6836 = vunpack.c.h.b16 %v6650
        %v6837 = vunpack.c.l.b16 %v6651
        %v6838 = vunpack.c.h.b16 %v6651
        %v6839 = vunpack.c.l.b16 %v6652
        %v6840 = vunpack.c.h.b16 %v6652
        %v6841 = vunpack.c.l.b16 %v6653
        %v6842 = vunpack.c.h.b16 %v6653
        %v6843 = vunpack.c.l.b16 %v6654
        %v6844 = vunpack.c.h.b16 %v6654
        %v6845 = vunpack.c.l.b16 %v6655
        %v6846 = vunpack.c.h.b16 %v6655
        %v6847 = vunpack.c.l.b16 %v6656
        %v6848 = vunpack.c.h.b16 %v6656
        %v6849 = vunpack.c.l.b16 %v6657
        %v6850 = vunpack.c.h.b16 %v6657
        %v6851 = vunpack.c.l.b16 %v6658
        %v6852 = vunpack.c.h.b16 %v6658
        %v6853 = vunpack.c.l.b16 %v6659
        %v6854 = vunpack.c.h.b16 %v6659
        %v6855 = vunpack.c.l.b16 %v6660
        %v6856 = vunpack.c.h.b16 %v6660
        %v6857 = vunpack.c.l.b16 %v6661
        %v6858 = vunpack.c.h.b16 %v6661
        %v6859 = vunpack.c.l.b16 %v6662
        %v6860 = vunpack.c.h.b16 %v6662
        %v6861 = vunpack.c.l.b16 %v6663
        %v6862 = vunpack.c.h.b16 %v6663
        %v6863 = vunpack.c.l.b16 %v6664
        %v6864 = vunpack.c.h.b16 %v6664
        %v6865 = vunpack.c.l.b16 %v6665
        %v6866 = vunpack.c.h.b16 %v6665
        %v6867 = vunpack.c.l.b16 %v6666
        %v6868 = vunpack.c.h.b16 %v6666
        %v6869 = vunpack.c.l.b16 %v6667
        %v6870 = vunpack.c.h.b16 %v6667
        %v6871 = vunpack.c.l.b16 %v6668
        %v6872 = vunpack.c.h.b16 %v6668
        %v6873 = vunpack.c.l.b16 %v6669
        %v6874 = vunpack.c.h.b16 %v6669
        %v6875 = vunpack.c.l.b16 %v6670
        %v6876 = vunpack.c.h.b16 %v6670
        %v6877 = vunpack.c.l.b16 %v6671
        %v6878 = vunpack.c.h.b16 %v6671
        %v6879 = vunpack.c.l.b16 %v6672
        %v6880 = vunpack.c.h.b16 %v6672
        %v6881 = vunpack.c.l.b16 %v6673
        %v6882 = vunpack.c.h.b16 %v6673
        %v6883 = vunpack.c.l.b16 %v6674
        %v6884 = vunpack.c.h.b16 %v6674
        %v6885 = vunpack.c.l.b16 %v6675
        %v6886 = vunpack.c.h.b16 %v6675
        %v6887 = vunpack.c.l.b16 %v6676
        %v6888 = vunpack.c.h.b16 %v6676
        %v6889 = vunpack.c.l.b16 %v6677
        %v6890 = vunpack.c.h.b16 %v6677
        %v6891 = vunpack.c.l.b16 %v6678
        %v6892 = vunpack.c.h.b16 %v6678
        %v6893 = vunpack.c.l.b16 %v6679
        %v6894 = vunpack.c.h.b16 %v6679
        %v6895 = vunpack.c.l.b16 %v6680
        %v6896 = vunpack.c.h.b16 %v6680
        %v6897 = vunpack.c.l.b16 %v6681
        %v6898 = vunpack.c.h.b16 %v6681
        %v6899 = vunpack.c.l.b16 %v6682
        %v6900 = vunpack.c.h.b16 %v6682
        %v6901 = vunpack.c.l.b16 %v6683
        %v6902 = vunpack.c.h.b16 %v6683
        %v6903 = vunpack.c.l.b16 %v6684
        %v6904 = vunpack.c.h.b16 %v6684
        %v6905 = vunpack.c.l.b16 %v6685
        %v6906 = vunpack.c.h.b16 %v6685
        %v6907 = vunpack.c.l.b16 %v6686
        %v6908 = vunpack.c.h.b16 %v6686
        %v6909 = vunpack.c.l.b16 %v6687
        %v6910 = vunpack.c.h.b16 %v6687
        %v6911 = vunpack.c.l.b16 %v6688
        %v6912 = vunpack.c.h.b16 %v6688
        %v6913 = vunpack.c.l.b16 %v6689
        %v6914 = vunpack.c.h.b16 %v6689
        %v6915 = vunpack.c.l.b16 %v6690
        %v6916 = vunpack.c.h.b16 %v6690
        %v6917 = vunpack.c.l.b16 %v6691
        %v6918 = vunpack.c.h.b16 %v6691
        %v6919 = vunpack.c.l.b16 %v6692
        %v6920 = vunpack.c.h.b16 %v6692
        %v6921 = vunpack.c.l.b16 %v6693
        %v6922 = vunpack.c.h.b16 %v6693
        %v6923 = vunpack.c.l.b16 %v6694
        %v6924 = vunpack.c.h.b16 %v6694
        %v6925 = vunpack.c.l.b16 %v6695
        %v6926 = vunpack.c.h.b16 %v6695
        %v6927 = vunpack.c.l.b16 %v6696
        %v6928 = vunpack.c.h.b16 %v6696
        %v6929 = vunpack.c.l.b16 %v6697
        %v6930 = vunpack.c.h.b16 %v6697
        %v6931 = vunpack.c.l.b16 %v6698
        %v6932 = vunpack.c.h.b16 %v6698
        %v6933 = vunpack.c.l.b16 %v6699
        %v6934 = vunpack.c.h.b16 %v6699
        %v6935 = vunpack.c.l.b16 %v6700
        %v6936 = vunpack.c.h.b16 %v6700
        %v6937 = vpack.c.b16 %v6797, %v6793
        %v6938 = vpack.c.b16 %v6798, %v6794
        %v6939 = vpack.c.b16 %v6799, %v6795
        %v6940 = vpack.c.b16 %v6800, %v6796
        %v6941 = vpack.c.b16 %v6805, %v6801
        %v6942 = vpack.c.b16 %v6806, %v6802
        %v6943 = vpack.c.b16 %v6807, %v6803
        %v6944 = vpack.c.b16 %v6808, %v6804
        %v6945 = vpack.c.b16 %v6813, %v6809
        %v6946 = vpack.c.b16 %v6814, %v6810
        %v6947 = vpack.c.b16 %v6815, %v6811
        %v6948 = vpack.c.b16 %v6816, %v6812
        %v6949 = vpack.c.b16 %v6821, %v6817
        %v6950 = vpack.c.b16 %v6822, %v6818
        %v6951 = vpack.c.b16 %v6823, %v6819
        %v6952 = vpack.c.b16 %v6824, %v6820
        %v6953 = vpack.c.b16 %v6829, %v6825
        %v6954 = vpack.c.b16 %v6830, %v6826
        %v6955 = vpack.c.b16 %v6831, %v6827
        %v6956 = vpack.c.b16 %v6832, %v6828
        %v6957 = vpack.c.b16 %v6837, %v6833
        %v6958 = vpack.c.b16 %v6838, %v6834
        %v6959 = vpack.c.b16 %v6839, %v6835
        %v6960 = vpack.c.b16 %v6840, %v6836
        %v6961 = vpack.c.b16 %v6845, %v6841
        %v6962 = vpack.c.b16 %v6846, %v6842
        %v6963 = vpack.c.b16 %v6847, %v6843
        %v6964 = vpack.c.b16 %v6848, %v6844
        %v6965 = vpack.c.b16 %v6853, %v6849
        %v6966 = vpack.c.b16 %v6854, %v6850
        %v6967 = vpack.c.b16 %v6855, %v6851
        %v6968 = vpack.c.b16 %v6856, %v6852
        %v6969 = vpack.c.b16 %v6861, %v6857
        %v6970 = vpack.c.b16 %v6862, %v6858
        %v6971 = vpack.c.b16 %v6863, %v6859
        %v6972 = vpack.c.b16 %v6864, %v6860
        %v6973 = vpack.c.b16 %v6869, %v6865
        %v6974 = vpack.c.b16 %v6870, %v6866
        %v6975 = vpack.c.b16 %v6871, %v6867
        %v6976 = vpack.c.b16 %v6872, %v6868
        %v6977 = vpack.c.b16 %v6877, %v6873
        %v6978 = vpack.c.b16 %v6878, %v6874
        %v6979 = vpack.c.b16 %v6879, %v6875
        %v6980 = vpack.c.b16 %v6880, %v6876
        %v6981 = vpack.c.b16 %v6885, %v6881
        %v6982 = vpack.c.b16 %v6886, %v6882
        %v6983 = vpack.c.b16 %v6887, %v6883
        %v6984 = vpack.c.b16 %v6888, %v6884
        %v6985 = vpack.c.b16 %v6893, %v6889
        %v6986 = vpack.c.b16 %v6894, %v6890
        %v6987 = vpack.c.b16 %v6895, %v6891
        %v6988 = vpack.c.b16 %v6896, %v6892
        %v6989 = vpack.c.b16 %v6901, %v6897
        %v6990 = vpack.c.b16 %v6902, %v6898
        %v6991 = vpack.c.b16 %v6903, %v6899
        %v6992 = vpack.c.b16 %v6904, %v6900
        %v6993 = vpack.c.b16 %v6909, %v6905
        %v6994 = vpack.c.b16 %v6910, %v6906
        %v6995 = vpack.c.b16 %v6911, %v6907
        %v6996 = vpack.c.b16 %v6912, %v6908
        %v6997 = vpack.c.b16 %v6917, %v6913
        %v6998 = vpack.c.b16 %v6918, %v6914
        %v6999 = vpack.c.b16 %v6919, %v6915
        %v7000 = vpack.c.b16 %v6920, %v6916
        %v7001 = vpack.c.b16 %v6925, %v6921
        %v7002 = vpack.c.b16 %v6926, %v6922
        %v7003 = vpack.c.b16 %v6927, %v6923
        %v7004 = vpack.c.b16 %v6928, %v6924
        %v7005 = vpack.c.b16 %v6933, %v6929
        %v7006 = vpack.c.b16 %v6934, %v6930
        %v7007 = vpack.c.b16 %v6935, %v6931
        %v7008 = vpack.c.b16 %v6936, %v6932
        %v7082 = vsel %vm344, %v6716, 0
        %v7085 = vsel %vm344, %v6715, 0
        %7087 = vmatprep.subr.bf16.mxu0 %v6938
        %7088 = vmatpush1.bf16.msra.mxu0 %v6937
        %7089 = vmatprep.subr.bf16.mxu0 %v6942
        %7090 = vmatpush1.bf16.msra.mxu0 %v6941
        %7091 = vmatprep.subr.bf16.mxu0 %v6946
        %7092 = vmatpush1.bf16.msra.mxu0 %v6945
        %7093 = vmatprep.subr.bf16.mxu0 %v6950
        %7094 = vmatpush1.bf16.msra.mxu0 %v6949
        %7095 = vmatprep.subr.bf16.mxu0 %v6954
        %7096 = vmatpush1.bf16.msra.mxu0 %v6953
        %7097 = vmatprep.subr.bf16.mxu0 %v6958
        %7098 = vmatpush1.bf16.msra.mxu0 %v6957
        %7099 = vmatprep.subr.bf16.mxu0 %v6962
        %7100 = vmatpush1.bf16.msra.mxu0 %v6961
        %7101 = vmatprep.subr.bf16.mxu0 %v6966
        %7102 = vmatpush1.bf16.msra.mxu0 %v6965
        %7103 = vmatprep.subr.bf16.mxu0 %v6970
        %7104 = vmatpush1.bf16.msra.mxu0 %v6969
        %7105 = vmatprep.subr.bf16.mxu0 %v6974
        %7106 = vmatpush1.bf16.msra.mxu0 %v6973
        %7107 = vmatprep.subr.bf16.mxu0 %v6978
        %7108 = vmatpush1.bf16.msra.mxu0 %v6977
        %7109 = vmatprep.subr.bf16.mxu0 %v6982
        %7110 = vmatpush1.bf16.msra.mxu0 %v6981
        %7111 = vmatprep.subr.bf16.mxu0 %v6986
        %7112 = vmatpush1.bf16.msra.mxu0 %v6985
        %7113 = vmatprep.subr.bf16.mxu0 %v6990
        %7114 = vmatpush1.bf16.msra.mxu0 %v6989
        %7115 = vmatprep.subr.bf16.mxu0 %v6994
        %7116 = vmatpush1.bf16.msra.mxu0 %v6993
        %7117 = vmatprep.subr.bf16.mxu0 %v6998
        %7118 = vmatpush1.bf16.msra.mxu0 %v6997
        %7119 = vmatprep.mubr.bf16.mxu0 %v6713
        %7120 = vmatmul.mubr.bf16.gmra.mrb[0].mxu0 %v6710
        %v7121 = vpop.f32.mrb[0].mxu0
        %v7122 = vadd.f32 0.0, %v7121
        %v7123 = vpop.f32.mrb[0].mxu0
        %v7124 = vadd.f32 0.0, %v7123
        %v7125 = vpop.f32.mrb[0].mxu0
        %v7126 = vadd.f32 0.0, %v7125
        %v7127 = vpop.f32.mrb[0].mxu0
        %v7128 = vadd.f32 0.0, %v7127
        %7129 = vmatprep.mubr.bf16.mxu0 %v6712
        %7130 = vmatmul.mubr.bf16.gmra.mrb[0].mxu0 %v6709
        %v7131 = vpop.f32.mrb[0].mxu0
        %v7132 = vpop.f32.mrb[0].mxu0
        %v7133 = vpop.f32.mrb[0].mxu0
        %v7134 = vpop.f32.mrb[0].mxu0
        %7135 = vdwg.mxu0
        %7136 = vmatprep.subr.bf16.mxu0 %v7002
        %7137 = vmatpush1.bf16.msra.mxu0 %v7001
        %7138 = vmatprep.subr.bf16.mxu0 %v7006
        %7139 = vmatpush1.bf16.msra.mxu0 %v7005
        %7140 = vmatprep.subr.bf16.mxu0 0
        %7141 = vmatpush1.bf16.msra.mxu0 0
        %7142 = vmatprep.subr.bf16.mxu0 0
        %7143 = vmatpush1.bf16.msra.mxu0 0
        %7144 = vmatprep.subr.bf16.mxu0 0
        %7145 = vmatpush1.bf16.msra.mxu0 0
        %7146 = vmatprep.subr.bf16.mxu0 0
        %7147 = vmatpush1.bf16.msra.mxu0 0
        %7148 = vmatprep.subr.bf16.mxu0 0
        %7149 = vmatpush1.bf16.msra.mxu0 0
        %7150 = vmatprep.subr.bf16.mxu0 0
        %7151 = vmatpush1.bf16.msra.mxu0 0
        %7152 = vmatprep.subr.bf16.mxu0 0
        %7153 = vmatpush1.bf16.msra.mxu0 0
        %7154 = vmatprep.subr.bf16.mxu0 0
        %7155 = vmatpush1.bf16.msra.mxu0 0
        %7156 = vmatprep.subr.bf16.mxu0 0
        %7157 = vmatpush1.bf16.msra.mxu0 0
        %7158 = vmatprep.subr.bf16.mxu0 0
        %7159 = vmatpush1.bf16.msra.mxu0 0
        %7160 = vmatprep.subr.bf16.mxu0 0
        %7161 = vmatpush1.bf16.msra.mxu0 0
        %7162 = vmatprep.subr.bf16.mxu0 0
        %7163 = vmatpush1.bf16.msra.mxu0 0
        %7164 = vmatprep.subr.bf16.mxu0 0
        %7165 = vmatpush1.bf16.msra.mxu0 0
        %7166 = vmatprep.subr.bf16.mxu0 0
        %7167 = vmatpush1.bf16.msra.mxu0 0
        %7168 = vmatprep.mubr.bf16.mxu0 0
        %7169 = vmatmul.mubr.bf16.gmra.mrb[0].mxu0 %v7082
        %v7170 = vpop.f32.mrb[0].mxu0
        %v7171 = vadd.f32 %v7122, %v7170
        %v7172 = vpop.f32.mrb[0].mxu0
        %v7173 = vadd.f32 %v7124, %v7172
        %v7174 = vpop.f32.mrb[0].mxu0
        %v7175 = vadd.f32 %v7126, %v7174
        %v7176 = vpop.f32.mrb[0].mxu0
        %v7177 = vadd.f32 %v7128, %v7176
        %7178 = vmatprep.mubr.bf16.mxu0 0
        %7179 = vmatmul.mubr.bf16.gmra.mrb[0].mxu0 %v7085
        %v7180 = vpop.f32.mrb[0].mxu0
        %v7181 = vpop.f32.mrb[0].mxu0
        %v7182 = vpop.f32.mrb[0].mxu0
        %v7183 = vpop.f32.mrb[0].mxu0
        %7184 = vdwg.mxu0
        %7185 = vmatprep.subr.bf16.mxu0 %v6940
        %7186 = vmatpush1.bf16.msra.mxu0 %v6939
        %7187 = vmatprep.subr.bf16.mxu0 %v6944
        %7188 = vmatpush1.bf16.msra.mxu0 %v6943
        %7189 = vmatprep.subr.bf16.mxu0 %v6948
        %7190 = vmatpush1.bf16.msra.mxu0 %v6947
        %7191 = vmatprep.subr.bf16.mxu0 %v6952
        %7192 = vmatpush1.bf16.msra.mxu0 %v6951
        %7193 = vmatprep.subr.bf16.mxu0 %v6956
        %7194 = vmatpush1.bf16.msra.mxu0 %v6955
        %7195 = vmatprep.subr.bf16.mxu0 %v6960
        %7196 = vmatpush1.bf16.msra.mxu0 %v6959
        %7197 = vmatprep.subr.bf16.mxu0 %v6964
        %7198 = vmatpush1.bf16.msra.mxu0 %v6963
        %7199 = vmatprep.subr.bf16.mxu0 %v6968
        %7200 = vmatpush1.bf16.msra.mxu0 %v6967
        %7201 = vmatprep.subr.bf16.mxu0 %v6972
        %7202 = vmatpush1.bf16.msra.mxu0 %v6971
        %7203 = vmatprep.subr.bf16.mxu0 %v6976
        %7204 = vmatpush1.bf16.msra.mxu0 %v6975
        %7205 = vmatprep.subr.bf16.mxu0 %v6980
        %7206 = vmatpush1.bf16.msra.mxu0 %v6979
        %7207 = vmatprep.subr.bf16.mxu0 %v6984
        %7208 = vmatpush1.bf16.msra.mxu0 %v6983
        %7209 = vmatprep.subr.bf16.mxu0 %v6988
        %7210 = vmatpush1.bf16.msra.mxu0 %v6987
        %7211 = vmatprep.subr.bf16.mxu0 %v6992
        %7212 = vmatpush1.bf16.msra.mxu0 %v6991
        %7213 = vmatprep.subr.bf16.mxu0 %v6996
        %7214 = vmatpush1.bf16.msra.mxu0 %v6995
        %7215 = vmatprep.subr.bf16.mxu0 %v7000
        %7216 = vmatpush1.bf16.msra.mxu0 %v6999
        %7217 = vmatprep.mubr.bf16.mxu0 %v6713
        %7218 = vmatmul.mubr.bf16.gmra.mrb[0].mxu0 %v6710
        %v7219 = vpop.f32.mrb[0].mxu0
        %v7220 = vadd.f32 0.0, %v7219
        %v7221 = vpop.f32.mrb[0].mxu0
        %v7222 = vadd.f32 0.0, %v7221
        %v7223 = vpop.f32.mrb[0].mxu0
        %v7224 = vadd.f32 0.0, %v7223
        %v7225 = vpop.f32.mrb[0].mxu0
        %v7226 = vadd.f32 0.0, %v7225
        %7227 = vmatprep.mubr.bf16.mxu0 %v6712
        %7228 = vmatmul.mubr.bf16.gmra.mrb[0].mxu0 %v6709
        %v7229 = vpop.f32.mrb[0].mxu0
        %v7230 = vpop.f32.mrb[0].mxu0
        %v7231 = vpop.f32.mrb[0].mxu0
        %v7232 = vpop.f32.mrb[0].mxu0
        %7233 = vdwg.mxu0
        %7234 = vmatprep.subr.bf16.mxu0 %v7004
        %7235 = vmatpush1.bf16.msra.mxu0 %v7003
        %7236 = vmatprep.subr.bf16.mxu0 %v7008
        %7237 = vmatpush1.bf16.msra.mxu0 %v7007
        %7238 = vmatprep.subr.bf16.mxu0 0
        %7239 = vmatpush1.bf16.msra.mxu0 0
        %7240 = vmatprep.subr.bf16.mxu0 0
        %7241 = vmatpush1.bf16.msra.mxu0 0
        %7242 = vmatprep.subr.bf16.mxu0 0
        %7243 = vmatpush1.bf16.msra.mxu0 0
        %7244 = vmatprep.subr.bf16.mxu0 0
        %7245 = vmatpush1.bf16.msra.mxu0 0
        %7246 = vmatprep.subr.bf16.mxu0 0
        %7247 = vmatpush1.bf16.msra.mxu0 0
        %7248 = vmatprep.subr.bf16.mxu0 0
        %7249 = vmatpush1.bf16.msra.mxu0 0
        %7250 = vmatprep.subr.bf16.mxu0 0
        %7251 = vmatpush1.bf16.msra.mxu0 0
        %7252 = vmatprep.subr.bf16.mxu0 0
        %7253 = vmatpush1.bf16.msra.mxu0 0
        %7254 = vmatprep.subr.bf16.mxu0 0
        %7255 = vmatpush1.bf16.msra.mxu0 0
        %7256 = vmatprep.subr.bf16.mxu0 0
        %7257 = vmatpush1.bf16.msra.mxu0 0
        %7258 = vmatprep.subr.bf16.mxu0 0
        %7259 = vmatpush1.bf16.msra.mxu0 0
        %7260 = vmatprep.subr.bf16.mxu0 0
        %7261 = vmatpush1.bf16.msra.mxu0 0
        %7262 = vmatprep.subr.bf16.mxu0 0
        %7263 = vmatpush1.bf16.msra.mxu0 0
        %7264 = vmatprep.subr.bf16.mxu0 0
        %7265 = vmatpush1.bf16.msra.mxu0 0
        %7266 = vmatprep.mubr.bf16.mxu0 0
        %7267 = vmatmul.mubr.bf16.gmra.mrb[0].mxu0 %v7082
        %v7268 = vpop.f32.mrb[0].mxu0
        %v7269 = vadd.f32 %v7220, %v7268
        %v7270 = vpop.f32.mrb[0].mxu0
        %v7271 = vadd.f32 %v7222, %v7270
        %v7272 = vpop.f32.mrb[0].mxu0
        %v7273 = vadd.f32 %v7224, %v7272
        %v7274 = vpop.f32.mrb[0].mxu0
        %v7275 = vadd.f32 %v7226, %v7274
        %7276 = vmatprep.mubr.bf16.mxu0 0
        %7277 = vmatmul.mubr.bf16.gmra.mrb[0].mxu0 %v7085
        %v7278 = vpop.f32.mrb[0].mxu0
        %v7279 = vpop.f32.mrb[0].mxu0
        %v7280 = vpop.f32.mrb[0].mxu0
        %v7281 = vpop.f32.mrb[0].mxu0
        %7282 = vdwg.mxu0
        %v7283 = vadd.f32 %v6504, %v7171
        %v7284 = vadd.f32 %v6506, %v7173
        %v7285 = vadd.f32 %v6602, %v7269
        %v7286 = vadd.f32 %v6604, %v7271
        %v7287 = vadd.f32 %v6508, %v7175
        %v7288 = vadd.f32 %v6510, %v7177
        %v7289 = vadd.f32 %v6606, %v7273
        %v7290 = vadd.f32 %v6608, %v7275
        %v7291 = vld [vmem:[#allocation3] sm:$0xf8]
        %v7292 = vld [vmem:[#allocation3 + $0x8] sm:$0xf8]
        %v7293 = vld [vmem:[#allocation3 + $0x10] sm:$0xf8]
        %v7294 = vld [vmem:[#allocation3 + $0x30] sm:$0x1f]
        %v7295 = vld [vmem:[#allocation3 + $0x38] sm:$0x1f]
        %v7296 = vld [vmem:[#allocation3 + $0x40] sm:$0x1f]
        %v7297 = vpack.c.bf16 %v5273, %v7291
        %v7298 = vpack.c.bf16 %v5274, %v7292
        %v7299 = vpack.c.bf16 %v5275, %v7293
        %v7300 = vpack.c.bf16 %v7294, %v7294
        %v7301 = vpack.c.bf16 %v7295, %v7295
        %v7302 = vpack.c.bf16 %v7296, %v7296
        %s7303 = scalar_lea.vmem [#allocation9], 1728
        %v7304 = vld [vmem:[%s7303] sm:$0xff]
        %v7305 = vld [vmem:[%s7303 + $0x8] sm:$0xff]
        %v7306 = vld [vmem:[%s7303 + $0x10] sm:$0xff]
        %v7307 = vld [vmem:[%s7303 + $0x18] sm:$0xff]
        %v7308 = vld [vmem:[%s7303 + $0x20] sm:$0xff]
        %v7309 = vld [vmem:[%s7303 + $0x28] sm:$0xff]
        %v7310 = vld [vmem:[%s7303 + $0x30] sm:$0xff]
        %v7311 = vld [vmem:[%s7303 + $0x38] sm:$0xff]
        %v7312 = vld [vmem:[%s7303 + $0x40] sm:$0xff]
        %v7313 = vld [vmem:[%s7303 + $0x48] sm:$0xff]
        %v7314 = vld [vmem:[%s7303 + $0x50] sm:$0xff]
        %v7315 = vld [vmem:[%s7303 + $0x58] sm:$0xff]
        %v7316 = vld [vmem:[%s7303 + $0x60] sm:$0xff]
        %v7317 = vld [vmem:[%s7303 + $0x68] sm:$0xff]
        %v7318 = vld [vmem:[%s7303 + $0x70] sm:$0xff]
        %v7319 = vld [vmem:[%s7303 + $0x78] sm:$0xff]
        %v7320 = vld [vmem:[%s7303 + $0x80] sm:$0xff]
        %v7321 = vld [vmem:[%s7303 + $0x88] sm:$0xff]
        %v7322 = vld [vmem:[%s7303 + $0x90] sm:$0xff]
        %v7323 = vld [vmem:[%s7303 + $0x98] sm:$0xff]
        %v7324 = vld [vmem:[%s7303 + $0xa0] sm:$0xff]
        %v7325 = vld [vmem:[%s7303 + $0xa8] sm:$0xff]
        %v7326 = vld [vmem:[%s7303 + $0xb0] sm:$0xff]
        %v7327 = vld [vmem:[%s7303 + $0xb8] sm:$0xff]
        %v7328 = vld [vmem:[%s7303 + $0xc0] sm:$0xff]
        %v7329 = vld [vmem:[%s7303 + $0xc8] sm:$0xff]
        %v7330 = vld [vmem:[%s7303 + $0xd0] sm:$0xff]
        %v7331 = vld [vmem:[%s7303 + $0xd8] sm:$0xff]
        %v7332 = vld [vmem:[%s7303 + $0xe0] sm:$0xff]
        %v7333 = vld [vmem:[%s7303 + $0xe8] sm:$0xff]
        %v7334 = vld [vmem:[%s7303 + $0xf0] sm:$0xff]
        %v7335 = vld [vmem:[%s7303 + $0xf8] sm:$0xff]
        %v7336 = vld [vmem:[%s7303 + $0x100] sm:$0xff]
        %v7337 = vld [vmem:[%s7303 + $0x108] sm:$0xff]
        %v7338 = vld [vmem:[%s7303 + $0x110] sm:$0xff]
        %v7339 = vld [vmem:[%s7303 + $0x118] sm:$0xff]
        %v7340 = vld [vmem:[%s7303 + $0x120] sm:$0xff]
        %v7341 = vld [vmem:[%s7303 + $0x128] sm:$0xff]
        %v7342 = vld [vmem:[%s7303 + $0x130] sm:$0xff]
        %v7343 = vld [vmem:[%s7303 + $0x138] sm:$0xff]
        %v7344 = vld [vmem:[%s7303 + $0x140] sm:$0xff]
        %v7345 = vld [vmem:[%s7303 + $0x148] sm:$0xff]
        %v7346 = vld [vmem:[%s7303 + $0x150] sm:$0xff]
        %v7347 = vld [vmem:[%s7303 + $0x158] sm:$0xff]
        %v7348 = vld [vmem:[%s7303 + $0x160] sm:$0xff]
        %v7349 = vld [vmem:[%s7303 + $0x168] sm:$0xff]
        %v7350 = vld [vmem:[%s7303 + $0x170] sm:$0xff]
        %v7351 = vld [vmem:[%s7303 + $0x178] sm:$0xff]
        %v7352 = vld [vmem:[%s7303 + $0x180] sm:$0xff]
        %v7353 = vld [vmem:[%s7303 + $0x188] sm:$0xff]
        %v7354 = vld [vmem:[%s7303 + $0x190] sm:$0xff]
        %v7355 = vld [vmem:[%s7303 + $0x198] sm:$0xff]
        %v7356 = vld [vmem:[%s7303 + $0x1a0] sm:$0xff]
        %v7357 = vld [vmem:[%s7303 + $0x1a8] sm:$0xff]
        %v7358 = vld [vmem:[%s7303 + $0x1b0] sm:$0xff]
        %v7359 = vld [vmem:[%s7303 + $0x1b8] sm:$0xff]
        %v7360 = vld [vmem:[%s7303 + $0x1c0] sm:$0xff]
        %v7361 = vld [vmem:[%s7303 + $0x1c8] sm:$0xff]
        %v7362 = vld [vmem:[%s7303 + $0x1d0] sm:$0xff]
        %v7363 = vld [vmem:[%s7303 + $0x1d8] sm:$0xff]
        %v7364 = vld [vmem:[%s7303 + $0x1e0] sm:$0xff]
        %v7365 = vld [vmem:[%s7303 + $0x1e8] sm:$0xff]
        %v7366 = vld [vmem:[%s7303 + $0x1f0] sm:$0xff]
        %v7367 = vld [vmem:[%s7303 + $0x1f8] sm:$0xff]
        %v7368 = vld [vmem:[%s7303 + $0x200] sm:$0xff]
        %v7369 = vld [vmem:[%s7303 + $0x208] sm:$0xff]
        %v7370 = vld [vmem:[%s7303 + $0x210] sm:$0xff]
        %v7371 = vld [vmem:[%s7303 + $0x218] sm:$0xff]
        %v7372 = vld [vmem:[%s7303 + $0x220] sm:$0xff]
        %v7373 = vld [vmem:[%s7303 + $0x228] sm:$0xff]
        %v7374 = vld [vmem:[%s7303 + $0x230] sm:$0xff]
        %v7375 = vld [vmem:[%s7303 + $0x238] sm:$0xff]
        %vm7376 = vsmask.f32 6400
        %v7378 = vshrl.u32 %v7297, 16
        %v7380 = vrot.slane %v7378, 1
        %v7381 = vshll.u32 %v7297, 16
        %v7383 = vrot.slane %v7381, 2
        %v7384 = vor.u32 %v7380, %v7383
        %v7386 = vshrl.u32 %v7300, 16
        %v7388 = vrot.slane %v7386, 1
        %v7389 = vshll.u32 %v7300, 16
        %v7391 = vrot.slane %v7389, 2
        %v7392 = vor.u32 %v7388, %v7391
        %v7393 = vsel %vm7376, %v7384, %v7392
        %v7395 = vshrl.u32 %v7298, 16
        %v7397 = vrot.slane %v7395, 1
        %v7398 = vshll.u32 %v7298, 16
        %v7400 = vrot.slane %v7398, 2
        %v7401 = vor.u32 %v7397, %v7400
        %v7403 = vshrl.u32 %v7301, 16
        %v7405 = vrot.slane %v7403, 1
        %v7406 = vshll.u32 %v7301, 16
        %v7408 = vrot.slane %v7406, 2
        %v7409 = vor.u32 %v7405, %v7408
        %v7410 = vsel %vm7376, %v7401, %v7409
        %v7412 = vshrl.u32 %v7299, 16
        %v7414 = vrot.slane %v7412, 1
        %v7415 = vshll.u32 %v7299, 16
        %v7417 = vrot.slane %v7415, 2
        %v7418 = vor.u32 %v7414, %v7417
        %v7420 = vshrl.u32 %v7302, 16
        %v7422 = vrot.slane %v7420, 1
        %v7423 = vshll.u32 %v7302, 16
        %v7425 = vrot.slane %v7423, 2
        %v7426 = vor.u32 %v7422, %v7425
        %v7427 = vsel %vm7376, %v7418, %v7426
        %v7504 = vunpack.c.l.b16 %v7304
        %v7505 = vunpack.c.h.b16 %v7304
        %v7506 = vunpack.c.l.b16 %v7305
        %v7507 = vunpack.c.h.b16 %v7305
        %v7508 = vunpack.c.l.b16 %v7306
        %v7509 = vunpack.c.h.b16 %v7306
        %v7510 = vunpack.c.l.b16 %v7307
        %v7511 = vunpack.c.h.b16 %v7307
        %v7512 = vunpack.c.l.b16 %v7308
        %v7513 = vunpack.c.h.b16 %v7308
        %v7514 = vunpack.c.l.b16 %v7309
        %v7515 = vunpack.c.h.b16 %v7309
        %v7516 = vunpack.c.l.b16 %v7310
        %v7517 = vunpack.c.h.b16 %v7310
        %v7518 = vunpack.c.l.b16 %v7311
        %v7519 = vunpack.c.h.b16 %v7311
        %v7520 = vunpack.c.l.b16 %v7312
        %v7521 = vunpack.c.h.b16 %v7312
        %v7522 = vunpack.c.l.b16 %v7313
        %v7523 = vunpack.c.h.b16 %v7313
        %v7524 = vunpack.c.l.b16 %v7314
        %v7525 = vunpack.c.h.b16 %v7314
        %v7526 = vunpack.c.l.b16 %v7315
        %v7527 = vunpack.c.h.b16 %v7315
        %v7528 = vunpack.c.l.b16 %v7316
        %v7529 = vunpack.c.h.b16 %v7316
        %v7530 = vunpack.c.l.b16 %v7317
        %v7531 = vunpack.c.h.b16 %v7317
        %v7532 = vunpack.c.l.b16 %v7318
        %v7533 = vunpack.c.h.b16 %v7318
        %v7534 = vunpack.c.l.b16 %v7319
        %v7535 = vunpack.c.h.b16 %v7319
        %v7536 = vunpack.c.l.b16 %v7320
        %v7537 = vunpack.c.h.b16 %v7320
        %v7538 = vunpack.c.l.b16 %v7321
        %v7539 = vunpack.c.h.b16 %v7321
        %v7540 = vunpack.c.l.b16 %v7322
        %v7541 = vunpack.c.h.b16 %v7322
        %v7542 = vunpack.c.l.b16 %v7323
        %v7543 = vunpack.c.h.b16 %v7323
        %v7544 = vunpack.c.l.b16 %v7324
        %v7545 = vunpack.c.h.b16 %v7324
        %v7546 = vunpack.c.l.b16 %v7325
        %v7547 = vunpack.c.h.b16 %v7325
        %v7548 = vunpack.c.l.b16 %v7326
        %v7549 = vunpack.c.h.b16 %v7326
        %v7550 = vunpack.c.l.b16 %v7327
        %v7551 = vunpack.c.h.b16 %v7327
        %v7552 = vunpack.c.l.b16 %v7328
        %v7553 = vunpack.c.h.b16 %v7328
        %v7554 = vunpack.c.l.b16 %v7329
        %v7555 = vunpack.c.h.b16 %v7329
        %v7556 = vunpack.c.l.b16 %v7330
        %v7557 = vunpack.c.h.b16 %v7330
        %v7558 = vunpack.c.l.b16 %v7331
        %v7559 = vunpack.c.h.b16 %v7331
        %v7560 = vunpack.c.l.b16 %v7332
        %v7561 = vunpack.c.h.b16 %v7332
        %v7562 = vunpack.c.l.b16 %v7333
        %v7563 = vunpack.c.h.b16 %v7333
        %v7564 = vunpack.c.l.b16 %v7334
        %v7565 = vunpack.c.h.b16 %v7334
        %v7566 = vunpack.c.l.b16 %v7335
        %v7567 = vunpack.c.h.b16 %v7335
        %v7568 = vunpack.c.l.b16 %v7336
        %v7569 = vunpack.c.h.b16 %v7336
        %v7570 = vunpack.c.l.b16 %v7337
        %v7571 = vunpack.c.h.b16 %v7337
        %v7572 = vunpack.c.l.b16 %v7338
        %v7573 = vunpack.c.h.b16 %v7338
        %v7574 = vunpack.c.l.b16 %v7339
        %v7575 = vunpack.c.h.b16 %v7339
        %v7576 = vunpack.c.l.b16 %v7340
        %v7577 = vunpack.c.h.b16 %v7340
        %v7578 = vunpack.c.l.b16 %v7341
        %v7579 = vunpack.c.h.b16 %v7341
        %v7580 = vunpack.c.l.b16 %v7342
        %v7581 = vunpack.c.h.b16 %v7342
        %v7582 = vunpack.c.l.b16 %v7343
        %v7583 = vunpack.c.h.b16 %v7343
        %v7584 = vunpack.c.l.b16 %v7344
        %v7585 = vunpack.c.h.b16 %v7344
        %v7586 = vunpack.c.l.b16 %v7345
        %v7587 = vunpack.c.h.b16 %v7345
        %v7588 = vunpack.c.l.b16 %v7346
        %v7589 = vunpack.c.h.b16 %v7346
        %v7590 = vunpack.c.l.b16 %v7347
        %v7591 = vunpack.c.h.b16 %v7347
        %v7592 = vunpack.c.l.b16 %v7348
        %v7593 = vunpack.c.h.b16 %v7348
        %v7594 = vunpack.c.l.b16 %v7349
        %v7595 = vunpack.c.h.b16 %v7349
        %v7596 = vunpack.c.l.b16 %v7350
        %v7597 = vunpack.c.h.b16 %v7350
        %v7598 = vunpack.c.l.b16 %v7351
        %v7599 = vunpack.c.h.b16 %v7351
        %v7600 = vunpack.c.l.b16 %v7352
        %v7601 = vunpack.c.h.b16 %v7352
        %v7602 = vunpack.c.l.b16 %v7353
        %v7603 = vunpack.c.h.b16 %v7353
        %v7604 = vunpack.c.l.b16 %v7354
        %v7605 = vunpack.c.h.b16 %v7354
        %v7606 = vunpack.c.l.b16 %v7355
        %v7607 = vunpack.c.h.b16 %v7355
        %v7608 = vunpack.c.l.b16 %v7356
        %v7609 = vunpack.c.h.b16 %v7356
        %v7610 = vunpack.c.l.b16 %v7357
        %v7611 = vunpack.c.h.b16 %v7357
        %v7612 = vunpack.c.l.b16 %v7358
        %v7613 = vunpack.c.h.b16 %v7358
        %v7614 = vunpack.c.l.b16 %v7359
        %v7615 = vunpack.c.h.b16 %v7359
        %v7616 = vunpack.c.l.b16 %v7360
        %v7617 = vunpack.c.h.b16 %v7360
        %v7618 = vunpack.c.l.b16 %v7361
        %v7619 = vunpack.c.h.b16 %v7361
        %v7620 = vunpack.c.l.b16 %v7362
        %v7621 = vunpack.c.h.b16 %v7362
        %v7622 = vunpack.c.l.b16 %v7363
        %v7623 = vunpack.c.h.b16 %v7363
        %v7624 = vunpack.c.l.b16 %v7364
        %v7625 = vunpack.c.h.b16 %v7364
        %v7626 = vunpack.c.l.b16 %v7365
        %v7627 = vunpack.c.h.b16 %v7365
        %v7628 = vunpack.c.l.b16 %v7366
        %v7629 = vunpack.c.h.b16 %v7366
        %v7630 = vunpack.c.l.b16 %v7367
        %v7631 = vunpack.c.h.b16 %v7367
        %v7632 = vunpack.c.l.b16 %v7368
        %v7633 = vunpack.c.h.b16 %v7368
        %v7634 = vunpack.c.l.b16 %v7369
        %v7635 = vunpack.c.h.b16 %v7369
        %v7636 = vunpack.c.l.b16 %v7370
        %v7637 = vunpack.c.h.b16 %v7370
        %v7638 = vunpack.c.l.b16 %v7371
        %v7639 = vunpack.c.h.b16 %v7371
        %v7640 = vunpack.c.l.b16 %v7372
        %v7641 = vunpack.c.h.b16 %v7372
        %v7642 = vunpack.c.l.b16 %v7373
        %v7643 = vunpack.c.h.b16 %v7373
        %v7644 = vunpack.c.l.b16 %v7374
        %v7645 = vunpack.c.h.b16 %v7374
        %v7646 = vunpack.c.l.b16 %v7375
        %v7647 = vunpack.c.h.b16 %v7375
        %v7648 = vpack.c.b16 %v7508, %v7504
        %v7649 = vpack.c.b16 %v7509, %v7505
        %v7650 = vpack.c.b16 %v7510, %v7506
        %v7651 = vpack.c.b16 %v7511, %v7507
        %v7652 = vpack.c.b16 %v7516, %v7512
        %v7653 = vpack.c.b16 %v7517, %v7513
        %v7654 = vpack.c.b16 %v7518, %v7514
        %v7655 = vpack.c.b16 %v7519, %v7515
        %v7656 = vpack.c.b16 %v7524, %v7520
        %v7657 = vpack.c.b16 %v7525, %v7521
        %v7658 = vpack.c.b16 %v7526, %v7522
        %v7659 = vpack.c.b16 %v7527, %v7523
        %v7660 = vpack.c.b16 %v7532, %v7528
        %v7661 = vpack.c.b16 %v7533, %v7529
        %v7662 = vpack.c.b16 %v7534, %v7530
        %v7663 = vpack.c.b16 %v7535, %v7531
        %v7664 = vpack.c.b16 %v7540, %v7536
        %v7665 = vpack.c.b16 %v7541, %v7537
        %v7666 = vpack.c.b16 %v7542, %v7538
        %v7667 = vpack.c.b16 %v7543, %v7539
        %v7668 = vpack.c.b16 %v7548, %v7544
        %v7669 = vpack.c.b16 %v7549, %v7545
        %v7670 = vpack.c.b16 %v7550, %v7546
        %v7671 = vpack.c.b16 %v7551, %v7547
        %v7672 = vpack.c.b16 %v7556, %v7552
        %v7673 = vpack.c.b16 %v7557, %v7553
        %v7674 = vpack.c.b16 %v7558, %v7554
        %v7675 = vpack.c.b16 %v7559, %v7555
        %v7676 = vpack.c.b16 %v7564, %v7560
        %v7677 = vpack.c.b16 %v7565, %v7561
        %v7678 = vpack.c.b16 %v7566, %v7562
        %v7679 = vpack.c.b16 %v7567, %v7563
        %v7680 = vpack.c.b16 %v7572, %v7568
        %v7681 = vpack.c.b16 %v7573, %v7569
        %v7682 = vpack.c.b16 %v7574, %v7570
        %v7683 = vpack.c.b16 %v7575, %v7571
        %v7684 = vpack.c.b16 %v7580, %v7576
        %v7685 = vpack.c.b16 %v7581, %v7577
        %v7686 = vpack.c.b16 %v7582, %v7578
        %v7687 = vpack.c.b16 %v7583, %v7579
        %v7688 = vpack.c.b16 %v7588, %v7584
        %v7689 = vpack.c.b16 %v7589, %v7585
        %v7690 = vpack.c.b16 %v7590, %v7586
        %v7691 = vpack.c.b16 %v7591, %v7587
        %v7692 = vpack.c.b16 %v7596, %v7592
        %v7693 = vpack.c.b16 %v7597, %v7593
        %v7694 = vpack.c.b16 %v7598, %v7594
        %v7695 = vpack.c.b16 %v7599, %v7595
        %v7696 = vpack.c.b16 %v7604, %v7600
        %v7697 = vpack.c.b16 %v7605, %v7601
        %v7698 = vpack.c.b16 %v7606, %v7602
        %v7699 = vpack.c.b16 %v7607, %v7603
        %v7700 = vpack.c.b16 %v7612, %v7608
        %v7701 = vpack.c.b16 %v7613, %v7609
        %v7702 = vpack.c.b16 %v7614, %v7610
        %v7703 = vpack.c.b16 %v7615, %v7611
        %v7704 = vpack.c.b16 %v7620, %v7616
        %v7705 = vpack.c.b16 %v7621, %v7617
        %v7706 = vpack.c.b16 %v7622, %v7618
        %v7707 = vpack.c.b16 %v7623, %v7619
        %v7708 = vpack.c.b16 %v7628, %v7624
        %v7709 = vpack.c.b16 %v7629, %v7625
        %v7710 = vpack.c.b16 %v7630, %v7626
        %v7711 = vpack.c.b16 %v7631, %v7627
        %v7712 = vpack.c.b16 %v7636, %v7632
        %v7713 = vpack.c.b16 %v7637, %v7633
        %v7714 = vpack.c.b16 %v7638, %v7634
        %v7715 = vpack.c.b16 %v7639, %v7635
        %v7716 = vpack.c.b16 %v7644, %v7640
        %v7717 = vpack.c.b16 %v7645, %v7641
        %v7718 = vpack.c.b16 %v7646, %v7642
        %v7719 = vpack.c.b16 %v7647, %v7643
        %v7793 = vsel %vm344, %v7427, 0
        %v7796 = vsel %vm344, %v7426, 0
        %7798 = vmatprep.subr.bf16.mxu0 %v7649
        %7799 = vmatpush1.bf16.msra.mxu0 %v7648
        %7800 = vmatprep.subr.bf16.mxu0 %v7653
        %7801 = vmatpush1.bf16.msra.mxu0 %v7652
        %7802 = vmatprep.subr.bf16.mxu0 %v7657
        %7803 = vmatpush1.bf16.msra.mxu0 %v7656
        %7804 = vmatprep.subr.bf16.mxu0 %v7661
        %7805 = vmatpush1.bf16.msra.mxu0 %v7660
        %7806 = vmatprep.subr.bf16.mxu0 %v7665
        %7807 = vmatpush1.bf16.msra.mxu0 %v7664
        %7808 = vmatprep.subr.bf16.mxu0 %v7669
        %7809 = vmatpush1.bf16.msra.mxu0 %v7668
        %7810 = vmatprep.subr.bf16.mxu0 %v7673
        %7811 = vmatpush1.bf16.msra.mxu0 %v7672
        %7812 = vmatprep.subr.bf16.mxu0 %v7677
        %7813 = vmatpush1.bf16.msra.mxu0 %v7676
        %7814 = vmatprep.subr.bf16.mxu0 %v7681
        %7815 = vmatpush1.bf16.msra.mxu0 %v7680
        %7816 = vmatprep.subr.bf16.mxu0 %v7685
        %7817 = vmatpush1.bf16.msra.mxu0 %v7684
        %7818 = vmatprep.subr.bf16.mxu0 %v7689
        %7819 = vmatpush1.bf16.msra.mxu0 %v7688
        %7820 = vmatprep.subr.bf16.mxu0 %v7693
        %7821 = vmatpush1.bf16.msra.mxu0 %v7692
        %7822 = vmatprep.subr.bf16.mxu0 %v7697
        %7823 = vmatpush1.bf16.msra.mxu0 %v7696
        %7824 = vmatprep.subr.bf16.mxu0 %v7701
        %7825 = vmatpush1.bf16.msra.mxu0 %v7700
        %7826 = vmatprep.subr.bf16.mxu0 %v7705
        %7827 = vmatpush1.bf16.msra.mxu0 %v7704
        %7828 = vmatprep.subr.bf16.mxu0 %v7709
        %7829 = vmatpush1.bf16.msra.mxu0 %v7708
        %7830 = vmatprep.mubr.bf16.mxu0 %v7410
        %7831 = vmatmul.mubr.bf16.gmra.mrb[0].mxu0 %v7393
        %v7832 = vpop.f32.mrb[0].mxu0
        %v7833 = vadd.f32 0.0, %v7832
        %v7834 = vpop.f32.mrb[0].mxu0
        %v7835 = vadd.f32 0.0, %v7834
        %v7836 = vpop.f32.mrb[0].mxu0
        %v7837 = vadd.f32 0.0, %v7836
        %v7838 = vpop.f32.mrb[0].mxu0
        %v7839 = vadd.f32 0.0, %v7838
        %7840 = vmatprep.mubr.bf16.mxu0 %v7409
        %7841 = vmatmul.mubr.bf16.gmra.mrb[0].mxu0 %v7392
        %v7842 = vpop.f32.mrb[0].mxu0
        %v7843 = vpop.f32.mrb[0].mxu0
        %v7844 = vpop.f32.mrb[0].mxu0
        %v7845 = vpop.f32.mrb[0].mxu0
        %7846 = vdwg.mxu0
        %7847 = vmatprep.subr.bf16.mxu0 %v7713
        %7848 = vmatpush1.bf16.msra.mxu0 %v7712
        %7849 = vmatprep.subr.bf16.mxu0 %v7717
        %7850 = vmatpush1.bf16.msra.mxu0 %v7716
        %7851 = vmatprep.subr.bf16.mxu0 0
        %7852 = vmatpush1.bf16.msra.mxu0 0
        %7853 = vmatprep.subr.bf16.mxu0 0
        %7854 = vmatpush1.bf16.msra.mxu0 0
        %7855 = vmatprep.subr.bf16.mxu0 0
        %7856 = vmatpush1.bf16.msra.mxu0 0
        %7857 = vmatprep.subr.bf16.mxu0 0
        %7858 = vmatpush1.bf16.msra.mxu0 0
        %7859 = vmatprep.subr.bf16.mxu0 0
        %7860 = vmatpush1.bf16.msra.mxu0 0
        %7861 = vmatprep.subr.bf16.mxu0 0
        %7862 = vmatpush1.bf16.msra.mxu0 0
        %7863 = vmatprep.subr.bf16.mxu0 0
        %7864 = vmatpush1.bf16.msra.mxu0 0
        %7865 = vmatprep.subr.bf16.mxu0 0
        %7866 = vmatpush1.bf16.msra.mxu0 0
        %7867 = vmatprep.subr.bf16.mxu0 0
        %7868 = vmatpush1.bf16.msra.mxu0 0
        %7869 = vmatprep.subr.bf16.mxu0 0
        %7870 = vmatpush1.bf16.msra.mxu0 0
        %7871 = vmatprep.subr.bf16.mxu0 0
        %7872 = vmatpush1.bf16.msra.mxu0 0
        %7873 = vmatprep.subr.bf16.mxu0 0
        %7874 = vmatpush1.bf16.msra.mxu0 0
        %7875 = vmatprep.subr.bf16.mxu0 0
        %7876 = vmatpush1.bf16.msra.mxu0 0
        %7877 = vmatprep.subr.bf16.mxu0 0
        %7878 = vmatpush1.bf16.msra.mxu0 0
        %7879 = vmatprep.mubr.bf16.mxu0 0
        %7880 = vmatmul.mubr.bf16.gmra.mrb[0].mxu0 %v7793
        %v7881 = vpop.f32.mrb[0].mxu0
        %v7882 = vadd.f32 %v7833, %v7881
        %v7883 = vpop.f32.mrb[0].mxu0
        %v7884 = vadd.f32 %v7835, %v7883
        %v7885 = vpop.f32.mrb[0].mxu0
        %v7886 = vadd.f32 %v7837, %v7885
        %v7887 = vpop.f32.mrb[0].mxu0
        %v7888 = vadd.f32 %v7839, %v7887
        %7889 = vmatprep.mubr.bf16.mxu0 0
        %7890 = vmatmul.mubr.bf16.gmra.mrb[0].mxu0 %v7796
        %v7891 = vpop.f32.mrb[0].mxu0
        %v7892 = vpop.f32.mrb[0].mxu0
        %v7893 = vpop.f32.mrb[0].mxu0
        %v7894 = vpop.f32.mrb[0].mxu0
        %7895 = vdwg.mxu0
        %7896 = vmatprep.subr.bf16.mxu0 %v7651
        %7897 = vmatpush1.bf16.msra.mxu0 %v7650
        %7898 = vmatprep.subr.bf16.mxu0 %v7655
        %7899 = vmatpush1.bf16.msra.mxu0 %v7654
        %7900 = vmatprep.subr.bf16.mxu0 %v7659
        %7901 = vmatpush1.bf16.msra.mxu0 %v7658
        %7902 = vmatprep.subr.bf16.mxu0 %v7663
        %7903 = vmatpush1.bf16.msra.mxu0 %v7662
        %7904 = vmatprep.subr.bf16.mxu0 %v7667
        %7905 = vmatpush1.bf16.msra.mxu0 %v7666
        %7906 = vmatprep.subr.bf16.mxu0 %v7671
        %7907 = vmatpush1.bf16.msra.mxu0 %v7670
        %7908 = vmatprep.subr.bf16.mxu0 %v7675
        %7909 = vmatpush1.bf16.msra.mxu0 %v7674
        %7910 = vmatprep.subr.bf16.mxu0 %v7679
        %7911 = vmatpush1.bf16.msra.mxu0 %v7678
        %7912 = vmatprep.subr.bf16.mxu0 %v7683
        %7913 = vmatpush1.bf16.msra.mxu0 %v7682
        %7914 = vmatprep.subr.bf16.mxu0 %v7687
        %7915 = vmatpush1.bf16.msra.mxu0 %v7686
        %7916 = vmatprep.subr.bf16.mxu0 %v7691
        %7917 = vmatpush1.bf16.msra.mxu0 %v7690
        %7918 = vmatprep.subr.bf16.mxu0 %v7695
        %7919 = vmatpush1.bf16.msra.mxu0 %v7694
        %7920 = vmatprep.subr.bf16.mxu0 %v7699
        %7921 = vmatpush1.bf16.msra.mxu0 %v7698
        %7922 = vmatprep.subr.bf16.mxu0 %v7703
        %7923 = vmatpush1.bf16.msra.mxu0 %v7702
        %7924 = vmatprep.subr.bf16.mxu0 %v7707
        %7925 = vmatpush1.bf16.msra.mxu0 %v7706
        %7926 = vmatprep.subr.bf16.mxu0 %v7711
        %7927 = vmatpush1.bf16.msra.mxu0 %v7710
        %7928 = vmatprep.mubr.bf16.mxu0 %v7410
        %7929 = vmatmul.mubr.bf16.gmra.mrb[0].mxu0 %v7393
        %v7930 = vpop.f32.mrb[0].mxu0
        %v7931 = vadd.f32 0.0, %v7930
        %v7932 = vpop.f32.mrb[0].mxu0
        %v7933 = vadd.f32 0.0, %v7932
        %v7934 = vpop.f32.mrb[0].mxu0
        %v7935 = vadd.f32 0.0, %v7934
        %v7936 = vpop.f32.mrb[0].mxu0
        %v7937 = vadd.f32 0.0, %v7936
        %7938 = vmatprep.mubr.bf16.mxu0 %v7409
        %7939 = vmatmul.mubr.bf16.gmra.mrb[0].mxu0 %v7392
        %v7940 = vpop.f32.mrb[0].mxu0
        %v7941 = vpop.f32.mrb[0].mxu0
        %v7942 = vpop.f32.mrb[0].mxu0
        %v7943 = vpop.f32.mrb[0].mxu0
        %7944 = vdwg.mxu0
        %7945 = vmatprep.subr.bf16.mxu0 %v7715
        %7946 = vmatpush1.bf16.msra.mxu0 %v7714
        %7947 = vmatprep.subr.bf16.mxu0 %v7719
        %7948 = vmatpush1.bf16.msra.mxu0 %v7718
        %7949 = vmatprep.subr.bf16.mxu0 0
        %7950 = vmatpush1.bf16.msra.mxu0 0
        %7951 = vmatprep.subr.bf16.mxu0 0
        %7952 = vmatpush1.bf16.msra.mxu0 0
        %7953 = vmatprep.subr.bf16.mxu0 0
        %7954 = vmatpush1.bf16.msra.mxu0 0
        %7955 = vmatprep.subr.bf16.mxu0 0
        %7956 = vmatpush1.bf16.msra.mxu0 0
        %7957 = vmatprep.subr.bf16.mxu0 0
        %7958 = vmatpush1.bf16.msra.mxu0 0
        %7959 = vmatprep.subr.bf16.mxu0 0
        %7960 = vmatpush1.bf16.msra.mxu0 0
        %7961 = vmatprep.subr.bf16.mxu0 0
        %7962 = vmatpush1.bf16.msra.mxu0 0
        %7963 = vmatprep.subr.bf16.mxu0 0
        %7964 = vmatpush1.bf16.msra.mxu0 0
        %7965 = vmatprep.subr.bf16.mxu0 0
        %7966 = vmatpush1.bf16.msra.mxu0 0
        %7967 = vmatprep.subr.bf16.mxu0 0
        %7968 = vmatpush1.bf16.msra.mxu0 0
        %7969 = vmatprep.subr.bf16.mxu0 0
        %7970 = vmatpush1.bf16.msra.mxu0 0
        %7971 = vmatprep.subr.bf16.mxu0 0
        %7972 = vmatpush1.bf16.msra.mxu0 0
        %7973 = vmatprep.subr.bf16.mxu0 0
        %7974 = vmatpush1.bf16.msra.mxu0 0
        %7975 = vmatprep.subr.bf16.mxu0 0
        %7976 = vmatpush1.bf16.msra.mxu0 0
        %7977 = vmatprep.mubr.bf16.mxu0 0
        %7978 = vmatmul.mubr.bf16.gmra.mrb[0].mxu0 %v7793
        %v7979 = vpop.f32.mrb[0].mxu0
        %v7980 = vadd.f32 %v7931, %v7979
        %v7981 = vpop.f32.mrb[0].mxu0
        %v7982 = vadd.f32 %v7933, %v7981
        %v7983 = vpop.f32.mrb[0].mxu0
        %v7984 = vadd.f32 %v7935, %v7983
        %v7985 = vpop.f32.mrb[0].mxu0
        %v7986 = vadd.f32 %v7937, %v7985
        %7987 = vmatprep.mubr.bf16.mxu0 0
        %7988 = vmatmul.mubr.bf16.gmra.mrb[0].mxu0 %v7796
        %v7989 = vpop.f32.mrb[0].mxu0
        %v7990 = vpop.f32.mrb[0].mxu0
        %v7991 = vpop.f32.mrb[0].mxu0
        %v7992 = vpop.f32.mrb[0].mxu0
        %7993 = vdwg.mxu0
        %v7994 = vadd.f32 %v7283, %v7882
        %v7995 = vadd.f32 %v7284, %v7884
        %v7996 = vadd.f32 %v7285, %v7980
        %v7997 = vadd.f32 %v7286, %v7982
        %v7998 = vadd.f32 %v7287, %v7886
        %v7999 = vadd.f32 %v7288, %v7888
        %v8000 = vadd.f32 %v7289, %v7984
        %v8001 = vadd.f32 %v7290, %v7986
        %v8002 = vld [vmem:[#allocation3] sm:$0xf0]
        %v8003 = vld [vmem:[#allocation3 + $0x8] sm:$0xf0]
        %v8004 = vld [vmem:[#allocation3 + $0x10] sm:$0xf0]
        %v8005 = vld [vmem:[#allocation3 + $0x30] sm:$0x3f]
        %v8006 = vld [vmem:[#allocation3 + $0x38] sm:$0x3f]
        %v8007 = vld [vmem:[#allocation3 + $0x40] sm:$0x3f]
        %v8008 = vpack.c.bf16 %v5273, %v8002
        %v8009 = vpack.c.bf16 %v5274, %v8003
        %v8010 = vpack.c.bf16 %v5275, %v8004
        %v8011 = vpack.c.bf16 %v8005, %v8005
        %v8012 = vpack.c.bf16 %v8006, %v8006
        %v8013 = vpack.c.bf16 %v8007, %v8007
        %s8014 = scalar_lea.vmem [#allocation9], 2304
        %v8015 = vld [vmem:[%s8014] sm:$0xff]
        %v8016 = vld [vmem:[%s8014 + $0x8] sm:$0xff]
        %v8017 = vld [vmem:[%s8014 + $0x10] sm:$0xff]
        %v8018 = vld [vmem:[%s8014 + $0x18] sm:$0xff]
        %v8019 = vld [vmem:[%s8014 + $0x20] sm:$0xff]
        %v8020 = vld [vmem:[%s8014 + $0x28] sm:$0xff]
        %v8021 = vld [vmem:[%s8014 + $0x30] sm:$0xff]
        %v8022 = vld [vmem:[%s8014 + $0x38] sm:$0xff]
        %v8023 = vld [vmem:[%s8014 + $0x40] sm:$0xff]
        %v8024 = vld [vmem:[%s8014 + $0x48] sm:$0xff]
        %v8025 = vld [vmem:[%s8014 + $0x50] sm:$0xff]
        %v8026 = vld [vmem:[%s8014 + $0x58] sm:$0xff]
        %v8027 = vld [vmem:[%s8014 + $0x60] sm:$0xff]
        %v8028 = vld [vmem:[%s8014 + $0x68] sm:$0xff]
        %v8029 = vld [vmem:[%s8014 + $0x70] sm:$0xff]
        %v8030 = vld [vmem:[%s8014 + $0x78] sm:$0xff]
        %v8031 = vld [vmem:[%s8014 + $0x80] sm:$0xff]
        %v8032 = vld [vmem:[%s8014 + $0x88] sm:$0xff]
        %v8033 = vld [vmem:[%s8014 + $0x90] sm:$0xff]
        %v8034 = vld [vmem:[%s8014 + $0x98] sm:$0xff]
        %v8035 = vld [vmem:[%s8014 + $0xa0] sm:$0xff]
        %v8036 = vld [vmem:[%s8014 + $0xa8] sm:$0xff]
        %v8037 = vld [vmem:[%s8014 + $0xb0] sm:$0xff]
        %v8038 = vld [vmem:[%s8014 + $0xb8] sm:$0xff]
        %v8039 = vld [vmem:[%s8014 + $0xc0] sm:$0xff]
        %v8040 = vld [vmem:[%s8014 + $0xc8] sm:$0xff]
        %v8041 = vld [vmem:[%s8014 + $0xd0] sm:$0xff]
        %v8042 = vld [vmem:[%s8014 + $0xd8] sm:$0xff]
        %v8043 = vld [vmem:[%s8014 + $0xe0] sm:$0xff]
        %v8044 = vld [vmem:[%s8014 + $0xe8] sm:$0xff]
        %v8045 = vld [vmem:[%s8014 + $0xf0] sm:$0xff]
        %v8046 = vld [vmem:[%s8014 + $0xf8] sm:$0xff]
        %v8047 = vld [vmem:[%s8014 + $0x100] sm:$0xff]
        %v8048 = vld [vmem:[%s8014 + $0x108] sm:$0xff]
        %v8049 = vld [vmem:[%s8014 + $0x110] sm:$0xff]
        %v8050 = vld [vmem:[%s8014 + $0x118] sm:$0xff]
        %v8051 = vld [vmem:[%s8014 + $0x120] sm:$0xff]
        %v8052 = vld [vmem:[%s8014 + $0x128] sm:$0xff]
        %v8053 = vld [vmem:[%s8014 + $0x130] sm:$0xff]
        %v8054 = vld [vmem:[%s8014 + $0x138] sm:$0xff]
        %v8055 = vld [vmem:[%s8014 + $0x140] sm:$0xff]
        %v8056 = vld [vmem:[%s8014 + $0x148] sm:$0xff]
        %v8057 = vld [vmem:[%s8014 + $0x150] sm:$0xff]
        %v8058 = vld [vmem:[%s8014 + $0x158] sm:$0xff]
        %v8059 = vld [vmem:[%s8014 + $0x160] sm:$0xff]
        %v8060 = vld [vmem:[%s8014 + $0x168] sm:$0xff]
        %v8061 = vld [vmem:[%s8014 + $0x170] sm:$0xff]
        %v8062 = vld [vmem:[%s8014 + $0x178] sm:$0xff]
        %v8063 = vld [vmem:[%s8014 + $0x180] sm:$0xff]
        %v8064 = vld [vmem:[%s8014 + $0x188] sm:$0xff]
        %v8065 = vld [vmem:[%s8014 + $0x190] sm:$0xff]
        %v8066 = vld [vmem:[%s8014 + $0x198] sm:$0xff]
        %v8067 = vld [vmem:[%s8014 + $0x1a0] sm:$0xff]
        %v8068 = vld [vmem:[%s8014 + $0x1a8] sm:$0xff]
        %v8069 = vld [vmem:[%s8014 + $0x1b0] sm:$0xff]
        %v8070 = vld [vmem:[%s8014 + $0x1b8] sm:$0xff]
        %v8071 = vld [vmem:[%s8014 + $0x1c0] sm:$0xff]
        %v8072 = vld [vmem:[%s8014 + $0x1c8] sm:$0xff]
        %v8073 = vld [vmem:[%s8014 + $0x1d0] sm:$0xff]
        %v8074 = vld [vmem:[%s8014 + $0x1d8] sm:$0xff]
        %v8075 = vld [vmem:[%s8014 + $0x1e0] sm:$0xff]
        %v8076 = vld [vmem:[%s8014 + $0x1e8] sm:$0xff]
        %v8077 = vld [vmem:[%s8014 + $0x1f0] sm:$0xff]
        %v8078 = vld [vmem:[%s8014 + $0x1f8] sm:$0xff]
        %v8079 = vld [vmem:[%s8014 + $0x200] sm:$0xff]
        %v8080 = vld [vmem:[%s8014 + $0x208] sm:$0xff]
        %v8081 = vld [vmem:[%s8014 + $0x210] sm:$0xff]
        %v8082 = vld [vmem:[%s8014 + $0x218] sm:$0xff]
        %v8083 = vld [vmem:[%s8014 + $0x220] sm:$0xff]
        %v8084 = vld [vmem:[%s8014 + $0x228] sm:$0xff]
        %v8085 = vld [vmem:[%s8014 + $0x230] sm:$0xff]
        %v8086 = vld [vmem:[%s8014 + $0x238] sm:$0xff]
        %vm8093 = vcmask 1045504
        %v8094 = vrot.slane %v8008, 2
        %v8095 = vrot.slane %v8011, 2
        %v8096 = vsel %vm8093, %v8094, %v8095
        %v8097 = vrot.slane %v8009, 2
        %v8098 = vrot.slane %v8012, 2
        %v8099 = vsel %vm8093, %v8097, %v8098
        %v8100 = vrot.slane %v8010, 2
        %v8101 = vrot.slane %v8013, 2
        %v8102 = vsel %vm8093, %v8100, %v8101
        %v8179 = vunpack.c.l.b16 %v8015
        %v8180 = vunpack.c.h.b16 %v8015
        %v8181 = vunpack.c.l.b16 %v8016
        %v8182 = vunpack.c.h.b16 %v8016
        %v8183 = vunpack.c.l.b16 %v8017
        %v8184 = vunpack.c.h.b16 %v8017
        %v8185 = vunpack.c.l.b16 %v8018
        %v8186 = vunpack.c.h.b16 %v8018
        %v8187 = vunpack.c.l.b16 %v8019
        %v8188 = vunpack.c.h.b16 %v8019
        %v8189 = vunpack.c.l.b16 %v8020
        %v8190 = vunpack.c.h.b16 %v8020
        %v8191 = vunpack.c.l.b16 %v8021
        %v8192 = vunpack.c.h.b16 %v8021
        %v8193 = vunpack.c.l.b16 %v8022
        %v8194 = vunpack.c.h.b16 %v8022
        %v8195 = vunpack.c.l.b16 %v8023
        %v8196 = vunpack.c.h.b16 %v8023
        %v8197 = vunpack.c.l.b16 %v8024
        %v8198 = vunpack.c.h.b16 %v8024
        %v8199 = vunpack.c.l.b16 %v8025
        %v8200 = vunpack.c.h.b16 %v8025
        %v8201 = vunpack.c.l.b16 %v8026
        %v8202 = vunpack.c.h.b16 %v8026
        %v8203 = vunpack.c.l.b16 %v8027
        %v8204 = vunpack.c.h.b16 %v8027
        %v8205 = vunpack.c.l.b16 %v8028
        %v8206 = vunpack.c.h.b16 %v8028
        %v8207 = vunpack.c.l.b16 %v8029
        %v8208 = vunpack.c.h.b16 %v8029
        %v8209 = vunpack.c.l.b16 %v8030
        %v8210 = vunpack.c.h.b16 %v8030
        %v8211 = vunpack.c.l.b16 %v8031
        %v8212 = vunpack.c.h.b16 %v8031
        %v8213 = vunpack.c.l.b16 %v8032
        %v8214 = vunpack.c.h.b16 %v8032
        %v8215 = vunpack.c.l.b16 %v8033
        %v8216 = vunpack.c.h.b16 %v8033
        %v8217 = vunpack.c.l.b16 %v8034
        %v8218 = vunpack.c.h.b16 %v8034
        %v8219 = vunpack.c.l.b16 %v8035
        %v8220 = vunpack.c.h.b16 %v8035
        %v8221 = vunpack.c.l.b16 %v8036
        %v8222 = vunpack.c.h.b16 %v8036
        %v8223 = vunpack.c.l.b16 %v8037
        %v8224 = vunpack.c.h.b16 %v8037
        %v8225 = vunpack.c.l.b16 %v8038
        %v8226 = vunpack.c.h.b16 %v8038
        %v8227 = vunpack.c.l.b16 %v8039
        %v8228 = vunpack.c.h.b16 %v8039
        %v8229 = vunpack.c.l.b16 %v8040
        %v8230 = vunpack.c.h.b16 %v8040
        %v8231 = vunpack.c.l.b16 %v8041
        %v8232 = vunpack.c.h.b16 %v8041
        %v8233 = vunpack.c.l.b16 %v8042
        %v8234 = vunpack.c.h.b16 %v8042
        %v8235 = vunpack.c.l.b16 %v8043
        %v8236 = vunpack.c.h.b16 %v8043
        %v8237 = vunpack.c.l.b16 %v8044
        %v8238 = vunpack.c.h.b16 %v8044
        %v8239 = vunpack.c.l.b16 %v8045
        %v8240 = vunpack.c.h.b16 %v8045
        %v8241 = vunpack.c.l.b16 %v8046
        %v8242 = vunpack.c.h.b16 %v8046
        %v8243 = vunpack.c.l.b16 %v8047
        %v8244 = vunpack.c.h.b16 %v8047
        %v8245 = vunpack.c.l.b16 %v8048
        %v8246 = vunpack.c.h.b16 %v8048
        %v8247 = vunpack.c.l.b16 %v8049
        %v8248 = vunpack.c.h.b16 %v8049
        %v8249 = vunpack.c.l.b16 %v8050
        %v8250 = vunpack.c.h.b16 %v8050
        %v8251 = vunpack.c.l.b16 %v8051
        %v8252 = vunpack.c.h.b16 %v8051
        %v8253 = vunpack.c.l.b16 %v8052
        %v8254 = vunpack.c.h.b16 %v8052
        %v8255 = vunpack.c.l.b16 %v8053
        %v8256 = vunpack.c.h.b16 %v8053
        %v8257 = vunpack.c.l.b16 %v8054
        %v8258 = vunpack.c.h.b16 %v8054
        %v8259 = vunpack.c.l.b16 %v8055
        %v8260 = vunpack.c.h.b16 %v8055
        %v8261 = vunpack.c.l.b16 %v8056
        %v8262 = vunpack.c.h.b16 %v8056
        %v8263 = vunpack.c.l.b16 %v8057
        %v8264 = vunpack.c.h.b16 %v8057
        %v8265 = vunpack.c.l.b16 %v8058
        %v8266 = vunpack.c.h.b16 %v8058
        %v8267 = vunpack.c.l.b16 %v8059
        %v8268 = vunpack.c.h.b16 %v8059
        %v8269 = vunpack.c.l.b16 %v8060
        %v8270 = vunpack.c.h.b16 %v8060
        %v8271 = vunpack.c.l.b16 %v8061
        %v8272 = vunpack.c.h.b16 %v8061
        %v8273 = vunpack.c.l.b16 %v8062
        %v8274 = vunpack.c.h.b16 %v8062
        %v8275 = vunpack.c.l.b16 %v8063
        %v8276 = vunpack.c.h.b16 %v8063
        %v8277 = vunpack.c.l.b16 %v8064
        %v8278 = vunpack.c.h.b16 %v8064
        %v8279 = vunpack.c.l.b16 %v8065
        %v8280 = vunpack.c.h.b16 %v8065
        %v8281 = vunpack.c.l.b16 %v8066
        %v8282 = vunpack.c.h.b16 %v8066
        %v8283 = vunpack.c.l.b16 %v8067
        %v8284 = vunpack.c.h.b16 %v8067
        %v8285 = vunpack.c.l.b16 %v8068
        %v8286 = vunpack.c.h.b16 %v8068
        %v8287 = vunpack.c.l.b16 %v8069
        %v8288 = vunpack.c.h.b16 %v8069
        %v8289 = vunpack.c.l.b16 %v8070
        %v8290 = vunpack.c.h.b16 %v8070
        %v8291 = vunpack.c.l.b16 %v8071
        %v8292 = vunpack.c.h.b16 %v8071
        %v8293 = vunpack.c.l.b16 %v8072
        %v8294 = vunpack.c.h.b16 %v8072
        %v8295 = vunpack.c.l.b16 %v8073
        %v8296 = vunpack.c.h.b16 %v8073
        %v8297 = vunpack.c.l.b16 %v8074
        %v8298 = vunpack.c.h.b16 %v8074
        %v8299 = vunpack.c.l.b16 %v8075
        %v8300 = vunpack.c.h.b16 %v8075
        %v8301 = vunpack.c.l.b16 %v8076
        %v8302 = vunpack.c.h.b16 %v8076
        %v8303 = vunpack.c.l.b16 %v8077
        %v8304 = vunpack.c.h.b16 %v8077
        %v8305 = vunpack.c.l.b16 %v8078
        %v8306 = vunpack.c.h.b16 %v8078
        %v8307 = vunpack.c.l.b16 %v8079
        %v8308 = vunpack.c.h.b16 %v8079
        %v8309 = vunpack.c.l.b16 %v8080
        %v8310 = vunpack.c.h.b16 %v8080
        %v8311 = vunpack.c.l.b16 %v8081
        %v8312 = vunpack.c.h.b16 %v8081
        %v8313 = vunpack.c.l.b16 %v8082
        %v8314 = vunpack.c.h.b16 %v8082
        %v8315 = vunpack.c.l.b16 %v8083
        %v8316 = vunpack.c.h.b16 %v8083
        %v8317 = vunpack.c.l.b16 %v8084
        %v8318 = vunpack.c.h.b16 %v8084
        %v8319 = vunpack.c.l.b16 %v8085
        %v8320 = vunpack.c.h.b16 %v8085
        %v8321 = vunpack.c.l.b16 %v8086
        %v8322 = vunpack.c.h.b16 %v8086
        %v8323 = vpack.c.b16 %v8183, %v8179
        %v8324 = vpack.c.b16 %v8184, %v8180
        %v8325 = vpack.c.b16 %v8185, %v8181
        %v8326 = vpack.c.b16 %v8186, %v8182
        %v8327 = vpack.c.b16 %v8191, %v8187
        %v8328 = vpack.c.b16 %v8192, %v8188
        %v8329 = vpack.c.b16 %v8193, %v8189
        %v8330 = vpack.c.b16 %v8194, %v8190
        %v8331 = vpack.c.b16 %v8199, %v8195
        %v8332 = vpack.c.b16 %v8200, %v8196
        %v8333 = vpack.c.b16 %v8201, %v8197
        %v8334 = vpack.c.b16 %v8202, %v8198
        %v8335 = vpack.c.b16 %v8207, %v8203
        %v8336 = vpack.c.b16 %v8208, %v8204
        %v8337 = vpack.c.b16 %v8209, %v8205
        %v8338 = vpack.c.b16 %v8210, %v8206
        %v8339 = vpack.c.b16 %v8215, %v8211
        %v8340 = vpack.c.b16 %v8216, %v8212
        %v8341 = vpack.c.b16 %v8217, %v8213
        %v8342 = vpack.c.b16 %v8218, %v8214
        %v8343 = vpack.c.b16 %v8223, %v8219
        %v8344 = vpack.c.b16 %v8224, %v8220
        %v8345 = vpack.c.b16 %v8225, %v8221
        %v8346 = vpack.c.b16 %v8226, %v8222
        %v8347 = vpack.c.b16 %v8231, %v8227
        %v8348 = vpack.c.b16 %v8232, %v8228
        %v8349 = vpack.c.b16 %v8233, %v8229
        %v8350 = vpack.c.b16 %v8234, %v8230
        %v8351 = vpack.c.b16 %v8239, %v8235
        %v8352 = vpack.c.b16 %v8240, %v8236
        %v8353 = vpack.c.b16 %v8241, %v8237
        %v8354 = vpack.c.b16 %v8242, %v8238
        %v8355 = vpack.c.b16 %v8247, %v8243
        %v8356 = vpack.c.b16 %v8248, %v8244
        %v8357 = vpack.c.b16 %v8249, %v8245
        %v8358 = vpack.c.b16 %v8250, %v8246
        %v8359 = vpack.c.b16 %v8255, %v8251
        %v8360 = vpack.c.b16 %v8256, %v8252
        %v8361 = vpack.c.b16 %v8257, %v8253
        %v8362 = vpack.c.b16 %v8258, %v8254
        %v8363 = vpack.c.b16 %v8263, %v8259
        %v8364 = vpack.c.b16 %v8264, %v8260
        %v8365 = vpack.c.b16 %v8265, %v8261
        %v8366 = vpack.c.b16 %v8266, %v8262
        %v8367 = vpack.c.b16 %v8271, %v8267
        %v8368 = vpack.c.b16 %v8272, %v8268
        %v8369 = vpack.c.b16 %v8273, %v8269
        %v8370 = vpack.c.b16 %v8274, %v8270
        %v8371 = vpack.c.b16 %v8279, %v8275
        %v8372 = vpack.c.b16 %v8280, %v8276
        %v8373 = vpack.c.b16 %v8281, %v8277
        %v8374 = vpack.c.b16 %v8282, %v8278
        %v8375 = vpack.c.b16 %v8287, %v8283
        %v8376 = vpack.c.b16 %v8288, %v8284
        %v8377 = vpack.c.b16 %v8289, %v8285
        %v8378 = vpack.c.b16 %v8290, %v8286
        %v8379 = vpack.c.b16 %v8295, %v8291
        %v8380 = vpack.c.b16 %v8296, %v8292
        %v8381 = vpack.c.b16 %v8297, %v8293
        %v8382 = vpack.c.b16 %v8298, %v8294
        %v8383 = vpack.c.b16 %v8303, %v8299
        %v8384 = vpack.c.b16 %v8304, %v8300
        %v8385 = vpack.c.b16 %v8305, %v8301
        %v8386 = vpack.c.b16 %v8306, %v8302
        %v8387 = vpack.c.b16 %v8311, %v8307
        %v8388 = vpack.c.b16 %v8312, %v8308
        %v8389 = vpack.c.b16 %v8313, %v8309
        %v8390 = vpack.c.b16 %v8314, %v8310
        %v8391 = vpack.c.b16 %v8319, %v8315
        %v8392 = vpack.c.b16 %v8320, %v8316
        %v8393 = vpack.c.b16 %v8321, %v8317
        %v8394 = vpack.c.b16 %v8322, %v8318
        %v8468 = vsel %vm344, %v8102, 0
        %v8471 = vsel %vm344, %v8101, 0
        %8473 = vmatprep.subr.bf16.mxu0 %v8324
        %8474 = vmatpush1.bf16.msra.mxu0 %v8323
        %8475 = vmatprep.subr.bf16.mxu0 %v8328
        %8476 = vmatpush1.bf16.msra.mxu0 %v8327
        %8477 = vmatprep.subr.bf16.mxu0 %v8332
        %8478 = vmatpush1.bf16.msra.mxu0 %v8331
        %8479 = vmatprep.subr.bf16.mxu0 %v8336
        %8480 = vmatpush1.bf16.msra.mxu0 %v8335
        %8481 = vmatprep.subr.bf16.mxu0 %v8340
        %8482 = vmatpush1.bf16.msra.mxu0 %v8339
        %8483 = vmatprep.subr.bf16.mxu0 %v8344
        %8484 = vmatpush1.bf16.msra.mxu0 %v8343
        %8485 = vmatprep.subr.bf16.mxu0 %v8348
        %8486 = vmatpush1.bf16.msra.mxu0 %v8347
        %8487 = vmatprep.subr.bf16.mxu0 %v8352
        %8488 = vmatpush1.bf16.msra.mxu0 %v8351
        %8489 = vmatprep.subr.bf16.mxu0 %v8356
        %8490 = vmatpush1.bf16.msra.mxu0 %v8355
        %8491 = vmatprep.subr.bf16.mxu0 %v8360
        %8492 = vmatpush1.bf16.msra.mxu0 %v8359
        %8493 = vmatprep.subr.bf16.mxu0 %v8364
        %8494 = vmatpush1.bf16.msra.mxu0 %v8363
        %8495 = vmatprep.subr.bf16.mxu0 %v8368
        %8496 = vmatpush1.bf16.msra.mxu0 %v8367
        %8497 = vmatprep.subr.bf16.mxu0 %v8372
        %8498 = vmatpush1.bf16.msra.mxu0 %v8371
        %8499 = vmatprep.subr.bf16.mxu0 %v8376
        %8500 = vmatpush1.bf16.msra.mxu0 %v8375
        %8501 = vmatprep.subr.bf16.mxu0 %v8380
        %8502 = vmatpush1.bf16.msra.mxu0 %v8379
        %8503 = vmatprep.subr.bf16.mxu0 %v8384
        %8504 = vmatpush1.bf16.msra.mxu0 %v8383
        %8505 = vmatprep.mubr.bf16.mxu0 %v8099
        %8506 = vmatmul.mubr.bf16.gmra.mrb[0].mxu0 %v8096
        %v8507 = vpop.f32.mrb[0].mxu0
        %v8508 = vadd.f32 0.0, %v8507
        %v8509 = vpop.f32.mrb[0].mxu0
        %v8510 = vadd.f32 0.0, %v8509
        %v8511 = vpop.f32.mrb[0].mxu0
        %v8512 = vadd.f32 0.0, %v8511
        %v8513 = vpop.f32.mrb[0].mxu0
        %v8514 = vadd.f32 0.0, %v8513
        %8515 = vmatprep.mubr.bf16.mxu0 %v8098
        %8516 = vmatmul.mubr.bf16.gmra.mrb[0].mxu0 %v8095
        %v8517 = vpop.f32.mrb[0].mxu0
        %v8518 = vpop.f32.mrb[0].mxu0
        %v8519 = vpop.f32.mrb[0].mxu0
        %v8520 = vpop.f32.mrb[0].mxu0
        %8521 = vdwg.mxu0
        %8522 = vmatprep.subr.bf16.mxu0 %v8388
        %8523 = vmatpush1.bf16.msra.mxu0 %v8387
        %8524 = vmatprep.subr.bf16.mxu0 %v8392
        %8525 = vmatpush1.bf16.msra.mxu0 %v8391
        %8526 = vmatprep.subr.bf16.mxu0 0
        %8527 = vmatpush1.bf16.msra.mxu0 0
        %8528 = vmatprep.subr.bf16.mxu0 0
        %8529 = vmatpush1.bf16.msra.mxu0 0
        %8530 = vmatprep.subr.bf16.mxu0 0
        %8531 = vmatpush1.bf16.msra.mxu0 0
        %8532 = vmatprep.subr.bf16.mxu0 0
        %8533 = vmatpush1.bf16.msra.mxu0 0
        %8534 = vmatprep.subr.bf16.mxu0 0
        %8535 = vmatpush1.bf16.msra.mxu0 0
        %8536 = vmatprep.subr.bf16.mxu0 0
        %8537 = vmatpush1.bf16.msra.mxu0 0
        %8538 = vmatprep.subr.bf16.mxu0 0
        %8539 = vmatpush1.bf16.msra.mxu0 0
        %8540 = vmatprep.subr.bf16.mxu0 0
        %8541 = vmatpush1.bf16.msra.mxu0 0
        %8542 = vmatprep.subr.bf16.mxu0 0
        %8543 = vmatpush1.bf16.msra.mxu0 0
        %8544 = vmatprep.subr.bf16.mxu0 0
        %8545 = vmatpush1.bf16.msra.mxu0 0
        %8546 = vmatprep.subr.bf16.mxu0 0
        %8547 = vmatpush1.bf16.msra.mxu0 0
        %8548 = vmatprep.subr.bf16.mxu0 0
        %8549 = vmatpush1.bf16.msra.mxu0 0
        %8550 = vmatprep.subr.bf16.mxu0 0
        %8551 = vmatpush1.bf16.msra.mxu0 0
        %8552 = vmatprep.subr.bf16.mxu0 0
        %8553 = vmatpush1.bf16.msra.mxu0 0
        %8554 = vmatprep.mubr.bf16.mxu0 0
        %8555 = vmatmul.mubr.bf16.gmra.mrb[0].mxu0 %v8468
        %v8556 = vpop.f32.mrb[0].mxu0
        %v8557 = vadd.f32 %v8508, %v8556
        %v8558 = vpop.f32.mrb[0].mxu0
        %v8559 = vadd.f32 %v8510, %v8558
        %v8560 = vpop.f32.mrb[0].mxu0
        %v8561 = vadd.f32 %v8512, %v8560
        %v8562 = vpop.f32.mrb[0].mxu0
        %v8563 = vadd.f32 %v8514, %v8562
        %8564 = vmatprep.mubr.bf16.mxu0 0
        %8565 = vmatmul.mubr.bf16.gmra.mrb[0].mxu0 %v8471
        %v8566 = vpop.f32.mrb[0].mxu0
        %v8567 = vpop.f32.mrb[0].mxu0
        %v8568 = vpop.f32.mrb[0].mxu0
        %v8569 = vpop.f32.mrb[0].mxu0
        %8570 = vdwg.mxu0
        %8571 = vmatprep.subr.bf16.mxu0 %v8326
        %8572 = vmatpush1.bf16.msra.mxu0 %v8325
        %8573 = vmatprep.subr.bf16.mxu0 %v8330
        %8574 = vmatpush1.bf16.msra.mxu0 %v8329
        %8575 = vmatprep.subr.bf16.mxu0 %v8334
        %8576 = vmatpush1.bf16.msra.mxu0 %v8333
        %8577 = vmatprep.subr.bf16.mxu0 %v8338
        %8578 = vmatpush1.bf16.msra.mxu0 %v8337
        %8579 = vmatprep.subr.bf16.mxu0 %v8342
        %8580 = vmatpush1.bf16.msra.mxu0 %v8341
        %8581 = vmatprep.subr.bf16.mxu0 %v8346
        %8582 = vmatpush1.bf16.msra.mxu0 %v8345
        %8583 = vmatprep.subr.bf16.mxu0 %v8350
        %8584 = vmatpush1.bf16.msra.mxu0 %v8349
        %8585 = vmatprep.subr.bf16.mxu0 %v8354
        %8586 = vmatpush1.bf16.msra.mxu0 %v8353
        %8587 = vmatprep.subr.bf16.mxu0 %v8358
        %8588 = vmatpush1.bf16.msra.mxu0 %v8357
        %8589 = vmatprep.subr.bf16.mxu0 %v8362
        %8590 = vmatpush1.bf16.msra.mxu0 %v8361
        %8591 = vmatprep.subr.bf16.mxu0 %v8366
        %8592 = vmatpush1.bf16.msra.mxu0 %v8365
        %8593 = vmatprep.subr.bf16.mxu0 %v8370
        %8594 = vmatpush1.bf16.msra.mxu0 %v8369
        %8595 = vmatprep.subr.bf16.mxu0 %v8374
        %8596 = vmatpush1.bf16.msra.mxu0 %v8373
        %8597 = vmatprep.subr.bf16.mxu0 %v8378
        %8598 = vmatpush1.bf16.msra.mxu0 %v8377
        %8599 = vmatprep.subr.bf16.mxu0 %v8382
        %8600 = vmatpush1.bf16.msra.mxu0 %v8381
        %8601 = vmatprep.subr.bf16.mxu0 %v8386
        %8602 = vmatpush1.bf16.msra.mxu0 %v8385
        %8603 = vmatprep.mubr.bf16.mxu0 %v8099
        %8604 = vmatmul.mubr.bf16.gmra.mrb[0].mxu0 %v8096
        %v8605 = vpop.f32.mrb[0].mxu0
        %v8606 = vadd.f32 0.0, %v8605
        %v8607 = vpop.f32.mrb[0].mxu0
        %v8608 = vadd.f32 0.0, %v8607
        %v8609 = vpop.f32.mrb[0].mxu0
        %v8610 = vadd.f32 0.0, %v8609
        %v8611 = vpop.f32.mrb[0].mxu0
        %v8612 = vadd.f32 0.0, %v8611
        %8613 = vmatprep.mubr.bf16.mxu0 %v8098
        %8614 = vmatmul.mubr.bf16.gmra.mrb[0].mxu0 %v8095
        %v8615 = vpop.f32.mrb[0].mxu0
        %v8616 = vpop.f32.mrb[0].mxu0
        %v8617 = vpop.f32.mrb[0].mxu0
        %v8618 = vpop.f32.mrb[0].mxu0
        %8619 = vdwg.mxu0
        %8620 = vmatprep.subr.bf16.mxu0 %v8390
        %8621 = vmatpush1.bf16.msra.mxu0 %v8389
        %8622 = vmatprep.subr.bf16.mxu0 %v8394
        %8623 = vmatpush1.bf16.msra.mxu0 %v8393
        %8624 = vmatprep.subr.bf16.mxu0 0
        %8625 = vmatpush1.bf16.msra.mxu0 0
        %8626 = vmatprep.subr.bf16.mxu0 0
        %8627 = vmatpush1.bf16.msra.mxu0 0
        %8628 = vmatprep.subr.bf16.mxu0 0
        %8629 = vmatpush1.bf16.msra.mxu0 0
        %8630 = vmatprep.subr.bf16.mxu0 0
        %8631 = vmatpush1.bf16.msra.mxu0 0
        %8632 = vmatprep.subr.bf16.mxu0 0
        %8633 = vmatpush1.bf16.msra.mxu0 0
        %8634 = vmatprep.subr.bf16.mxu0 0
        %8635 = vmatpush1.bf16.msra.mxu0 0
        %8636 = vmatprep.subr.bf16.mxu0 0
        %8637 = vmatpush1.bf16.msra.mxu0 0
        %8638 = vmatprep.subr.bf16.mxu0 0
        %8639 = vmatpush1.bf16.msra.mxu0 0
        %8640 = vmatprep.subr.bf16.mxu0 0
        %8641 = vmatpush1.bf16.msra.mxu0 0
        %8642 = vmatprep.subr.bf16.mxu0 0
        %8643 = vmatpush1.bf16.msra.mxu0 0
        %8644 = vmatprep.subr.bf16.mxu0 0
        %8645 = vmatpush1.bf16.msra.mxu0 0
        %8646 = vmatprep.subr.bf16.mxu0 0
        %8647 = vmatpush1.bf16.msra.mxu0 0
        %8648 = vmatprep.subr.bf16.mxu0 0
        %8649 = vmatpush1.bf16.msra.mxu0 0
        %8650 = vmatprep.subr.bf16.mxu0 0
        %8651 = vmatpush1.bf16.msra.mxu0 0
        %8652 = vmatprep.mubr.bf16.mxu0 0
        %8653 = vmatmul.mubr.bf16.gmra.mrb[0].mxu0 %v8468
        %v8654 = vpop.f32.mrb[0].mxu0
        %v8655 = vadd.f32 %v8606, %v8654
        %v8656 = vpop.f32.mrb[0].mxu0
        %v8657 = vadd.f32 %v8608, %v8656
        %v8658 = vpop.f32.mrb[0].mxu0
        %v8659 = vadd.f32 %v8610, %v8658
        %v8660 = vpop.f32.mrb[0].mxu0
        %v8661 = vadd.f32 %v8612, %v8660
        %8662 = vmatprep.mubr.bf16.mxu0 0
        %8663 = vmatmul.mubr.bf16.gmra.mrb[0].mxu0 %v8471
        %v8664 = vpop.f32.mrb[0].mxu0
        %v8665 = vpop.f32.mrb[0].mxu0
        %v8666 = vpop.f32.mrb[0].mxu0
        %v8667 = vpop.f32.mrb[0].mxu0
        %8668 = vdwg.mxu0
        %v8669 = vadd.f32 %v7994, %v8557
        %v8670 = vadd.f32 %v7995, %v8559
        %v8671 = vadd.f32 %v7996, %v8655
        %v8672 = vadd.f32 %v7997, %v8657
        %v8673 = vadd.f32 %v7998, %v8561
        %v8674 = vadd.f32 %v7999, %v8563
        %v8675 = vadd.f32 %v8000, %v8659
        %v8676 = vadd.f32 %v8001, %v8661
        %v8677 = vld [vmem:[#allocation10] sm:$0xf]
        %v8679 = vlaneseq
        %v8680 = vshrl.u32 %v8679, 7
        %v8681 = vsub.s32 0, %v8680
        %v8682 = vrot.slane %v8677, %v8681
        %v8683 = vlaneseq
        %v8684 = vshrl.u32 %v8683, 7
        %v8685 = vsub.s32 1, %v8684
        %v8686 = vrot.slane %v8677, %v8685
        %v8687 = vlaneseq
        %v8688 = vshrl.u32 %v8687, 7
        %v8689 = vsub.s32 2, %v8688
        %v8690 = vrot.slane %v8677, %v8689
        %v8691 = vlaneseq
        %v8692 = vshrl.u32 %v8691, 7
        %v8693 = vsub.s32 3, %v8692
        %v8694 = vrot.slane %v8677, %v8693
        %v8699 = vadd.f32 %v8669, %v8682
        %v8700 = vadd.f32 %v8670, %v8686
        %v8701 = vadd.f32 %v8671, %v8690
        %v8702 = vadd.f32 %v8672, %v8694
        %v8703 = vadd.f32 %v8673, %v8682
        %v8704 = vadd.f32 %v8674, %v8686
        %v8705 = vadd.f32 %v8675, %v8690
        %v8706 = vadd.f32 %v8676, %v8694
        %v8707 = vmax.f32 %v8699, 0.0
        %v8708 = vmax.f32 %v8700, 0.0
        %v8709 = vmax.f32 %v8701, 0.0
        %v8710 = vmax.f32 %v8702, 0.0
        %v8711 = vmax.f32 %v8703, 0.0
        %v8712 = vmax.f32 %v8704, 0.0
        %v8713 = vmax.f32 %v8705, 0.0
        %v8714 = vmax.f32 %v8706, 0.0
        %8717 = vrot.lane.b32.xlu0 %v8707, 64
        %v8718 = vpop.permute.xlu0 %8717
        %8719 = vrot.lane.b32.xlu0 %v8711, 64
        %v8720 = vpop.permute.xlu0 %8719
        %8725 = vrot.lane.b32.xlu0 %v8708, 64
        %v8726 = vpop.permute.xlu0 %8725
        %8727 = vrot.lane.b32.xlu0 %v8712, 64
        %v8728 = vpop.permute.xlu0 %8727
        %8733 = vrot.lane.b32.xlu0 %v8709, 64
        %v8734 = vpop.permute.xlu0 %8733
        %8735 = vrot.lane.b32.xlu0 %v8713, 64
        %v8736 = vpop.permute.xlu0 %8735
        %v8739 = vcombine.low %v8707, %v8708
        %v8740 = vcombine.high %v8707, %v8708
        %v8742 = vunpack.c.l.s4 1983009808
        %v8743 = vunpack.c.0.s8 %v8742
        %v8744 = vlaneseq
        %v8745 = vshrl.u32 %v8744, 7
        %v8746 = vsub.s32 %v8743, %v8745
        %v8747 = vrot.slane %v8739, %v8746
        %v8749 = vunpack.c.l.s4 1983009808
        %v8750 = vunpack.c.0.s8 %v8749
        %v8751 = vlaneseq
        %v8752 = vshrl.u32 %v8751, 7
        %v8753 = vsub.s32 %v8750, %v8752
        %v8754 = vrot.slane %v8740, %v8753
        %v8755 = vcombine.low %v8718, %v8726
        %v8756 = vcombine.high %v8718, %v8726
        %v8758 = vunpack.c.l.s4 1983009808
        %v8759 = vunpack.c.0.s8 %v8758
        %v8760 = vlaneseq
        %v8761 = vshrl.u32 %v8760, 7
        %v8762 = vsub.s32 %v8759, %v8761
        %v8763 = vrot.slane %v8755, %v8762
        %v8765 = vunpack.c.l.s4 1983009808
        %v8766 = vunpack.c.0.s8 %v8765
        %v8767 = vlaneseq
        %v8768 = vshrl.u32 %v8767, 7
        %v8769 = vsub.s32 %v8766, %v8768
        %v8770 = vrot.slane %v8756, %v8769
        %v8771 = vcombine.low %v8709, %v8710
        %v8772 = vcombine.high %v8709, %v8710
        %v8774 = vunpack.c.l.s4 1983009808
        %v8775 = vunpack.c.0.s8 %v8774
        %v8776 = vlaneseq
        %v8777 = vshrl.u32 %v8776, 7
        %v8778 = vsub.s32 %v8775, %v8777
        %v8779 = vrot.slane %v8771, %v8778
        %v8781 = vunpack.c.l.s4 1983009808
        %v8782 = vunpack.c.0.s8 %v8781
        %v8783 = vlaneseq
        %v8784 = vshrl.u32 %v8783, 7
        %v8785 = vsub.s32 %v8782, %v8784
        %v8786 = vrot.slane %v8772, %v8785
        %v8787 = vcombine.high %v8734, 0.0
        %v8789 = vunpack.c.l.s4 1983009808
        %v8790 = vunpack.c.0.s8 %v8789
        %v8791 = vlaneseq
        %v8792 = vshrl.u32 %v8791, 7
        %v8793 = vsub.s32 %v8790, %v8792
        %v8794 = vrot.slane %v8734, %v8793
        %v8796 = vunpack.c.l.s4 1983009808
        %v8797 = vunpack.c.0.s8 %v8796
        %v8798 = vlaneseq
        %v8799 = vshrl.u32 %v8798, 7
        %v8800 = vsub.s32 %v8797, %v8799
        %v8801 = vrot.slane %v8787, %v8800
        %v8802 = vcombine.low %v8747, %v8763
        %v8803 = vcombine.high %v8747, %v8763
        %v8805 = vunpack.c.l.s4 1934713408
        %v8806 = vunpack.c.0.s8 %v8805
        %v8807 = vlaneseq
        %v8808 = vshrl.u32 %v8807, 7
        %v8809 = vsub.s32 %v8806, %v8808
        %v8810 = vrot.slane %v8802, %v8809
        %v8812 = vunpack.c.l.s4 1934713408
        %v8813 = vunpack.c.0.s8 %v8812
        %v8814 = vlaneseq
        %v8815 = vshrl.u32 %v8814, 7
        %v8816 = vsub.s32 %v8813, %v8815
        %v8817 = vrot.slane %v8803, %v8816
        %v8818 = vcombine.low %v8754, %v8770
        %v8819 = vcombine.high %v8754, %v8770
        %v8821 = vunpack.c.l.s4 1934713408
        %v8822 = vunpack.c.0.s8 %v8821
        %v8823 = vlaneseq
        %v8824 = vshrl.u32 %v8823, 7
        %v8825 = vsub.s32 %v8822, %v8824
        %v8826 = vrot.slane %v8818, %v8825
        %v8828 = vunpack.c.l.s4 1934713408
        %v8829 = vunpack.c.0.s8 %v8828
        %v8830 = vlaneseq
        %v8831 = vshrl.u32 %v8830, 7
        %v8832 = vsub.s32 %v8829, %v8831
        %v8833 = vrot.slane %v8819, %v8832
        %v8834 = vcombine.low %v8779, %v8794
        %v8835 = vcombine.high %v8779, %v8794
        %v8837 = vunpack.c.l.s4 1934713408
        %v8838 = vunpack.c.0.s8 %v8837
        %v8839 = vlaneseq
        %v8840 = vshrl.u32 %v8839, 7
        %v8841 = vsub.s32 %v8838, %v8840
        %v8842 = vrot.slane %v8834, %v8841
        %v8844 = vunpack.c.l.s4 1934713408
        %v8845 = vunpack.c.0.s8 %v8844
        %v8846 = vlaneseq
        %v8847 = vshrl.u32 %v8846, 7
        %v8848 = vsub.s32 %v8845, %v8847
        %v8849 = vrot.slane %v8835, %v8848
        %v8850 = vcombine.low %v8786, %v8801
        %v8851 = vcombine.high %v8786, %v8801
        %v8853 = vunpack.c.l.s4 1934713408
        %v8854 = vunpack.c.0.s8 %v8853
        %v8855 = vlaneseq
        %v8856 = vshrl.u32 %v8855, 7
        %v8857 = vsub.s32 %v8854, %v8856
        %v8858 = vrot.slane %v8850, %v8857
        %v8860 = vunpack.c.l.s4 1934713408
        %v8861 = vunpack.c.0.s8 %v8860
        %v8862 = vlaneseq
        %v8863 = vshrl.u32 %v8862, 7
        %v8864 = vsub.s32 %v8861, %v8863
        %v8865 = vrot.slane %v8851, %v8864
        %v8866 = vcombine.low %v8810, %v8842
        %v8867 = vcombine.high %v8810, %v8842
        %v8868 = vcombine.low %v8817, %v8849
        %v8869 = vcombine.high %v8817, %v8849
        %v8870 = vcombine.low %v8826, %v8858
        %v8871 = vcombine.high %v8826, %v8858
        %v8872 = vcombine.low %v8833, %v8865
        %v8873 = vcombine.high %v8833, %v8865
        %v8874 = vcombine.low %v8711, %v8712
        %v8875 = vcombine.high %v8711, %v8712
        %v8877 = vunpack.c.l.s4 1983009808
        %v8878 = vunpack.c.0.s8 %v8877
        %v8879 = vlaneseq
        %v8880 = vshrl.u32 %v8879, 7
        %v8881 = vsub.s32 %v8878, %v8880
        %v8882 = vrot.slane %v8874, %v8881
        %v8884 = vunpack.c.l.s4 1983009808
        %v8885 = vunpack.c.0.s8 %v8884
        %v8886 = vlaneseq
        %v8887 = vshrl.u32 %v8886, 7
        %v8888 = vsub.s32 %v8885, %v8887
        %v8889 = vrot.slane %v8875, %v8888
        %v8890 = vcombine.low %v8720, %v8728
        %v8891 = vcombine.high %v8720, %v8728
        %v8893 = vunpack.c.l.s4 1983009808
        %v8894 = vunpack.c.0.s8 %v8893
        %v8895 = vlaneseq
        %v8896 = vshrl.u32 %v8895, 7
        %v8897 = vsub.s32 %v8894, %v8896
        %v8898 = vrot.slane %v8890, %v8897
        %v8900 = vunpack.c.l.s4 1983009808
        %v8901 = vunpack.c.0.s8 %v8900
        %v8902 = vlaneseq
        %v8903 = vshrl.u32 %v8902, 7
        %v8904 = vsub.s32 %v8901, %v8903
        %v8905 = vrot.slane %v8891, %v8904
        %v8906 = vcombine.low %v8713, %v8714
        %v8907 = vcombine.high %v8713, %v8714
        %v8909 = vunpack.c.l.s4 1983009808
        %v8910 = vunpack.c.0.s8 %v8909
        %v8911 = vlaneseq
        %v8912 = vshrl.u32 %v8911, 7
        %v8913 = vsub.s32 %v8910, %v8912
        %v8914 = vrot.slane %v8906, %v8913
        %v8916 = vunpack.c.l.s4 1983009808
        %v8917 = vunpack.c.0.s8 %v8916
        %v8918 = vlaneseq
        %v8919 = vshrl.u32 %v8918, 7
        %v8920 = vsub.s32 %v8917, %v8919
        %v8921 = vrot.slane %v8907, %v8920
        %v8922 = vcombine.high %v8736, 0.0
        %v8924 = vunpack.c.l.s4 1983009808
        %v8925 = vunpack.c.0.s8 %v8924
        %v8926 = vlaneseq
        %v8927 = vshrl.u32 %v8926, 7
        %v8928 = vsub.s32 %v8925, %v8927
        %v8929 = vrot.slane %v8736, %v8928
        %v8931 = vunpack.c.l.s4 1983009808
        %v8932 = vunpack.c.0.s8 %v8931
        %v8933 = vlaneseq
        %v8934 = vshrl.u32 %v8933, 7
        %v8935 = vsub.s32 %v8932, %v8934
        %v8936 = vrot.slane %v8922, %v8935
        %v8937 = vcombine.low %v8882, %v8898
        %v8938 = vcombine.high %v8882, %v8898
        %v8940 = vunpack.c.l.s4 1934713408
        %v8941 = vunpack.c.0.s8 %v8940
        %v8942 = vlaneseq
        %v8943 = vshrl.u32 %v8942, 7
        %v8944 = vsub.s32 %v8941, %v8943
        %v8945 = vrot.slane %v8937, %v8944
        %v8947 = vunpack.c.l.s4 1934713408
        %v8948 = vunpack.c.0.s8 %v8947
        %v8949 = vlaneseq
        %v8950 = vshrl.u32 %v8949, 7
        %v8951 = vsub.s32 %v8948, %v8950
        %v8952 = vrot.slane %v8938, %v8951
        %v8953 = vcombine.low %v8889, %v8905
        %v8955 = vunpack.c.l.s4 1934713408
        %v8956 = vunpack.c.0.s8 %v8955
        %v8957 = vlaneseq
        %v8958 = vshrl.u32 %v8957, 7
        %v8959 = vsub.s32 %v8956, %v8958
        %v8960 = vrot.slane %v8953, %v8959
        %v8961 = vcombine.low %v8914, %v8929
        %v8962 = vcombine.high %v8914, %v8929
        %v8964 = vunpack.c.l.s4 1934713408
        %v8965 = vunpack.c.0.s8 %v8964
        %v8966 = vlaneseq
        %v8967 = vshrl.u32 %v8966, 7
        %v8968 = vsub.s32 %v8965, %v8967
        %v8969 = vrot.slane %v8961, %v8968
        %v8971 = vunpack.c.l.s4 1934713408
        %v8972 = vunpack.c.0.s8 %v8971
        %v8973 = vlaneseq
        %v8974 = vshrl.u32 %v8973, 7
        %v8975 = vsub.s32 %v8972, %v8974
        %v8976 = vrot.slane %v8962, %v8975
        %v8977 = vcombine.low %v8921, %v8936
        %v8979 = vunpack.c.l.s4 1934713408
        %v8980 = vunpack.c.0.s8 %v8979
        %v8981 = vlaneseq
        %v8982 = vshrl.u32 %v8981, 7
        %v8983 = vsub.s32 %v8980, %v8982
        %v8984 = vrot.slane %v8977, %v8983
        %v8985 = vcombine.low %v8945, %v8969
        %v8986 = vcombine.high %v8945, %v8969
        %v8987 = vcombine.low %v8952, %v8976
        %v8988 = vcombine.high %v8952, %v8976
        %v8989 = vcombine.low %v8960, %v8984
        %v8990 = vcombine.high %v8960, %v8984
        %9005 = vrot.lane.b32.xlu0 %v8866, 96
        %v9006 = vpop.permute.xlu0 %9005
        %9007 = vrot.lane.b32.xlu0 %v8867, 96
        %v9008 = vpop.permute.xlu0 %9007
        %9009 = vrot.lane.b32.xlu0 %v8868, 96
        %v9010 = vpop.permute.xlu0 %9009
        %9011 = vrot.lane.b32.xlu0 %v8869, 96
        %v9012 = vpop.permute.xlu0 %9011
        %9013 = vrot.lane.b32.xlu0 %v8870, 96
        %v9014 = vpop.permute.xlu0 %9013
        %9015 = vrot.lane.b32.xlu0 %v8871, 96
        %v9016 = vpop.permute.xlu0 %9015
        %9017 = vrot.lane.b32.xlu0 %v8872, 96
        %v9018 = vpop.permute.xlu0 %9017
        %9019 = vrot.lane.b32.xlu0 %v8873, 96
        %v9020 = vpop.permute.xlu0 %9019
        %9021 = vrot.lane.b32.xlu0 %v8985, 96
        %v9022 = vpop.permute.xlu0 %9021
        %9023 = vrot.lane.b32.xlu0 %v8986, 96
        %v9024 = vpop.permute.xlu0 %9023
        %9025 = vrot.lane.b32.xlu0 %v8987, 96
        %v9026 = vpop.permute.xlu0 %9025
        %9027 = vrot.lane.b32.xlu0 %v8988, 96
        %v9028 = vpop.permute.xlu0 %9027
        %9029 = vrot.lane.b32.xlu0 %v8989, 96
        %v9030 = vpop.permute.xlu0 %9029
        %9031 = vrot.lane.b32.xlu0 %v8990, 96
        %v9032 = vpop.permute.xlu0 %9031
        %v9047 = vmax.f32 %v8866, %v9006
        %v9048 = vmax.f32 %v8867, %v9008
        %v9049 = vmax.f32 %v8868, %v9010
        %v9050 = vmax.f32 %v8869, %v9012
        %v9051 = vmax.f32 %v8870, %v9014
        %v9052 = vmax.f32 %v8871, %v9016
        %v9053 = vmax.f32 %v8872, %v9018
        %v9054 = vmax.f32 %v8873, %v9020
        %v9055 = vmax.f32 %v8985, %v9022
        %v9056 = vmax.f32 %v8986, %v9024
        %v9057 = vmax.f32 %v8987, %v9026
        %v9058 = vmax.f32 %v8988, %v9028
        %v9059 = vmax.f32 %v8989, %v9030
        %v9060 = vmax.f32 %v8990, %v9032
        %v9061 = vcombine.high %v9047, 0.0
        %v9063 = vunpack.c.l.s4 1983009808
        %v9064 = vunpack.c.0.s8 %v9063
        %v9065 = vlaneseq
        %v9066 = vshrl.u32 %v9065, 7
        %v9067 = vsub.s32 %v9064, %v9066
        %v9068 = vrot.slane %v9047, %v9067
        %v9070 = vunpack.c.l.s4 1983009808
        %v9071 = vunpack.c.0.s8 %v9070
        %v9072 = vlaneseq
        %v9073 = vshrl.u32 %v9072, 7
        %v9074 = vsub.s32 %v9071, %v9073
        %v9075 = vrot.slane %v9061, %v9074
        %v9076 = vcombine.high %v9048, 0.0
        %v9078 = vunpack.c.l.s4 1983009808
        %v9079 = vunpack.c.0.s8 %v9078
        %v9080 = vlaneseq
        %v9081 = vshrl.u32 %v9080, 7
        %v9082 = vsub.s32 %v9079, %v9081
        %v9083 = vrot.slane %v9048, %v9082
        %v9085 = vunpack.c.l.s4 1983009808
        %v9086 = vunpack.c.0.s8 %v9085
        %v9087 = vlaneseq
        %v9088 = vshrl.u32 %v9087, 7
        %v9089 = vsub.s32 %v9086, %v9088
        %v9090 = vrot.slane %v9076, %v9089
        %v9091 = vcombine.low %v9068, %v9083
        %v9092 = vcombine.high %v9068, %v9083
        %v9094 = vunpack.c.l.s4 1934713408
        %v9095 = vunpack.c.0.s8 %v9094
        %v9096 = vlaneseq
        %v9097 = vshrl.u32 %v9096, 7
        %v9098 = vsub.s32 %v9095, %v9097
        %v9099 = vrot.slane %v9091, %v9098
        %v9101 = vunpack.c.l.s4 1934713408
        %v9102 = vunpack.c.0.s8 %v9101
        %v9103 = vlaneseq
        %v9104 = vshrl.u32 %v9103, 7
        %v9105 = vsub.s32 %v9102, %v9104
        %v9106 = vrot.slane %v9092, %v9105
        %v9107 = vcombine.low %v9075, %v9090
        %v9108 = vcombine.high %v9075, %v9090
        %v9110 = vunpack.c.l.s4 1934713408
        %v9111 = vunpack.c.0.s8 %v9110
        %v9112 = vlaneseq
        %v9113 = vshrl.u32 %v9112, 7
        %v9114 = vsub.s32 %v9111, %v9113
        %v9115 = vrot.slane %v9107, %v9114
        %v9116 = vcombine.high %v9099, 0.0
        %v9117 = vcombine.high %v9106, 0.0
        %v9118 = vcombine.high %v9115, 0.0
        %v9120 = vunpack.c.l.s4 1934713408
        %v9121 = vunpack.c.0.s8 %v9120
        %v9122 = vlaneseq
        %v9123 = vshrl.u32 %v9122, 7
        %v9124 = vsub.s32 %v9121, %v9123
        %v9125 = vrot.slane %v9108, %v9124
        %v9126 = vcombine.high %v9049, 0.0
        %v9128 = vunpack.c.l.s4 1983009808
        %v9129 = vunpack.c.0.s8 %v9128
        %v9130 = vlaneseq
        %v9131 = vshrl.u32 %v9130, 7
        %v9132 = vsub.s32 %v9129, %v9131
        %v9133 = vrot.slane %v9049, %v9132
        %v9135 = vunpack.c.l.s4 1983009808
        %v9136 = vunpack.c.0.s8 %v9135
        %v9137 = vlaneseq
        %v9138 = vshrl.u32 %v9137, 7
        %v9139 = vsub.s32 %v9136, %v9138
        %v9140 = vrot.slane %v9126, %v9139
        %v9141 = vcombine.high %v9050, 0.0
        %v9143 = vunpack.c.l.s4 1983009808
        %v9144 = vunpack.c.0.s8 %v9143
        %v9145 = vlaneseq
        %v9146 = vshrl.u32 %v9145, 7
        %v9147 = vsub.s32 %v9144, %v9146
        %v9148 = vrot.slane %v9050, %v9147
        %v9150 = vunpack.c.l.s4 1983009808
        %v9151 = vunpack.c.0.s8 %v9150
        %v9152 = vlaneseq
        %v9153 = vshrl.u32 %v9152, 7
        %v9154 = vsub.s32 %v9151, %v9153
        %v9155 = vrot.slane %v9141, %v9154
        %v9156 = vcombine.low %v9133, %v9148
        %v9157 = vcombine.high %v9133, %v9148
        %v9159 = vunpack.c.l.s4 1934713408
        %v9160 = vunpack.c.0.s8 %v9159
        %v9161 = vlaneseq
        %v9162 = vshrl.u32 %v9161, 7
        %v9163 = vsub.s32 %v9160, %v9162
        %v9164 = vrot.slane %v9156, %v9163
        %v9166 = vunpack.c.l.s4 1934713408
        %v9167 = vunpack.c.0.s8 %v9166
        %v9168 = vlaneseq
        %v9169 = vshrl.u32 %v9168, 7
        %v9170 = vsub.s32 %v9167, %v9169
        %v9171 = vrot.slane %v9157, %v9170
        %v9172 = vcombine.low %v9140, %v9155
        %v9173 = vcombine.high %v9140, %v9155
        %v9175 = vunpack.c.l.s4 1934713408
        %v9176 = vunpack.c.0.s8 %v9175
        %v9177 = vlaneseq
        %v9178 = vshrl.u32 %v9177, 7
        %v9179 = vsub.s32 %v9176, %v9178
        %v9180 = vrot.slane %v9172, %v9179
        %v9181 = vcombine.high %v9164, 0.0
        %v9182 = vcombine.high %v9171, 0.0
        %v9183 = vcombine.high %v9180, 0.0
        %v9185 = vunpack.c.l.s4 1934713408
        %v9186 = vunpack.c.0.s8 %v9185
        %v9187 = vlaneseq
        %v9188 = vshrl.u32 %v9187, 7
        %v9189 = vsub.s32 %v9186, %v9188
        %v9190 = vrot.slane %v9173, %v9189
        %v9191 = vcombine.high %v9051, 0.0
        %v9193 = vunpack.c.l.s4 1983009808
        %v9194 = vunpack.c.0.s8 %v9193
        %v9195 = vlaneseq
        %v9196 = vshrl.u32 %v9195, 7
        %v9197 = vsub.s32 %v9194, %v9196
        %v9198 = vrot.slane %v9051, %v9197
        %v9200 = vunpack.c.l.s4 1983009808
        %v9201 = vunpack.c.0.s8 %v9200
        %v9202 = vlaneseq
        %v9203 = vshrl.u32 %v9202, 7
        %v9204 = vsub.s32 %v9201, %v9203
        %v9205 = vrot.slane %v9191, %v9204
        %v9206 = vcombine.high %v9052, 0.0
        %v9208 = vunpack.c.l.s4 1983009808
        %v9209 = vunpack.c.0.s8 %v9208
        %v9210 = vlaneseq
        %v9211 = vshrl.u32 %v9210, 7
        %v9212 = vsub.s32 %v9209, %v9211
        %v9213 = vrot.slane %v9052, %v9212
        %v9215 = vunpack.c.l.s4 1983009808
        %v9216 = vunpack.c.0.s8 %v9215
        %v9217 = vlaneseq
        %v9218 = vshrl.u32 %v9217, 7
        %v9219 = vsub.s32 %v9216, %v9218
        %v9220 = vrot.slane %v9206, %v9219
        %v9221 = vcombine.low %v9198, %v9213
        %v9222 = vcombine.high %v9198, %v9213
        %v9224 = vunpack.c.l.s4 1934713408
        %v9225 = vunpack.c.0.s8 %v9224
        %v9226 = vlaneseq
        %v9227 = vshrl.u32 %v9226, 7
        %v9228 = vsub.s32 %v9225, %v9227
        %v9229 = vrot.slane %v9221, %v9228
        %v9231 = vunpack.c.l.s4 1934713408
        %v9232 = vunpack.c.0.s8 %v9231
        %v9233 = vlaneseq
        %v9234 = vshrl.u32 %v9233, 7
        %v9235 = vsub.s32 %v9232, %v9234
        %v9236 = vrot.slane %v9222, %v9235
        %v9237 = vcombine.low %v9205, %v9220
        %v9238 = vcombine.high %v9205, %v9220
        %v9240 = vunpack.c.l.s4 1934713408
        %v9241 = vunpack.c.0.s8 %v9240
        %v9242 = vlaneseq
        %v9243 = vshrl.u32 %v9242, 7
        %v9244 = vsub.s32 %v9241, %v9243
        %v9245 = vrot.slane %v9237, %v9244
        %v9246 = vcombine.high %v9229, 0.0
        %v9247 = vcombine.high %v9236, 0.0
        %v9248 = vcombine.high %v9245, 0.0
        %v9250 = vunpack.c.l.s4 1934713408
        %v9251 = vunpack.c.0.s8 %v9250
        %v9252 = vlaneseq
        %v9253 = vshrl.u32 %v9252, 7
        %v9254 = vsub.s32 %v9251, %v9253
        %v9255 = vrot.slane %v9238, %v9254
        %v9256 = vcombine.high %v9053, 0.0
        %v9258 = vunpack.c.l.s4 1983009808
        %v9259 = vunpack.c.0.s8 %v9258
        %v9260 = vlaneseq
        %v9261 = vshrl.u32 %v9260, 7
        %v9262 = vsub.s32 %v9259, %v9261
        %v9263 = vrot.slane %v9053, %v9262
        %v9265 = vunpack.c.l.s4 1983009808
        %v9266 = vunpack.c.0.s8 %v9265
        %v9267 = vlaneseq
        %v9268 = vshrl.u32 %v9267, 7
        %v9269 = vsub.s32 %v9266, %v9268
        %v9270 = vrot.slane %v9256, %v9269
        %v9271 = vcombine.high %v9054, 0.0
        %v9273 = vunpack.c.l.s4 1983009808
        %v9274 = vunpack.c.0.s8 %v9273
        %v9275 = vlaneseq
        %v9276 = vshrl.u32 %v9275, 7
        %v9277 = vsub.s32 %v9274, %v9276
        %v9278 = vrot.slane %v9054, %v9277
        %v9280 = vunpack.c.l.s4 1983009808
        %v9281 = vunpack.c.0.s8 %v9280
        %v9282 = vlaneseq
        %v9283 = vshrl.u32 %v9282, 7
        %v9284 = vsub.s32 %v9281, %v9283
        %v9285 = vrot.slane %v9271, %v9284
        %v9286 = vcombine.low %v9263, %v9278
        %v9287 = vcombine.high %v9263, %v9278
        %v9289 = vunpack.c.l.s4 1934713408
        %v9290 = vunpack.c.0.s8 %v9289
        %v9291 = vlaneseq
        %v9292 = vshrl.u32 %v9291, 7
        %v9293 = vsub.s32 %v9290, %v9292
        %v9294 = vrot.slane %v9286, %v9293
        %v9296 = vunpack.c.l.s4 1934713408
        %v9297 = vunpack.c.0.s8 %v9296
        %v9298 = vlaneseq
        %v9299 = vshrl.u32 %v9298, 7
        %v9300 = vsub.s32 %v9297, %v9299
        %v9301 = vrot.slane %v9287, %v9300
        %v9302 = vcombine.low %v9270, %v9285
        %v9303 = vcombine.high %v9270, %v9285
        %v9305 = vunpack.c.l.s4 1934713408
        %v9306 = vunpack.c.0.s8 %v9305
        %v9307 = vlaneseq
        %v9308 = vshrl.u32 %v9307, 7
        %v9309 = vsub.s32 %v9306, %v9308
        %v9310 = vrot.slane %v9302, %v9309
        %v9311 = vcombine.high %v9294, 0.0
        %v9312 = vcombine.high %v9301, 0.0
        %v9313 = vcombine.high %v9310, 0.0
        %v9315 = vunpack.c.l.s4 1934713408
        %v9316 = vunpack.c.0.s8 %v9315
        %v9317 = vlaneseq
        %v9318 = vshrl.u32 %v9317, 7
        %v9319 = vsub.s32 %v9316, %v9318
        %v9320 = vrot.slane %v9303, %v9319
        %v9321 = vcombine.high %v9055, 0.0
        %v9323 = vunpack.c.l.s4 1983009808
        %v9324 = vunpack.c.0.s8 %v9323
        %v9325 = vlaneseq
        %v9326 = vshrl.u32 %v9325, 7
        %v9327 = vsub.s32 %v9324, %v9326
        %v9328 = vrot.slane %v9055, %v9327
        %v9330 = vunpack.c.l.s4 1983009808
        %v9331 = vunpack.c.0.s8 %v9330
        %v9332 = vlaneseq
        %v9333 = vshrl.u32 %v9332, 7
        %v9334 = vsub.s32 %v9331, %v9333
        %v9335 = vrot.slane %v9321, %v9334
        %v9336 = vcombine.high %v9056, 0.0
        %v9338 = vunpack.c.l.s4 1983009808
        %v9339 = vunpack.c.0.s8 %v9338
        %v9340 = vlaneseq
        %v9341 = vshrl.u32 %v9340, 7
        %v9342 = vsub.s32 %v9339, %v9341
        %v9343 = vrot.slane %v9056, %v9342
        %v9345 = vunpack.c.l.s4 1983009808
        %v9346 = vunpack.c.0.s8 %v9345
        %v9347 = vlaneseq
        %v9348 = vshrl.u32 %v9347, 7
        %v9349 = vsub.s32 %v9346, %v9348
        %v9350 = vrot.slane %v9336, %v9349
        %v9351 = vcombine.low %v9328, %v9343
        %v9352 = vcombine.high %v9328, %v9343
        %v9354 = vunpack.c.l.s4 1934713408
        %v9355 = vunpack.c.0.s8 %v9354
        %v9356 = vlaneseq
        %v9357 = vshrl.u32 %v9356, 7
        %v9358 = vsub.s32 %v9355, %v9357
        %v9359 = vrot.slane %v9351, %v9358
        %v9361 = vunpack.c.l.s4 1934713408
        %v9362 = vunpack.c.0.s8 %v9361
        %v9363 = vlaneseq
        %v9364 = vshrl.u32 %v9363, 7
        %v9365 = vsub.s32 %v9362, %v9364
        %v9366 = vrot.slane %v9352, %v9365
        %v9367 = vcombine.low %v9335, %v9350
        %v9368 = vcombine.high %v9335, %v9350
        %v9370 = vunpack.c.l.s4 1934713408
        %v9371 = vunpack.c.0.s8 %v9370
        %v9372 = vlaneseq
        %v9373 = vshrl.u32 %v9372, 7
        %v9374 = vsub.s32 %v9371, %v9373
        %v9375 = vrot.slane %v9367, %v9374
        %v9376 = vcombine.high %v9359, 0.0
        %v9377 = vcombine.high %v9366, 0.0
        %v9378 = vcombine.high %v9375, 0.0
        %v9380 = vunpack.c.l.s4 1934713408
        %v9381 = vunpack.c.0.s8 %v9380
        %v9382 = vlaneseq
        %v9383 = vshrl.u32 %v9382, 7
        %v9384 = vsub.s32 %v9381, %v9383
        %v9385 = vrot.slane %v9368, %v9384
        %v9386 = vcombine.high %v9057, 0.0
        %v9388 = vunpack.c.l.s4 1983009808
        %v9389 = vunpack.c.0.s8 %v9388
        %v9390 = vlaneseq
        %v9391 = vshrl.u32 %v9390, 7
        %v9392 = vsub.s32 %v9389, %v9391
        %v9393 = vrot.slane %v9057, %v9392
        %v9395 = vunpack.c.l.s4 1983009808
        %v9396 = vunpack.c.0.s8 %v9395
        %v9397 = vlaneseq
        %v9398 = vshrl.u32 %v9397, 7
        %v9399 = vsub.s32 %v9396, %v9398
        %v9400 = vrot.slane %v9386, %v9399
        %v9401 = vcombine.high %v9058, 0.0
        %v9403 = vunpack.c.l.s4 1983009808
        %v9404 = vunpack.c.0.s8 %v9403
        %v9405 = vlaneseq
        %v9406 = vshrl.u32 %v9405, 7
        %v9407 = vsub.s32 %v9404, %v9406
        %v9408 = vrot.slane %v9058, %v9407
        %v9410 = vunpack.c.l.s4 1983009808
        %v9411 = vunpack.c.0.s8 %v9410
        %v9412 = vlaneseq
        %v9413 = vshrl.u32 %v9412, 7
        %v9414 = vsub.s32 %v9411, %v9413
        %v9415 = vrot.slane %v9401, %v9414
        %v9416 = vcombine.low %v9393, %v9408
        %v9417 = vcombine.high %v9393, %v9408
        %v9419 = vunpack.c.l.s4 1934713408
        %v9420 = vunpack.c.0.s8 %v9419
        %v9421 = vlaneseq
        %v9422 = vshrl.u32 %v9421, 7
        %v9423 = vsub.s32 %v9420, %v9422
        %v9424 = vrot.slane %v9416, %v9423
        %v9426 = vunpack.c.l.s4 1934713408
        %v9427 = vunpack.c.0.s8 %v9426
        %v9428 = vlaneseq
        %v9429 = vshrl.u32 %v9428, 7
        %v9430 = vsub.s32 %v9427, %v9429
        %v9431 = vrot.slane %v9417, %v9430
        %v9432 = vcombine.low %v9400, %v9415
        %v9433 = vcombine.high %v9400, %v9415
        %v9435 = vunpack.c.l.s4 1934713408
        %v9436 = vunpack.c.0.s8 %v9435
        %v9437 = vlaneseq
        %v9438 = vshrl.u32 %v9437, 7
        %v9439 = vsub.s32 %v9436, %v9438
        %v9440 = vrot.slane %v9432, %v9439
        %v9441 = vcombine.high %v9424, 0.0
        %v9442 = vcombine.high %v9431, 0.0
        %v9443 = vcombine.high %v9440, 0.0
        %v9445 = vunpack.c.l.s4 1934713408
        %v9446 = vunpack.c.0.s8 %v9445
        %v9447 = vlaneseq
        %v9448 = vshrl.u32 %v9447, 7
        %v9449 = vsub.s32 %v9446, %v9448
        %v9450 = vrot.slane %v9433, %v9449
        %v9451 = vcombine.high %v9059, 0.0
        %v9453 = vunpack.c.l.s4 1983009808
        %v9454 = vunpack.c.0.s8 %v9453
        %v9455 = vlaneseq
        %v9456 = vshrl.u32 %v9455, 7
        %v9457 = vsub.s32 %v9454, %v9456
        %v9458 = vrot.slane %v9059, %v9457
        %v9460 = vunpack.c.l.s4 1983009808
        %v9461 = vunpack.c.0.s8 %v9460
        %v9462 = vlaneseq
        %v9463 = vshrl.u32 %v9462, 7
        %v9464 = vsub.s32 %v9461, %v9463
        %v9465 = vrot.slane %v9451, %v9464
        %v9466 = vcombine.high %v9060, 0.0
        %v9468 = vunpack.c.l.s4 1983009808
        %v9469 = vunpack.c.0.s8 %v9468
        %v9470 = vlaneseq
        %v9471 = vshrl.u32 %v9470, 7
        %v9472 = vsub.s32 %v9469, %v9471
        %v9473 = vrot.slane %v9060, %v9472
        %v9475 = vunpack.c.l.s4 1983009808
        %v9476 = vunpack.c.0.s8 %v9475
        %v9477 = vlaneseq
        %v9478 = vshrl.u32 %v9477, 7
        %v9479 = vsub.s32 %v9476, %v9478
        %v9480 = vrot.slane %v9466, %v9479
        %v9481 = vcombine.low %v9458, %v9473
        %v9482 = vcombine.high %v9458, %v9473
        %v9484 = vunpack.c.l.s4 1934713408
        %v9485 = vunpack.c.0.s8 %v9484
        %v9486 = vlaneseq
        %v9487 = vshrl.u32 %v9486, 7
        %v9488 = vsub.s32 %v9485, %v9487
        %v9489 = vrot.slane %v9481, %v9488
        %v9491 = vunpack.c.l.s4 1934713408
        %v9492 = vunpack.c.0.s8 %v9491
        %v9493 = vlaneseq
        %v9494 = vshrl.u32 %v9493, 7
        %v9495 = vsub.s32 %v9492, %v9494
        %v9496 = vrot.slane %v9482, %v9495
        %v9497 = vcombine.low %v9465, %v9480
        %v9498 = vcombine.high %v9465, %v9480
        %v9500 = vunpack.c.l.s4 1934713408
        %v9501 = vunpack.c.0.s8 %v9500
        %v9502 = vlaneseq
        %v9503 = vshrl.u32 %v9502, 7
        %v9504 = vsub.s32 %v9501, %v9503
        %v9505 = vrot.slane %v9497, %v9504
        %v9506 = vcombine.high %v9489, 0.0
        %v9507 = vcombine.high %v9496, 0.0
        %v9508 = vcombine.high %v9505, 0.0
        %v9510 = vunpack.c.l.s4 1934713408
        %v9511 = vunpack.c.0.s8 %v9510
        %v9512 = vlaneseq
        %v9513 = vshrl.u32 %v9512, 7
        %v9514 = vsub.s32 %v9511, %v9513
        %v9515 = vrot.slane %v9498, %v9514
        %9523 = vrot.lane.b32.xlu0 %v9116, 32
        %v9524 = vpop.permute.xlu0 %9523
        %9525 = vrot.lane.b32.xlu0 %v9181, 32
        %v9526 = vpop.permute.xlu0 %9525
        %9527 = vrot.lane.b32.xlu0 %v9246, 32
        %v9528 = vpop.permute.xlu0 %9527
        %9529 = vrot.lane.b32.xlu0 %v9311, 32
        %v9530 = vpop.permute.xlu0 %9529
        %9531 = vrot.lane.b32.xlu0 %v9376, 32
        %v9532 = vpop.permute.xlu0 %9531
        %9533 = vrot.lane.b32.xlu0 %v9441, 32
        %v9534 = vpop.permute.xlu0 %9533
        %9535 = vrot.lane.b32.xlu0 %v9506, 32
        %v9536 = vpop.permute.xlu0 %9535
        %9551 = vrot.lane.b32.xlu0 %v9106, 64
        %v9552 = vpop.permute.xlu0 %9551
        %9553 = vrot.lane.b32.xlu0 %v9171, 64
        %v9554 = vpop.permute.xlu0 %9553
        %9555 = vrot.lane.b32.xlu0 %v9236, 64
        %v9556 = vpop.permute.xlu0 %9555
        %9557 = vrot.lane.b32.xlu0 %v9301, 64
        %v9558 = vpop.permute.xlu0 %9557
        %9559 = vrot.lane.b32.xlu0 %v9366, 64
        %v9560 = vpop.permute.xlu0 %9559
        %9561 = vrot.lane.b32.xlu0 %v9431, 64
        %v9562 = vpop.permute.xlu0 %9561
        %9563 = vrot.lane.b32.xlu0 %v9496, 64
        %v9564 = vpop.permute.xlu0 %9563
        %9579 = vrot.lane.b32.xlu0 %v9117, 96
        %v9580 = vpop.permute.xlu0 %9579
        %9581 = vrot.lane.b32.xlu0 %v9182, 96
        %v9582 = vpop.permute.xlu0 %9581
        %9583 = vrot.lane.b32.xlu0 %v9247, 96
        %v9584 = vpop.permute.xlu0 %9583
        %9585 = vrot.lane.b32.xlu0 %v9312, 96
        %v9586 = vpop.permute.xlu0 %9585
        %9587 = vrot.lane.b32.xlu0 %v9377, 96
        %v9588 = vpop.permute.xlu0 %9587
        %9589 = vrot.lane.b32.xlu0 %v9442, 96
        %v9590 = vpop.permute.xlu0 %9589
        %9591 = vrot.lane.b32.xlu0 %v9507, 96
        %v9592 = vpop.permute.xlu0 %9591
        %9607 = vrot.lane.b32.xlu0 %v9118, 32
        %v9608 = vpop.permute.xlu0 %9607
        %9609 = vrot.lane.b32.xlu0 %v9183, 32
        %v9610 = vpop.permute.xlu0 %9609
        %9611 = vrot.lane.b32.xlu0 %v9248, 32
        %v9612 = vpop.permute.xlu0 %9611
        %9613 = vrot.lane.b32.xlu0 %v9313, 32
        %v9614 = vpop.permute.xlu0 %9613
        %9615 = vrot.lane.b32.xlu0 %v9378, 32
        %v9616 = vpop.permute.xlu0 %9615
        %9617 = vrot.lane.b32.xlu0 %v9443, 32
        %v9618 = vpop.permute.xlu0 %9617
        %9619 = vrot.lane.b32.xlu0 %v9508, 32
        %v9620 = vpop.permute.xlu0 %9619
        %9635 = vrot.lane.b32.xlu0 %v9125, 64
        %v9636 = vpop.permute.xlu0 %9635
        %9637 = vrot.lane.b32.xlu0 %v9190, 64
        %v9638 = vpop.permute.xlu0 %9637
        %9639 = vrot.lane.b32.xlu0 %v9255, 64
        %v9640 = vpop.permute.xlu0 %9639
        %9641 = vrot.lane.b32.xlu0 %v9320, 64
        %v9642 = vpop.permute.xlu0 %9641
        %9643 = vrot.lane.b32.xlu0 %v9385, 64
        %v9644 = vpop.permute.xlu0 %9643
        %9645 = vrot.lane.b32.xlu0 %v9450, 64
        %v9646 = vpop.permute.xlu0 %9645
        %9647 = vrot.lane.b32.xlu0 %v9515, 64
        %v9648 = vpop.permute.xlu0 %9647
        %v9656 = vsel %vm344, %v9099, %v9524
        %v9657 = vsel %vm344, %v9164, %v9526
        %v9658 = vsel %vm344, %v9229, %v9528
        %v9659 = vsel %vm344, %v9294, %v9530
        %v9660 = vsel %vm344, %v9359, %v9532
        %v9661 = vsel %vm344, %v9424, %v9534
        %v9662 = vsel %vm344, %v9489, %v9536
        %v9663 = vsel %vm4923, %v9656, %v9552
        %v9664 = vsel %vm4923, %v9657, %v9554
        %v9665 = vsel %vm4923, %v9658, %v9556
        %v9666 = vsel %vm4923, %v9659, %v9558
        %v9667 = vsel %vm4923, %v9660, %v9560
        %v9668 = vsel %vm4923, %v9661, %v9562
        %v9669 = vsel %vm4923, %v9662, %v9564
        %v9670 = vsel %vm4953, %v9663, %v9580
        %v9671 = vsel %vm4953, %v9664, %v9582
        %v9672 = vsel %vm4953, %v9665, %v9584
        %v9673 = vsel %vm4953, %v9666, %v9586
        %v9674 = vsel %vm4953, %v9667, %v9588
        %v9675 = vsel %vm4953, %v9668, %v9590
        %v9676 = vsel %vm4953, %v9669, %v9592
        %v9677 = vsel %vm344, %v9115, %v9608
        %v9678 = vsel %vm344, %v9180, %v9610
        %v9679 = vsel %vm344, %v9245, %v9612
        %v9680 = vsel %vm344, %v9310, %v9614
        %v9681 = vsel %vm344, %v9375, %v9616
        %v9682 = vsel %vm344, %v9440, %v9618
        %v9683 = vsel %vm344, %v9505, %v9620
        %v9684 = vsel %vm4923, %v9677, %v9636
        %v9685 = vsel %vm4923, %v9678, %v9638
        %v9686 = vsel %vm4923, %v9679, %v9640
        %v9687 = vsel %vm4923, %v9680, %v9642
        %v9688 = vsel %vm4923, %v9681, %v9644
        %v9689 = vsel %vm4923, %v9682, %v9646
        %v9690 = vsel %vm4923, %v9683, %v9648
        %v9705 = vrot.slane %v9670, 1
        %v9706 = vrot.slane %v9684, 1
        %v9707 = vrot.slane %v9671, 1
        %v9708 = vrot.slane %v9685, 1
        %v9709 = vrot.slane %v9672, 1
        %v9710 = vrot.slane %v9686, 1
        %v9711 = vrot.slane %v9673, 1
        %v9712 = vrot.slane %v9687, 1
        %v9713 = vrot.slane %v9674, 1
        %v9714 = vrot.slane %v9688, 1
        %v9715 = vrot.slane %v9675, 1
        %v9716 = vrot.slane %v9689, 1
        %v9717 = vrot.slane %v9676, 1
        %v9718 = vrot.slane %v9690, 1
        %v9733 = vmax.f32 %v9670, %v9705
        %v9734 = vmax.f32 %v9684, %v9706
        %v9735 = vmax.f32 %v9671, %v9707
        %v9736 = vmax.f32 %v9685, %v9708
        %v9737 = vmax.f32 %v9672, %v9709
        %v9738 = vmax.f32 %v9686, %v9710
        %v9739 = vmax.f32 %v9673, %v9711
        %v9740 = vmax.f32 %v9687, %v9712
        %v9741 = vmax.f32 %v9674, %v9713
        %v9742 = vmax.f32 %v9688, %v9714
        %v9743 = vmax.f32 %v9675, %v9715
        %v9744 = vmax.f32 %v9689, %v9716
        %v9745 = vmax.f32 %v9676, %v9717
        %v9746 = vmax.f32 %v9690, %v9718
        %v9761 = vrot.slane %v9735, 7
        %v9762 = vsel %vm5221, %v9761, %v9733
        %v9763 = vrot.slane %v9737, 6
        %v9764 = vsel %vm5224, %v9763, %v9762
        %v9765 = vrot.slane %v9739, 5
        %v9766 = vsel %vm5195, %v9765, %v9764
        %v9767 = vrot.slane %v9741, 4
        %v9768 = vsel %vm5198, %v9767, %v9766
        %v9769 = vrot.slane %v9743, 3
        %v9770 = vsel %vm5201, %v9769, %v9768
        %v9771 = vrot.slane %v9745, 2
        %v9772 = vsel %vm5204, %v9771, %v9770
        %v9773 = vrot.slane %v9736, 7
        %v9774 = vsel %vm5221, %v9773, %v9734
        %v9775 = vrot.slane %v9738, 6
        %v9776 = vsel %vm5224, %v9775, %v9774
        %v9777 = vrot.slane %v9740, 5
        %v9778 = vsel %vm5195, %v9777, %v9776
        %v9779 = vrot.slane %v9742, 4
        %v9780 = vsel %vm5198, %v9779, %v9778
        %v9781 = vrot.slane %v9744, 3
        %v9782 = vsel %vm5201, %v9781, %v9780
        %v9783 = vrot.slane %v9746, 2
        %v9784 = vsel %vm5204, %v9783, %v9782
        %v9787 = vcombine.high %v9772, 0.0
        %v9789 = vunpack.c.l.s4 1983009808
        %v9790 = vunpack.c.0.s8 %v9789
        %v9791 = vlaneseq
        %v9792 = vshrl.u32 %v9791, 7
        %v9793 = vsub.s32 %v9790, %v9792
        %v9794 = vrot.slane %v9772, %v9793
        %v9796 = vunpack.c.l.s4 1983009808
        %v9797 = vunpack.c.0.s8 %v9796
        %v9798 = vlaneseq
        %v9799 = vshrl.u32 %v9798, 7
        %v9800 = vsub.s32 %v9797, %v9799
        %v9801 = vrot.slane %v9787, %v9800
        %v9802 = vcombine.high %v9794, 0.0
        %v9804 = vunpack.c.l.s4 1934713408
        %v9805 = vunpack.c.0.s8 %v9804
        %v9806 = vlaneseq
        %v9807 = vshrl.u32 %v9806, 7
        %v9808 = vsub.s32 %v9805, %v9807
        %v9809 = vrot.slane %v9794, %v9808
        %v9811 = vunpack.c.l.s4 1934713408
        %v9812 = vunpack.c.0.s8 %v9811
        %v9813 = vlaneseq
        %v9814 = vshrl.u32 %v9813, 7
        %v9815 = vsub.s32 %v9812, %v9814
        %v9816 = vrot.slane %v9802, %v9815
        %v9818 = vunpack.c.l.s4 1934713408
        %v9819 = vunpack.c.0.s8 %v9818
        %v9820 = vlaneseq
        %v9821 = vshrl.u32 %v9820, 7
        %v9822 = vsub.s32 %v9819, %v9821
        %v9823 = vrot.slane %v9801, %v9822
        %v9824 = vcombine.high %v9809, 0.0
        %v9825 = vcombine.high %v9816, 0.0
        %v9826 = vcombine.high %v9823, 0.0
        %v9827 = vcombine.high %v9801, 0.0
        %v9828 = vcombine.high %v9784, 0.0
        %v9830 = vunpack.c.l.s4 1983009808
        %v9831 = vunpack.c.0.s8 %v9830
        %v9832 = vlaneseq
        %v9833 = vshrl.u32 %v9832, 7
        %v9834 = vsub.s32 %v9831, %v9833
        %v9835 = vrot.slane %v9784, %v9834
        %v9837 = vunpack.c.l.s4 1983009808
        %v9838 = vunpack.c.0.s8 %v9837
        %v9839 = vlaneseq
        %v9840 = vshrl.u32 %v9839, 7
        %v9841 = vsub.s32 %v9838, %v9840
        %v9842 = vrot.slane %v9828, %v9841
        %v9843 = vcombine.high %v9835, 0.0
        %v9845 = vunpack.c.l.s4 1934713408
        %v9846 = vunpack.c.0.s8 %v9845
        %v9847 = vlaneseq
        %v9848 = vshrl.u32 %v9847, 7
        %v9849 = vsub.s32 %v9846, %v9848
        %v9850 = vrot.slane %v9835, %v9849
        %v9852 = vunpack.c.l.s4 1934713408
        %v9853 = vunpack.c.0.s8 %v9852
        %v9854 = vlaneseq
        %v9855 = vshrl.u32 %v9854, 7
        %v9856 = vsub.s32 %v9853, %v9855
        %v9857 = vrot.slane %v9843, %v9856
        %v9859 = vunpack.c.l.s4 1934713408
        %v9860 = vunpack.c.0.s8 %v9859
        %v9861 = vlaneseq
        %v9862 = vshrl.u32 %v9861, 7
        %v9863 = vsub.s32 %v9860, %v9862
        %v9864 = vrot.slane %v9842, %v9863
        %v9865 = vcombine.high %v9850, 0.0
        %v9866 = vcombine.high %v9857, 0.0
        %v9867 = vcombine.high %v9864, 0.0
        %v9868 = vcombine.high %v9842, 0.0
        %9871 = vrot.lane.b32.xlu0 %v9824, 96
        %v9872 = vpop.permute.xlu0 %9871
        %9873 = vrot.lane.b32.xlu0 %v9865, 96
        %v9874 = vpop.permute.xlu0 %9873
        %v9875 = vsel %vm4953, %v9872, %v9874
        %9881 = vrot.lane.b32.xlu0 %v9816, 64
        %v9882 = vpop.permute.xlu0 %9881
        %9883 = vrot.lane.b32.xlu0 %v9857, 64
        %v9884 = vpop.permute.xlu0 %9883
        %v9885 = vsel %vm4923, %v9882, %v9884
        %9891 = vrot.lane.b32.xlu0 %v9825, 32
        %v9892 = vpop.permute.xlu0 %9891
        %9893 = vrot.lane.b32.xlu0 %v9866, 32
        %v9894 = vpop.permute.xlu0 %9893
        %v9895 = vsel %vm344, %v9892, %v9894
        %9900 = vrot.lane.b32.xlu0 %v9826, 96
        %v9901 = vpop.permute.xlu0 %9900
        %9902 = vrot.lane.b32.xlu0 %v9867, 96
        %v9903 = vpop.permute.xlu0 %9902
        %v9904 = vsel %vm4953, %v9901, %v9903
        %9910 = vrot.lane.b32.xlu0 %v9827, 64
        %v9911 = vpop.permute.xlu0 %9910
        %9912 = vrot.lane.b32.xlu0 %v9868, 64
        %v9913 = vpop.permute.xlu0 %9912
        %v9914 = vsel %vm4923, %v9911, %v9913
        %v9918 = vsel %vm4953, %v9850, %v9872
        %v9919 = vsel %vm4923, %v9874, %v9882
        %v9920 = vsel %vm344, %v9884, %v9892
        %v9921 = vsel %vm4953, %v9864, %v9901
        %v9922 = vsel %vm4923, %v9903, %v9911
        %v9923 = vpack.c.bf16 %v9809, %v9809
        %v9924 = vpack.c.bf16 %v9918, %v9918
        %v9925 = vpack.c.bf16 %v9875, %v9875
        %v9926 = vpack.c.bf16 %v9919, %v9919
        %v9927 = vpack.c.bf16 %v9885, %v9885
        %v9928 = vpack.c.bf16 %v9920, %v9920
        %v9929 = vpack.c.bf16 %v9895, %v9895
        %v9930 = vpack.c.bf16 %v9823, %v9823
        %v9931 = vpack.c.bf16 %v9921, %v9921
        %v9932 = vpack.c.bf16 %v9904, %v9904
        %v9933 = vpack.c.bf16 %v9922, %v9922
        %v9934 = vpack.c.bf16 %v9914, %v9914
        %v9935 = vpack.c.bf16 %v9913, %v9913
        %v9936 = vld [vmem:[%s5] sm:$0xf]
        %v9937 = vld [vmem:[%s5 + $0x4] sm:$0xf]
        %v9938 = vld [vmem:[%s5 + $0x8] sm:$0xf]
        %v9939 = vld [vmem:[%s5 + $0xc] sm:$0xf]
        %v9940 = vld [vmem:[%s5 + $0x10] sm:$0xf]
        %v9941 = vld [vmem:[%s5 + $0x14] sm:$0xf]
        %v9942 = vld [vmem:[%s5 + $0x18] sm:$0xf]
        %v9943 = vld [vmem:[%s5 + $0x1c] sm:$0xf]
        %v9944 = vld [vmem:[%s5 + $0x20] sm:$0xf]
        %v9945 = vld [vmem:[%s5 + $0x24] sm:$0xf]
        %v9946 = vld [vmem:[%s5 + $0x28] sm:$0xf]
        %v9947 = vld [vmem:[%s5 + $0x2c] sm:$0xf]
        %v9948 = vld [vmem:[%s5 + $0x30] sm:$0xf]
        %v9949 = vld [vmem:[%s5 + $0x34] sm:$0xf]
        %v9950 = vld [vmem:[%s5 + $0x38] sm:$0xf]
        %v9951 = vld [vmem:[%s5 + $0x3c] sm:$0xf]
        %v9952 = vld [vmem:[%s5 + $0x40] sm:$0xf]
        %v9953 = vld [vmem:[%s5 + $0x44] sm:$0xf]
        %v9954 = vld [vmem:[%s5 + $0x48] sm:$0xf]
        %v9955 = vld [vmem:[%s5 + $0x4c] sm:$0xf]
        %v9956 = vld [vmem:[%s5 + $0x50] sm:$0xf]
        %v9957 = vld [vmem:[%s5 + $0x54] sm:$0xf]
        %v9958 = vld [vmem:[%s5 + $0x58] sm:$0xf]
        %v9959 = vld [vmem:[%s5 + $0x5c] sm:$0xf]
        %v9960 = vld [vmem:[%s5 + $0x60] sm:$0xf]
        %v9961 = vld [vmem:[%s5 + $0x64] sm:$0xf]
        %v9962 = vld [vmem:[%s5 + $0x68] sm:$0xf]
        %v9963 = vld [vmem:[%s5 + $0x6c] sm:$0xf]
        %v9964 = vld [vmem:[%s5 + $0x70] sm:$0xf]
        %v9965 = vld [vmem:[%s5 + $0x74] sm:$0xf]
        %v9966 = vld [vmem:[%s5 + $0x78] sm:$0xf]
        %v9967 = vld [vmem:[%s5 + $0x7c] sm:$0xf]
        %v9968 = vld [vmem:[%s5 + $0x80] sm:$0xf]
        %v9969 = vld [vmem:[%s5 + $0x84] sm:$0xf]
        %v9970 = vld [vmem:[%s5 + $0x88] sm:$0xf]
        %v9971 = vld [vmem:[%s5 + $0x8c] sm:$0xf]
        %v9972 = vld [vmem:[%s5 + $0x90] sm:$0xf]
        %v9973 = vld [vmem:[%s5 + $0x94] sm:$0xf]
        %v9974 = vld [vmem:[%s5 + $0x98] sm:$0xf]
        %v9975 = vld [vmem:[%s5 + $0x9c] sm:$0xf]
        %v9976 = vld [vmem:[%s5 + $0xa0] sm:$0xf]
        %v9977 = vld [vmem:[%s5 + $0xa4] sm:$0xf]
        %v9978 = vld [vmem:[%s5 + $0xa8] sm:$0xf]
        %v9979 = vld [vmem:[%s5 + $0xac] sm:$0xf]
        %v9980 = vld [vmem:[%s5 + $0xb0] sm:$0xf]
        %v9981 = vld [vmem:[%s5 + $0xb4] sm:$0xf]
        %v9982 = vld [vmem:[%s5 + $0xb8] sm:$0xf]
        %v9983 = vld [vmem:[%s5 + $0xbc] sm:$0xf]
        %v9984 = vld [vmem:[%s5 + $0xc0] sm:$0xf]
        %v9985 = vld [vmem:[%s5 + $0xc4] sm:$0xf]
        %v9986 = vld [vmem:[%s5 + $0xc8] sm:$0xf]
        %v9987 = vld [vmem:[%s5 + $0xcc] sm:$0xf]
        %v9988 = vld [vmem:[%s5 + $0xd0] sm:$0xf]
        %v9989 = vld [vmem:[%s5 + $0xd4] sm:$0xf]
        %v9990 = vld [vmem:[%s5 + $0xd8] sm:$0xf]
        %v9991 = vld [vmem:[%s5 + $0xdc] sm:$0xf]
        %v9992 = vld [vmem:[%s5 + $0xe0] sm:$0xf]
        %v9993 = vld [vmem:[%s5 + $0xe4] sm:$0xf]
        %v9994 = vld [vmem:[%s5 + $0xe8] sm:$0xf]
        %v9995 = vld [vmem:[%s5 + $0xec] sm:$0xf]
        %v9996 = vld [vmem:[%s5 + $0xf0] sm:$0xf]
        %v9997 = vld [vmem:[%s5 + $0xf4] sm:$0xf]
        %v9998 = vld [vmem:[%s5 + $0xf8] sm:$0xf]
        %v9999 = vld [vmem:[%s5 + $0xfc] sm:$0xf]
        %v10000 = vld [vmem:[%s5 + $0x100] sm:$0xf]
        %v10001 = vld [vmem:[%s5 + $0x104] sm:$0xf]
        %v10002 = vld [vmem:[%s5 + $0x108] sm:$0xf]
        %v10003 = vld [vmem:[%s5 + $0x10c] sm:$0xf]
        %v10004 = vld [vmem:[%s5 + $0x110] sm:$0xf]
        %v10005 = vld [vmem:[%s5 + $0x114] sm:$0xf]
        %v10006 = vld [vmem:[%s5 + $0x118] sm:$0xf]
        %v10007 = vld [vmem:[%s5 + $0x11c] sm:$0xf]
        %v10008 = vld [vmem:[%s5 + $0x120] sm:$0xf]
        %v10009 = vld [vmem:[%s5 + $0x124] sm:$0xf]
        %v10010 = vld [vmem:[%s5 + $0x128] sm:$0xf]
        %v10011 = vld [vmem:[%s5 + $0x12c] sm:$0xf]
        %v10012 = vld [vmem:[%s5 + $0x130] sm:$0xf]
        %v10013 = vld [vmem:[%s5 + $0x134] sm:$0xf]
        %v10014 = vld [vmem:[%s5 + $0x138] sm:$0xf]
        %v10015 = vld [vmem:[%s5 + $0x13c] sm:$0xf]
        %v10016 = vld [vmem:[%s5 + $0x140] sm:$0xf]
        %v10017 = vld [vmem:[%s5 + $0x144] sm:$0xf]
        %v10018 = vld [vmem:[%s5 + $0x148] sm:$0xf]
        %v10019 = vld [vmem:[%s5 + $0x14c] sm:$0xf]
        %v10020 = vld [vmem:[%s5 + $0x150] sm:$0xf]
        %v10021 = vld [vmem:[%s5 + $0x154] sm:$0xf]
        %v10022 = vld [vmem:[%s5 + $0x158] sm:$0xf]
        %v10023 = vld [vmem:[%s5 + $0x15c] sm:$0xf]
        %v10024 = vld [vmem:[%s5 + $0x160] sm:$0xf]
        %v10025 = vld [vmem:[%s5 + $0x164] sm:$0xf]
        %v10026 = vld [vmem:[%s5 + $0x168] sm:$0xf]
        %v10027 = vld [vmem:[%s5 + $0x16c] sm:$0xf]
        %v10028 = vld [vmem:[%s5 + $0x170] sm:$0xf]
        %v10029 = vld [vmem:[%s5 + $0x174] sm:$0xf]
        %v10030 = vld [vmem:[%s5 + $0x178] sm:$0xf]
        %v10031 = vld [vmem:[%s5 + $0x17c] sm:$0xf]
        %v10032 = vld [vmem:[%s5 + $0x180] sm:$0xf]
        %v10033 = vld [vmem:[%s5 + $0x184] sm:$0xf]
        %v10034 = vld [vmem:[%s5 + $0x188] sm:$0xf]
        %v10035 = vld [vmem:[%s5 + $0x18c] sm:$0xf]
        %v10036 = vld [vmem:[%s5 + $0x190] sm:$0xf]
        %v10037 = vld [vmem:[%s5 + $0x194] sm:$0xf]
        %v10038 = vld [vmem:[%s5 + $0x198] sm:$0xf]
        %v10039 = vld [vmem:[%s5 + $0x19c] sm:$0xf]
        %v10040 = vld [vmem:[%s5 + $0x1a0] sm:$0xf]
        %v10041 = vld [vmem:[%s5 + $0x1a4] sm:$0xf]
        %v10042 = vld [vmem:[%s5 + $0x1a8] sm:$0xf]
        %v10043 = vld [vmem:[%s5 + $0x1ac] sm:$0xf]
        %v10044 = vld [vmem:[%s5 + $0x1b0] sm:$0xf]
        %v10045 = vld [vmem:[%s5 + $0x1b4] sm:$0xf]
        %v10046 = vld [vmem:[%s5 + $0x1b8] sm:$0xf]
        %v10047 = vld [vmem:[%s5 + $0x1bc] sm:$0xf]
        %v10048 = vld [vmem:[%s5 + $0x1c0] sm:$0xf]
        %v10049 = vld [vmem:[%s5 + $0x1c4] sm:$0xf]
        %v10050 = vld [vmem:[%s5 + $0x1c8] sm:$0xf]
        %v10051 = vld [vmem:[%s5 + $0x1cc] sm:$0xf]
        %v10052 = vld [vmem:[%s5 + $0x1d0] sm:$0xf]
        %v10053 = vld [vmem:[%s5 + $0x1d4] sm:$0xf]
        %v10054 = vld [vmem:[%s5 + $0x1d8] sm:$0xf]
        %v10055 = vld [vmem:[%s5 + $0x1dc] sm:$0xf]
        %v10056 = vld [vmem:[%s5 + $0x1e0] sm:$0xf]
        %v10057 = vld [vmem:[%s5 + $0x1e4] sm:$0xf]
        %v10058 = vld [vmem:[%s5 + $0x1e8] sm:$0xf]
        %v10059 = vld [vmem:[%s5 + $0x1ec] sm:$0xf]
        %v10060 = vld [vmem:[%s5 + $0x1f0] sm:$0xf]
        %v10061 = vld [vmem:[%s5 + $0x1f4] sm:$0xf]
        %v10062 = vld [vmem:[%s5 + $0x1f8] sm:$0xf]
        %v10063 = vld [vmem:[%s5 + $0x1fc] sm:$0xf]
        %v10064 = vld [vmem:[%s5 + $0x200] sm:$0xf]
        %v10065 = vld [vmem:[%s5 + $0x204] sm:$0xf]
        %v10066 = vld [vmem:[%s5 + $0x208] sm:$0xf]
        %v10067 = vld [vmem:[%s5 + $0x20c] sm:$0xf]
        %v10068 = vld [vmem:[%s5 + $0x210] sm:$0xf]
        %v10069 = vld [vmem:[%s5 + $0x214] sm:$0xf]
        %v10070 = vld [vmem:[%s5 + $0x218] sm:$0xf]
        %v10071 = vld [vmem:[%s5 + $0x21c] sm:$0xf]
        %v10072 = vld [vmem:[%s5 + $0x220] sm:$0xf]
        %v10073 = vld [vmem:[%s5 + $0x224] sm:$0xf]
        %v10074 = vld [vmem:[%s5 + $0x228] sm:$0xf]
        %v10075 = vld [vmem:[%s5 + $0x22c] sm:$0xf]
        %v10076 = vld [vmem:[%s5 + $0x230] sm:$0xf]
        %v10077 = vld [vmem:[%s5 + $0x234] sm:$0xf]
        %v10078 = vld [vmem:[%s5 + $0x238] sm:$0xf]
        %v10079 = vld [vmem:[%s5 + $0x23c] sm:$0xf]
        %v10080 = vld [vmem:[%s5 + $0x240] sm:$0xf]
        %v10081 = vld [vmem:[%s5 + $0x244] sm:$0xf]
        %v10082 = vld [vmem:[%s5 + $0x248] sm:$0xf]
        %v10083 = vld [vmem:[%s5 + $0x24c] sm:$0xf]
        %v10084 = vld [vmem:[%s5 + $0x250] sm:$0xf]
        %v10085 = vld [vmem:[%s5 + $0x254] sm:$0xf]
        %v10086 = vld [vmem:[%s5 + $0x258] sm:$0xf]
        %v10087 = vld [vmem:[%s5 + $0x25c] sm:$0xf]
        %v10088 = vld [vmem:[%s5 + $0x260] sm:$0xf]
        %v10089 = vld [vmem:[%s5 + $0x264] sm:$0xf]
        %v10090 = vld [vmem:[%s5 + $0x268] sm:$0xf]
        %v10091 = vld [vmem:[%s5 + $0x26c] sm:$0xf]
        %v10092 = vld [vmem:[%s5 + $0x270] sm:$0xf]
        %v10093 = vld [vmem:[%s5 + $0x274] sm:$0xf]
        %v10094 = vld [vmem:[%s5 + $0x278] sm:$0xf]
        %v10095 = vld [vmem:[%s5 + $0x27c] sm:$0xf]
        %v10096 = vld [vmem:[%s5 + $0x280] sm:$0xf]
        %v10097 = vld [vmem:[%s5 + $0x284] sm:$0xf]
        %v10098 = vld [vmem:[%s5 + $0x288] sm:$0xf]
        %v10099 = vld [vmem:[%s5 + $0x28c] sm:$0xf]
        %v10100 = vld [vmem:[%s5 + $0x290] sm:$0xf]
        %v10101 = vld [vmem:[%s5 + $0x294] sm:$0xf]
        %v10102 = vld [vmem:[%s5 + $0x298] sm:$0xf]
        %v10103 = vld [vmem:[%s5 + $0x29c] sm:$0xf]
        %v10104 = vld [vmem:[%s5 + $0x2a0] sm:$0xf]
        %v10105 = vld [vmem:[%s5 + $0x2a4] sm:$0xf]
        %v10106 = vld [vmem:[%s5 + $0x2a8] sm:$0xf]
        %v10107 = vld [vmem:[%s5 + $0x2ac] sm:$0xf]
        %v10108 = vld [vmem:[%s5 + $0x2b0] sm:$0xf]
        %v10109 = vld [vmem:[%s5 + $0x2b4] sm:$0xf]
        %v10110 = vld [vmem:[%s5 + $0x2b8] sm:$0xf]
        %v10111 = vld [vmem:[%s5 + $0x2bc] sm:$0xf]
        %v10112 = vld [vmem:[%s5 + $0x2c0] sm:$0xf]
        %v10113 = vld [vmem:[%s5 + $0x2c4] sm:$0xf]
        %v10114 = vld [vmem:[%s5 + $0x2c8] sm:$0xf]
        %v10115 = vld [vmem:[%s5 + $0x2cc] sm:$0xf]
        %v10116 = vld [vmem:[%s5 + $0x2d0] sm:$0xf]
        %v10117 = vld [vmem:[%s5 + $0x2d4] sm:$0xf]
        %v10118 = vld [vmem:[%s5 + $0x2d8] sm:$0xf]
        %v10119 = vld [vmem:[%s5 + $0x2dc] sm:$0xf]
        %v10120 = vld [vmem:[%s5 + $0x2e0] sm:$0xf]
        %v10121 = vld [vmem:[%s5 + $0x2e4] sm:$0xf]
        %v10122 = vld [vmem:[%s5 + $0x2e8] sm:$0xf]
        %v10123 = vld [vmem:[%s5 + $0x2ec] sm:$0xf]
        %v10124 = vld [vmem:[%s5 + $0x2f0] sm:$0xf]
        %v10125 = vld [vmem:[%s5 + $0x2f4] sm:$0xf]
        %v10126 = vld [vmem:[%s5 + $0x2f8] sm:$0xf]
        %v10127 = vld [vmem:[%s5 + $0x2fc] sm:$0xf]
        %v10128 = vld [vmem:[%s5 + $0x300] sm:$0xf]
        %v10129 = vld [vmem:[%s5 + $0x304] sm:$0xf]
        %v10130 = vld [vmem:[%s5 + $0x308] sm:$0xf]
        %v10131 = vld [vmem:[%s5 + $0x30c] sm:$0xf]
        %v10132 = vld [vmem:[#allocation12] sm:$0x1]
        %v10329 = vunpack.c.l.b16 %v9936
        %v10330 = vunpack.c.l.b16 %v9937
        %v10331 = vunpack.c.l.b16 %v9938
        %v10332 = vunpack.c.l.b16 %v9939
        %v10333 = vunpack.c.l.b16 %v9940
        %v10334 = vunpack.c.l.b16 %v9941
        %v10335 = vunpack.c.l.b16 %v9942
        %v10336 = vunpack.c.l.b16 %v9943
        %v10337 = vunpack.c.l.b16 %v9944
        %v10338 = vunpack.c.l.b16 %v9945
        %v10339 = vunpack.c.l.b16 %v9946
        %v10340 = vunpack.c.l.b16 %v9947
        %v10341 = vunpack.c.l.b16 %v9948
        %v10342 = vunpack.c.l.b16 %v9949
        %v10343 = vunpack.c.l.b16 %v9950
        %v10344 = vunpack.c.l.b16 %v9951
        %v10345 = vunpack.c.l.b16 %v9952
        %v10346 = vunpack.c.l.b16 %v9953
        %v10347 = vunpack.c.l.b16 %v9954
        %v10348 = vunpack.c.l.b16 %v9955
        %v10349 = vunpack.c.l.b16 %v9956
        %v10350 = vunpack.c.l.b16 %v9957
        %v10351 = vunpack.c.l.b16 %v9958
        %v10352 = vunpack.c.l.b16 %v9959
        %v10353 = vunpack.c.l.b16 %v9960
        %v10354 = vunpack.c.l.b16 %v9961
        %v10355 = vunpack.c.l.b16 %v9962
        %v10356 = vunpack.c.l.b16 %v9963
        %v10357 = vunpack.c.l.b16 %v9964
        %v10358 = vunpack.c.l.b16 %v9965
        %v10359 = vunpack.c.l.b16 %v9966
        %v10360 = vunpack.c.l.b16 %v9967
        %v10361 = vunpack.c.l.b16 %v9968
        %v10362 = vunpack.c.l.b16 %v9969
        %v10363 = vunpack.c.l.b16 %v9970
        %v10364 = vunpack.c.l.b16 %v9971
        %v10365 = vunpack.c.l.b16 %v9972
        %v10366 = vunpack.c.l.b16 %v9973
        %v10367 = vunpack.c.l.b16 %v9974
        %v10368 = vunpack.c.l.b16 %v9975
        %v10369 = vunpack.c.l.b16 %v9976
        %v10370 = vunpack.c.l.b16 %v9977
        %v10371 = vunpack.c.l.b16 %v9978
        %v10372 = vunpack.c.l.b16 %v9979
        %v10373 = vunpack.c.l.b16 %v9980
        %v10374 = vunpack.c.l.b16 %v9981
        %v10375 = vunpack.c.l.b16 %v9982
        %v10376 = vunpack.c.l.b16 %v9983
        %v10377 = vunpack.c.l.b16 %v9984
        %v10378 = vunpack.c.l.b16 %v9985
        %v10379 = vunpack.c.l.b16 %v9986
        %v10380 = vunpack.c.l.b16 %v9987
        %v10381 = vunpack.c.l.b16 %v9988
        %v10382 = vunpack.c.l.b16 %v9989
        %v10383 = vunpack.c.l.b16 %v9990
        %v10384 = vunpack.c.l.b16 %v9991
        %v10385 = vunpack.c.l.b16 %v9992
        %v10386 = vunpack.c.l.b16 %v9993
        %v10387 = vunpack.c.l.b16 %v9994
        %v10388 = vunpack.c.l.b16 %v9995
        %v10389 = vunpack.c.l.b16 %v9996
        %v10390 = vunpack.c.l.b16 %v9997
        %v10391 = vunpack.c.l.b16 %v9998
        %v10392 = vunpack.c.l.b16 %v9999
        %v10393 = vunpack.c.l.b16 %v10000
        %v10394 = vunpack.c.l.b16 %v10001
        %v10395 = vunpack.c.l.b16 %v10002
        %v10396 = vunpack.c.l.b16 %v10003
        %v10397 = vunpack.c.l.b16 %v10004
        %v10398 = vunpack.c.l.b16 %v10005
        %v10399 = vunpack.c.l.b16 %v10006
        %v10400 = vunpack.c.l.b16 %v10007
        %v10401 = vunpack.c.l.b16 %v10008
        %v10402 = vunpack.c.l.b16 %v10009
        %v10403 = vunpack.c.l.b16 %v10010
        %v10404 = vunpack.c.l.b16 %v10011
        %v10405 = vunpack.c.l.b16 %v10012
        %v10406 = vunpack.c.l.b16 %v10013
        %v10407 = vunpack.c.l.b16 %v10014
        %v10408 = vunpack.c.l.b16 %v10015
        %v10409 = vunpack.c.l.b16 %v10016
        %v10410 = vunpack.c.l.b16 %v10017
        %v10411 = vunpack.c.l.b16 %v10018
        %v10412 = vunpack.c.l.b16 %v10019
        %v10413 = vunpack.c.l.b16 %v10020
        %v10414 = vunpack.c.l.b16 %v10021
        %v10415 = vunpack.c.l.b16 %v10022
        %v10416 = vunpack.c.l.b16 %v10023
        %v10417 = vunpack.c.l.b16 %v10024
        %v10418 = vunpack.c.l.b16 %v10025
        %v10419 = vunpack.c.l.b16 %v10026
        %v10420 = vunpack.c.l.b16 %v10027
        %v10421 = vunpack.c.l.b16 %v10028
        %v10422 = vunpack.c.l.b16 %v10029
        %v10423 = vunpack.c.l.b16 %v10030
        %v10424 = vunpack.c.l.b16 %v10031
        %v10425 = vunpack.c.l.b16 %v10032
        %v10426 = vunpack.c.l.b16 %v10033
        %v10427 = vunpack.c.l.b16 %v10034
        %v10428 = vunpack.c.l.b16 %v10035
        %v10429 = vunpack.c.l.b16 %v10036
        %v10430 = vunpack.c.l.b16 %v10037
        %v10431 = vunpack.c.l.b16 %v10038
        %v10432 = vunpack.c.l.b16 %v10039
        %v10433 = vunpack.c.l.b16 %v10040
        %v10434 = vunpack.c.l.b16 %v10041
        %v10435 = vunpack.c.l.b16 %v10042
        %v10436 = vunpack.c.l.b16 %v10043
        %v10437 = vunpack.c.l.b16 %v10044
        %v10438 = vunpack.c.l.b16 %v10045
        %v10439 = vunpack.c.l.b16 %v10046
        %v10440 = vunpack.c.l.b16 %v10047
        %v10441 = vunpack.c.l.b16 %v10048
        %v10442 = vunpack.c.l.b16 %v10049
        %v10443 = vunpack.c.l.b16 %v10050
        %v10444 = vunpack.c.l.b16 %v10051
        %v10445 = vunpack.c.l.b16 %v10052
        %v10446 = vunpack.c.l.b16 %v10053
        %v10447 = vunpack.c.l.b16 %v10054
        %v10448 = vunpack.c.l.b16 %v10055
        %v10449 = vunpack.c.l.b16 %v10056
        %v10450 = vunpack.c.l.b16 %v10057
        %v10451 = vunpack.c.l.b16 %v10058
        %v10452 = vunpack.c.l.b16 %v10059
        %v10453 = vunpack.c.l.b16 %v10060
        %v10454 = vunpack.c.l.b16 %v10061
        %v10455 = vunpack.c.l.b16 %v10062
        %v10456 = vunpack.c.l.b16 %v10063
        %v10457 = vunpack.c.l.b16 %v10064
        %v10458 = vunpack.c.l.b16 %v10065
        %v10459 = vunpack.c.l.b16 %v10066
        %v10460 = vunpack.c.l.b16 %v10067
        %v10461 = vunpack.c.l.b16 %v10068
        %v10462 = vunpack.c.l.b16 %v10069
        %v10463 = vunpack.c.l.b16 %v10070
        %v10464 = vunpack.c.l.b16 %v10071
        %v10465 = vunpack.c.l.b16 %v10072
        %v10466 = vunpack.c.l.b16 %v10073
        %v10467 = vunpack.c.l.b16 %v10074
        %v10468 = vunpack.c.l.b16 %v10075
        %v10469 = vunpack.c.l.b16 %v10076
        %v10470 = vunpack.c.l.b16 %v10077
        %v10471 = vunpack.c.l.b16 %v10078
        %v10472 = vunpack.c.l.b16 %v10079
        %v10473 = vunpack.c.l.b16 %v10080
        %v10474 = vunpack.c.l.b16 %v10081
        %v10475 = vunpack.c.l.b16 %v10082
        %v10476 = vunpack.c.l.b16 %v10083
        %v10477 = vunpack.c.l.b16 %v10084
        %v10478 = vunpack.c.l.b16 %v10085
        %v10479 = vunpack.c.l.b16 %v10086
        %v10480 = vunpack.c.l.b16 %v10087
        %v10481 = vunpack.c.l.b16 %v10088
        %v10482 = vunpack.c.l.b16 %v10089
        %v10483 = vunpack.c.l.b16 %v10090
        %v10484 = vunpack.c.l.b16 %v10091
        %v10485 = vunpack.c.l.b16 %v10092
        %v10486 = vunpack.c.l.b16 %v10093
        %v10487 = vunpack.c.l.b16 %v10094
        %v10488 = vunpack.c.l.b16 %v10095
        %v10489 = vunpack.c.l.b16 %v10096
        %v10490 = vunpack.c.l.b16 %v10097
        %v10491 = vunpack.c.l.b16 %v10098
        %v10492 = vunpack.c.l.b16 %v10099
        %v10493 = vunpack.c.l.b16 %v10100
        %v10494 = vunpack.c.l.b16 %v10101
        %v10495 = vunpack.c.l.b16 %v10102
        %v10496 = vunpack.c.l.b16 %v10103
        %v10497 = vunpack.c.l.b16 %v10104
        %v10498 = vunpack.c.l.b16 %v10105
        %v10499 = vunpack.c.l.b16 %v10106
        %v10500 = vunpack.c.l.b16 %v10107
        %v10501 = vunpack.c.l.b16 %v10108
        %v10502 = vunpack.c.l.b16 %v10109
        %v10503 = vunpack.c.l.b16 %v10110
        %v10504 = vunpack.c.l.b16 %v10111
        %v10505 = vunpack.c.l.b16 %v10112
        %v10506 = vunpack.c.l.b16 %v10113
        %v10507 = vunpack.c.l.b16 %v10114
        %v10508 = vunpack.c.l.b16 %v10115
        %v10509 = vunpack.c.l.b16 %v10116
        %v10510 = vunpack.c.l.b16 %v10117
        %v10511 = vunpack.c.l.b16 %v10118
        %v10512 = vunpack.c.l.b16 %v10119
        %v10513 = vunpack.c.l.b16 %v10120
        %v10514 = vunpack.c.l.b16 %v10121
        %v10515 = vunpack.c.l.b16 %v10122
        %v10516 = vunpack.c.l.b16 %v10123
        %v10517 = vunpack.c.l.b16 %v10124
        %v10518 = vunpack.c.l.b16 %v10125
        %v10519 = vunpack.c.l.b16 %v10126
        %v10520 = vunpack.c.l.b16 %v10127
        %v10521 = vunpack.c.l.b16 %v10128
        %v10522 = vunpack.c.l.b16 %v10129
        %v10523 = vunpack.c.l.b16 %v10130
        %v10524 = vunpack.c.l.b16 %v10131
        %v10525 = vpack.c.b16 %v10330, %v10329
        %v10526 = vpack.c.b16 %v10332, %v10331
        %v10527 = vpack.c.b16 %v10334, %v10333
        %v10528 = vpack.c.b16 %v10336, %v10335
        %v10529 = vpack.c.b16 %v10338, %v10337
        %v10530 = vpack.c.b16 %v10340, %v10339
        %v10531 = vpack.c.b16 %v10342, %v10341
        %v10532 = vpack.c.b16 %v10344, %v10343
        %v10533 = vpack.c.b16 %v10346, %v10345
        %v10534 = vpack.c.b16 %v10348, %v10347
        %v10535 = vpack.c.b16 %v10350, %v10349
        %v10536 = vpack.c.b16 %v10352, %v10351
        %v10537 = vpack.c.b16 %v10354, %v10353
        %v10538 = vpack.c.b16 %v10356, %v10355
        %v10539 = vpack.c.b16 %v10358, %v10357
        %v10540 = vpack.c.b16 %v10360, %v10359
        %v10541 = vpack.c.b16 %v10362, %v10361
        %v10542 = vpack.c.b16 %v10364, %v10363
        %v10543 = vpack.c.b16 %v10366, %v10365
        %v10544 = vpack.c.b16 %v10368, %v10367
        %v10545 = vpack.c.b16 %v10370, %v10369
        %v10546 = vpack.c.b16 %v10372, %v10371
        %v10547 = vpack.c.b16 %v10374, %v10373
        %v10548 = vpack.c.b16 %v10376, %v10375
        %v10549 = vpack.c.b16 %v10378, %v10377
        %v10550 = vpack.c.b16 %v10380, %v10379
        %v10551 = vpack.c.b16 %v10382, %v10381
        %v10552 = vpack.c.b16 %v10384, %v10383
        %v10553 = vpack.c.b16 %v10386, %v10385
        %v10554 = vpack.c.b16 %v10388, %v10387
        %v10555 = vpack.c.b16 %v10390, %v10389
        %v10556 = vpack.c.b16 %v10392, %v10391
        %v10557 = vpack.c.b16 %v10394, %v10393
        %v10558 = vpack.c.b16 %v10396, %v10395
        %v10559 = vpack.c.b16 %v10398, %v10397
        %v10560 = vpack.c.b16 %v10400, %v10399
        %v10561 = vpack.c.b16 %v10402, %v10401
        %v10562 = vpack.c.b16 %v10404, %v10403
        %v10563 = vpack.c.b16 %v10406, %v10405
        %v10564 = vpack.c.b16 %v10408, %v10407
        %v10565 = vpack.c.b16 %v10410, %v10409
        %v10566 = vpack.c.b16 %v10412, %v10411
        %v10567 = vpack.c.b16 %v10414, %v10413
        %v10568 = vpack.c.b16 %v10416, %v10415
        %v10569 = vpack.c.b16 %v10418, %v10417
        %v10570 = vpack.c.b16 %v10420, %v10419
        %v10571 = vpack.c.b16 %v10422, %v10421
        %v10572 = vpack.c.b16 %v10424, %v10423
        %v10573 = vpack.c.b16 %v10426, %v10425
        %v10574 = vpack.c.b16 %v10428, %v10427
        %v10575 = vpack.c.b16 %v10430, %v10429
        %v10576 = vpack.c.b16 %v10432, %v10431
        %v10577 = vpack.c.b16 %v10434, %v10433
        %v10578 = vpack.c.b16 %v10436, %v10435
        %v10579 = vpack.c.b16 %v10438, %v10437
        %v10580 = vpack.c.b16 %v10440, %v10439
        %v10581 = vpack.c.b16 %v10442, %v10441
        %v10582 = vpack.c.b16 %v10444, %v10443
        %v10583 = vpack.c.b16 %v10446, %v10445
        %v10584 = vpack.c.b16 %v10448, %v10447
        %v10585 = vpack.c.b16 %v10450, %v10449
        %v10586 = vpack.c.b16 %v10452, %v10451
        %v10587 = vpack.c.b16 %v10454, %v10453
        %v10588 = vpack.c.b16 %v10456, %v10455
        %v10589 = vpack.c.b16 %v10458, %v10457
        %v10590 = vpack.c.b16 %v10460, %v10459
        %v10591 = vpack.c.b16 %v10462, %v10461
        %v10592 = vpack.c.b16 %v10464, %v10463
        %v10593 = vpack.c.b16 %v10466, %v10465
        %v10594 = vpack.c.b16 %v10468, %v10467
        %v10595 = vpack.c.b16 %v10470, %v10469
        %v10596 = vpack.c.b16 %v10472, %v10471
        %v10597 = vpack.c.b16 %v10474, %v10473
        %v10598 = vpack.c.b16 %v10476, %v10475
        %v10599 = vpack.c.b16 %v10478, %v10477
        %v10600 = vpack.c.b16 %v10480, %v10479
        %v10601 = vpack.c.b16 %v10482, %v10481
        %v10602 = vpack.c.b16 %v10484, %v10483
        %v10603 = vpack.c.b16 %v10486, %v10485
        %v10604 = vpack.c.b16 %v10488, %v10487
        %v10605 = vpack.c.b16 %v10490, %v10489
        %v10606 = vpack.c.b16 %v10492, %v10491
        %v10607 = vpack.c.b16 %v10494, %v10493
        %v10608 = vpack.c.b16 %v10496, %v10495
        %v10609 = vpack.c.b16 %v10498, %v10497
        %v10610 = vpack.c.b16 %v10500, %v10499
        %v10611 = vpack.c.b16 %v10502, %v10501
        %v10612 = vpack.c.b16 %v10504, %v10503
        %v10613 = vpack.c.b16 %v10506, %v10505
        %v10614 = vpack.c.b16 %v10508, %v10507
        %v10615 = vpack.c.b16 %v10510, %v10509
        %v10616 = vpack.c.b16 %v10512, %v10511
        %v10617 = vpack.c.b16 %v10514, %v10513
        %v10618 = vpack.c.b16 %v10516, %v10515
        %v10619 = vpack.c.b16 %v10518, %v10517
        %v10620 = vpack.c.b16 %v10520, %v10519
        %v10621 = vpack.c.b16 %v10522, %v10521
        %v10622 = vpack.c.b16 %v10524, %v10523
        %v10722 = vsel %vm344, %v9935, 0
        %10724 = vmatprep.subr.bf16.mxu0 0
        %10725 = vmatpush1.bf16.msra.mxu0 %v10525
        %10726 = vmatprep.subr.bf16.mxu0 0
        %10727 = vmatpush1.bf16.msra.mxu0 %v10526
        %10728 = vmatprep.subr.bf16.mxu0 0
        %10729 = vmatpush1.bf16.msra.mxu0 %v10527
        %10730 = vmatprep.subr.bf16.mxu0 0
        %10731 = vmatpush1.bf16.msra.mxu0 %v10528
        %10732 = vmatprep.subr.bf16.mxu0 0
        %10733 = vmatpush1.bf16.msra.mxu0 %v10529
        %10734 = vmatprep.subr.bf16.mxu0 0
        %10735 = vmatpush1.bf16.msra.mxu0 %v10530
        %10736 = vmatprep.subr.bf16.mxu0 0
        %10737 = vmatpush1.bf16.msra.mxu0 %v10531
        %10738 = vmatprep.subr.bf16.mxu0 0
        %10739 = vmatpush1.bf16.msra.mxu0 %v10532
        %10740 = vmatprep.subr.bf16.mxu0 0
        %10741 = vmatpush1.bf16.msra.mxu0 %v10533
        %10742 = vmatprep.subr.bf16.mxu0 0
        %10743 = vmatpush1.bf16.msra.mxu0 %v10534
        %10744 = vmatprep.subr.bf16.mxu0 0
        %10745 = vmatpush1.bf16.msra.mxu0 %v10535
        %10746 = vmatprep.subr.bf16.mxu0 0
        %10747 = vmatpush1.bf16.msra.mxu0 %v10536
        %10748 = vmatprep.subr.bf16.mxu0 0
        %10749 = vmatpush1.bf16.msra.mxu0 %v10537
        %10750 = vmatprep.subr.bf16.mxu0 0
        %10751 = vmatpush1.bf16.msra.mxu0 %v10538
        %10752 = vmatprep.subr.bf16.mxu0 0
        %10753 = vmatpush1.bf16.msra.mxu0 %v10539
        %10754 = vmatprep.subr.bf16.mxu0 0
        %10755 = vmatpush1.bf16.msra.mxu0 %v10540
        %10756 = vmatprep.mubr.bf16.mxu0 %v9924
        %10757 = vmatmul.mubr.bf16.gmra.mrb[0].mxu0 %v9923
        %v10758 = vpop.f32.mrb[0].mxu0
        %v10759 = vadd.f32 %v10132, %v10758
        %v10760 = vpop.f32.mrb[0].mxu0
        %v10761 = vpop.f32.mrb[0].mxu0
        %v10762 = vpop.f32.mrb[0].mxu0
        %10763 = vdwg.mxu0
        %10764 = vmatprep.subr.bf16.mxu0 0
        %10765 = vmatpush1.bf16.msra.mxu0 %v10541
        %10766 = vmatprep.subr.bf16.mxu0 0
        %10767 = vmatpush1.bf16.msra.mxu0 %v10542
        %10768 = vmatprep.subr.bf16.mxu0 0
        %10769 = vmatpush1.bf16.msra.mxu0 %v10543
        %10770 = vmatprep.subr.bf16.mxu0 0
        %10771 = vmatpush1.bf16.msra.mxu0 %v10544
        %10772 = vmatprep.subr.bf16.mxu0 0
        %10773 = vmatpush1.bf16.msra.mxu0 %v10545
        %10774 = vmatprep.subr.bf16.mxu0 0
        %10775 = vmatpush1.bf16.msra.mxu0 %v10546
        %10776 = vmatprep.subr.bf16.mxu0 0
        %10777 = vmatpush1.bf16.msra.mxu0 %v10547
        %10778 = vmatprep.subr.bf16.mxu0 0
        %10779 = vmatpush1.bf16.msra.mxu0 %v10548
        %10780 = vmatprep.subr.bf16.mxu0 0
        %10781 = vmatpush1.bf16.msra.mxu0 %v10549
        %10782 = vmatprep.subr.bf16.mxu0 0
        %10783 = vmatpush1.bf16.msra.mxu0 %v10550
        %10784 = vmatprep.subr.bf16.mxu0 0
        %10785 = vmatpush1.bf16.msra.mxu0 %v10551
        %10786 = vmatprep.subr.bf16.mxu0 0
        %10787 = vmatpush1.bf16.msra.mxu0 %v10552
        %10788 = vmatprep.subr.bf16.mxu0 0
        %10789 = vmatpush1.bf16.msra.mxu0 %v10553
        %10790 = vmatprep.subr.bf16.mxu0 0
        %10791 = vmatpush1.bf16.msra.mxu0 %v10554
        %10792 = vmatprep.subr.bf16.mxu0 0
        %10793 = vmatpush1.bf16.msra.mxu0 %v10555
        %10794 = vmatprep.subr.bf16.mxu0 0
        %10795 = vmatpush1.bf16.msra.mxu0 %v10556
        %10796 = vmatprep.mubr.bf16.mxu0 %v9926
        %10797 = vmatmul.mubr.bf16.gmra.mrb[0].mxu0 %v9925
        %v10798 = vpop.f32.mrb[0].mxu0
        %v10799 = vadd.f32 %v10759, %v10798
        %v10800 = vpop.f32.mrb[0].mxu0
        %v10801 = vpop.f32.mrb[0].mxu0
        %v10802 = vpop.f32.mrb[0].mxu0
        %10803 = vdwg.mxu0
        %10804 = vmatprep.subr.bf16.mxu0 0
        %10805 = vmatpush1.bf16.msra.mxu0 %v10557
        %10806 = vmatprep.subr.bf16.mxu0 0
        %10807 = vmatpush1.bf16.msra.mxu0 %v10558
        %10808 = vmatprep.subr.bf16.mxu0 0
        %10809 = vmatpush1.bf16.msra.mxu0 %v10559
        %10810 = vmatprep.subr.bf16.mxu0 0
        %10811 = vmatpush1.bf16.msra.mxu0 %v10560
        %10812 = vmatprep.subr.bf16.mxu0 0
        %10813 = vmatpush1.bf16.msra.mxu0 %v10561
        %10814 = vmatprep.subr.bf16.mxu0 0
        %10815 = vmatpush1.bf16.msra.mxu0 %v10562
        %10816 = vmatprep.subr.bf16.mxu0 0
        %10817 = vmatpush1.bf16.msra.mxu0 %v10563
        %10818 = vmatprep.subr.bf16.mxu0 0
        %10819 = vmatpush1.bf16.msra.mxu0 %v10564
        %10820 = vmatprep.subr.bf16.mxu0 0
        %10821 = vmatpush1.bf16.msra.mxu0 %v10565
        %10822 = vmatprep.subr.bf16.mxu0 0
        %10823 = vmatpush1.bf16.msra.mxu0 %v10566
        %10824 = vmatprep.subr.bf16.mxu0 0
        %10825 = vmatpush1.bf16.msra.mxu0 %v10567
        %10826 = vmatprep.subr.bf16.mxu0 0
        %10827 = vmatpush1.bf16.msra.mxu0 %v10568
        %10828 = vmatprep.subr.bf16.mxu0 0
        %10829 = vmatpush1.bf16.msra.mxu0 %v10569
        %10830 = vmatprep.subr.bf16.mxu0 0
        %10831 = vmatpush1.bf16.msra.mxu0 %v10570
        %10832 = vmatprep.subr.bf16.mxu0 0
        %10833 = vmatpush1.bf16.msra.mxu0 %v10571
        %10834 = vmatprep.subr.bf16.mxu0 0
        %10835 = vmatpush1.bf16.msra.mxu0 %v10572
        %10836 = vmatprep.mubr.bf16.mxu0 %v9928
        %10837 = vmatmul.mubr.bf16.gmra.mrb[0].mxu0 %v9927
        %v10838 = vpop.f32.mrb[0].mxu0
        %v10839 = vadd.f32 %v10799, %v10838
        %v10840 = vpop.f32.mrb[0].mxu0
        %v10841 = vpop.f32.mrb[0].mxu0
        %v10842 = vpop.f32.mrb[0].mxu0
        %10843 = vdwg.mxu0
        %10844 = vmatprep.subr.bf16.mxu0 0
        %10845 = vmatpush1.bf16.msra.mxu0 %v10573
        %10846 = vmatprep.subr.bf16.mxu0 0
        %10847 = vmatpush1.bf16.msra.mxu0 %v10574
        %10848 = vmatprep.subr.bf16.mxu0 0
        %10849 = vmatpush1.bf16.msra.mxu0 %v10575
        %10850 = vmatprep.subr.bf16.mxu0 0
        %10851 = vmatpush1.bf16.msra.mxu0 %v10576
        %10852 = vmatprep.subr.bf16.mxu0 0
        %10853 = vmatpush1.bf16.msra.mxu0 %v10577
        %10854 = vmatprep.subr.bf16.mxu0 0
        %10855 = vmatpush1.bf16.msra.mxu0 %v10578
        %10856 = vmatprep.subr.bf16.mxu0 0
        %10857 = vmatpush1.bf16.msra.mxu0 %v10579
        %10858 = vmatprep.subr.bf16.mxu0 0
        %10859 = vmatpush1.bf16.msra.mxu0 %v10580
        %10860 = vmatprep.subr.bf16.mxu0 0
        %10861 = vmatpush1.bf16.msra.mxu0 %v10581
        %10862 = vmatprep.subr.bf16.mxu0 0
        %10863 = vmatpush1.bf16.msra.mxu0 %v10582
        %10864 = vmatprep.subr.bf16.mxu0 0
        %10865 = vmatpush1.bf16.msra.mxu0 %v10583
        %10866 = vmatprep.subr.bf16.mxu0 0
        %10867 = vmatpush1.bf16.msra.mxu0 %v10584
        %10868 = vmatprep.subr.bf16.mxu0 0
        %10869 = vmatpush1.bf16.msra.mxu0 %v10585
        %10870 = vmatprep.subr.bf16.mxu0 0
        %10871 = vmatpush1.bf16.msra.mxu0 %v10586
        %10872 = vmatprep.subr.bf16.mxu0 0
        %10873 = vmatpush1.bf16.msra.mxu0 %v10587
        %10874 = vmatprep.subr.bf16.mxu0 0
        %10875 = vmatpush1.bf16.msra.mxu0 %v10588
        %10876 = vmatprep.mubr.bf16.mxu0 %v9930
        %10877 = vmatmul.mubr.bf16.gmra.mrb[0].mxu0 %v9929
        %v10878 = vpop.f32.mrb[0].mxu0
        %v10879 = vadd.f32 %v10839, %v10878
        %v10880 = vpop.f32.mrb[0].mxu0
        %v10881 = vpop.f32.mrb[0].mxu0
        %v10882 = vpop.f32.mrb[0].mxu0
        %10883 = vdwg.mxu0
        %10884 = vmatprep.subr.bf16.mxu0 0
        %10885 = vmatpush1.bf16.msra.mxu0 %v10589
        %10886 = vmatprep.subr.bf16.mxu0 0
        %10887 = vmatpush1.bf16.msra.mxu0 %v10590
        %10888 = vmatprep.subr.bf16.mxu0 0
        %10889 = vmatpush1.bf16.msra.mxu0 %v10591
        %10890 = vmatprep.subr.bf16.mxu0 0
        %10891 = vmatpush1.bf16.msra.mxu0 %v10592
        %10892 = vmatprep.subr.bf16.mxu0 0
        %10893 = vmatpush1.bf16.msra.mxu0 %v10593
        %10894 = vmatprep.subr.bf16.mxu0 0
        %10895 = vmatpush1.bf16.msra.mxu0 %v10594
        %10896 = vmatprep.subr.bf16.mxu0 0
        %10897 = vmatpush1.bf16.msra.mxu0 %v10595
        %10898 = vmatprep.subr.bf16.mxu0 0
        %10899 = vmatpush1.bf16.msra.mxu0 %v10596
        %10900 = vmatprep.subr.bf16.mxu0 0
        %10901 = vmatpush1.bf16.msra.mxu0 %v10597
        %10902 = vmatprep.subr.bf16.mxu0 0
        %10903 = vmatpush1.bf16.msra.mxu0 %v10598
        %10904 = vmatprep.subr.bf16.mxu0 0
        %10905 = vmatpush1.bf16.msra.mxu0 %v10599
        %10906 = vmatprep.subr.bf16.mxu0 0
        %10907 = vmatpush1.bf16.msra.mxu0 %v10600
        %10908 = vmatprep.subr.bf16.mxu0 0
        %10909 = vmatpush1.bf16.msra.mxu0 %v10601
        %10910 = vmatprep.subr.bf16.mxu0 0
        %10911 = vmatpush1.bf16.msra.mxu0 %v10602
        %10912 = vmatprep.subr.bf16.mxu0 0
        %10913 = vmatpush1.bf16.msra.mxu0 %v10603
        %10914 = vmatprep.subr.bf16.mxu0 0
        %10915 = vmatpush1.bf16.msra.mxu0 %v10604
        %10916 = vmatprep.mubr.bf16.mxu0 %v9932
        %10917 = vmatmul.mubr.bf16.gmra.mrb[0].mxu0 %v9931
        %v10918 = vpop.f32.mrb[0].mxu0
        %v10919 = vadd.f32 %v10879, %v10918
        %v10920 = vpop.f32.mrb[0].mxu0
        %v10921 = vpop.f32.mrb[0].mxu0
        %v10922 = vpop.f32.mrb[0].mxu0
        %10923 = vdwg.mxu0
        %10924 = vmatprep.subr.bf16.mxu0 0
        %10925 = vmatpush1.bf16.msra.mxu0 %v10605
        %10926 = vmatprep.subr.bf16.mxu0 0
        %10927 = vmatpush1.bf16.msra.mxu0 %v10606
        %10928 = vmatprep.subr.bf16.mxu0 0
        %10929 = vmatpush1.bf16.msra.mxu0 %v10607
        %10930 = vmatprep.subr.bf16.mxu0 0
        %10931 = vmatpush1.bf16.msra.mxu0 %v10608
        %10932 = vmatprep.subr.bf16.mxu0 0
        %10933 = vmatpush1.bf16.msra.mxu0 %v10609
        %10934 = vmatprep.subr.bf16.mxu0 0
        %10935 = vmatpush1.bf16.msra.mxu0 %v10610
        %10936 = vmatprep.subr.bf16.mxu0 0
        %10937 = vmatpush1.bf16.msra.mxu0 %v10611
        %10938 = vmatprep.subr.bf16.mxu0 0
        %10939 = vmatpush1.bf16.msra.mxu0 %v10612
        %10940 = vmatprep.subr.bf16.mxu0 0
        %10941 = vmatpush1.bf16.msra.mxu0 %v10613
        %10942 = vmatprep.subr.bf16.mxu0 0
        %10943 = vmatpush1.bf16.msra.mxu0 %v10614
        %10944 = vmatprep.subr.bf16.mxu0 0
        %10945 = vmatpush1.bf16.msra.mxu0 %v10615
        %10946 = vmatprep.subr.bf16.mxu0 0
        %10947 = vmatpush1.bf16.msra.mxu0 %v10616
        %10948 = vmatprep.subr.bf16.mxu0 0
        %10949 = vmatpush1.bf16.msra.mxu0 %v10617
        %10950 = vmatprep.subr.bf16.mxu0 0
        %10951 = vmatpush1.bf16.msra.mxu0 %v10618
        %10952 = vmatprep.subr.bf16.mxu0 0
        %10953 = vmatpush1.bf16.msra.mxu0 %v10619
        %10954 = vmatprep.subr.bf16.mxu0 0
        %10955 = vmatpush1.bf16.msra.mxu0 %v10620
        %10956 = vmatprep.mubr.bf16.mxu0 %v9934
        %10957 = vmatmul.mubr.bf16.gmra.mrb[0].mxu0 %v9933
        %v10958 = vpop.f32.mrb[0].mxu0
        %v10959 = vadd.f32 %v10919, %v10958
        %v10960 = vpop.f32.mrb[0].mxu0
        %v10961 = vpop.f32.mrb[0].mxu0
        %v10962 = vpop.f32.mrb[0].mxu0
        %10963 = vdwg.mxu0
        %10964 = vmatprep.subr.bf16.mxu0 0
        %10965 = vmatpush1.bf16.msra.mxu0 %v10621
        %10966 = vmatprep.subr.bf16.mxu0 0
        %10967 = vmatpush1.bf16.msra.mxu0 %v10622
        %10968 = vmatprep.subr.bf16.mxu0 0
        %10969 = vmatpush1.bf16.msra.mxu0 0
        %10970 = vmatprep.subr.bf16.mxu0 0
        %10971 = vmatpush1.bf16.msra.mxu0 0
        %10972 = vmatprep.subr.bf16.mxu0 0
        %10973 = vmatpush1.bf16.msra.mxu0 0
        %10974 = vmatprep.subr.bf16.mxu0 0
        %10975 = vmatpush1.bf16.msra.mxu0 0
        %10976 = vmatprep.subr.bf16.mxu0 0
        %10977 = vmatpush1.bf16.msra.mxu0 0
        %10978 = vmatprep.subr.bf16.mxu0 0
        %10979 = vmatpush1.bf16.msra.mxu0 0
        %10980 = vmatprep.subr.bf16.mxu0 0
        %10981 = vmatpush1.bf16.msra.mxu0 0
        %10982 = vmatprep.subr.bf16.mxu0 0
        %10983 = vmatpush1.bf16.msra.mxu0 0
        %10984 = vmatprep.subr.bf16.mxu0 0
        %10985 = vmatpush1.bf16.msra.mxu0 0
        %10986 = vmatprep.subr.bf16.mxu0 0
        %10987 = vmatpush1.bf16.msra.mxu0 0
        %10988 = vmatprep.subr.bf16.mxu0 0
        %10989 = vmatpush1.bf16.msra.mxu0 0
        %10990 = vmatprep.subr.bf16.mxu0 0
        %10991 = vmatpush1.bf16.msra.mxu0 0
        %10992 = vmatprep.subr.bf16.mxu0 0
        %10993 = vmatpush1.bf16.msra.mxu0 0
        %10994 = vmatprep.subr.bf16.mxu0 0
        %10995 = vmatpush1.bf16.msra.mxu0 0
        %10996 = vmatprep.mubr.bf16.mxu0 0
        %10997 = vmatmul.mubr.bf16.gmra.mrb[0].mxu0 %v10722
        %v10998 = vpop.f32.mrb[0].mxu0
        %v10999 = vadd.f32 %v10959, %v10998
        %v11000 = vpop.f32.mrb[0].mxu0
        %v11001 = vpop.f32.mrb[0].mxu0
        %v11002 = vpop.f32.mrb[0].mxu0
        %11003 = vdwg.mxu0
        %vm11004 = vcmask 73728
        %11005 = vst.msk [vmem:[%s337] sm:$0x1] %vm11004, %v10999
        %s11006 = sand.u32 %s184, 1
        %s11007 = scalar_lea.sflag [#allocation6], %s11006
        %s11008 = sand.u32 %s184, 1
        %s11009 = scalar_lea.vmem [#allocation13], %s11008
        // Predicated region
        $region69: #{cnn_forward.1} parent=47 // pred_check
          %p11010 = pneg %p194
        $region70: #{cnn_forward.1} parent=47 // pred_check_branch
          %11012 = sbr.rel (%p11010) target = $region72
        $region71: #{cnn_forward.1} parent=47 // pred_region
          %s11014 = ssub.s32 16, 16
          %11015 = vsyncadd %s11007, %s11014
          %s11016 = smul.addr %s24, 16
          %s11017 = scalar_lea.hbm %s7, %s11016
          %s11019 = sshll.u32 %s11009, 4
          %s11020 = int_to_ptr.vmem [resolvable:$true] %s11019
          %11022 = dma.vmem_to_hbm [thread:$0]  %s11020, 16, %s11017, %s11007
        $region72: #{cnn_forward.1} parent=47 // pred_fallthru
          _
      $region48: #{cnn_forward.1} parent=5 // pred_fallthru
        _
      %p11023 = scmp.le.s32.totalorder 2, %s19
      // Predicated region
      $region73: #{cnn_forward.1} parent=5 // pred_check
        %p11024 = pneg %p11023
      $region74: #{cnn_forward.1} parent=5 // pred_check_branch
        %11026 = sbr.rel (%p11024) target = $region76
      $region75: #{cnn_forward.1} parent=5 // pred_region
        %s11027 = ssub.s32 %s19, 2
        // Predicated region
        $region77: #{cnn_forward.1} parent=75 // pred_check
          %p11028 = pneg %p200
        $region78: #{cnn_forward.1} parent=75 // pred_check_branch
          %11030 = sbr.rel (%p11028) target = $region80
        $region79: #{cnn_forward.1} parent=75 // pred_region
          %s11031 = sand.u32 %s185, 1
          %s11032 = scalar_lea.sflag [#allocation6], %s11031
          %s11033 = sand.u32 %s185, 1
          %s11034 = scalar_lea.vmem [#allocation13], %s11033
          %11035 = dma.done %s11032, 16
        $region80: #{cnn_forward.1} parent=75 // pred_fallthru
          _
      $region76: #{cnn_forward.1} parent=5 // pred_fallthru
        _
    $region6: #{cnn_forward.1} parent=1 // loop_footer
      %s23 = sadd.s32 1, %s19
    $region7: #{cnn_forward.1} parent=1 // loop_footer_branch
      %18 = sbr.rel target = $region3
    $region8: #{cnn_forward.1} parent=1 // loop_exit
      _
    %11036 = vsyncpa [#allocation5], 1
    %s11037 = scalar_lea.sflag [#allocation5], 1
    %11038 = vsyncpa %s11037, 1
    %11039 = vsyncpa [#allocation8], 1
    %11040 = vsyncpa [#allocation11], 1
    %11041 = vsyncpa [#allocation6], 1
    %s11042 = scalar_lea.sflag [#allocation6], 1
    %11043 = vsyncpa %s11042, 1

</llo_original>
